<compile_context>
chip_gen: v7x
topology: tpu7x:2x2x1
jax: 0.10.0
libtpu: 0.0.40
codegen_flags: <defaults>
</compile_context>

<pallas_src>
import math
from functools import partial

import jax
import jax.numpy as jnp
from jax import lax
from jax.experimental import pallas as pl
from jax.experimental.pallas import tpu as pltpu

HIDDEN = 128  # fixed by the module: nn.LSTM(input_dim, 128, 3, bidirectional=True)


def _gelu_exact(x):
    # PyTorch F.gelu default ('none') = exact erf-based GELU
    return 0.5 * x * (1.0 + lax.erf(x * (1.0 / math.sqrt(2.0))))


# ---------------------------------------------------------------------------
# Fused per-layer bidirectional LSTM kernel.
#   grid = (2,) over direction d (0=forward, 1=backward), marked "parallel".
#   x_ref   : (T, Bp, Din)   time-major activations (same block for both d)
#   wih_ref : (1, Din, 4H)   this direction's input weights (stored transposed)
#   whh_ref : (1, H, 4H)     this direction's recurrent weights (stored transposed)
#   b_ref   : (1, 1, 4H)     b_ih + b_hh for this direction
#   out_ref : (T, Bp, H)     this direction's half of the (T, Bp, 2H) output
# ---------------------------------------------------------------------------
def lstm_layer_kernel(x_ref, wih_ref, whh_ref, b_ref, out_ref, gx_scr, whh_bf):
    T, Bp, Din = x_ref.shape
    H = whh_ref.shape[1]
    d = pl.program_id(0)

    # Input projection for all timesteps at once (off the sequential chain),
    # kept VMEM-resident in gx_scr (no HBM round trip).
    x2 = x_ref[...].reshape(T * Bp, Din).astype(jnp.bfloat16)
    gx = jnp.dot(x2, wih_ref[0].astype(jnp.bfloat16),
                 preferred_element_type=jnp.float32) + b_ref[0]
    gx_scr[...] = gx.reshape(T, Bp, 4 * H)

    # Stage the recurrent weight once in bf16 (read from VMEM every step).
    whh_bf[...] = whh_ref[0].astype(jnp.bfloat16)

    def step(t, h, c):
        # forward direction walks t upward; backward reads/writes index T-1-t
        idx = jnp.where(d == 0, t, T - 1 - t)
        gates = gx_scr[idx] + jnp.dot(h.astype(jnp.bfloat16), whh_bf[...],
                                      preferred_element_type=jnp.float32)
        # PyTorch gate order: i, f, g, o
        i = jax.nn.sigmoid(gates[:, 0 * H:1 * H])
        f = jax.nn.sigmoid(gates[:, 1 * H:2 * H])
        g = jnp.tanh(gates[:, 2 * H:3 * H])
        o = jax.nn.sigmoid(gates[:, 3 * H:4 * H])
        c = f * c + i * g
        h = o * jnp.tanh(c)
        out_ref[idx] = h
        return h, c

    h = jnp.zeros((Bp, H), jnp.float32)
    c = jnp.zeros((Bp, H), jnp.float32)
    if T <= 32:
        # Fully unrolled: lets the scheduler overlap step t+1's MXU push with
        # step t's EUP/VPU gate math.
        for t in range(T):
            h, c = step(t, h, c)
    else:
        # TODO(synk): chunk-unroll (e.g. by 4) for very long sequences.
        lax.fori_loop(0, T, lambda t, hc: step(t, *hc), (h, c))


def lstm_layer(x_tm, wih, whh, b):
    # x_tm: (T, Bp, Din); wih: (2, Din, 4H); whh: (2, H, 4H); b: (2, 1, 4H)
    T, Bp, Din = x_tm.shape
    H = whh.shape[1]
    return pl.pallas_call(
        lstm_layer_kernel,
        out_shape=jax.ShapeDtypeStruct((T, Bp, 2 * H), jnp.float32),
        grid_spec=pltpu.PrefetchScalarGridSpec(
            num_scalar_prefetch=0,
            grid=(2,),
            in_specs=[
                pl.BlockSpec((T, Bp, Din), lambda d: (0, 0, 0)),
                pl.BlockSpec((1, Din, 4 * H), lambda d: (d, 0, 0)),
                pl.BlockSpec((1, H, 4 * H), lambda d: (d, 0, 0)),
                pl.BlockSpec((1, 1, 4 * H), lambda d: (d, 0, 0)),
            ],
            out_specs=pl.BlockSpec((T, Bp, H), lambda d: (0, 0, d)),
            scratch_shapes=[
                pltpu.VMEM((T, Bp, 4 * H), jnp.float32),   # gx (input projection)
                pltpu.VMEM((H, 4 * H), jnp.bfloat16),      # bf16 staged W_hh
            ],
        ),
        compiler_params=pltpu.CompilerParams(
            dimension_semantics=("parallel",)),  # fwd/bwd on separate TCs on v7x
    )(x_tm, wih, whh, b)


# ---------------------------------------------------------------------------
# Fused heads kernel: value MLP + classifier, lane-padded final projections.
#   x_ref   : (T, Bp, 2H) time-major LSTM output
#   outputs : v_out (T, Bp, 128) [value in lane 0], c_out (Bp, 128) [first output_dim lanes]
# ---------------------------------------------------------------------------
def heads_kernel(x_ref, w1_ref, b1_ref, w2_ref, b2_ref, wv_ref, bv_ref,
                 wfc_ref, bfc_ref, wcl_ref, bcl_ref, v_out_ref, c_out_ref):
    T, Bp, D2 = x_ref.shape
    x32 = x_ref[...]                                   # f32 (T, Bp, 2H)

    # ---- value head: per-timestep MLP (fc1+gelu, fc2+gelu, value) ----
    xf = x32.reshape(T * Bp, D2).astype(jnp.bfloat16)
    h1 = _gelu_exact(jnp.dot(xf, w1_ref[...].astype(jnp.bfloat16),
                             preferred_element_type=jnp.float32) + b1_ref[...])
    h2 = _gelu_exact(jnp.dot(h1.astype(jnp.bfloat16), w2_ref[...].astype(jnp.bfloat16),
                             preferred_element_type=jnp.float32) + b2_ref[...])
    v = jnp.dot(h2.astype(jnp.bfloat16), wv_ref[...].astype(jnp.bfloat16),
                preferred_element_type=jnp.float32) + bv_ref[...]
    v_out_ref[...] = v.reshape(T, Bp, v_out_ref.shape[-1])

    # ---- classifier head: x.reshape(B, T*2H) @ Wfc == sum_t x[t] @ Wfc[t] ----
    # TODO(synk): K-tile this matmul over T (grid + f32 accumulator) for very large seq_len
    # so the (seq_len*2H, 64) weight never has to be VMEM-resident in one shot.
    acc = jnp.zeros((Bp, wfc_ref.shape[-1]), jnp.float32)
    for t in range(T):
        acc = acc + jnp.dot(x32[t].astype(jnp.bfloat16),
                            wfc_ref[t].astype(jnp.bfloat16),
                            preferred_element_type=jnp.float32)
    cg = _gelu_exact(acc + bfc_ref[...])
    c = jnp.dot(cg.astype(jnp.bfloat16), wcl_ref[...].astype(jnp.bfloat16),
                preferred_element_type=jnp.float32) + bcl_ref[...]
    c_out_ref[...] = c


def heads(x_tm, params):
    T, Bp, _ = x_tm.shape
    w1, b1 = params["value_fc1"]
    w2, b2 = params["value_fc2"]
    wv, bv = params["value"]
    wfc, bfc = params["classifier_fc"]
    wcl, bcl = params["classifier"]
    return pl.pallas_call(
        heads_kernel,
        out_shape=(jax.ShapeDtypeStruct((T, Bp, wv.shape[1]), jnp.float32),
                   jax.ShapeDtypeStruct((Bp, wcl.shape[1]), jnp.float32)),
    )(x_tm, w1, b1, w2, b2, wv, bv, wfc, bfc, wcl, bcl)


# ---------------------------------------------------------------------------
# Parameter initialization (deterministic, PyTorch-style uniform bounds),
# stored directly in kernel-friendly (stacked / transposed / lane-padded) layout.
# ---------------------------------------------------------------------------
def init_params(key, input_dim, output_dim, seq_len):
    H = HIDDEN
    keys = iter(jax.random.split(key, 40))

    def u(shape, fan_in):
        bound = 1.0 / math.sqrt(fan_in)
        return jax.random.uniform(next(keys), shape, jnp.float32, -bound, bound)

    lstm = []
    for layer in range(3):
        din = input_dim if layer == 0 else 2 * H
        wih = u((2, din, 4 * H), H)                       # (dir, in, 4H) stored transposed
        whh = u((2, H, 4 * H), H)                         # (dir, H, 4H) stored transposed
        b = u((2, 1, 4 * H), H) + u((2, 1, 4 * H), H)     # b_ih + b_hh combined
        lstm.append((wih, whh, b))

    w1 = u((2 * H, 256), 2 * H); b1 = u((1, 256), 2 * H)
    w2 = u((256, 128), 256);     b2 = u((1, 128), 256)
    wv = u((128, 1), 128);       bv = u((1, 1), 128)
    # lane-pad the N=1 value projection to 128 (unmasked stores; sliced in wrapper)
    wv_pad = jnp.zeros((128, 128), jnp.float32).at[:, :1].set(wv)
    bv_pad = jnp.zeros((1, 128), jnp.float32).at[:, :1].set(bv)

    wfc = u((seq_len, 2 * H, 64), 2 * H * seq_len)        # reshape of (seq_len*2H, 64)
    bfc = u((1, 64), 2 * H * seq_len)
    wcl = u((64, output_dim), 64); bcl = u((1, output_dim), 64)
    # lane-pad the N=output_dim classifier projection to 128
    wcl_pad = jnp.zeros((64, 128), jnp.float32).at[:, :output_dim].set(wcl)
    bcl_pad = jnp.zeros((1, 128), jnp.float32).at[:, :output_dim].set(bcl)

    return {
        "lstm": lstm,
        "value_fc1": (w1, b1),
        "value_fc2": (w2, b2),
        "value": (wv_pad, bv_pad),
        "classifier_fc": (wfc, bfc),
        "classifier": (wcl_pad, bcl_pad),
    }


# ---------------------------------------------------------------------------
# Forward pass (matches CriticClassifierNet.forward, eval semantics)
# ---------------------------------------------------------------------------
@partial(jax.jit, static_argnames=("output_dim",))
def critic_classifier_forward(params, state, *, output_dim):
    B, T, _ = state.shape
    Bp = ((B + 7) // 8) * 8                                # pad batch to full (8,128) sublanes

    x = jnp.transpose(state, (1, 0, 2))                    # time-major (T, B, Din)
    if Bp != B:
        x = jnp.pad(x, ((0, 0), (0, Bp - B), (0, 0)))

    for (wih, whh, b) in params["lstm"]:
        x = lstm_layer(x, wih, whh, b)                     # (T, Bp, 2H) fwd|bwd concat
        # TODO(synk): inter-layer LSTM dropout(0.25) only active in training; identity here (eval).

    # TODO(synk): nn.Dropout(0.5) constructed inside forward is stochastic; applied as identity (eval).
    v_pad, c_pad = heads(x, params)                        # (T, Bp, 128), (Bp, 128)

    value = jnp.transpose(v_pad[:, :B, :1], (1, 0, 2))     # (B, T, 1)
    classifier = c_pad[:B, :output_dim]                    # (B, output_dim)
    return value, classifier


if __name__ == "__main__":
    B, T, input_dim, output_dim = 2, 8, 16, 4
    key = jax.random.PRNGKey(0)
    pkey, xkey = jax.random.split(key)
    params = init_params(pkey, input_dim, output_dim, T)
    state = jax.random.normal(xkey, (B, T, input_dim), jnp.float32)

    value, classifier = critic_classifier_forward(params, state, output_dim=output_dim)
    jax.block_until_ready((value, classifier))

    assert value.shape == (B, T, 1), value.shape
    assert classifier.shape == (B, output_dim), classifier.shape
    assert jnp.all(jnp.isfinite(value)) and jnp.all(jnp.isfinite(classifier))
    print("KERNEL_OK")
</pallas_src>

<mosaic_0001>
module attributes {stable_mosaic.version = 11 : i64} {
  func.func @lstm_layer_kernel(%arg0: i32, %arg1: memref<8x8x16xf32, #tpu.memory_space<vmem>>, %arg2: memref<1x16x512xf32, #tpu.memory_space<vmem>>, %arg3: memref<1x128x512xf32, #tpu.memory_space<vmem>>, %arg4: memref<1x1x512xf32, #tpu.memory_space<vmem>>, %arg5: memref<8x8x128xf32, #tpu.memory_space<vmem>>, %arg6: memref<8x8x512xf32, #tpu.memory_space<vmem>>, %arg7: memref<128x512xbf16, #tpu.memory_space<vmem>>) attributes {dimension_semantics = [#tpu.dimension_semantics<parallel>], iteration_bounds = array<i64: 2>, scalar_prefetch = 0 : i64, scratch_operands = 2 : i64, tpu.core_type = #tpu.core_type<tc>, window_params = [{pipeline_mode = #tpu.pipeline_mode<synchronous>, transform_indices = @transform_0, window_bounds = array<i64: 8, 8, 16>}, {transform_indices = @transform_1, window_bounds = array<i64: 1, 16, 512>}, {transform_indices = @transform_2, window_bounds = array<i64: 1, 128, 512>}, {transform_indices = @transform_3, window_bounds = array<i64: 1, 1, 512>}, {transform_indices = @transform_4, window_bounds = array<i64: 8, 8, 128>}]} {
    %c0 = arith.constant 0 : index
    %c0_0 = arith.constant 0 : index
    %c0_1 = arith.constant 0 : index
    %0 = vector.load %arg1[%c0, %c0_0, %c0_1] : memref<8x8x16xf32, #tpu.memory_space<vmem>>, vector<8x8x16xf32>
    %1 = vector.shape_cast %0 : vector<8x8x16xf32> to vector<64x16xf32>
    %2 = arith.truncf %1 : vector<64x16xf32> to vector<64x16xbf16>
    %c0_2 = arith.constant 0 : index
    %c0_3 = arith.constant 0 : index
    %c0_4 = arith.constant 0 : index
    %3 = vector.load %arg2[%c0_2, %c0_3, %c0_4] : memref<1x16x512xf32, #tpu.memory_space<vmem>>, vector<1x16x512xf32>
    %4 = vector.shape_cast %3 : vector<1x16x512xf32> to vector<16x512xf32>
    %5 = arith.truncf %4 : vector<16x512xf32> to vector<16x512xbf16>
    %cst = arith.constant dense<0.000000e+00> : vector<64x512xf32>
    %6 = tpu.matmul %2, %5, %cst {dimension_numbers = #tpu.dot_dimension_numbers<[1], [0], [0], [1], [0, 0, 1, 1], [], []>} : vector<64x16xbf16>, vector<16x512xbf16>, vector<64x512xf32> -> vector<64x512xf32>
    %c0_5 = arith.constant 0 : index
    %c0_6 = arith.constant 0 : index
    %c0_7 = arith.constant 0 : index
    %7 = vector.load %arg4[%c0_5, %c0_6, %c0_7] : memref<1x1x512xf32, #tpu.memory_space<vmem>>, vector<1x1x512xf32>
    %8 = vector.shape_cast %7 : vector<1x1x512xf32> to vector<1x512xf32>
    %9 = vector.broadcast %8 : vector<1x512xf32> to vector<64x512xf32>
    %10 = arith.addf %6, %9 : vector<64x512xf32>
    %11 = vector.shape_cast %10 : vector<64x512xf32> to vector<8x8x512xf32>
    %c0_8 = arith.constant 0 : index
    %c0_9 = arith.constant 0 : index
    %c0_10 = arith.constant 0 : index
    %12 = vector.load %arg6[%c0_8, %c0_9, %c0_10] : memref<8x8x512xf32, #tpu.memory_space<vmem>>, vector<8x8x512xf32>
    tpu.vector_store %arg6[%c0_8, %c0_9, %c0_10], %11 {strides = array<i32>} : memref<8x8x512xf32, #tpu.memory_space<vmem>>, vector<8x8x512xf32>,
    %c0_11 = arith.constant 0 : index
    %c0_12 = arith.constant 0 : index
    %c0_13 = arith.constant 0 : index
    %13 = vector.load %arg3[%c0_11, %c0_12, %c0_13] : memref<1x128x512xf32, #tpu.memory_space<vmem>>, vector<1x128x512xf32>
    %14 = vector.shape_cast %13 : vector<1x128x512xf32> to vector<128x512xf32>
    %15 = arith.truncf %14 : vector<128x512xf32> to vector<128x512xbf16>
    %c0_14 = arith.constant 0 : index
    %c0_15 = arith.constant 0 : index
    %16 = vector.load %arg7[%c0_14, %c0_15] : memref<128x512xbf16, #tpu.memory_space<vmem>>, vector<128x512xbf16>
    tpu.vector_store %arg7[%c0_14, %c0_15], %15 {strides = array<i32>} : memref<128x512xbf16, #tpu.memory_space<vmem>>, vector<128x512xbf16>,
    %cst_16 = arith.constant 0.000000e+00 : f32
    %17 = vector.broadcast %cst_16 : f32 to vector<8x128xf32>
    %cst_17 = arith.constant 0.000000e+00 : f32
    %18 = vector.broadcast %cst_17 : f32 to vector<8x128xf32>
    %c0_i32 = arith.constant 0 : i32
    %19 = arith.cmpi eq, %arg0, %c0_i32 : i32
    %c0_i32_18 = arith.constant 0 : i32
    %c7_i32 = arith.constant 7 : i32
    %20 = arith.select %19, %c0_i32_18, %c7_i32 : i32
    %21 = arith.index_cast %20 : i32 to index
    %c0_19 = arith.constant 0 : index
    %c0_20 = arith.constant 0 : index
    %22 = vector.load %arg6[%21, %c0_19, %c0_20] : memref<8x8x512xf32, #tpu.memory_space<vmem>>, vector<1x8x512xf32>
    %23 = vector.shape_cast %22 : vector<1x8x512xf32> to vector<8x512xf32>
    %24 = arith.truncf %17 : vector<8x128xf32> to vector<8x128xbf16>
    %c0_21 = arith.constant 0 : index
    %c0_22 = arith.constant 0 : index
    %25 = vector.load %arg7[%c0_21, %c0_22] : memref<128x512xbf16, #tpu.memory_space<vmem>>, vector<128x512xbf16>
    %cst_23 = arith.constant dense<0.000000e+00> : vector<8x512xf32>
    %26 = tpu.matmul %24, %25, %cst_23 {dimension_numbers = #tpu.dot_dimension_numbers<[1], [0], [0], [1], [0, 0, 1, 1], [], []>} : vector<8x128xbf16>, vector<128x512xbf16>, vector<8x512xf32> -> vector<8x512xf32>
    %27 = arith.addf %23, %26 : vector<8x512xf32>
    %28 = vector.extract_strided_slice %27 {offsets = [0, 0], sizes = [8, 128], strides = [1, 1]} : vector<8x512xf32> to vector<8x128xf32>
    %29 = arith.negf %28 : vector<8x128xf32>
    %30 = math.exp %29 : vector<8x128xf32>
    %cst_24 = arith.constant 1.000000e+00 : f32
    %31 = vector.broadcast %cst_24 : f32 to vector<8x128xf32>
    %32 = arith.addf %31, %30 : vector<8x128xf32>
    %33 = arith.divf %31, %32 : vector<8x128xf32>
    %34 = vector.extract_strided_slice %27 {offsets = [0, 128], sizes = [8, 128], strides = [1, 1]} : vector<8x512xf32> to vector<8x128xf32>
    %35 = arith.negf %34 : vector<8x128xf32>
    %36 = math.exp %35 : vector<8x128xf32>
    %cst_25 = arith.constant 1.000000e+00 : f32
    %37 = vector.broadcast %cst_25 : f32 to vector<8x128xf32>
    %38 = arith.addf %37, %36 : vector<8x128xf32>
    %39 = arith.divf %37, %38 : vector<8x128xf32>
    %40 = vector.extract_strided_slice %27 {offsets = [0, 256], sizes = [8, 128], strides = [1, 1]} : vector<8x512xf32> to vector<8x128xf32>
    %41 = math.tanh %40 : vector<8x128xf32>
    %42 = vector.extract_strided_slice %27 {offsets = [0, 384], sizes = [8, 128], strides = [1, 1]} : vector<8x512xf32> to vector<8x128xf32>
    %43 = arith.negf %42 : vector<8x128xf32>
    %44 = math.exp %43 : vector<8x128xf32>
    %cst_26 = arith.constant 1.000000e+00 : f32
    %45 = vector.broadcast %cst_26 : f32 to vector<8x128xf32>
    %46 = arith.addf %45, %44 : vector<8x128xf32>
    %47 = arith.divf %45, %46 : vector<8x128xf32>
    %48 = arith.mulf %39, %18 : vector<8x128xf32>
    %49 = arith.mulf %33, %41 : vector<8x128xf32>
    %50 = arith.addf %48, %49 : vector<8x128xf32>
    %51 = math.tanh %50 : vector<8x128xf32>
    %52 = arith.mulf %47, %51 : vector<8x128xf32>
    %53 = arith.index_cast %20 : i32 to index
    %c0_27 = arith.constant 0 : index
    %c0_28 = arith.constant 0 : index
    %54 = vector.load %arg5[%53, %c0_27, %c0_28] : memref<8x8x128xf32, #tpu.memory_space<vmem>>, vector<1x8x128xf32>
    %55 = vector.shape_cast %54 : vector<1x8x128xf32> to vector<8x128xf32>
    %56 = vector.shape_cast %52 : vector<8x128xf32> to vector<1x8x128xf32>
    tpu.vector_store %arg5[%53, %c0_27, %c0_28], %56 {strides = array<i32>} : memref<8x8x128xf32, #tpu.memory_space<vmem>>, vector<1x8x128xf32>,
    %c0_i32_29 = arith.constant 0 : i32
    %57 = arith.cmpi eq, %arg0, %c0_i32_29 : i32
    %c1_i32 = arith.constant 1 : i32
    %c6_i32 = arith.constant 6 : i32
    %58 = arith.select %57, %c1_i32, %c6_i32 : i32
    %59 = arith.index_cast %58 : i32 to index
    %c0_30 = arith.constant 0 : index
    %c0_31 = arith.constant 0 : index
    %60 = vector.load %arg6[%59, %c0_30, %c0_31] : memref<8x8x512xf32, #tpu.memory_space<vmem>>, vector<1x8x512xf32>
    %61 = vector.shape_cast %60 : vector<1x8x512xf32> to vector<8x512xf32>
    %62 = arith.truncf %52 : vector<8x128xf32> to vector<8x128xbf16>
    %c0_32 = arith.constant 0 : index
    %c0_33 = arith.constant 0 : index
    %63 = vector.load %arg7[%c0_32, %c0_33] : memref<128x512xbf16, #tpu.memory_space<vmem>>, vector<128x512xbf16>
    %cst_34 = arith.constant dense<0.000000e+00> : vector<8x512xf32>
    %64 = tpu.matmul %62, %63, %cst_34 {dimension_numbers = #tpu.dot_dimension_numbers<[1], [0], [0], [1], [0, 0, 1, 1], [], []>} : vector<8x128xbf16>, vector<128x512xbf16>, vector<8x512xf32> -> vector<8x512xf32>
    %65 = arith.addf %61, %64 : vector<8x512xf32>
    %66 = vector.extract_strided_slice %65 {offsets = [0, 0], sizes = [8, 128], strides = [1, 1]} : vector<8x512xf32> to vector<8x128xf32>
    %67 = arith.negf %66 : vector<8x128xf32>
    %68 = math.exp %67 : vector<8x128xf32>
    %cst_35 = arith.constant 1.000000e+00 : f32
    %69 = vector.broadcast %cst_35 : f32 to vector<8x128xf32>
    %70 = arith.addf %69, %68 : vector<8x128xf32>
    %71 = arith.divf %69, %70 : vector<8x128xf32>
    %72 = vector.extract_strided_slice %65 {offsets = [0, 128], sizes = [8, 128], strides = [1, 1]} : vector<8x512xf32> to vector<8x128xf32>
    %73 = arith.negf %72 : vector<8x128xf32>
    %74 = math.exp %73 : vector<8x128xf32>
    %cst_36 = arith.constant 1.000000e+00 : f32
    %75 = vector.broadcast %cst_36 : f32 to vector<8x128xf32>
    %76 = arith.addf %75, %74 : vector<8x128xf32>
    %77 = arith.divf %75, %76 : vector<8x128xf32>
    %78 = vector.extract_strided_slice %65 {offsets = [0, 256], sizes = [8, 128], strides = [1, 1]} : vector<8x512xf32> to vector<8x128xf32>
    %79 = math.tanh %78 : vector<8x128xf32>
    %80 = vector.extract_strided_slice %65 {offsets = [0, 384], sizes = [8, 128], strides = [1, 1]} : vector<8x512xf32> to vector<8x128xf32>
    %81 = arith.negf %80 : vector<8x128xf32>
    %82 = math.exp %81 : vector<8x128xf32>
    %cst_37 = arith.constant 1.000000e+00 : f32
    %83 = vector.broadcast %cst_37 : f32 to vector<8x128xf32>
    %84 = arith.addf %83, %82 : vector<8x128xf32>
    %85 = arith.divf %83, %84 : vector<8x128xf32>
    %86 = arith.mulf %77, %50 : vector<8x128xf32>
    %87 = arith.mulf %71, %79 : vector<8x128xf32>
    %88 = arith.addf %86, %87 : vector<8x128xf32>
    %89 = math.tanh %88 : vector<8x128xf32>
    %90 = arith.mulf %85, %89 : vector<8x128xf32>
    %91 = arith.index_cast %58 : i32 to index
    %c0_38 = arith.constant 0 : index
    %c0_39 = arith.constant 0 : index
    %92 = vector.load %arg5[%91, %c0_38, %c0_39] : memref<8x8x128xf32, #tpu.memory_space<vmem>>, vector<1x8x128xf32>
    %93 = vector.shape_cast %92 : vector<1x8x128xf32> to vector<8x128xf32>
    %94 = vector.shape_cast %90 : vector<8x128xf32> to vector<1x8x128xf32>
    tpu.vector_store %arg5[%91, %c0_38, %c0_39], %94 {strides = array<i32>} : memref<8x8x128xf32, #tpu.memory_space<vmem>>, vector<1x8x128xf32>,
    %c0_i32_40 = arith.constant 0 : i32
    %95 = arith.cmpi eq, %arg0, %c0_i32_40 : i32
    %c2_i32 = arith.constant 2 : i32
    %c5_i32 = arith.constant 5 : i32
    %96 = arith.select %95, %c2_i32, %c5_i32 : i32
    %97 = arith.index_cast %96 : i32 to index
    %c0_41 = arith.constant 0 : index
    %c0_42 = arith.constant 0 : index
    %98 = vector.load %arg6[%97, %c0_41, %c0_42] : memref<8x8x512xf32, #tpu.memory_space<vmem>>, vector<1x8x512xf32>
    %99 = vector.shape_cast %98 : vector<1x8x512xf32> to vector<8x512xf32>
    %100 = arith.truncf %90 : vector<8x128xf32> to vector<8x128xbf16>
    %c0_43 = arith.constant 0 : index
    %c0_44 = arith.constant 0 : index
    %101 = vector.load %arg7[%c0_43, %c0_44] : memref<128x512xbf16, #tpu.memory_space<vmem>>, vector<128x512xbf16>
    %cst_45 = arith.constant dense<0.000000e+00> : vector<8x512xf32>
    %102 = tpu.matmul %100, %101, %cst_45 {dimension_numbers = #tpu.dot_dimension_numbers<[1], [0], [0], [1], [0, 0, 1, 1], [], []>} : vector<8x128xbf16>, vector<128x512xbf16>, vector<8x512xf32> -> vector<8x512xf32>
    %103 = arith.addf %99, %102 : vector<8x512xf32>
    %104 = vector.extract_strided_slice %103 {offsets = [0, 0], sizes = [8, 128], strides = [1, 1]} : vector<8x512xf32> to vector<8x128xf32>
    %105 = arith.negf %104 : vector<8x128xf32>
    %106 = math.exp %105 : vector<8x128xf32>
    %cst_46 = arith.constant 1.000000e+00 : f32
    %107 = vector.broadcast %cst_46 : f32 to vector<8x128xf32>
    %108 = arith.addf %107, %106 : vector<8x128xf32>
    %109 = arith.divf %107, %108 : vector<8x128xf32>
    %110 = vector.extract_strided_slice %103 {offsets = [0, 128], sizes = [8, 128], strides = [1, 1]} : vector<8x512xf32> to vector<8x128xf32>
    %111 = arith.negf %110 : vector<8x128xf32>
    %112 = math.exp %111 : vector<8x128xf32>
    %cst_47 = arith.constant 1.000000e+00 : f32
    %113 = vector.broadcast %cst_47 : f32 to vector<8x128xf32>
    %114 = arith.addf %113, %112 : vector<8x128xf32>
    %115 = arith.divf %113, %114 : vector<8x128xf32>
    %116 = vector.extract_strided_slice %103 {offsets = [0, 256], sizes = [8, 128], strides = [1, 1]} : vector<8x512xf32> to vector<8x128xf32>
    %117 = math.tanh %116 : vector<8x128xf32>
    %118 = vector.extract_strided_slice %103 {offsets = [0, 384], sizes = [8, 128], strides = [1, 1]} : vector<8x512xf32> to vector<8x128xf32>
    %119 = arith.negf %118 : vector<8x128xf32>
    %120 = math.exp %119 : vector<8x128xf32>
    %cst_48 = arith.constant 1.000000e+00 : f32
    %121 = vector.broadcast %cst_48 : f32 to vector<8x128xf32>
    %122 = arith.addf %121, %120 : vector<8x128xf32>
    %123 = arith.divf %121, %122 : vector<8x128xf32>
    %124 = arith.mulf %115, %88 : vector<8x128xf32>
    %125 = arith.mulf %109, %117 : vector<8x128xf32>
    %126 = arith.addf %124, %125 : vector<8x128xf32>
    %127 = math.tanh %126 : vector<8x128xf32>
    %128 = arith.mulf %123, %127 : vector<8x128xf32>
    %129 = arith.index_cast %96 : i32 to index
    %c0_49 = arith.constant 0 : index
    %c0_50 = arith.constant 0 : index
    %130 = vector.load %arg5[%129, %c0_49, %c0_50] : memref<8x8x128xf32, #tpu.memory_space<vmem>>, vector<1x8x128xf32>
    %131 = vector.shape_cast %130 : vector<1x8x128xf32> to vector<8x128xf32>
    %132 = vector.shape_cast %128 : vector<8x128xf32> to vector<1x8x128xf32>
    tpu.vector_store %arg5[%129, %c0_49, %c0_50], %132 {strides = array<i32>} : memref<8x8x128xf32, #tpu.memory_space<vmem>>, vector<1x8x128xf32>,
    %c0_i32_51 = arith.constant 0 : i32
    %133 = arith.cmpi eq, %arg0, %c0_i32_51 : i32
    %c3_i32 = arith.constant 3 : i32
    %c4_i32 = arith.constant 4 : i32
    %134 = arith.select %133, %c3_i32, %c4_i32 : i32
    %135 = arith.index_cast %134 : i32 to index
    %c0_52 = arith.constant 0 : index
    %c0_53 = arith.constant 0 : index
    %136 = vector.load %arg6[%135, %c0_52, %c0_53] : memref<8x8x512xf32, #tpu.memory_space<vmem>>, vector<1x8x512xf32>
    %137 = vector.shape_cast %136 : vector<1x8x512xf32> to vector<8x512xf32>
    %138 = arith.truncf %128 : vector<8x128xf32> to vector<8x128xbf16>
    %c0_54 = arith.constant 0 : index
    %c0_55 = arith.constant 0 : index
    %139 = vector.load %arg7[%c0_54, %c0_55] : memref<128x512xbf16, #tpu.memory_space<vmem>>, vector<128x512xbf16>
    %cst_56 = arith.constant dense<0.000000e+00> : vector<8x512xf32>
    %140 = tpu.matmul %138, %139, %cst_56 {dimension_numbers = #tpu.dot_dimension_numbers<[1], [0], [0], [1], [0, 0, 1, 1], [], []>} : vector<8x128xbf16>, vector<128x512xbf16>, vector<8x512xf32> -> vector<8x512xf32>
    %141 = arith.addf %137, %140 : vector<8x512xf32>
    %142 = vector.extract_strided_slice %141 {offsets = [0, 0], sizes = [8, 128], strides = [1, 1]} : vector<8x512xf32> to vector<8x128xf32>
    %143 = arith.negf %142 : vector<8x128xf32>
    %144 = math.exp %143 : vector<8x128xf32>
    %cst_57 = arith.constant 1.000000e+00 : f32
    %145 = vector.broadcast %cst_57 : f32 to vector<8x128xf32>
    %146 = arith.addf %145, %144 : vector<8x128xf32>
    %147 = arith.divf %145, %146 : vector<8x128xf32>
    %148 = vector.extract_strided_slice %141 {offsets = [0, 128], sizes = [8, 128], strides = [1, 1]} : vector<8x512xf32> to vector<8x128xf32>
    %149 = arith.negf %148 : vector<8x128xf32>
    %150 = math.exp %149 : vector<8x128xf32>
    %cst_58 = arith.constant 1.000000e+00 : f32
    %151 = vector.broadcast %cst_58 : f32 to vector<8x128xf32>
    %152 = arith.addf %151, %150 : vector<8x128xf32>
    %153 = arith.divf %151, %152 : vector<8x128xf32>
    %154 = vector.extract_strided_slice %141 {offsets = [0, 256], sizes = [8, 128], strides = [1, 1]} : vector<8x512xf32> to vector<8x128xf32>
    %155 = math.tanh %154 : vector<8x128xf32>
    %156 = vector.extract_strided_slice %141 {offsets = [0, 384], sizes = [8, 128], strides = [1, 1]} : vector<8x512xf32> to vector<8x128xf32>
    %157 = arith.negf %156 : vector<8x128xf32>
    %158 = math.exp %157 : vector<8x128xf32>
    %cst_59 = arith.constant 1.000000e+00 : f32
    %159 = vector.broadcast %cst_59 : f32 to vector<8x128xf32>
    %160 = arith.addf %159, %158 : vector<8x128xf32>
    %161 = arith.divf %159, %160 : vector<8x128xf32>
    %162 = arith.mulf %153, %126 : vector<8x128xf32>
    %163 = arith.mulf %147, %155 : vector<8x128xf32>
    %164 = arith.addf %162, %163 : vector<8x128xf32>
    %165 = math.tanh %164 : vector<8x128xf32>
    %166 = arith.mulf %161, %165 : vector<8x128xf32>
    %167 = arith.index_cast %134 : i32 to index
    %c0_60 = arith.constant 0 : index
    %c0_61 = arith.constant 0 : index
    %168 = vector.load %arg5[%167, %c0_60, %c0_61] : memref<8x8x128xf32, #tpu.memory_space<vmem>>, vector<1x8x128xf32>
    %169 = vector.shape_cast %168 : vector<1x8x128xf32> to vector<8x128xf32>
    %170 = vector.shape_cast %166 : vector<8x128xf32> to vector<1x8x128xf32>
    tpu.vector_store %arg5[%167, %c0_60, %c0_61], %170 {strides = array<i32>} : memref<8x8x128xf32, #tpu.memory_space<vmem>>, vector<1x8x128xf32>,
    %c0_i32_62 = arith.constant 0 : i32
    %171 = arith.cmpi eq, %arg0, %c0_i32_62 : i32
    %c4_i32_63 = arith.constant 4 : i32
    %c3_i32_64 = arith.constant 3 : i32
    %172 = arith.select %171, %c4_i32_63, %c3_i32_64 : i32
    %173 = arith.index_cast %172 : i32 to index
    %c0_65 = arith.constant 0 : index
    %c0_66 = arith.constant 0 : index
    %174 = vector.load %arg6[%173, %c0_65, %c0_66] : memref<8x8x512xf32, #tpu.memory_space<vmem>>, vector<1x8x512xf32>
    %175 = vector.shape_cast %174 : vector<1x8x512xf32> to vector<8x512xf32>
    %176 = arith.truncf %166 : vector<8x128xf32> to vector<8x128xbf16>
    %c0_67 = arith.constant 0 : index
    %c0_68 = arith.constant 0 : index
    %177 = vector.load %arg7[%c0_67, %c0_68] : memref<128x512xbf16, #tpu.memory_space<vmem>>, vector<128x512xbf16>
    %cst_69 = arith.constant dense<0.000000e+00> : vector<8x512xf32>
    %178 = tpu.matmul %176, %177, %cst_69 {dimension_numbers = #tpu.dot_dimension_numbers<[1], [0], [0], [1], [0, 0, 1, 1], [], []>} : vector<8x128xbf16>, vector<128x512xbf16>, vector<8x512xf32> -> vector<8x512xf32>
    %179 = arith.addf %175, %178 : vector<8x512xf32>
    %180 = vector.extract_strided_slice %179 {offsets = [0, 0], sizes = [8, 128], strides = [1, 1]} : vector<8x512xf32> to vector<8x128xf32>
    %181 = arith.negf %180 : vector<8x128xf32>
    %182 = math.exp %181 : vector<8x128xf32>
    %cst_70 = arith.constant 1.000000e+00 : f32
    %183 = vector.broadcast %cst_70 : f32 to vector<8x128xf32>
    %184 = arith.addf %183, %182 : vector<8x128xf32>
    %185 = arith.divf %183, %184 : vector<8x128xf32>
    %186 = vector.extract_strided_slice %179 {offsets = [0, 128], sizes = [8, 128], strides = [1, 1]} : vector<8x512xf32> to vector<8x128xf32>
    %187 = arith.negf %186 : vector<8x128xf32>
    %188 = math.exp %187 : vector<8x128xf32>
    %cst_71 = arith.constant 1.000000e+00 : f32
    %189 = vector.broadcast %cst_71 : f32 to vector<8x128xf32>
    %190 = arith.addf %189, %188 : vector<8x128xf32>
    %191 = arith.divf %189, %190 : vector<8x128xf32>
    %192 = vector.extract_strided_slice %179 {offsets = [0, 256], sizes = [8, 128], strides = [1, 1]} : vector<8x512xf32> to vector<8x128xf32>
    %193 = math.tanh %192 : vector<8x128xf32>
    %194 = vector.extract_strided_slice %179 {offsets = [0, 384], sizes = [8, 128], strides = [1, 1]} : vector<8x512xf32> to vector<8x128xf32>
    %195 = arith.negf %194 : vector<8x128xf32>
    %196 = math.exp %195 : vector<8x128xf32>
    %cst_72 = arith.constant 1.000000e+00 : f32
    %197 = vector.broadcast %cst_72 : f32 to vector<8x128xf32>
    %198 = arith.addf %197, %196 : vector<8x128xf32>
    %199 = arith.divf %197, %198 : vector<8x128xf32>
    %200 = arith.mulf %191, %164 : vector<8x128xf32>
    %201 = arith.mulf %185, %193 : vector<8x128xf32>
    %202 = arith.addf %200, %201 : vector<8x128xf32>
    %203 = math.tanh %202 : vector<8x128xf32>
    %204 = arith.mulf %199, %203 : vector<8x128xf32>
    %205 = arith.index_cast %172 : i32 to index
    %c0_73 = arith.constant 0 : index
    %c0_74 = arith.constant 0 : index
    %206 = vector.load %arg5[%205, %c0_73, %c0_74] : memref<8x8x128xf32, #tpu.memory_space<vmem>>, vector<1x8x128xf32>
    %207 = vector.shape_cast %206 : vector<1x8x128xf32> to vector<8x128xf32>
    %208 = vector.shape_cast %204 : vector<8x128xf32> to vector<1x8x128xf32>
    tpu.vector_store %arg5[%205, %c0_73, %c0_74], %208 {strides = array<i32>} : memref<8x8x128xf32, #tpu.memory_space<vmem>>, vector<1x8x128xf32>,
    %c0_i32_75 = arith.constant 0 : i32
    %209 = arith.cmpi eq, %arg0, %c0_i32_75 : i32
    %c5_i32_76 = arith.constant 5 : i32
    %c2_i32_77 = arith.constant 2 : i32
    %210 = arith.select %209, %c5_i32_76, %c2_i32_77 : i32
    %211 = arith.index_cast %210 : i32 to index
    %c0_78 = arith.constant 0 : index
    %c0_79 = arith.constant 0 : index
    %212 = vector.load %arg6[%211, %c0_78, %c0_79] : memref<8x8x512xf32, #tpu.memory_space<vmem>>, vector<1x8x512xf32>
    %213 = vector.shape_cast %212 : vector<1x8x512xf32> to vector<8x512xf32>
    %214 = arith.truncf %204 : vector<8x128xf32> to vector<8x128xbf16>
    %c0_80 = arith.constant 0 : index
    %c0_81 = arith.constant 0 : index
    %215 = vector.load %arg7[%c0_80, %c0_81] : memref<128x512xbf16, #tpu.memory_space<vmem>>, vector<128x512xbf16>
    %cst_82 = arith.constant dense<0.000000e+00> : vector<8x512xf32>
    %216 = tpu.matmul %214, %215, %cst_82 {dimension_numbers = #tpu.dot_dimension_numbers<[1], [0], [0], [1], [0, 0, 1, 1], [], []>} : vector<8x128xbf16>, vector<128x512xbf16>, vector<8x512xf32> -> vector<8x512xf32>
    %217 = arith.addf %213, %216 : vector<8x512xf32>
    %218 = vector.extract_strided_slice %217 {offsets = [0, 0], sizes = [8, 128], strides = [1, 1]} : vector<8x512xf32> to vector<8x128xf32>
    %219 = arith.negf %218 : vector<8x128xf32>
    %220 = math.exp %219 : vector<8x128xf32>
    %cst_83 = arith.constant 1.000000e+00 : f32
    %221 = vector.broadcast %cst_83 : f32 to vector<8x128xf32>
    %222 = arith.addf %221, %220 : vector<8x128xf32>
    %223 = arith.divf %221, %222 : vector<8x128xf32>
    %224 = vector.extract_strided_slice %217 {offsets = [0, 128], sizes = [8, 128], strides = [1, 1]} : vector<8x512xf32> to vector<8x128xf32>
    %225 = arith.negf %224 : vector<8x128xf32>
    %226 = math.exp %225 : vector<8x128xf32>
    %cst_84 = arith.constant 1.000000e+00 : f32
    %227 = vector.broadcast %cst_84 : f32 to vector<8x128xf32>
    %228 = arith.addf %227, %226 : vector<8x128xf32>
    %229 = arith.divf %227, %228 : vector<8x128xf32>
    %230 = vector.extract_strided_slice %217 {offsets = [0, 256], sizes = [8, 128], strides = [1, 1]} : vector<8x512xf32> to vector<8x128xf32>
    %231 = math.tanh %230 : vector<8x128xf32>
    %232 = vector.extract_strided_slice %217 {offsets = [0, 384], sizes = [8, 128], strides = [1, 1]} : vector<8x512xf32> to vector<8x128xf32>
    %233 = arith.negf %232 : vector<8x128xf32>
    %234 = math.exp %233 : vector<8x128xf32>
    %cst_85 = arith.constant 1.000000e+00 : f32
    %235 = vector.broadcast %cst_85 : f32 to vector<8x128xf32>
    %236 = arith.addf %235, %234 : vector<8x128xf32>
    %237 = arith.divf %235, %236 : vector<8x128xf32>
    %238 = arith.mulf %229, %202 : vector<8x128xf32>
    %239 = arith.mulf %223, %231 : vector<8x128xf32>
    %240 = arith.addf %238, %239 : vector<8x128xf32>
    %241 = math.tanh %240 : vector<8x128xf32>
    %242 = arith.mulf %237, %241 : vector<8x128xf32>
    %243 = arith.index_cast %210 : i32 to index
    %c0_86 = arith.constant 0 : index
    %c0_87 = arith.constant 0 : index
    %244 = vector.load %arg5[%243, %c0_86, %c0_87] : memref<8x8x128xf32, #tpu.memory_space<vmem>>, vector<1x8x128xf32>
    %245 = vector.shape_cast %244 : vector<1x8x128xf32> to vector<8x128xf32>
    %246 = vector.shape_cast %242 : vector<8x128xf32> to vector<1x8x128xf32>
    tpu.vector_store %arg5[%243, %c0_86, %c0_87], %246 {strides = array<i32>} : memref<8x8x128xf32, #tpu.memory_space<vmem>>, vector<1x8x128xf32>,
    %c0_i32_88 = arith.constant 0 : i32
    %247 = arith.cmpi eq, %arg0, %c0_i32_88 : i32
    %c6_i32_89 = arith.constant 6 : i32
    %c1_i32_90 = arith.constant 1 : i32
    %248 = arith.select %247, %c6_i32_89, %c1_i32_90 : i32
    %249 = arith.index_cast %248 : i32 to index
    %c0_91 = arith.constant 0 : index
    %c0_92 = arith.constant 0 : index
    %250 = vector.load %arg6[%249, %c0_91, %c0_92] : memref<8x8x512xf32, #tpu.memory_space<vmem>>, vector<1x8x512xf32>
    %251 = vector.shape_cast %250 : vector<1x8x512xf32> to vector<8x512xf32>
    %252 = arith.truncf %242 : vector<8x128xf32> to vector<8x128xbf16>
    %c0_93 = arith.constant 0 : index
    %c0_94 = arith.constant 0 : index
    %253 = vector.load %arg7[%c0_93, %c0_94] : memref<128x512xbf16, #tpu.memory_space<vmem>>, vector<128x512xbf16>
    %cst_95 = arith.constant dense<0.000000e+00> : vector<8x512xf32>
    %254 = tpu.matmul %252, %253, %cst_95 {dimension_numbers = #tpu.dot_dimension_numbers<[1], [0], [0], [1], [0, 0, 1, 1], [], []>} : vector<8x128xbf16>, vector<128x512xbf16>, vector<8x512xf32> -> vector<8x512xf32>
    %255 = arith.addf %251, %254 : vector<8x512xf32>
    %256 = vector.extract_strided_slice %255 {offsets = [0, 0], sizes = [8, 128], strides = [1, 1]} : vector<8x512xf32> to vector<8x128xf32>
    %257 = arith.negf %256 : vector<8x128xf32>
    %258 = math.exp %257 : vector<8x128xf32>
    %cst_96 = arith.constant 1.000000e+00 : f32
    %259 = vector.broadcast %cst_96 : f32 to vector<8x128xf32>
    %260 = arith.addf %259, %258 : vector<8x128xf32>
    %261 = arith.divf %259, %260 : vector<8x128xf32>
    %262 = vector.extract_strided_slice %255 {offsets = [0, 128], sizes = [8, 128], strides = [1, 1]} : vector<8x512xf32> to vector<8x128xf32>
    %263 = arith.negf %262 : vector<8x128xf32>
    %264 = math.exp %263 : vector<8x128xf32>
    %cst_97 = arith.constant 1.000000e+00 : f32
    %265 = vector.broadcast %cst_97 : f32 to vector<8x128xf32>
    %266 = arith.addf %265, %264 : vector<8x128xf32>
    %267 = arith.divf %265, %266 : vector<8x128xf32>
    %268 = vector.extract_strided_slice %255 {offsets = [0, 256], sizes = [8, 128], strides = [1, 1]} : vector<8x512xf32> to vector<8x128xf32>
    %269 = math.tanh %268 : vector<8x128xf32>
    %270 = vector.extract_strided_slice %255 {offsets = [0, 384], sizes = [8, 128], strides = [1, 1]} : vector<8x512xf32> to vector<8x128xf32>
    %271 = arith.negf %270 : vector<8x128xf32>
    %272 = math.exp %271 : vector<8x128xf32>
    %cst_98 = arith.constant 1.000000e+00 : f32
    %273 = vector.broadcast %cst_98 : f32 to vector<8x128xf32>
    %274 = arith.addf %273, %272 : vector<8x128xf32>
    %275 = arith.divf %273, %274 : vector<8x128xf32>
    %276 = arith.mulf %267, %240 : vector<8x128xf32>
    %277 = arith.mulf %261, %269 : vector<8x128xf32>
    %278 = arith.addf %276, %277 : vector<8x128xf32>
    %279 = math.tanh %278 : vector<8x128xf32>
    %280 = arith.mulf %275, %279 : vector<8x128xf32>
    %281 = arith.index_cast %248 : i32 to index
    %c0_99 = arith.constant 0 : index
    %c0_100 = arith.constant 0 : index
    %282 = vector.load %arg5[%281, %c0_99, %c0_100] : memref<8x8x128xf32, #tpu.memory_space<vmem>>, vector<1x8x128xf32>
    %283 = vector.shape_cast %282 : vector<1x8x128xf32> to vector<8x128xf32>
    %284 = vector.shape_cast %280 : vector<8x128xf32> to vector<1x8x128xf32>
    tpu.vector_store %arg5[%281, %c0_99, %c0_100], %284 {strides = array<i32>} : memref<8x8x128xf32, #tpu.memory_space<vmem>>, vector<1x8x128xf32>,
    %c0_i32_101 = arith.constant 0 : i32
    %285 = arith.cmpi eq, %arg0, %c0_i32_101 : i32
    %c7_i32_102 = arith.constant 7 : i32
    %c0_i32_103 = arith.constant 0 : i32
    %286 = arith.select %285, %c7_i32_102, %c0_i32_103 : i32
    %287 = arith.index_cast %286 : i32 to index
    %c0_104 = arith.constant 0 : index
    %c0_105 = arith.constant 0 : index
    %288 = vector.load %arg6[%287, %c0_104, %c0_105] : memref<8x8x512xf32, #tpu.memory_space<vmem>>, vector<1x8x512xf32>
    %289 = vector.shape_cast %288 : vector<1x8x512xf32> to vector<8x512xf32>
    %290 = arith.truncf %280 : vector<8x128xf32> to vector<8x128xbf16>
    %c0_106 = arith.constant 0 : index
    %c0_107 = arith.constant 0 : index
    %291 = vector.load %arg7[%c0_106, %c0_107] : memref<128x512xbf16, #tpu.memory_space<vmem>>, vector<128x512xbf16>
    %cst_108 = arith.constant dense<0.000000e+00> : vector<8x512xf32>
    %292 = tpu.matmul %290, %291, %cst_108 {dimension_numbers = #tpu.dot_dimension_numbers<[1], [0], [0], [1], [0, 0, 1, 1], [], []>} : vector<8x128xbf16>, vector<128x512xbf16>, vector<8x512xf32> -> vector<8x512xf32>
    %293 = arith.addf %289, %292 : vector<8x512xf32>
    %294 = vector.extract_strided_slice %293 {offsets = [0, 0], sizes = [8, 128], strides = [1, 1]} : vector<8x512xf32> to vector<8x128xf32>
    %295 = arith.negf %294 : vector<8x128xf32>
    %296 = math.exp %295 : vector<8x128xf32>
    %cst_109 = arith.constant 1.000000e+00 : f32
    %297 = vector.broadcast %cst_109 : f32 to vector<8x128xf32>
    %298 = arith.addf %297, %296 : vector<8x128xf32>
    %299 = arith.divf %297, %298 : vector<8x128xf32>
    %300 = vector.extract_strided_slice %293 {offsets = [0, 128], sizes = [8, 128], strides = [1, 1]} : vector<8x512xf32> to vector<8x128xf32>
    %301 = arith.negf %300 : vector<8x128xf32>
    %302 = math.exp %301 : vector<8x128xf32>
    %cst_110 = arith.constant 1.000000e+00 : f32
    %303 = vector.broadcast %cst_110 : f32 to vector<8x128xf32>
    %304 = arith.addf %303, %302 : vector<8x128xf32>
    %305 = arith.divf %303, %304 : vector<8x128xf32>
    %306 = vector.extract_strided_slice %293 {offsets = [0, 256], sizes = [8, 128], strides = [1, 1]} : vector<8x512xf32> to vector<8x128xf32>
    %307 = math.tanh %306 : vector<8x128xf32>
    %308 = vector.extract_strided_slice %293 {offsets = [0, 384], sizes = [8, 128], strides = [1, 1]} : vector<8x512xf32> to vector<8x128xf32>
    %309 = arith.negf %308 : vector<8x128xf32>
    %310 = math.exp %309 : vector<8x128xf32>
    %cst_111 = arith.constant 1.000000e+00 : f32
    %311 = vector.broadcast %cst_111 : f32 to vector<8x128xf32>
    %312 = arith.addf %311, %310 : vector<8x128xf32>
    %313 = arith.divf %311, %312 : vector<8x128xf32>
    %314 = arith.mulf %305, %278 : vector<8x128xf32>
    %315 = arith.mulf %299, %307 : vector<8x128xf32>
    %316 = arith.addf %314, %315 : vector<8x128xf32>
    %317 = math.tanh %316 : vector<8x128xf32>
    %318 = arith.mulf %313, %317 : vector<8x128xf32>
    %319 = arith.index_cast %286 : i32 to index
    %c0_112 = arith.constant 0 : index
    %c0_113 = arith.constant 0 : index
    %320 = vector.load %arg5[%319, %c0_112, %c0_113] : memref<8x8x128xf32, #tpu.memory_space<vmem>>, vector<1x8x128xf32>
    %321 = vector.shape_cast %320 : vector<1x8x128xf32> to vector<8x128xf32>
    %322 = vector.shape_cast %318 : vector<8x128xf32> to vector<1x8x128xf32>
    tpu.vector_store %arg5[%319, %c0_112, %c0_113], %322 {strides = array<i32>} : memref<8x8x128xf32, #tpu.memory_space<vmem>>, vector<1x8x128xf32>,
    return
  }
  func.func @transform_0(%arg0: i32) -> (i32, i32, i32) {
    %c0_i32 = arith.constant 0 : i32
    %c0_i32_0 = arith.constant 0 : i32
    %c0_i32_1 = arith.constant 0 : i32
    %c0_i32_2 = arith.constant 0 : i32
    return %c0_i32, %c0_i32_0, %c0_i32_1 : i32, i32, i32
  }
  func.func @transform_1(%arg0: i32) -> (i32, i32, i32) {
    %c0_i32 = arith.constant 0 : i32
    %c0_i32_0 = arith.constant 0 : i32
    %c0_i32_1 = arith.constant 0 : i32
    return %arg0, %c0_i32, %c0_i32_0 : i32, i32, i32
  }
  func.func @transform_2(%arg0: i32) -> (i32, i32, i32) {
    %c0_i32 = arith.constant 0 : i32
    %c0_i32_0 = arith.constant 0 : i32
    %c0_i32_1 = arith.constant 0 : i32
    return %arg0, %c0_i32, %c0_i32_0 : i32, i32, i32
  }
  func.func @transform_3(%arg0: i32) -> (i32, i32, i32) {
    %c0_i32 = arith.constant 0 : i32
    %c0_i32_0 = arith.constant 0 : i32
    %c0_i32_1 = arith.constant 0 : i32
    return %arg0, %c0_i32, %c0_i32_0 : i32, i32, i32
  }
  func.func @transform_4(%arg0: i32) -> (i32, i32, i32) {
    %c0_i32 = arith.constant 0 : i32
    %c0_i32_0 = arith.constant 0 : i32
    %c0_i32_1 = arith.constant 0 : i32
    return %c0_i32, %c0_i32_0, %arg0 : i32, i32, i32
  }
}

module attributes {stable_mosaic.version = 11 : i64} {
  func.func @lstm_layer_kernel(%arg0: i32, %arg1: memref<8x8x256xf32, #tpu.memory_space<vmem>>, %arg2: memref<1x256x512xf32, #tpu.memory_space<vmem>>, %arg3: memref<1x128x512xf32, #tpu.memory_space<vmem>>, %arg4: memref<1x1x512xf32, #tpu.memory_space<vmem>>, %arg5: memref<8x8x128xf32, #tpu.memory_space<vmem>>, %arg6: memref<8x8x512xf32, #tpu.memory_space<vmem>>, %arg7: memref<128x512xbf16, #tpu.memory_space<vmem>>) attributes {dimension_semantics = [#tpu.dimension_semantics<parallel>], iteration_bounds = array<i64: 2>, scalar_prefetch = 0 : i64, scratch_operands = 2 : i64, tpu.core_type = #tpu.core_type<tc>, window_params = [{pipeline_mode = #tpu.pipeline_mode<synchronous>, transform_indices = @transform_0, window_bounds = array<i64: 8, 8, 256>}, {transform_indices = @transform_1, window_bounds = array<i64: 1, 256, 512>}, {transform_indices = @transform_2, window_bounds = array<i64: 1, 128, 512>}, {transform_indices = @transform_3, window_bounds = array<i64: 1, 1, 512>}, {transform_indices = @transform_4, window_bounds = array<i64: 8, 8, 128>}]} {
    %c0 = arith.constant 0 : index
    %c0_0 = arith.constant 0 : index
    %c0_1 = arith.constant 0 : index
    %0 = vector.load %arg1[%c0, %c0_0, %c0_1] : memref<8x8x256xf32, #tpu.memory_space<vmem>>, vector<8x8x256xf32>
    %1 = vector.shape_cast %0 : vector<8x8x256xf32> to vector<64x256xf32>
    %2 = arith.truncf %1 : vector<64x256xf32> to vector<64x256xbf16>
    %c0_2 = arith.constant 0 : index
    %c0_3 = arith.constant 0 : index
    %c0_4 = arith.constant 0 : index
    %3 = vector.load %arg2[%c0_2, %c0_3, %c0_4] : memref<1x256x512xf32, #tpu.memory_space<vmem>>, vector<1x256x512xf32>
    %4 = vector.shape_cast %3 : vector<1x256x512xf32> to vector<256x512xf32>
    %5 = arith.truncf %4 : vector<256x512xf32> to vector<256x512xbf16>
    %cst = arith.constant dense<0.000000e+00> : vector<64x512xf32>
    %6 = tpu.matmul %2, %5, %cst {dimension_numbers = #tpu.dot_dimension_numbers<[1], [0], [0], [1], [0, 0, 1, 1], [], []>} : vector<64x256xbf16>, vector<256x512xbf16>, vector<64x512xf32> -> vector<64x512xf32>
    %c0_5 = arith.constant 0 : index
    %c0_6 = arith.constant 0 : index
    %c0_7 = arith.constant 0 : index
    %7 = vector.load %arg4[%c0_5, %c0_6, %c0_7] : memref<1x1x512xf32, #tpu.memory_space<vmem>>, vector<1x1x512xf32>
    %8 = vector.shape_cast %7 : vector<1x1x512xf32> to vector<1x512xf32>
    %9 = vector.broadcast %8 : vector<1x512xf32> to vector<64x512xf32>
    %10 = arith.addf %6, %9 : vector<64x512xf32>
    %11 = vector.shape_cast %10 : vector<64x512xf32> to vector<8x8x512xf32>
    %c0_8 = arith.constant 0 : index
    %c0_9 = arith.constant 0 : index
    %c0_10 = arith.constant 0 : index
    %12 = vector.load %arg6[%c0_8, %c0_9, %c0_10] : memref<8x8x512xf32, #tpu.memory_space<vmem>>, vector<8x8x512xf32>
    tpu.vector_store %arg6[%c0_8, %c0_9, %c0_10], %11 {strides = array<i32>} : memref<8x8x512xf32, #tpu.memory_space<vmem>>, vector<8x8x512xf32>,
    %c0_11 = arith.constant 0 : index
    %c0_12 = arith.constant 0 : index
    %c0_13 = arith.constant 0 : index
    %13 = vector.load %arg3[%c0_11, %c0_12, %c0_13] : memref<1x128x512xf32, #tpu.memory_space<vmem>>, vector<1x128x512xf32>
    %14 = vector.shape_cast %13 : vector<1x128x512xf32> to vector<128x512xf32>
    %15 = arith.truncf %14 : vector<128x512xf32> to vector<128x512xbf16>
    %c0_14 = arith.constant 0 : index
    %c0_15 = arith.constant 0 : index
    %16 = vector.load %arg7[%c0_14, %c0_15] : memref<128x512xbf16, #tpu.memory_space<vmem>>, vector<128x512xbf16>
    tpu.vector_store %arg7[%c0_14, %c0_15], %15 {strides = array<i32>} : memref<128x512xbf16, #tpu.memory_space<vmem>>, vector<128x512xbf16>,
    %cst_16 = arith.constant 0.000000e+00 : f32
    %17 = vector.broadcast %cst_16 : f32 to vector<8x128xf32>
    %cst_17 = arith.constant 0.000000e+00 : f32
    %18 = vector.broadcast %cst_17 : f32 to vector<8x128xf32>
    %c0_i32 = arith.constant 0 : i32
    %19 = arith.cmpi eq, %arg0, %c0_i32 : i32
    %c0_i32_18 = arith.constant 0 : i32
    %c7_i32 = arith.constant 7 : i32
    %20 = arith.select %19, %c0_i32_18, %c7_i32 : i32
    %21 = arith.index_cast %20 : i32 to index
    %c0_19 = arith.constant 0 : index
    %c0_20 = arith.constant 0 : index
    %22 = vector.load %arg6[%21, %c0_19, %c0_20] : memref<8x8x512xf32, #tpu.memory_space<vmem>>, vector<1x8x512xf32>
    %23 = vector.shape_cast %22 : vector<1x8x512xf32> to vector<8x512xf32>
    %24 = arith.truncf %17 : vector<8x128xf32> to vector<8x128xbf16>
    %c0_21 = arith.constant 0 : index
    %c0_22 = arith.constant 0 : index
    %25 = vector.load %arg7[%c0_21, %c0_22] : memref<128x512xbf16, #tpu.memory_space<vmem>>, vector<128x512xbf16>
    %cst_23 = arith.constant dense<0.000000e+00> : vector<8x512xf32>
    %26 = tpu.matmul %24, %25, %cst_23 {dimension_numbers = #tpu.dot_dimension_numbers<[1], [0], [0], [1], [0, 0, 1, 1], [], []>} : vector<8x128xbf16>, vector<128x512xbf16>, vector<8x512xf32> -> vector<8x512xf32>
    %27 = arith.addf %23, %26 : vector<8x512xf32>
    %28 = vector.extract_strided_slice %27 {offsets = [0, 0], sizes = [8, 128], strides = [1, 1]} : vector<8x512xf32> to vector<8x128xf32>
    %29 = arith.negf %28 : vector<8x128xf32>
    %30 = math.exp %29 : vector<8x128xf32>
    %cst_24 = arith.constant 1.000000e+00 : f32
    %31 = vector.broadcast %cst_24 : f32 to vector<8x128xf32>
    %32 = arith.addf %31, %30 : vector<8x128xf32>
    %33 = arith.divf %31, %32 : vector<8x128xf32>
    %34 = vector.extract_strided_slice %27 {offsets = [0, 128], sizes = [8, 128], strides = [1, 1]} : vector<8x512xf32> to vector<8x128xf32>
    %35 = arith.negf %34 : vector<8x128xf32>
    %36 = math.exp %35 : vector<8x128xf32>
    %cst_25 = arith.constant 1.000000e+00 : f32
    %37 = vector.broadcast %cst_25 : f32 to vector<8x128xf32>
    %38 = arith.addf %37, %36 : vector<8x128xf32>
    %39 = arith.divf %37, %38 : vector<8x128xf32>
    %40 = vector.extract_strided_slice %27 {offsets = [0, 256], sizes = [8, 128], strides = [1, 1]} : vector<8x512xf32> to vector<8x128xf32>
    %41 = math.tanh %40 : vector<8x128xf32>
    %42 = vector.extract_strided_slice %27 {offsets = [0, 384], sizes = [8, 128], strides = [1, 1]} : vector<8x512xf32> to vector<8x128xf32>
    %43 = arith.negf %42 : vector<8x128xf32>
    %44 = math.exp %43 : vector<8x128xf32>
    %cst_26 = arith.constant 1.000000e+00 : f32
    %45 = vector.broadcast %cst_26 : f32 to vector<8x128xf32>
    %46 = arith.addf %45, %44 : vector<8x128xf32>
    %47 = arith.divf %45, %46 : vector<8x128xf32>
    %48 = arith.mulf %39, %18 : vector<8x128xf32>
    %49 = arith.mulf %33, %41 : vector<8x128xf32>
    %50 = arith.addf %48, %49 : vector<8x128xf32>
    %51 = math.tanh %50 : vector<8x128xf32>
    %52 = arith.mulf %47, %51 : vector<8x128xf32>
    %53 = arith.index_cast %20 : i32 to index
    %c0_27 = arith.constant 0 : index
    %c0_28 = arith.constant 0 : index
    %54 = vector.load %arg5[%53, %c0_27, %c0_28] : memref<8x8x128xf32, #tpu.memory_space<vmem>>, vector<1x8x128xf32>
    %55 = vector.shape_cast %54 : vector<1x8x128xf32> to vector<8x128xf32>
    %56 = vector.shape_cast %52 : vector<8x128xf32> to vector<1x8x128xf32>
    tpu.vector_store %arg5[%53, %c0_27, %c0_28], %56 {strides = array<i32>} : memref<8x8x128xf32, #tpu.memory_space<vmem>>, vector<1x8x128xf32>,
    %c0_i32_29 = arith.constant 0 : i32
    %57 = arith.cmpi eq, %arg0, %c0_i32_29 : i32
    %c1_i32 = arith.constant 1 : i32
    %c6_i32 = arith.constant 6 : i32
    %58 = arith.select %57, %c1_i32, %c6_i32 : i32
    %59 = arith.index_cast %58 : i32 to index
    %c0_30 = arith.constant 0 : index
    %c0_31 = arith.constant 0 : index
    %60 = vector.load %arg6[%59, %c0_30, %c0_31] : memref<8x8x512xf32, #tpu.memory_space<vmem>>, vector<1x8x512xf32>
    %61 = vector.shape_cast %60 : vector<1x8x512xf32> to vector<8x512xf32>
    %62 = arith.truncf %52 : vector<8x128xf32> to vector<8x128xbf16>
    %c0_32 = arith.constant 0 : index
    %c0_33 = arith.constant 0 : index
    %63 = vector.load %arg7[%c0_32, %c0_33] : memref<128x512xbf16, #tpu.memory_space<vmem>>, vector<128x512xbf16>
    %cst_34 = arith.constant dense<0.000000e+00> : vector<8x512xf32>
    %64 = tpu.matmul %62, %63, %cst_34 {dimension_numbers = #tpu.dot_dimension_numbers<[1], [0], [0], [1], [0, 0, 1, 1], [], []>} : vector<8x128xbf16>, vector<128x512xbf16>, vector<8x512xf32> -> vector<8x512xf32>
    %65 = arith.addf %61, %64 : vector<8x512xf32>
    %66 = vector.extract_strided_slice %65 {offsets = [0, 0], sizes = [8, 128], strides = [1, 1]} : vector<8x512xf32> to vector<8x128xf32>
    %67 = arith.negf %66 : vector<8x128xf32>
    %68 = math.exp %67 : vector<8x128xf32>
    %cst_35 = arith.constant 1.000000e+00 : f32
    %69 = vector.broadcast %cst_35 : f32 to vector<8x128xf32>
    %70 = arith.addf %69, %68 : vector<8x128xf32>
    %71 = arith.divf %69, %70 : vector<8x128xf32>
    %72 = vector.extract_strided_slice %65 {offsets = [0, 128], sizes = [8, 128], strides = [1, 1]} : vector<8x512xf32> to vector<8x128xf32>
    %73 = arith.negf %72 : vector<8x128xf32>
    %74 = math.exp %73 : vector<8x128xf32>
    %cst_36 = arith.constant 1.000000e+00 : f32
    %75 = vector.broadcast %cst_36 : f32 to vector<8x128xf32>
    %76 = arith.addf %75, %74 : vector<8x128xf32>
    %77 = arith.divf %75, %76 : vector<8x128xf32>
    %78 = vector.extract_strided_slice %65 {offsets = [0, 256], sizes = [8, 128], strides = [1, 1]} : vector<8x512xf32> to vector<8x128xf32>
    %79 = math.tanh %78 : vector<8x128xf32>
    %80 = vector.extract_strided_slice %65 {offsets = [0, 384], sizes = [8, 128], strides = [1, 1]} : vector<8x512xf32> to vector<8x128xf32>
    %81 = arith.negf %80 : vector<8x128xf32>
    %82 = math.exp %81 : vector<8x128xf32>
    %cst_37 = arith.constant 1.000000e+00 : f32
    %83 = vector.broadcast %cst_37 : f32 to vector<8x128xf32>
    %84 = arith.addf %83, %82 : vector<8x128xf32>
    %85 = arith.divf %83, %84 : vector<8x128xf32>
    %86 = arith.mulf %77, %50 : vector<8x128xf32>
    %87 = arith.mulf %71, %79 : vector<8x128xf32>
    %88 = arith.addf %86, %87 : vector<8x128xf32>
    %89 = math.tanh %88 : vector<8x128xf32>
    %90 = arith.mulf %85, %89 : vector<8x128xf32>
    %91 = arith.index_cast %58 : i32 to index
    %c0_38 = arith.constant 0 : index
    %c0_39 = arith.constant 0 : index
    %92 = vector.load %arg5[%91, %c0_38, %c0_39] : memref<8x8x128xf32, #tpu.memory_space<vmem>>, vector<1x8x128xf32>
    %93 = vector.shape_cast %92 : vector<1x8x128xf32> to vector<8x128xf32>
    %94 = vector.shape_cast %90 : vector<8x128xf32> to vector<1x8x128xf32>
    tpu.vector_store %arg5[%91, %c0_38, %c0_39], %94 {strides = array<i32>} : memref<8x8x128xf32, #tpu.memory_space<vmem>>, vector<1x8x128xf32>,
    %c0_i32_40 = arith.constant 0 : i32
    %95 = arith.cmpi eq, %arg0, %c0_i32_40 : i32
    %c2_i32 = arith.constant 2 : i32
    %c5_i32 = arith.constant 5 : i32
    %96 = arith.select %95, %c2_i32, %c5_i32 : i32
    %97 = arith.index_cast %96 : i32 to index
    %c0_41 = arith.constant 0 : index
    %c0_42 = arith.constant 0 : index
    %98 = vector.load %arg6[%97, %c0_41, %c0_42] : memref<8x8x512xf32, #tpu.memory_space<vmem>>, vector<1x8x512xf32>
    %99 = vector.shape_cast %98 : vector<1x8x512xf32> to vector<8x512xf32>
    %100 = arith.truncf %90 : vector<8x128xf32> to vector<8x128xbf16>
    %c0_43 = arith.constant 0 : index
    %c0_44 = arith.constant 0 : index
    %101 = vector.load %arg7[%c0_43, %c0_44] : memref<128x512xbf16, #tpu.memory_space<vmem>>, vector<128x512xbf16>
    %cst_45 = arith.constant dense<0.000000e+00> : vector<8x512xf32>
    %102 = tpu.matmul %100, %101, %cst_45 {dimension_numbers = #tpu.dot_dimension_numbers<[1], [0], [0], [1], [0, 0, 1, 1], [], []>} : vector<8x128xbf16>, vector<128x512xbf16>, vector<8x512xf32> -> vector<8x512xf32>
    %103 = arith.addf %99, %102 : vector<8x512xf32>
    %104 = vector.extract_strided_slice %103 {offsets = [0, 0], sizes = [8, 128], strides = [1, 1]} : vector<8x512xf32> to vector<8x128xf32>
    %105 = arith.negf %104 : vector<8x128xf32>
    %106 = math.exp %105 : vector<8x128xf32>
    %cst_46 = arith.constant 1.000000e+00 : f32
    %107 = vector.broadcast %cst_46 : f32 to vector<8x128xf32>
    %108 = arith.addf %107, %106 : vector<8x128xf32>
    %109 = arith.divf %107, %108 : vector<8x128xf32>
    %110 = vector.extract_strided_slice %103 {offsets = [0, 128], sizes = [8, 128], strides = [1, 1]} : vector<8x512xf32> to vector<8x128xf32>
    %111 = arith.negf %110 : vector<8x128xf32>
    %112 = math.exp %111 : vector<8x128xf32>
    %cst_47 = arith.constant 1.000000e+00 : f32
    %113 = vector.broadcast %cst_47 : f32 to vector<8x128xf32>
    %114 = arith.addf %113, %112 : vector<8x128xf32>
    %115 = arith.divf %113, %114 : vector<8x128xf32>
    %116 = vector.extract_strided_slice %103 {offsets = [0, 256], sizes = [8, 128], strides = [1, 1]} : vector<8x512xf32> to vector<8x128xf32>
    %117 = math.tanh %116 : vector<8x128xf32>
    %118 = vector.extract_strided_slice %103 {offsets = [0, 384], sizes = [8, 128], strides = [1, 1]} : vector<8x512xf32> to vector<8x128xf32>
    %119 = arith.negf %118 : vector<8x128xf32>
    %120 = math.exp %119 : vector<8x128xf32>
    %cst_48 = arith.constant 1.000000e+00 : f32
    %121 = vector.broadcast %cst_48 : f32 to vector<8x128xf32>
    %122 = arith.addf %121, %120 : vector<8x128xf32>
    %123 = arith.divf %121, %122 : vector<8x128xf32>
    %124 = arith.mulf %115, %88 : vector<8x128xf32>
    %125 = arith.mulf %109, %117 : vector<8x128xf32>
    %126 = arith.addf %124, %125 : vector<8x128xf32>
    %127 = math.tanh %126 : vector<8x128xf32>
    %128 = arith.mulf %123, %127 : vector<8x128xf32>
    %129 = arith.index_cast %96 : i32 to index
    %c0_49 = arith.constant 0 : index
    %c0_50 = arith.constant 0 : index
    %130 = vector.load %arg5[%129, %c0_49, %c0_50] : memref<8x8x128xf32, #tpu.memory_space<vmem>>, vector<1x8x128xf32>
    %131 = vector.shape_cast %130 : vector<1x8x128xf32> to vector<8x128xf32>
    %132 = vector.shape_cast %128 : vector<8x128xf32> to vector<1x8x128xf32>
    tpu.vector_store %arg5[%129, %c0_49, %c0_50], %132 {strides = array<i32>} : memref<8x8x128xf32, #tpu.memory_space<vmem>>, vector<1x8x128xf32>,
    %c0_i32_51 = arith.constant 0 : i32
    %133 = arith.cmpi eq, %arg0, %c0_i32_51 : i32
    %c3_i32 = arith.constant 3 : i32
    %c4_i32 = arith.constant 4 : i32
    %134 = arith.select %133, %c3_i32, %c4_i32 : i32
    %135 = arith.index_cast %134 : i32 to index
    %c0_52 = arith.constant 0 : index
    %c0_53 = arith.constant 0 : index
    %136 = vector.load %arg6[%135, %c0_52, %c0_53] : memref<8x8x512xf32, #tpu.memory_space<vmem>>, vector<1x8x512xf32>
    %137 = vector.shape_cast %136 : vector<1x8x512xf32> to vector<8x512xf32>
    %138 = arith.truncf %128 : vector<8x128xf32> to vector<8x128xbf16>
    %c0_54 = arith.constant 0 : index
    %c0_55 = arith.constant 0 : index
    %139 = vector.load %arg7[%c0_54, %c0_55] : memref<128x512xbf16, #tpu.memory_space<vmem>>, vector<128x512xbf16>
    %cst_56 = arith.constant dense<0.000000e+00> : vector<8x512xf32>
    %140 = tpu.matmul %138, %139, %cst_56 {dimension_numbers = #tpu.dot_dimension_numbers<[1], [0], [0], [1], [0, 0, 1, 1], [], []>} : vector<8x128xbf16>, vector<128x512xbf16>, vector<8x512xf32> -> vector<8x512xf32>
    %141 = arith.addf %137, %140 : vector<8x512xf32>
    %142 = vector.extract_strided_slice %141 {offsets = [0, 0], sizes = [8, 128], strides = [1, 1]} : vector<8x512xf32> to vector<8x128xf32>
    %143 = arith.negf %142 : vector<8x128xf32>
    %144 = math.exp %143 : vector<8x128xf32>
    %cst_57 = arith.constant 1.000000e+00 : f32
    %145 = vector.broadcast %cst_57 : f32 to vector<8x128xf32>
    %146 = arith.addf %145, %144 : vector<8x128xf32>
    %147 = arith.divf %145, %146 : vector<8x128xf32>
    %148 = vector.extract_strided_slice %141 {offsets = [0, 128], sizes = [8, 128], strides = [1, 1]} : vector<8x512xf32> to vector<8x128xf32>
    %149 = arith.negf %148 : vector<8x128xf32>
    %150 = math.exp %149 : vector<8x128xf32>
    %cst_58 = arith.constant 1.000000e+00 : f32
    %151 = vector.broadcast %cst_58 : f32 to vector<8x128xf32>
    %152 = arith.addf %151, %150 : vector<8x128xf32>
    %153 = arith.divf %151, %152 : vector<8x128xf32>
    %154 = vector.extract_strided_slice %141 {offsets = [0, 256], sizes = [8, 128], strides = [1, 1]} : vector<8x512xf32> to vector<8x128xf32>
    %155 = math.tanh %154 : vector<8x128xf32>
    %156 = vector.extract_strided_slice %141 {offsets = [0, 384], sizes = [8, 128], strides = [1, 1]} : vector<8x512xf32> to vector<8x128xf32>
    %157 = arith.negf %156 : vector<8x128xf32>
    %158 = math.exp %157 : vector<8x128xf32>
    %cst_59 = arith.constant 1.000000e+00 : f32
    %159 = vector.broadcast %cst_59 : f32 to vector<8x128xf32>
    %160 = arith.addf %159, %158 : vector<8x128xf32>
    %161 = arith.divf %159, %160 : vector<8x128xf32>
    %162 = arith.mulf %153, %126 : vector<8x128xf32>
    %163 = arith.mulf %147, %155 : vector<8x128xf32>
    %164 = arith.addf %162, %163 : vector<8x128xf32>
    %165 = math.tanh %164 : vector<8x128xf32>
    %166 = arith.mulf %161, %165 : vector<8x128xf32>
    %167 = arith.index_cast %134 : i32 to index
    %c0_60 = arith.constant 0 : index
    %c0_61 = arith.constant 0 : index
    %168 = vector.load %arg5[%167, %c0_60, %c0_61] : memref<8x8x128xf32, #tpu.memory_space<vmem>>, vector<1x8x128xf32>
    %169 = vector.shape_cast %168 : vector<1x8x128xf32> to vector<8x128xf32>
    %170 = vector.shape_cast %166 : vector<8x128xf32> to vector<1x8x128xf32>
    tpu.vector_store %arg5[%167, %c0_60, %c0_61], %170 {strides = array<i32>} : memref<8x8x128xf32, #tpu.memory_space<vmem>>, vector<1x8x128xf32>,
    %c0_i32_62 = arith.constant 0 : i32
    %171 = arith.cmpi eq, %arg0, %c0_i32_62 : i32
    %c4_i32_63 = arith.constant 4 : i32
    %c3_i32_64 = arith.constant 3 : i32
    %172 = arith.select %171, %c4_i32_63, %c3_i32_64 : i32
    %173 = arith.index_cast %172 : i32 to index
    %c0_65 = arith.constant 0 : index
    %c0_66 = arith.constant 0 : index
    %174 = vector.load %arg6[%173, %c0_65, %c0_66] : memref<8x8x512xf32, #tpu.memory_space<vmem>>, vector<1x8x512xf32>
    %175 = vector.shape_cast %174 : vector<1x8x512xf32> to vector<8x512xf32>
    %176 = arith.truncf %166 : vector<8x128xf32> to vector<8x128xbf16>
    %c0_67 = arith.constant 0 : index
    %c0_68 = arith.constant 0 : index
    %177 = vector.load %arg7[%c0_67, %c0_68] : memref<128x512xbf16, #tpu.memory_space<vmem>>, vector<128x512xbf16>
    %cst_69 = arith.constant dense<0.000000e+00> : vector<8x512xf32>
    %178 = tpu.matmul %176, %177, %cst_69 {dimension_numbers = #tpu.dot_dimension_numbers<[1], [0], [0], [1], [0, 0, 1, 1], [], []>} : vector<8x128xbf16>, vector<128x512xbf16>, vector<8x512xf32> -> vector<8x512xf32>
    %179 = arith.addf %175, %178 : vector<8x512xf32>
    %180 = vector.extract_strided_slice %179 {offsets = [0, 0], sizes = [8, 128], strides = [1, 1]} : vector<8x512xf32> to vector<8x128xf32>
    %181 = arith.negf %180 : vector<8x128xf32>
    %182 = math.exp %181 : vector<8x128xf32>
    %cst_70 = arith.constant 1.000000e+00 : f32
    %183 = vector.broadcast %cst_70 : f32 to vector<8x128xf32>
    %184 = arith.addf %183, %182 : vector<8x128xf32>
    %185 = arith.divf %183, %184 : vector<8x128xf32>
    %186 = vector.extract_strided_slice %179 {offsets = [0, 128], sizes = [8, 128], strides = [1, 1]} : vector<8x512xf32> to vector<8x128xf32>
    %187 = arith.negf %186 : vector<8x128xf32>
    %188 = math.exp %187 : vector<8x128xf32>
    %cst_71 = arith.constant 1.000000e+00 : f32
    %189 = vector.broadcast %cst_71 : f32 to vector<8x128xf32>
    %190 = arith.addf %189, %188 : vector<8x128xf32>
    %191 = arith.divf %189, %190 : vector<8x128xf32>
    %192 = vector.extract_strided_slice %179 {offsets = [0, 256], sizes = [8, 128], strides = [1, 1]} : vector<8x512xf32> to vector<8x128xf32>
    %193 = math.tanh %192 : vector<8x128xf32>
    %194 = vector.extract_strided_slice %179 {offsets = [0, 384], sizes = [8, 128], strides = [1, 1]} : vector<8x512xf32> to vector<8x128xf32>
    %195 = arith.negf %194 : vector<8x128xf32>
    %196 = math.exp %195 : vector<8x128xf32>
    %cst_72 = arith.constant 1.000000e+00 : f32
    %197 = vector.broadcast %cst_72 : f32 to vector<8x128xf32>
    %198 = arith.addf %197, %196 : vector<8x128xf32>
    %199 = arith.divf %197, %198 : vector<8x128xf32>
    %200 = arith.mulf %191, %164 : vector<8x128xf32>
    %201 = arith.mulf %185, %193 : vector<8x128xf32>
    %202 = arith.addf %200, %201 : vector<8x128xf32>
    %203 = math.tanh %202 : vector<8x128xf32>
    %204 = arith.mulf %199, %203 : vector<8x128xf32>
    %205 = arith.index_cast %172 : i32 to index
    %c0_73 = arith.constant 0 : index
    %c0_74 = arith.constant 0 : index
    %206 = vector.load %arg5[%205, %c0_73, %c0_74] : memref<8x8x128xf32, #tpu.memory_space<vmem>>, vector<1x8x128xf32>
    %207 = vector.shape_cast %206 : vector<1x8x128xf32> to vector<8x128xf32>
    %208 = vector.shape_cast %204 : vector<8x128xf32> to vector<1x8x128xf32>
    tpu.vector_store %arg5[%205, %c0_73, %c0_74], %208 {strides = array<i32>} : memref<8x8x128xf32, #tpu.memory_space<vmem>>, vector<1x8x128xf32>,
    %c0_i32_75 = arith.constant 0 : i32
    %209 = arith.cmpi eq, %arg0, %c0_i32_75 : i32
    %c5_i32_76 = arith.constant 5 : i32
    %c2_i32_77 = arith.constant 2 : i32
    %210 = arith.select %209, %c5_i32_76, %c2_i32_77 : i32
    %211 = arith.index_cast %210 : i32 to index
    %c0_78 = arith.constant 0 : index
    %c0_79 = arith.constant 0 : index
    %212 = vector.load %arg6[%211, %c0_78, %c0_79] : memref<8x8x512xf32, #tpu.memory_space<vmem>>, vector<1x8x512xf32>
    %213 = vector.shape_cast %212 : vector<1x8x512xf32> to vector<8x512xf32>
    %214 = arith.truncf %204 : vector<8x128xf32> to vector<8x128xbf16>
    %c0_80 = arith.constant 0 : index
    %c0_81 = arith.constant 0 : index
    %215 = vector.load %arg7[%c0_80, %c0_81] : memref<128x512xbf16, #tpu.memory_space<vmem>>, vector<128x512xbf16>
    %cst_82 = arith.constant dense<0.000000e+00> : vector<8x512xf32>
    %216 = tpu.matmul %214, %215, %cst_82 {dimension_numbers = #tpu.dot_dimension_numbers<[1], [0], [0], [1], [0, 0, 1, 1], [], []>} : vector<8x128xbf16>, vector<128x512xbf16>, vector<8x512xf32> -> vector<8x512xf32>
    %217 = arith.addf %213, %216 : vector<8x512xf32>
    %218 = vector.extract_strided_slice %217 {offsets = [0, 0], sizes = [8, 128], strides = [1, 1]} : vector<8x512xf32> to vector<8x128xf32>
    %219 = arith.negf %218 : vector<8x128xf32>
    %220 = math.exp %219 : vector<8x128xf32>
    %cst_83 = arith.constant 1.000000e+00 : f32
    %221 = vector.broadcast %cst_83 : f32 to vector<8x128xf32>
    %222 = arith.addf %221, %220 : vector<8x128xf32>
    %223 = arith.divf %221, %222 : vector<8x128xf32>
    %224 = vector.extract_strided_slice %217 {offsets = [0, 128], sizes = [8, 128], strides = [1, 1]} : vector<8x512xf32> to vector<8x128xf32>
    %225 = arith.negf %224 : vector<8x128xf32>
    %226 = math.exp %225 : vector<8x128xf32>
    %cst_84 = arith.constant 1.000000e+00 : f32
    %227 = vector.broadcast %cst_84 : f32 to vector<8x128xf32>
    %228 = arith.addf %227, %226 : vector<8x128xf32>
    %229 = arith.divf %227, %228 : vector<8x128xf32>
    %230 = vector.extract_strided_slice %217 {offsets = [0, 256], sizes = [8, 128], strides = [1, 1]} : vector<8x512xf32> to vector<8x128xf32>
    %231 = math.tanh %230 : vector<8x128xf32>
    %232 = vector.extract_strided_slice %217 {offsets = [0, 384], sizes = [8, 128], strides = [1, 1]} : vector<8x512xf32> to vector<8x128xf32>
    %233 = arith.negf %232 : vector<8x128xf32>
    %234 = math.exp %233 : vector<8x128xf32>
    %cst_85 = arith.constant 1.000000e+00 : f32
    %235 = vector.broadcast %cst_85 : f32 to vector<8x128xf32>
    %236 = arith.addf %235, %234 : vector<8x128xf32>
    %237 = arith.divf %235, %236 : vector<8x128xf32>
    %238 = arith.mulf %229, %202 : vector<8x128xf32>
    %239 = arith.mulf %223, %231 : vector<8x128xf32>
    %240 = arith.addf %238, %239 : vector<8x128xf32>
    %241 = math.tanh %240 : vector<8x128xf32>
    %242 = arith.mulf %237, %241 : vector<8x128xf32>
    %243 = arith.index_cast %210 : i32 to index
    %c0_86 = arith.constant 0 : index
    %c0_87 = arith.constant 0 : index
    %244 = vector.load %arg5[%243, %c0_86, %c0_87] : memref<8x8x128xf32, #tpu.memory_space<vmem>>, vector<1x8x128xf32>
    %245 = vector.shape_cast %244 : vector<1x8x128xf32> to vector<8x128xf32>
    %246 = vector.shape_cast %242 : vector<8x128xf32> to vector<1x8x128xf32>
    tpu.vector_store %arg5[%243, %c0_86, %c0_87], %246 {strides = array<i32>} : memref<8x8x128xf32, #tpu.memory_space<vmem>>, vector<1x8x128xf32>,
    %c0_i32_88 = arith.constant 0 : i32
    %247 = arith.cmpi eq, %arg0, %c0_i32_88 : i32
    %c6_i32_89 = arith.constant 6 : i32
    %c1_i32_90 = arith.constant 1 : i32
    %248 = arith.select %247, %c6_i32_89, %c1_i32_90 : i32
    %249 = arith.index_cast %248 : i32 to index
    %c0_91 = arith.constant 0 : index
    %c0_92 = arith.constant 0 : index
    %250 = vector.load %arg6[%249, %c0_91, %c0_92] : memref<8x8x512xf32, #tpu.memory_space<vmem>>, vector<1x8x512xf32>
    %251 = vector.shape_cast %250 : vector<1x8x512xf32> to vector<8x512xf32>
    %252 = arith.truncf %242 : vector<8x128xf32> to vector<8x128xbf16>
    %c0_93 = arith.constant 0 : index
    %c0_94 = arith.constant 0 : index
    %253 = vector.load %arg7[%c0_93, %c0_94] : memref<128x512xbf16, #tpu.memory_space<vmem>>, vector<128x512xbf16>
    %cst_95 = arith.constant dense<0.000000e+00> : vector<8x512xf32>
    %254 = tpu.matmul %252, %253, %cst_95 {dimension_numbers = #tpu.dot_dimension_numbers<[1], [0], [0], [1], [0, 0, 1, 1], [], []>} : vector<8x128xbf16>, vector<128x512xbf16>, vector<8x512xf32> -> vector<8x512xf32>
    %255 = arith.addf %251, %254 : vector<8x512xf32>
    %256 = vector.extract_strided_slice %255 {offsets = [0, 0], sizes = [8, 128], strides = [1, 1]} : vector<8x512xf32> to vector<8x128xf32>
    %257 = arith.negf %256 : vector<8x128xf32>
    %258 = math.exp %257 : vector<8x128xf32>
    %cst_96 = arith.constant 1.000000e+00 : f32
    %259 = vector.broadcast %cst_96 : f32 to vector<8x128xf32>
    %260 = arith.addf %259, %258 : vector<8x128xf32>
    %261 = arith.divf %259, %260 : vector<8x128xf32>
    %262 = vector.extract_strided_slice %255 {offsets = [0, 128], sizes = [8, 128], strides = [1, 1]} : vector<8x512xf32> to vector<8x128xf32>
    %263 = arith.negf %262 : vector<8x128xf32>
    %264 = math.exp %263 : vector<8x128xf32>
    %cst_97 = arith.constant 1.000000e+00 : f32
    %265 = vector.broadcast %cst_97 : f32 to vector<8x128xf32>
    %266 = arith.addf %265, %264 : vector<8x128xf32>
    %267 = arith.divf %265, %266 : vector<8x128xf32>
    %268 = vector.extract_strided_slice %255 {offsets = [0, 256], sizes = [8, 128], strides = [1, 1]} : vector<8x512xf32> to vector<8x128xf32>
    %269 = math.tanh %268 : vector<8x128xf32>
    %270 = vector.extract_strided_slice %255 {offsets = [0, 384], sizes = [8, 128], strides = [1, 1]} : vector<8x512xf32> to vector<8x128xf32>
    %271 = arith.negf %270 : vector<8x128xf32>
    %272 = math.exp %271 : vector<8x128xf32>
    %cst_98 = arith.constant 1.000000e+00 : f32
    %273 = vector.broadcast %cst_98 : f32 to vector<8x128xf32>
    %274 = arith.addf %273, %272 : vector<8x128xf32>
    %275 = arith.divf %273, %274 : vector<8x128xf32>
    %276 = arith.mulf %267, %240 : vector<8x128xf32>
    %277 = arith.mulf %261, %269 : vector<8x128xf32>
    %278 = arith.addf %276, %277 : vector<8x128xf32>
    %279 = math.tanh %278 : vector<8x128xf32>
    %280 = arith.mulf %275, %279 : vector<8x128xf32>
    %281 = arith.index_cast %248 : i32 to index
    %c0_99 = arith.constant 0 : index
    %c0_100 = arith.constant 0 : index
    %282 = vector.load %arg5[%281, %c0_99, %c0_100] : memref<8x8x128xf32, #tpu.memory_space<vmem>>, vector<1x8x128xf32>
    %283 = vector.shape_cast %282 : vector<1x8x128xf32> to vector<8x128xf32>
    %284 = vector.shape_cast %280 : vector<8x128xf32> to vector<1x8x128xf32>
    tpu.vector_store %arg5[%281, %c0_99, %c0_100], %284 {strides = array<i32>} : memref<8x8x128xf32, #tpu.memory_space<vmem>>, vector<1x8x128xf32>,
    %c0_i32_101 = arith.constant 0 : i32
    %285 = arith.cmpi eq, %arg0, %c0_i32_101 : i32
    %c7_i32_102 = arith.constant 7 : i32
    %c0_i32_103 = arith.constant 0 : i32
    %286 = arith.select %285, %c7_i32_102, %c0_i32_103 : i32
    %287 = arith.index_cast %286 : i32 to index
    %c0_104 = arith.constant 0 : index
    %c0_105 = arith.constant 0 : index
    %288 = vector.load %arg6[%287, %c0_104, %c0_105] : memref<8x8x512xf32, #tpu.memory_space<vmem>>, vector<1x8x512xf32>
    %289 = vector.shape_cast %288 : vector<1x8x512xf32> to vector<8x512xf32>
    %290 = arith.truncf %280 : vector<8x128xf32> to vector<8x128xbf16>
    %c0_106 = arith.constant 0 : index
    %c0_107 = arith.constant 0 : index
    %291 = vector.load %arg7[%c0_106, %c0_107] : memref<128x512xbf16, #tpu.memory_space<vmem>>, vector<128x512xbf16>
    %cst_108 = arith.constant dense<0.000000e+00> : vector<8x512xf32>
    %292 = tpu.matmul %290, %291, %cst_108 {dimension_numbers = #tpu.dot_dimension_numbers<[1], [0], [0], [1], [0, 0, 1, 1], [], []>} : vector<8x128xbf16>, vector<128x512xbf16>, vector<8x512xf32> -> vector<8x512xf32>
    %293 = arith.addf %289, %292 : vector<8x512xf32>
    %294 = vector.extract_strided_slice %293 {offsets = [0, 0], sizes = [8, 128], strides = [1, 1]} : vector<8x512xf32> to vector<8x128xf32>
    %295 = arith.negf %294 : vector<8x128xf32>
    %296 = math.exp %295 : vector<8x128xf32>
    %cst_109 = arith.constant 1.000000e+00 : f32
    %297 = vector.broadcast %cst_109 : f32 to vector<8x128xf32>
    %298 = arith.addf %297, %296 : vector<8x128xf32>
    %299 = arith.divf %297, %298 : vector<8x128xf32>
    %300 = vector.extract_strided_slice %293 {offsets = [0, 128], sizes = [8, 128], strides = [1, 1]} : vector<8x512xf32> to vector<8x128xf32>
    %301 = arith.negf %300 : vector<8x128xf32>
    %302 = math.exp %301 : vector<8x128xf32>
    %cst_110 = arith.constant 1.000000e+00 : f32
    %303 = vector.broadcast %cst_110 : f32 to vector<8x128xf32>
    %304 = arith.addf %303, %302 : vector<8x128xf32>
    %305 = arith.divf %303, %304 : vector<8x128xf32>
    %306 = vector.extract_strided_slice %293 {offsets = [0, 256], sizes = [8, 128], strides = [1, 1]} : vector<8x512xf32> to vector<8x128xf32>
    %307 = math.tanh %306 : vector<8x128xf32>
    %308 = vector.extract_strided_slice %293 {offsets = [0, 384], sizes = [8, 128], strides = [1, 1]} : vector<8x512xf32> to vector<8x128xf32>
    %309 = arith.negf %308 : vector<8x128xf32>
    %310 = math.exp %309 : vector<8x128xf32>
    %cst_111 = arith.constant 1.000000e+00 : f32
    %311 = vector.broadcast %cst_111 : f32 to vector<8x128xf32>
    %312 = arith.addf %311, %310 : vector<8x128xf32>
    %313 = arith.divf %311, %312 : vector<8x128xf32>
    %314 = arith.mulf %305, %278 : vector<8x128xf32>
    %315 = arith.mulf %299, %307 : vector<8x128xf32>
    %316 = arith.addf %314, %315 : vector<8x128xf32>
    %317 = math.tanh %316 : vector<8x128xf32>
    %318 = arith.mulf %313, %317 : vector<8x128xf32>
    %319 = arith.index_cast %286 : i32 to index
    %c0_112 = arith.constant 0 : index
    %c0_113 = arith.constant 0 : index
    %320 = vector.load %arg5[%319, %c0_112, %c0_113] : memref<8x8x128xf32, #tpu.memory_space<vmem>>, vector<1x8x128xf32>
    %321 = vector.shape_cast %320 : vector<1x8x128xf32> to vector<8x128xf32>
    %322 = vector.shape_cast %318 : vector<8x128xf32> to vector<1x8x128xf32>
    tpu.vector_store %arg5[%319, %c0_112, %c0_113], %322 {strides = array<i32>} : memref<8x8x128xf32, #tpu.memory_space<vmem>>, vector<1x8x128xf32>,
    return
  }
  func.func @transform_0(%arg0: i32) -> (i32, i32, i32) {
    %c0_i32 = arith.constant 0 : i32
    %c0_i32_0 = arith.constant 0 : i32
    %c0_i32_1 = arith.constant 0 : i32
    %c0_i32_2 = arith.constant 0 : i32
    return %c0_i32, %c0_i32_0, %c0_i32_1 : i32, i32, i32
  }
  func.func @transform_1(%arg0: i32) -> (i32, i32, i32) {
    %c0_i32 = arith.constant 0 : i32
    %c0_i32_0 = arith.constant 0 : i32
    %c0_i32_1 = arith.constant 0 : i32
    return %arg0, %c0_i32, %c0_i32_0 : i32, i32, i32
  }
  func.func @transform_2(%arg0: i32) -> (i32, i32, i32) {
    %c0_i32 = arith.constant 0 : i32
    %c0_i32_0 = arith.constant 0 : i32
    %c0_i32_1 = arith.constant 0 : i32
    return %arg0, %c0_i32, %c0_i32_0 : i32, i32, i32
  }
  func.func @transform_3(%arg0: i32) -> (i32, i32, i32) {
    %c0_i32 = arith.constant 0 : i32
    %c0_i32_0 = arith.constant 0 : i32
    %c0_i32_1 = arith.constant 0 : i32
    return %arg0, %c0_i32, %c0_i32_0 : i32, i32, i32
  }
  func.func @transform_4(%arg0: i32) -> (i32, i32, i32) {
    %c0_i32 = arith.constant 0 : i32
    %c0_i32_0 = arith.constant 0 : i32
    %c0_i32_1 = arith.constant 0 : i32
    return %c0_i32, %c0_i32_0, %arg0 : i32, i32, i32
  }
}

module attributes {stable_mosaic.version = 11 : i64} {
  func.func @lstm_layer_kernel(%arg0: i32, %arg1: memref<8x8x256xf32, #tpu.memory_space<vmem>>, %arg2: memref<1x256x512xf32, #tpu.memory_space<vmem>>, %arg3: memref<1x128x512xf32, #tpu.memory_space<vmem>>, %arg4: memref<1x1x512xf32, #tpu.memory_space<vmem>>, %arg5: memref<8x8x128xf32, #tpu.memory_space<vmem>>, %arg6: memref<8x8x512xf32, #tpu.memory_space<vmem>>, %arg7: memref<128x512xbf16, #tpu.memory_space<vmem>>) attributes {dimension_semantics = [#tpu.dimension_semantics<parallel>], iteration_bounds = array<i64: 2>, scalar_prefetch = 0 : i64, scratch_operands = 2 : i64, tpu.core_type = #tpu.core_type<tc>, window_params = [{pipeline_mode = #tpu.pipeline_mode<synchronous>, transform_indices = @transform_0, window_bounds = array<i64: 8, 8, 256>}, {transform_indices = @transform_1, window_bounds = array<i64: 1, 256, 512>}, {transform_indices = @transform_2, window_bounds = array<i64: 1, 128, 512>}, {transform_indices = @transform_3, window_bounds = array<i64: 1, 1, 512>}, {transform_indices = @transform_4, window_bounds = array<i64: 8, 8, 128>}]} {
    %c0 = arith.constant 0 : index
    %c0_0 = arith.constant 0 : index
    %c0_1 = arith.constant 0 : index
    %0 = vector.load %arg1[%c0, %c0_0, %c0_1] : memref<8x8x256xf32, #tpu.memory_space<vmem>>, vector<8x8x256xf32>
    %1 = vector.shape_cast %0 : vector<8x8x256xf32> to vector<64x256xf32>
    %2 = arith.truncf %1 : vector<64x256xf32> to vector<64x256xbf16>
    %c0_2 = arith.constant 0 : index
    %c0_3 = arith.constant 0 : index
    %c0_4 = arith.constant 0 : index
    %3 = vector.load %arg2[%c0_2, %c0_3, %c0_4] : memref<1x256x512xf32, #tpu.memory_space<vmem>>, vector<1x256x512xf32>
    %4 = vector.shape_cast %3 : vector<1x256x512xf32> to vector<256x512xf32>
    %5 = arith.truncf %4 : vector<256x512xf32> to vector<256x512xbf16>
    %cst = arith.constant dense<0.000000e+00> : vector<64x512xf32>
    %6 = tpu.matmul %2, %5, %cst {dimension_numbers = #tpu.dot_dimension_numbers<[1], [0], [0], [1], [0, 0, 1, 1], [], []>} : vector<64x256xbf16>, vector<256x512xbf16>, vector<64x512xf32> -> vector<64x512xf32>
    %c0_5 = arith.constant 0 : index
    %c0_6 = arith.constant 0 : index
    %c0_7 = arith.constant 0 : index
    %7 = vector.load %arg4[%c0_5, %c0_6, %c0_7] : memref<1x1x512xf32, #tpu.memory_space<vmem>>, vector<1x1x512xf32>
    %8 = vector.shape_cast %7 : vector<1x1x512xf32> to vector<1x512xf32>
    %9 = vector.broadcast %8 : vector<1x512xf32> to vector<64x512xf32>
    %10 = arith.addf %6, %9 : vector<64x512xf32>
    %11 = vector.shape_cast %10 : vector<64x512xf32> to vector<8x8x512xf32>
    %c0_8 = arith.constant 0 : index
    %c0_9 = arith.constant 0 : index
    %c0_10 = arith.constant 0 : index
    %12 = vector.load %arg6[%c0_8, %c0_9, %c0_10] : memref<8x8x512xf32, #tpu.memory_space<vmem>>, vector<8x8x512xf32>
    tpu.vector_store %arg6[%c0_8, %c0_9, %c0_10], %11 {strides = array<i32>} : memref<8x8x512xf32, #tpu.memory_space<vmem>>, vector<8x8x512xf32>,
    %c0_11 = arith.constant 0 : index
    %c0_12 = arith.constant 0 : index
    %c0_13 = arith.constant 0 : index
    %13 = vector.load %arg3[%c0_11, %c0_12, %c0_13] : memref<1x128x512xf32, #tpu.memory_space<vmem>>, vector<1x128x512xf32>
    %14 = vector.shape_cast %13 : vector<1x128x512xf32> to vector<128x512xf32>
    %15 = arith.truncf %14 : vector<128x512xf32> to vector<128x512xbf16>
    %c0_14 = arith.constant 0 : index
    %c0_15 = arith.constant 0 : index
    %16 = vector.load %arg7[%c0_14, %c0_15] : memref<128x512xbf16, #tpu.memory_space<vmem>>, vector<128x512xbf16>
    tpu.vector_store %arg7[%c0_14, %c0_15], %15 {strides = array<i32>} : memref<128x512xbf16, #tpu.memory_space<vmem>>, vector<128x512xbf16>,
    %cst_16 = arith.constant 0.000000e+00 : f32
    %17 = vector.broadcast %cst_16 : f32 to vector<8x128xf32>
    %cst_17 = arith.constant 0.000000e+00 : f32
    %18 = vector.broadcast %cst_17 : f32 to vector<8x128xf32>
    %c0_i32 = arith.constant 0 : i32
    %19 = arith.cmpi eq, %arg0, %c0_i32 : i32
    %c0_i32_18 = arith.constant 0 : i32
    %c7_i32 = arith.constant 7 : i32
    %20 = arith.select %19, %c0_i32_18, %c7_i32 : i32
    %21 = arith.index_cast %20 : i32 to index
    %c0_19 = arith.constant 0 : index
    %c0_20 = arith.constant 0 : index
    %22 = vector.load %arg6[%21, %c0_19, %c0_20] : memref<8x8x512xf32, #tpu.memory_space<vmem>>, vector<1x8x512xf32>
    %23 = vector.shape_cast %22 : vector<1x8x512xf32> to vector<8x512xf32>
    %24 = arith.truncf %17 : vector<8x128xf32> to vector<8x128xbf16>
    %c0_21 = arith.constant 0 : index
    %c0_22 = arith.constant 0 : index
    %25 = vector.load %arg7[%c0_21, %c0_22] : memref<128x512xbf16, #tpu.memory_space<vmem>>, vector<128x512xbf16>
    %cst_23 = arith.constant dense<0.000000e+00> : vector<8x512xf32>
    %26 = tpu.matmul %24, %25, %cst_23 {dimension_numbers = #tpu.dot_dimension_numbers<[1], [0], [0], [1], [0, 0, 1, 1], [], []>} : vector<8x128xbf16>, vector<128x512xbf16>, vector<8x512xf32> -> vector<8x512xf32>
    %27 = arith.addf %23, %26 : vector<8x512xf32>
    %28 = vector.extract_strided_slice %27 {offsets = [0, 0], sizes = [8, 128], strides = [1, 1]} : vector<8x512xf32> to vector<8x128xf32>
    %29 = arith.negf %28 : vector<8x128xf32>
    %30 = math.exp %29 : vector<8x128xf32>
    %cst_24 = arith.constant 1.000000e+00 : f32
    %31 = vector.broadcast %cst_24 : f32 to vector<8x128xf32>
    %32 = arith.addf %31, %30 : vector<8x128xf32>
    %33 = arith.divf %31, %32 : vector<8x128xf32>
    %34 = vector.extract_strided_slice %27 {offsets = [0, 128], sizes = [8, 128], strides = [1, 1]} : vector<8x512xf32> to vector<8x128xf32>
    %35 = arith.negf %34 : vector<8x128xf32>
    %36 = math.exp %35 : vector<8x128xf32>
    %cst_25 = arith.constant 1.000000e+00 : f32
    %37 = vector.broadcast %cst_25 : f32 to vector<8x128xf32>
    %38 = arith.addf %37, %36 : vector<8x128xf32>
    %39 = arith.divf %37, %38 : vector<8x128xf32>
    %40 = vector.extract_strided_slice %27 {offsets = [0, 256], sizes = [8, 128], strides = [1, 1]} : vector<8x512xf32> to vector<8x128xf32>
    %41 = math.tanh %40 : vector<8x128xf32>
    %42 = vector.extract_strided_slice %27 {offsets = [0, 384], sizes = [8, 128], strides = [1, 1]} : vector<8x512xf32> to vector<8x128xf32>
    %43 = arith.negf %42 : vector<8x128xf32>
    %44 = math.exp %43 : vector<8x128xf32>
    %cst_26 = arith.constant 1.000000e+00 : f32
    %45 = vector.broadcast %cst_26 : f32 to vector<8x128xf32>
    %46 = arith.addf %45, %44 : vector<8x128xf32>
    %47 = arith.divf %45, %46 : vector<8x128xf32>
    %48 = arith.mulf %39, %18 : vector<8x128xf32>
    %49 = arith.mulf %33, %41 : vector<8x128xf32>
    %50 = arith.addf %48, %49 : vector<8x128xf32>
    %51 = math.tanh %50 : vector<8x128xf32>
    %52 = arith.mulf %47, %51 : vector<8x128xf32>
    %53 = arith.index_cast %20 : i32 to index
    %c0_27 = arith.constant 0 : index
    %c0_28 = arith.constant 0 : index
    %54 = vector.load %arg5[%53, %c0_27, %c0_28] : memref<8x8x128xf32, #tpu.memory_space<vmem>>, vector<1x8x128xf32>
    %55 = vector.shape_cast %54 : vector<1x8x128xf32> to vector<8x128xf32>
    %56 = vector.shape_cast %52 : vector<8x128xf32> to vector<1x8x128xf32>
    tpu.vector_store %arg5[%53, %c0_27, %c0_28], %56 {strides = array<i32>} : memref<8x8x128xf32, #tpu.memory_space<vmem>>, vector<1x8x128xf32>,
    %c0_i32_29 = arith.constant 0 : i32
    %57 = arith.cmpi eq, %arg0, %c0_i32_29 : i32
    %c1_i32 = arith.constant 1 : i32
    %c6_i32 = arith.constant 6 : i32
    %58 = arith.select %57, %c1_i32, %c6_i32 : i32
    %59 = arith.index_cast %58 : i32 to index
    %c0_30 = arith.constant 0 : index
    %c0_31 = arith.constant 0 : index
    %60 = vector.load %arg6[%59, %c0_30, %c0_31] : memref<8x8x512xf32, #tpu.memory_space<vmem>>, vector<1x8x512xf32>
    %61 = vector.shape_cast %60 : vector<1x8x512xf32> to vector<8x512xf32>
    %62 = arith.truncf %52 : vector<8x128xf32> to vector<8x128xbf16>
    %c0_32 = arith.constant 0 : index
    %c0_33 = arith.constant 0 : index
    %63 = vector.load %arg7[%c0_32, %c0_33] : memref<128x512xbf16, #tpu.memory_space<vmem>>, vector<128x512xbf16>
    %cst_34 = arith.constant dense<0.000000e+00> : vector<8x512xf32>
    %64 = tpu.matmul %62, %63, %cst_34 {dimension_numbers = #tpu.dot_dimension_numbers<[1], [0], [0], [1], [0, 0, 1, 1], [], []>} : vector<8x128xbf16>, vector<128x512xbf16>, vector<8x512xf32> -> vector<8x512xf32>
    %65 = arith.addf %61, %64 : vector<8x512xf32>
    %66 = vector.extract_strided_slice %65 {offsets = [0, 0], sizes = [8, 128], strides = [1, 1]} : vector<8x512xf32> to vector<8x128xf32>
    %67 = arith.negf %66 : vector<8x128xf32>
    %68 = math.exp %67 : vector<8x128xf32>
    %cst_35 = arith.constant 1.000000e+00 : f32
    %69 = vector.broadcast %cst_35 : f32 to vector<8x128xf32>
    %70 = arith.addf %69, %68 : vector<8x128xf32>
    %71 = arith.divf %69, %70 : vector<8x128xf32>
    %72 = vector.extract_strided_slice %65 {offsets = [0, 128], sizes = [8, 128], strides = [1, 1]} : vector<8x512xf32> to vector<8x128xf32>
    %73 = arith.negf %72 : vector<8x128xf32>
    %74 = math.exp %73 : vector<8x128xf32>
    %cst_36 = arith.constant 1.000000e+00 : f32
    %75 = vector.broadcast %cst_36 : f32 to vector<8x128xf32>
    %76 = arith.addf %75, %74 : vector<8x128xf32>
    %77 = arith.divf %75, %76 : vector<8x128xf32>
    %78 = vector.extract_strided_slice %65 {offsets = [0, 256], sizes = [8, 128], strides = [1, 1]} : vector<8x512xf32> to vector<8x128xf32>
    %79 = math.tanh %78 : vector<8x128xf32>
    %80 = vector.extract_strided_slice %65 {offsets = [0, 384], sizes = [8, 128], strides = [1, 1]} : vector<8x512xf32> to vector<8x128xf32>
    %81 = arith.negf %80 : vector<8x128xf32>
    %82 = math.exp %81 : vector<8x128xf32>
    %cst_37 = arith.constant 1.000000e+00 : f32
    %83 = vector.broadcast %cst_37 : f32 to vector<8x128xf32>
    %84 = arith.addf %83, %82 : vector<8x128xf32>
    %85 = arith.divf %83, %84 : vector<8x128xf32>
    %86 = arith.mulf %77, %50 : vector<8x128xf32>
    %87 = arith.mulf %71, %79 : vector<8x128xf32>
    %88 = arith.addf %86, %87 : vector<8x128xf32>
    %89 = math.tanh %88 : vector<8x128xf32>
    %90 = arith.mulf %85, %89 : vector<8x128xf32>
    %91 = arith.index_cast %58 : i32 to index
    %c0_38 = arith.constant 0 : index
    %c0_39 = arith.constant 0 : index
    %92 = vector.load %arg5[%91, %c0_38, %c0_39] : memref<8x8x128xf32, #tpu.memory_space<vmem>>, vector<1x8x128xf32>
    %93 = vector.shape_cast %92 : vector<1x8x128xf32> to vector<8x128xf32>
    %94 = vector.shape_cast %90 : vector<8x128xf32> to vector<1x8x128xf32>
    tpu.vector_store %arg5[%91, %c0_38, %c0_39], %94 {strides = array<i32>} : memref<8x8x128xf32, #tpu.memory_space<vmem>>, vector<1x8x128xf32>,
    %c0_i32_40 = arith.constant 0 : i32
    %95 = arith.cmpi eq, %arg0, %c0_i32_40 : i32
    %c2_i32 = arith.constant 2 : i32
    %c5_i32 = arith.constant 5 : i32
    %96 = arith.select %95, %c2_i32, %c5_i32 : i32
    %97 = arith.index_cast %96 : i32 to index
    %c0_41 = arith.constant 0 : index
    %c0_42 = arith.constant 0 : index
    %98 = vector.load %arg6[%97, %c0_41, %c0_42] : memref<8x8x512xf32, #tpu.memory_space<vmem>>, vector<1x8x512xf32>
    %99 = vector.shape_cast %98 : vector<1x8x512xf32> to vector<8x512xf32>
    %100 = arith.truncf %90 : vector<8x128xf32> to vector<8x128xbf16>
    %c0_43 = arith.constant 0 : index
    %c0_44 = arith.constant 0 : index
    %101 = vector.load %arg7[%c0_43, %c0_44] : memref<128x512xbf16, #tpu.memory_space<vmem>>, vector<128x512xbf16>
    %cst_45 = arith.constant dense<0.000000e+00> : vector<8x512xf32>
    %102 = tpu.matmul %100, %101, %cst_45 {dimension_numbers = #tpu.dot_dimension_numbers<[1], [0], [0], [1], [0, 0, 1, 1], [], []>} : vector<8x128xbf16>, vector<128x512xbf16>, vector<8x512xf32> -> vector<8x512xf32>
    %103 = arith.addf %99, %102 : vector<8x512xf32>
    %104 = vector.extract_strided_slice %103 {offsets = [0, 0], sizes = [8, 128], strides = [1, 1]} : vector<8x512xf32> to vector<8x128xf32>
    %105 = arith.negf %104 : vector<8x128xf32>
    %106 = math.exp %105 : vector<8x128xf32>
    %cst_46 = arith.constant 1.000000e+00 : f32
    %107 = vector.broadcast %cst_46 : f32 to vector<8x128xf32>
    %108 = arith.addf %107, %106 : vector<8x128xf32>
    %109 = arith.divf %107, %108 : vector<8x128xf32>
    %110 = vector.extract_strided_slice %103 {offsets = [0, 128], sizes = [8, 128], strides = [1, 1]} : vector<8x512xf32> to vector<8x128xf32>
    %111 = arith.negf %110 : vector<8x128xf32>
    %112 = math.exp %111 : vector<8x128xf32>
    %cst_47 = arith.constant 1.000000e+00 : f32
    %113 = vector.broadcast %cst_47 : f32 to vector<8x128xf32>
    %114 = arith.addf %113, %112 : vector<8x128xf32>
    %115 = arith.divf %113, %114 : vector<8x128xf32>
    %116 = vector.extract_strided_slice %103 {offsets = [0, 256], sizes = [8, 128], strides = [1, 1]} : vector<8x512xf32> to vector<8x128xf32>
    %117 = math.tanh %116 : vector<8x128xf32>
    %118 = vector.extract_strided_slice %103 {offsets = [0, 384], sizes = [8, 128], strides = [1, 1]} : vector<8x512xf32> to vector<8x128xf32>
    %119 = arith.negf %118 : vector<8x128xf32>
    %120 = math.exp %119 : vector<8x128xf32>
    %cst_48 = arith.constant 1.000000e+00 : f32
    %121 = vector.broadcast %cst_48 : f32 to vector<8x128xf32>
    %122 = arith.addf %121, %120 : vector<8x128xf32>
    %123 = arith.divf %121, %122 : vector<8x128xf32>
    %124 = arith.mulf %115, %88 : vector<8x128xf32>
    %125 = arith.mulf %109, %117 : vector<8x128xf32>
    %126 = arith.addf %124, %125 : vector<8x128xf32>
    %127 = math.tanh %126 : vector<8x128xf32>
    %128 = arith.mulf %123, %127 : vector<8x128xf32>
    %129 = arith.index_cast %96 : i32 to index
    %c0_49 = arith.constant 0 : index
    %c0_50 = arith.constant 0 : index
    %130 = vector.load %arg5[%129, %c0_49, %c0_50] : memref<8x8x128xf32, #tpu.memory_space<vmem>>, vector<1x8x128xf32>
    %131 = vector.shape_cast %130 : vector<1x8x128xf32> to vector<8x128xf32>
    %132 = vector.shape_cast %128 : vector<8x128xf32> to vector<1x8x128xf32>
    tpu.vector_store %arg5[%129, %c0_49, %c0_50], %132 {strides = array<i32>} : memref<8x8x128xf32, #tpu.memory_space<vmem>>, vector<1x8x128xf32>,
    %c0_i32_51 = arith.constant 0 : i32
    %133 = arith.cmpi eq, %arg0, %c0_i32_51 : i32
    %c3_i32 = arith.constant 3 : i32
    %c4_i32 = arith.constant 4 : i32
    %134 = arith.select %133, %c3_i32, %c4_i32 : i32
    %135 = arith.index_cast %134 : i32 to index
    %c0_52 = arith.constant 0 : index
    %c0_53 = arith.constant 0 : index
    %136 = vector.load %arg6[%135, %c0_52, %c0_53] : memref<8x8x512xf32, #tpu.memory_space<vmem>>, vector<1x8x512xf32>
    %137 = vector.shape_cast %136 : vector<1x8x512xf32> to vector<8x512xf32>
    %138 = arith.truncf %128 : vector<8x128xf32> to vector<8x128xbf16>
    %c0_54 = arith.constant 0 : index
    %c0_55 = arith.constant 0 : index
    %139 = vector.load %arg7[%c0_54, %c0_55] : memref<128x512xbf16, #tpu.memory_space<vmem>>, vector<128x512xbf16>
    %cst_56 = arith.constant dense<0.000000e+00> : vector<8x512xf32>
    %140 = tpu.matmul %138, %139, %cst_56 {dimension_numbers = #tpu.dot_dimension_numbers<[1], [0], [0], [1], [0, 0, 1, 1], [], []>} : vector<8x128xbf16>, vector<128x512xbf16>, vector<8x512xf32> -> vector<8x512xf32>
    %141 = arith.addf %137, %140 : vector<8x512xf32>
    %142 = vector.extract_strided_slice %141 {offsets = [0, 0], sizes = [8, 128], strides = [1, 1]} : vector<8x512xf32> to vector<8x128xf32>
    %143 = arith.negf %142 : vector<8x128xf32>
    %144 = math.exp %143 : vector<8x128xf32>
    %cst_57 = arith.constant 1.000000e+00 : f32
    %145 = vector.broadcast %cst_57 : f32 to vector<8x128xf32>
    %146 = arith.addf %145, %144 : vector<8x128xf32>
    %147 = arith.divf %145, %146 : vector<8x128xf32>
    %148 = vector.extract_strided_slice %141 {offsets = [0, 128], sizes = [8, 128], strides = [1, 1]} : vector<8x512xf32> to vector<8x128xf32>
    %149 = arith.negf %148 : vector<8x128xf32>
    %150 = math.exp %149 : vector<8x128xf32>
    %cst_58 = arith.constant 1.000000e+00 : f32
    %151 = vector.broadcast %cst_58 : f32 to vector<8x128xf32>
    %152 = arith.addf %151, %150 : vector<8x128xf32>
    %153 = arith.divf %151, %152 : vector<8x128xf32>
    %154 = vector.extract_strided_slice %141 {offsets = [0, 256], sizes = [8, 128], strides = [1, 1]} : vector<8x512xf32> to vector<8x128xf32>
    %155 = math.tanh %154 : vector<8x128xf32>
    %156 = vector.extract_strided_slice %141 {offsets = [0, 384], sizes = [8, 128], strides = [1, 1]} : vector<8x512xf32> to vector<8x128xf32>
    %157 = arith.negf %156 : vector<8x128xf32>
    %158 = math.exp %157 : vector<8x128xf32>
    %cst_59 = arith.constant 1.000000e+00 : f32
    %159 = vector.broadcast %cst_59 : f32 to vector<8x128xf32>
    %160 = arith.addf %159, %158 : vector<8x128xf32>
    %161 = arith.divf %159, %160 : vector<8x128xf32>
    %162 = arith.mulf %153, %126 : vector<8x128xf32>
    %163 = arith.mulf %147, %155 : vector<8x128xf32>
    %164 = arith.addf %162, %163 : vector<8x128xf32>
    %165 = math.tanh %164 : vector<8x128xf32>
    %166 = arith.mulf %161, %165 : vector<8x128xf32>
    %167 = arith.index_cast %134 : i32 to index
    %c0_60 = arith.constant 0 : index
    %c0_61 = arith.constant 0 : index
    %168 = vector.load %arg5[%167, %c0_60, %c0_61] : memref<8x8x128xf32, #tpu.memory_space<vmem>>, vector<1x8x128xf32>
    %169 = vector.shape_cast %168 : vector<1x8x128xf32> to vector<8x128xf32>
    %170 = vector.shape_cast %166 : vector<8x128xf32> to vector<1x8x128xf32>
    tpu.vector_store %arg5[%167, %c0_60, %c0_61], %170 {strides = array<i32>} : memref<8x8x128xf32, #tpu.memory_space<vmem>>, vector<1x8x128xf32>,
    %c0_i32_62 = arith.constant 0 : i32
    %171 = arith.cmpi eq, %arg0, %c0_i32_62 : i32
    %c4_i32_63 = arith.constant 4 : i32
    %c3_i32_64 = arith.constant 3 : i32
    %172 = arith.select %171, %c4_i32_63, %c3_i32_64 : i32
    %173 = arith.index_cast %172 : i32 to index
    %c0_65 = arith.constant 0 : index
    %c0_66 = arith.constant 0 : index
    %174 = vector.load %arg6[%173, %c0_65, %c0_66] : memref<8x8x512xf32, #tpu.memory_space<vmem>>, vector<1x8x512xf32>
    %175 = vector.shape_cast %174 : vector<1x8x512xf32> to vector<8x512xf32>
    %176 = arith.truncf %166 : vector<8x128xf32> to vector<8x128xbf16>
    %c0_67 = arith.constant 0 : index
    %c0_68 = arith.constant 0 : index
    %177 = vector.load %arg7[%c0_67, %c0_68] : memref<128x512xbf16, #tpu.memory_space<vmem>>, vector<128x512xbf16>
    %cst_69 = arith.constant dense<0.000000e+00> : vector<8x512xf32>
    %178 = tpu.matmul %176, %177, %cst_69 {dimension_numbers = #tpu.dot_dimension_numbers<[1], [0], [0], [1], [0, 0, 1, 1], [], []>} : vector<8x128xbf16>, vector<128x512xbf16>, vector<8x512xf32> -> vector<8x512xf32>
    %179 = arith.addf %175, %178 : vector<8x512xf32>
    %180 = vector.extract_strided_slice %179 {offsets = [0, 0], sizes = [8, 128], strides = [1, 1]} : vector<8x512xf32> to vector<8x128xf32>
    %181 = arith.negf %180 : vector<8x128xf32>
    %182 = math.exp %181 : vector<8x128xf32>
    %cst_70 = arith.constant 1.000000e+00 : f32
    %183 = vector.broadcast %cst_70 : f32 to vector<8x128xf32>
    %184 = arith.addf %183, %182 : vector<8x128xf32>
    %185 = arith.divf %183, %184 : vector<8x128xf32>
    %186 = vector.extract_strided_slice %179 {offsets = [0, 128], sizes = [8, 128], strides = [1, 1]} : vector<8x512xf32> to vector<8x128xf32>
    %187 = arith.negf %186 : vector<8x128xf32>
    %188 = math.exp %187 : vector<8x128xf32>
    %cst_71 = arith.constant 1.000000e+00 : f32
    %189 = vector.broadcast %cst_71 : f32 to vector<8x128xf32>
    %190 = arith.addf %189, %188 : vector<8x128xf32>
    %191 = arith.divf %189, %190 : vector<8x128xf32>
    %192 = vector.extract_strided_slice %179 {offsets = [0, 256], sizes = [8, 128], strides = [1, 1]} : vector<8x512xf32> to vector<8x128xf32>
    %193 = math.tanh %192 : vector<8x128xf32>
    %194 = vector.extract_strided_slice %179 {offsets = [0, 384], sizes = [8, 128], strides = [1, 1]} : vector<8x512xf32> to vector<8x128xf32>
    %195 = arith.negf %194 : vector<8x128xf32>
    %196 = math.exp %195 : vector<8x128xf32>
    %cst_72 = arith.constant 1.000000e+00 : f32
    %197 = vector.broadcast %cst_72 : f32 to vector<8x128xf32>
    %198 = arith.addf %197, %196 : vector<8x128xf32>
    %199 = arith.divf %197, %198 : vector<8x128xf32>
    %200 = arith.mulf %191, %164 : vector<8x128xf32>
    %201 = arith.mulf %185, %193 : vector<8x128xf32>
    %202 = arith.addf %200, %201 : vector<8x128xf32>
    %203 = math.tanh %202 : vector<8x128xf32>
    %204 = arith.mulf %199, %203 : vector<8x128xf32>
    %205 = arith.index_cast %172 : i32 to index
    %c0_73 = arith.constant 0 : index
    %c0_74 = arith.constant 0 : index
    %206 = vector.load %arg5[%205, %c0_73, %c0_74] : memref<8x8x128xf32, #tpu.memory_space<vmem>>, vector<1x8x128xf32>
    %207 = vector.shape_cast %206 : vector<1x8x128xf32> to vector<8x128xf32>
    %208 = vector.shape_cast %204 : vector<8x128xf32> to vector<1x8x128xf32>
    tpu.vector_store %arg5[%205, %c0_73, %c0_74], %208 {strides = array<i32>} : memref<8x8x128xf32, #tpu.memory_space<vmem>>, vector<1x8x128xf32>,
    %c0_i32_75 = arith.constant 0 : i32
    %209 = arith.cmpi eq, %arg0, %c0_i32_75 : i32
    %c5_i32_76 = arith.constant 5 : i32
    %c2_i32_77 = arith.constant 2 : i32
    %210 = arith.select %209, %c5_i32_76, %c2_i32_77 : i32
    %211 = arith.index_cast %210 : i32 to index
    %c0_78 = arith.constant 0 : index
    %c0_79 = arith.constant 0 : index
    %212 = vector.load %arg6[%211, %c0_78, %c0_79] : memref<8x8x512xf32, #tpu.memory_space<vmem>>, vector<1x8x512xf32>
    %213 = vector.shape_cast %212 : vector<1x8x512xf32> to vector<8x512xf32>
    %214 = arith.truncf %204 : vector<8x128xf32> to vector<8x128xbf16>
    %c0_80 = arith.constant 0 : index
    %c0_81 = arith.constant 0 : index
    %215 = vector.load %arg7[%c0_80, %c0_81] : memref<128x512xbf16, #tpu.memory_space<vmem>>, vector<128x512xbf16>
    %cst_82 = arith.constant dense<0.000000e+00> : vector<8x512xf32>
    %216 = tpu.matmul %214, %215, %cst_82 {dimension_numbers = #tpu.dot_dimension_numbers<[1], [0], [0], [1], [0, 0, 1, 1], [], []>} : vector<8x128xbf16>, vector<128x512xbf16>, vector<8x512xf32> -> vector<8x512xf32>
    %217 = arith.addf %213, %216 : vector<8x512xf32>
    %218 = vector.extract_strided_slice %217 {offsets = [0, 0], sizes = [8, 128], strides = [1, 1]} : vector<8x512xf32> to vector<8x128xf32>
    %219 = arith.negf %218 : vector<8x128xf32>
    %220 = math.exp %219 : vector<8x128xf32>
    %cst_83 = arith.constant 1.000000e+00 : f32
    %221 = vector.broadcast %cst_83 : f32 to vector<8x128xf32>
    %222 = arith.addf %221, %220 : vector<8x128xf32>
    %223 = arith.divf %221, %222 : vector<8x128xf32>
    %224 = vector.extract_strided_slice %217 {offsets = [0, 128], sizes = [8, 128], strides = [1, 1]} : vector<8x512xf32> to vector<8x128xf32>
    %225 = arith.negf %224 : vector<8x128xf32>
    %226 = math.exp %225 : vector<8x128xf32>
    %cst_84 = arith.constant 1.000000e+00 : f32
    %227 = vector.broadcast %cst_84 : f32 to vector<8x128xf32>
    %228 = arith.addf %227, %226 : vector<8x128xf32>
    %229 = arith.divf %227, %228 : vector<8x128xf32>
    %230 = vector.extract_strided_slice %217 {offsets = [0, 256], sizes = [8, 128], strides = [1, 1]} : vector<8x512xf32> to vector<8x128xf32>
    %231 = math.tanh %230 : vector<8x128xf32>
    %232 = vector.extract_strided_slice %217 {offsets = [0, 384], sizes = [8, 128], strides = [1, 1]} : vector<8x512xf32> to vector<8x128xf32>
    %233 = arith.negf %232 : vector<8x128xf32>
    %234 = math.exp %233 : vector<8x128xf32>
    %cst_85 = arith.constant 1.000000e+00 : f32
    %235 = vector.broadcast %cst_85 : f32 to vector<8x128xf32>
    %236 = arith.addf %235, %234 : vector<8x128xf32>
    %237 = arith.divf %235, %236 : vector<8x128xf32>
    %238 = arith.mulf %229, %202 : vector<8x128xf32>
    %239 = arith.mulf %223, %231 : vector<8x128xf32>
    %240 = arith.addf %238, %239 : vector<8x128xf32>
    %241 = math.tanh %240 : vector<8x128xf32>
    %242 = arith.mulf %237, %241 : vector<8x128xf32>
    %243 = arith.index_cast %210 : i32 to index
    %c0_86 = arith.constant 0 : index
    %c0_87 = arith.constant 0 : index
    %244 = vector.load %arg5[%243, %c0_86, %c0_87] : memref<8x8x128xf32, #tpu.memory_space<vmem>>, vector<1x8x128xf32>
    %245 = vector.shape_cast %244 : vector<1x8x128xf32> to vector<8x128xf32>
    %246 = vector.shape_cast %242 : vector<8x128xf32> to vector<1x8x128xf32>
    tpu.vector_store %arg5[%243, %c0_86, %c0_87], %246 {strides = array<i32>} : memref<8x8x128xf32, #tpu.memory_space<vmem>>, vector<1x8x128xf32>,
    %c0_i32_88 = arith.constant 0 : i32
    %247 = arith.cmpi eq, %arg0, %c0_i32_88 : i32
    %c6_i32_89 = arith.constant 6 : i32
    %c1_i32_90 = arith.constant 1 : i32
    %248 = arith.select %247, %c6_i32_89, %c1_i32_90 : i32
    %249 = arith.index_cast %248 : i32 to index
    %c0_91 = arith.constant 0 : index
    %c0_92 = arith.constant 0 : index
    %250 = vector.load %arg6[%249, %c0_91, %c0_92] : memref<8x8x512xf32, #tpu.memory_space<vmem>>, vector<1x8x512xf32>
    %251 = vector.shape_cast %250 : vector<1x8x512xf32> to vector<8x512xf32>
    %252 = arith.truncf %242 : vector<8x128xf32> to vector<8x128xbf16>
    %c0_93 = arith.constant 0 : index
    %c0_94 = arith.constant 0 : index
    %253 = vector.load %arg7[%c0_93, %c0_94] : memref<128x512xbf16, #tpu.memory_space<vmem>>, vector<128x512xbf16>
    %cst_95 = arith.constant dense<0.000000e+00> : vector<8x512xf32>
    %254 = tpu.matmul %252, %253, %cst_95 {dimension_numbers = #tpu.dot_dimension_numbers<[1], [0], [0], [1], [0, 0, 1, 1], [], []>} : vector<8x128xbf16>, vector<128x512xbf16>, vector<8x512xf32> -> vector<8x512xf32>
    %255 = arith.addf %251, %254 : vector<8x512xf32>
    %256 = vector.extract_strided_slice %255 {offsets = [0, 0], sizes = [8, 128], strides = [1, 1]} : vector<8x512xf32> to vector<8x128xf32>
    %257 = arith.negf %256 : vector<8x128xf32>
    %258 = math.exp %257 : vector<8x128xf32>
    %cst_96 = arith.constant 1.000000e+00 : f32
    %259 = vector.broadcast %cst_96 : f32 to vector<8x128xf32>
    %260 = arith.addf %259, %258 : vector<8x128xf32>
    %261 = arith.divf %259, %260 : vector<8x128xf32>
    %262 = vector.extract_strided_slice %255 {offsets = [0, 128], sizes = [8, 128], strides = [1, 1]} : vector<8x512xf32> to vector<8x128xf32>
    %263 = arith.negf %262 : vector<8x128xf32>
    %264 = math.exp %263 : vector<8x128xf32>
    %cst_97 = arith.constant 1.000000e+00 : f32
    %265 = vector.broadcast %cst_97 : f32 to vector<8x128xf32>
    %266 = arith.addf %265, %264 : vector<8x128xf32>
    %267 = arith.divf %265, %266 : vector<8x128xf32>
    %268 = vector.extract_strided_slice %255 {offsets = [0, 256], sizes = [8, 128], strides = [1, 1]} : vector<8x512xf32> to vector<8x128xf32>
    %269 = math.tanh %268 : vector<8x128xf32>
    %270 = vector.extract_strided_slice %255 {offsets = [0, 384], sizes = [8, 128], strides = [1, 1]} : vector<8x512xf32> to vector<8x128xf32>
    %271 = arith.negf %270 : vector<8x128xf32>
    %272 = math.exp %271 : vector<8x128xf32>
    %cst_98 = arith.constant 1.000000e+00 : f32
    %273 = vector.broadcast %cst_98 : f32 to vector<8x128xf32>
    %274 = arith.addf %273, %272 : vector<8x128xf32>
    %275 = arith.divf %273, %274 : vector<8x128xf32>
    %276 = arith.mulf %267, %240 : vector<8x128xf32>
    %277 = arith.mulf %261, %269 : vector<8x128xf32>
    %278 = arith.addf %276, %277 : vector<8x128xf32>
    %279 = math.tanh %278 : vector<8x128xf32>
    %280 = arith.mulf %275, %279 : vector<8x128xf32>
    %281 = arith.index_cast %248 : i32 to index
    %c0_99 = arith.constant 0 : index
    %c0_100 = arith.constant 0 : index
    %282 = vector.load %arg5[%281, %c0_99, %c0_100] : memref<8x8x128xf32, #tpu.memory_space<vmem>>, vector<1x8x128xf32>
    %283 = vector.shape_cast %282 : vector<1x8x128xf32> to vector<8x128xf32>
    %284 = vector.shape_cast %280 : vector<8x128xf32> to vector<1x8x128xf32>
    tpu.vector_store %arg5[%281, %c0_99, %c0_100], %284 {strides = array<i32>} : memref<8x8x128xf32, #tpu.memory_space<vmem>>, vector<1x8x128xf32>,
    %c0_i32_101 = arith.constant 0 : i32
    %285 = arith.cmpi eq, %arg0, %c0_i32_101 : i32
    %c7_i32_102 = arith.constant 7 : i32
    %c0_i32_103 = arith.constant 0 : i32
    %286 = arith.select %285, %c7_i32_102, %c0_i32_103 : i32
    %287 = arith.index_cast %286 : i32 to index
    %c0_104 = arith.constant 0 : index
    %c0_105 = arith.constant 0 : index
    %288 = vector.load %arg6[%287, %c0_104, %c0_105] : memref<8x8x512xf32, #tpu.memory_space<vmem>>, vector<1x8x512xf32>
    %289 = vector.shape_cast %288 : vector<1x8x512xf32> to vector<8x512xf32>
    %290 = arith.truncf %280 : vector<8x128xf32> to vector<8x128xbf16>
    %c0_106 = arith.constant 0 : index
    %c0_107 = arith.constant 0 : index
    %291 = vector.load %arg7[%c0_106, %c0_107] : memref<128x512xbf16, #tpu.memory_space<vmem>>, vector<128x512xbf16>
    %cst_108 = arith.constant dense<0.000000e+00> : vector<8x512xf32>
    %292 = tpu.matmul %290, %291, %cst_108 {dimension_numbers = #tpu.dot_dimension_numbers<[1], [0], [0], [1], [0, 0, 1, 1], [], []>} : vector<8x128xbf16>, vector<128x512xbf16>, vector<8x512xf32> -> vector<8x512xf32>
    %293 = arith.addf %289, %292 : vector<8x512xf32>
    %294 = vector.extract_strided_slice %293 {offsets = [0, 0], sizes = [8, 128], strides = [1, 1]} : vector<8x512xf32> to vector<8x128xf32>
    %295 = arith.negf %294 : vector<8x128xf32>
    %296 = math.exp %295 : vector<8x128xf32>
    %cst_109 = arith.constant 1.000000e+00 : f32
    %297 = vector.broadcast %cst_109 : f32 to vector<8x128xf32>
    %298 = arith.addf %297, %296 : vector<8x128xf32>
    %299 = arith.divf %297, %298 : vector<8x128xf32>
    %300 = vector.extract_strided_slice %293 {offsets = [0, 128], sizes = [8, 128], strides = [1, 1]} : vector<8x512xf32> to vector<8x128xf32>
    %301 = arith.negf %300 : vector<8x128xf32>
    %302 = math.exp %301 : vector<8x128xf32>
    %cst_110 = arith.constant 1.000000e+00 : f32
    %303 = vector.broadcast %cst_110 : f32 to vector<8x128xf32>
    %304 = arith.addf %303, %302 : vector<8x128xf32>
    %305 = arith.divf %303, %304 : vector<8x128xf32>
    %306 = vector.extract_strided_slice %293 {offsets = [0, 256], sizes = [8, 128], strides = [1, 1]} : vector<8x512xf32> to vector<8x128xf32>
    %307 = math.tanh %306 : vector<8x128xf32>
    %308 = vector.extract_strided_slice %293 {offsets = [0, 384], sizes = [8, 128], strides = [1, 1]} : vector<8x512xf32> to vector<8x128xf32>
    %309 = arith.negf %308 : vector<8x128xf32>
    %310 = math.exp %309 : vector<8x128xf32>
    %cst_111 = arith.constant 1.000000e+00 : f32
    %311 = vector.broadcast %cst_111 : f32 to vector<8x128xf32>
    %312 = arith.addf %311, %310 : vector<8x128xf32>
    %313 = arith.divf %311, %312 : vector<8x128xf32>
    %314 = arith.mulf %305, %278 : vector<8x128xf32>
    %315 = arith.mulf %299, %307 : vector<8x128xf32>
    %316 = arith.addf %314, %315 : vector<8x128xf32>
    %317 = math.tanh %316 : vector<8x128xf32>
    %318 = arith.mulf %313, %317 : vector<8x128xf32>
    %319 = arith.index_cast %286 : i32 to index
    %c0_112 = arith.constant 0 : index
    %c0_113 = arith.constant 0 : index
    %320 = vector.load %arg5[%319, %c0_112, %c0_113] : memref<8x8x128xf32, #tpu.memory_space<vmem>>, vector<1x8x128xf32>
    %321 = vector.shape_cast %320 : vector<1x8x128xf32> to vector<8x128xf32>
    %322 = vector.shape_cast %318 : vector<8x128xf32> to vector<1x8x128xf32>
    tpu.vector_store %arg5[%319, %c0_112, %c0_113], %322 {strides = array<i32>} : memref<8x8x128xf32, #tpu.memory_space<vmem>>, vector<1x8x128xf32>,
    return
  }
  func.func @transform_0(%arg0: i32) -> (i32, i32, i32) {
    %c0_i32 = arith.constant 0 : i32
    %c0_i32_0 = arith.constant 0 : i32
    %c0_i32_1 = arith.constant 0 : i32
    %c0_i32_2 = arith.constant 0 : i32
    return %c0_i32, %c0_i32_0, %c0_i32_1 : i32, i32, i32
  }
  func.func @transform_1(%arg0: i32) -> (i32, i32, i32) {
    %c0_i32 = arith.constant 0 : i32
    %c0_i32_0 = arith.constant 0 : i32
    %c0_i32_1 = arith.constant 0 : i32
    return %arg0, %c0_i32, %c0_i32_0 : i32, i32, i32
  }
  func.func @transform_2(%arg0: i32) -> (i32, i32, i32) {
    %c0_i32 = arith.constant 0 : i32
    %c0_i32_0 = arith.constant 0 : i32
    %c0_i32_1 = arith.constant 0 : i32
    return %arg0, %c0_i32, %c0_i32_0 : i32, i32, i32
  }
  func.func @transform_3(%arg0: i32) -> (i32, i32, i32) {
    %c0_i32 = arith.constant 0 : i32
    %c0_i32_0 = arith.constant 0 : i32
    %c0_i32_1 = arith.constant 0 : i32
    return %arg0, %c0_i32, %c0_i32_0 : i32, i32, i32
  }
  func.func @transform_4(%arg0: i32) -> (i32, i32, i32) {
    %c0_i32 = arith.constant 0 : i32
    %c0_i32_0 = arith.constant 0 : i32
    %c0_i32_1 = arith.constant 0 : i32
    return %c0_i32, %c0_i32_0, %arg0 : i32, i32, i32
  }
}

module attributes {stable_mosaic.version = 11 : i64} {
  func.func @heads_kernel(%arg0: memref<8x8x256xf32, #tpu.memory_space<vmem>>, %arg1: memref<256x256xf32, #tpu.memory_space<vmem>>, %arg2: memref<1x256xf32, #tpu.memory_space<vmem>>, %arg3: memref<256x128xf32, #tpu.memory_space<vmem>>, %arg4: memref<1x128xf32, #tpu.memory_space<vmem>>, %arg5: memref<128x128xf32, #tpu.memory_space<vmem>>, %arg6: memref<1x128xf32, #tpu.memory_space<vmem>>, %arg7: memref<8x256x64xf32, #tpu.memory_space<vmem>>, %arg8: memref<1x64xf32, #tpu.memory_space<vmem>>, %arg9: memref<64x128xf32, #tpu.memory_space<vmem>>, %arg10: memref<1x128xf32, #tpu.memory_space<vmem>>, %arg11: memref<8x8x128xf32, #tpu.memory_space<vmem>>, %arg12: memref<8x128xf32, #tpu.memory_space<vmem>>) attributes {dimension_semantics = [], scalar_prefetch = 0 : i64, scratch_operands = 0 : i64, tpu.core_type = #tpu.core_type<tc>} {
    %c0 = arith.constant 0 : index
    %c0_0 = arith.constant 0 : index
    %c0_1 = arith.constant 0 : index
    %0 = vector.load %arg0[%c0, %c0_0, %c0_1] : memref<8x8x256xf32, #tpu.memory_space<vmem>>, vector<8x8x256xf32>
    %1 = vector.shape_cast %0 : vector<8x8x256xf32> to vector<64x256xf32>
    %2 = arith.truncf %1 : vector<64x256xf32> to vector<64x256xbf16>
    %c0_2 = arith.constant 0 : index
    %c0_3 = arith.constant 0 : index
    %3 = vector.load %arg1[%c0_2, %c0_3] : memref<256x256xf32, #tpu.memory_space<vmem>>, vector<256x256xf32>
    %4 = arith.truncf %3 : vector<256x256xf32> to vector<256x256xbf16>
    %cst = arith.constant dense<0.000000e+00> : vector<64x256xf32>
    %5 = tpu.matmul %2, %4, %cst {dimension_numbers = #tpu.dot_dimension_numbers<[1], [0], [0], [1], [0, 0, 1, 1], [], []>} : vector<64x256xbf16>, vector<256x256xbf16>, vector<64x256xf32> -> vector<64x256xf32>
    %c0_4 = arith.constant 0 : index
    %c0_5 = arith.constant 0 : index
    %6 = vector.load %arg2[%c0_4, %c0_5] : memref<1x256xf32, #tpu.memory_space<vmem>>, vector<1x256xf32>
    %7 = vector.broadcast %6 : vector<1x256xf32> to vector<64x256xf32>
    %8 = arith.addf %5, %7 : vector<64x256xf32>
    %cst_6 = arith.constant 5.000000e-01 : f32
    %9 = vector.broadcast %cst_6 : f32 to vector<64x256xf32>
    %10 = arith.mulf %9, %8 : vector<64x256xf32>
    %cst_7 = arith.constant 0.707106769 : f32
    %11 = vector.broadcast %cst_7 : f32 to vector<64x256xf32>
    %12 = arith.mulf %8, %11 : vector<64x256xf32>
    %13 = math.erf %12 : vector<64x256xf32>
    %cst_8 = arith.constant 1.000000e+00 : f32
    %14 = vector.broadcast %cst_8 : f32 to vector<64x256xf32>
    %15 = arith.addf %14, %13 : vector<64x256xf32>
    %16 = arith.mulf %10, %15 : vector<64x256xf32>
    %17 = arith.truncf %16 : vector<64x256xf32> to vector<64x256xbf16>
    %c0_9 = arith.constant 0 : index
    %c0_10 = arith.constant 0 : index
    %18 = vector.load %arg3[%c0_9, %c0_10] : memref<256x128xf32, #tpu.memory_space<vmem>>, vector<256x128xf32>
    %19 = arith.truncf %18 : vector<256x128xf32> to vector<256x128xbf16>
    %cst_11 = arith.constant dense<0.000000e+00> : vector<64x128xf32>
    %20 = tpu.matmul %17, %19, %cst_11 {dimension_numbers = #tpu.dot_dimension_numbers<[1], [0], [0], [1], [0, 0, 1, 1], [], []>} : vector<64x256xbf16>, vector<256x128xbf16>, vector<64x128xf32> -> vector<64x128xf32>
    %c0_12 = arith.constant 0 : index
    %c0_13 = arith.constant 0 : index
    %21 = vector.load %arg4[%c0_12, %c0_13] : memref<1x128xf32, #tpu.memory_space<vmem>>, vector<1x128xf32>
    %22 = vector.broadcast %21 : vector<1x128xf32> to vector<64x128xf32>
    %23 = arith.addf %20, %22 : vector<64x128xf32>
    %cst_14 = arith.constant 5.000000e-01 : f32
    %24 = vector.broadcast %cst_14 : f32 to vector<64x128xf32>
    %25 = arith.mulf %24, %23 : vector<64x128xf32>
    %cst_15 = arith.constant 0.707106769 : f32
    %26 = vector.broadcast %cst_15 : f32 to vector<64x128xf32>
    %27 = arith.mulf %23, %26 : vector<64x128xf32>
    %28 = math.erf %27 : vector<64x128xf32>
    %cst_16 = arith.constant 1.000000e+00 : f32
    %29 = vector.broadcast %cst_16 : f32 to vector<64x128xf32>
    %30 = arith.addf %29, %28 : vector<64x128xf32>
    %31 = arith.mulf %25, %30 : vector<64x128xf32>
    %32 = arith.truncf %31 : vector<64x128xf32> to vector<64x128xbf16>
    %c0_17 = arith.constant 0 : index
    %c0_18 = arith.constant 0 : index
    %33 = vector.load %arg5[%c0_17, %c0_18] : memref<128x128xf32, #tpu.memory_space<vmem>>, vector<128x128xf32>
    %34 = arith.truncf %33 : vector<128x128xf32> to vector<128x128xbf16>
    %cst_19 = arith.constant dense<0.000000e+00> : vector<64x128xf32>
    %35 = tpu.matmul %32, %34, %cst_19 {dimension_numbers = #tpu.dot_dimension_numbers<[1], [0], [0], [1], [0, 0, 1, 1], [], []>} : vector<64x128xbf16>, vector<128x128xbf16>, vector<64x128xf32> -> vector<64x128xf32>
    %c0_20 = arith.constant 0 : index
    %c0_21 = arith.constant 0 : index
    %36 = vector.load %arg6[%c0_20, %c0_21] : memref<1x128xf32, #tpu.memory_space<vmem>>, vector<1x128xf32>
    %37 = vector.broadcast %36 : vector<1x128xf32> to vector<64x128xf32>
    %38 = arith.addf %35, %37 : vector<64x128xf32>
    %39 = vector.shape_cast %38 : vector<64x128xf32> to vector<8x8x128xf32>
    %c0_22 = arith.constant 0 : index
    %c0_23 = arith.constant 0 : index
    %c0_24 = arith.constant 0 : index
    %40 = vector.load %arg11[%c0_22, %c0_23, %c0_24] : memref<8x8x128xf32, #tpu.memory_space<vmem>>, vector<8x8x128xf32>
    tpu.vector_store %arg11[%c0_22, %c0_23, %c0_24], %39 {strides = array<i32>} : memref<8x8x128xf32, #tpu.memory_space<vmem>>, vector<8x8x128xf32>,
    %cst_25 = arith.constant 0.000000e+00 : f32
    %41 = vector.broadcast %cst_25 : f32 to vector<8x64xf32>
    %42 = vector.extract_strided_slice %0 {offsets = [0, 0, 0], sizes = [1, 8, 256], strides = [1, 1, 1]} : vector<8x8x256xf32> to vector<1x8x256xf32>
    %43 = vector.shape_cast %42 : vector<1x8x256xf32> to vector<8x256xf32>
    %44 = arith.truncf %43 : vector<8x256xf32> to vector<8x256xbf16>
    %c0_26 = arith.constant 0 : index
    %c0_27 = arith.constant 0 : index
    %c0_28 = arith.constant 0 : index
    %45 = vector.load %arg7[%c0_26, %c0_27, %c0_28] : memref<8x256x64xf32, #tpu.memory_space<vmem>>, vector<1x256x64xf32>
    %46 = vector.shape_cast %45 : vector<1x256x64xf32> to vector<256x64xf32>
    %47 = arith.truncf %46 : vector<256x64xf32> to vector<256x64xbf16>
    %cst_29 = arith.constant dense<0.000000e+00> : vector<8x64xf32>
    %48 = tpu.matmul %44, %47, %cst_29 {dimension_numbers = #tpu.dot_dimension_numbers<[1], [0], [0], [1], [0, 0, 1, 1], [], []>} : vector<8x256xbf16>, vector<256x64xbf16>, vector<8x64xf32> -> vector<8x64xf32>
    %49 = arith.addf %41, %48 : vector<8x64xf32>
    %50 = vector.extract_strided_slice %0 {offsets = [1, 0, 0], sizes = [1, 8, 256], strides = [1, 1, 1]} : vector<8x8x256xf32> to vector<1x8x256xf32>
    %51 = vector.shape_cast %50 : vector<1x8x256xf32> to vector<8x256xf32>
    %52 = arith.truncf %51 : vector<8x256xf32> to vector<8x256xbf16>
    %c1 = arith.constant 1 : index
    %c0_30 = arith.constant 0 : index
    %c0_31 = arith.constant 0 : index
    %53 = vector.load %arg7[%c1, %c0_30, %c0_31] : memref<8x256x64xf32, #tpu.memory_space<vmem>>, vector<1x256x64xf32>
    %54 = vector.shape_cast %53 : vector<1x256x64xf32> to vector<256x64xf32>
    %55 = arith.truncf %54 : vector<256x64xf32> to vector<256x64xbf16>
    %cst_32 = arith.constant dense<0.000000e+00> : vector<8x64xf32>
    %56 = tpu.matmul %52, %55, %cst_32 {dimension_numbers = #tpu.dot_dimension_numbers<[1], [0], [0], [1], [0, 0, 1, 1], [], []>} : vector<8x256xbf16>, vector<256x64xbf16>, vector<8x64xf32> -> vector<8x64xf32>
    %57 = arith.addf %49, %56 : vector<8x64xf32>
    %58 = vector.extract_strided_slice %0 {offsets = [2, 0, 0], sizes = [1, 8, 256], strides = [1, 1, 1]} : vector<8x8x256xf32> to vector<1x8x256xf32>
    %59 = vector.shape_cast %58 : vector<1x8x256xf32> to vector<8x256xf32>
    %60 = arith.truncf %59 : vector<8x256xf32> to vector<8x256xbf16>
    %c2 = arith.constant 2 : index
    %c0_33 = arith.constant 0 : index
    %c0_34 = arith.constant 0 : index
    %61 = vector.load %arg7[%c2, %c0_33, %c0_34] : memref<8x256x64xf32, #tpu.memory_space<vmem>>, vector<1x256x64xf32>
    %62 = vector.shape_cast %61 : vector<1x256x64xf32> to vector<256x64xf32>
    %63 = arith.truncf %62 : vector<256x64xf32> to vector<256x64xbf16>
    %cst_35 = arith.constant dense<0.000000e+00> : vector<8x64xf32>
    %64 = tpu.matmul %60, %63, %cst_35 {dimension_numbers = #tpu.dot_dimension_numbers<[1], [0], [0], [1], [0, 0, 1, 1], [], []>} : vector<8x256xbf16>, vector<256x64xbf16>, vector<8x64xf32> -> vector<8x64xf32>
    %65 = arith.addf %57, %64 : vector<8x64xf32>
    %66 = vector.extract_strided_slice %0 {offsets = [3, 0, 0], sizes = [1, 8, 256], strides = [1, 1, 1]} : vector<8x8x256xf32> to vector<1x8x256xf32>
    %67 = vector.shape_cast %66 : vector<1x8x256xf32> to vector<8x256xf32>
    %68 = arith.truncf %67 : vector<8x256xf32> to vector<8x256xbf16>
    %c3 = arith.constant 3 : index
    %c0_36 = arith.constant 0 : index
    %c0_37 = arith.constant 0 : index
    %69 = vector.load %arg7[%c3, %c0_36, %c0_37] : memref<8x256x64xf32, #tpu.memory_space<vmem>>, vector<1x256x64xf32>
    %70 = vector.shape_cast %69 : vector<1x256x64xf32> to vector<256x64xf32>
    %71 = arith.truncf %70 : vector<256x64xf32> to vector<256x64xbf16>
    %cst_38 = arith.constant dense<0.000000e+00> : vector<8x64xf32>
    %72 = tpu.matmul %68, %71, %cst_38 {dimension_numbers = #tpu.dot_dimension_numbers<[1], [0], [0], [1], [0, 0, 1, 1], [], []>} : vector<8x256xbf16>, vector<256x64xbf16>, vector<8x64xf32> -> vector<8x64xf32>
    %73 = arith.addf %65, %72 : vector<8x64xf32>
    %74 = vector.extract_strided_slice %0 {offsets = [4, 0, 0], sizes = [1, 8, 256], strides = [1, 1, 1]} : vector<8x8x256xf32> to vector<1x8x256xf32>
    %75 = vector.shape_cast %74 : vector<1x8x256xf32> to vector<8x256xf32>
    %76 = arith.truncf %75 : vector<8x256xf32> to vector<8x256xbf16>
    %c4 = arith.constant 4 : index
    %c0_39 = arith.constant 0 : index
    %c0_40 = arith.constant 0 : index
    %77 = vector.load %arg7[%c4, %c0_39, %c0_40] : memref<8x256x64xf32, #tpu.memory_space<vmem>>, vector<1x256x64xf32>
    %78 = vector.shape_cast %77 : vector<1x256x64xf32> to vector<256x64xf32>
    %79 = arith.truncf %78 : vector<256x64xf32> to vector<256x64xbf16>
    %cst_41 = arith.constant dense<0.000000e+00> : vector<8x64xf32>
    %80 = tpu.matmul %76, %79, %cst_41 {dimension_numbers = #tpu.dot_dimension_numbers<[1], [0], [0], [1], [0, 0, 1, 1], [], []>} : vector<8x256xbf16>, vector<256x64xbf16>, vector<8x64xf32> -> vector<8x64xf32>
    %81 = arith.addf %73, %80 : vector<8x64xf32>
    %82 = vector.extract_strided_slice %0 {offsets = [5, 0, 0], sizes = [1, 8, 256], strides = [1, 1, 1]} : vector<8x8x256xf32> to vector<1x8x256xf32>
    %83 = vector.shape_cast %82 : vector<1x8x256xf32> to vector<8x256xf32>
    %84 = arith.truncf %83 : vector<8x256xf32> to vector<8x256xbf16>
    %c5 = arith.constant 5 : index
    %c0_42 = arith.constant 0 : index
    %c0_43 = arith.constant 0 : index
    %85 = vector.load %arg7[%c5, %c0_42, %c0_43] : memref<8x256x64xf32, #tpu.memory_space<vmem>>, vector<1x256x64xf32>
    %86 = vector.shape_cast %85 : vector<1x256x64xf32> to vector<256x64xf32>
    %87 = arith.truncf %86 : vector<256x64xf32> to vector<256x64xbf16>
    %cst_44 = arith.constant dense<0.000000e+00> : vector<8x64xf32>
    %88 = tpu.matmul %84, %87, %cst_44 {dimension_numbers = #tpu.dot_dimension_numbers<[1], [0], [0], [1], [0, 0, 1, 1], [], []>} : vector<8x256xbf16>, vector<256x64xbf16>, vector<8x64xf32> -> vector<8x64xf32>
    %89 = arith.addf %81, %88 : vector<8x64xf32>
    %90 = vector.extract_strided_slice %0 {offsets = [6, 0, 0], sizes = [1, 8, 256], strides = [1, 1, 1]} : vector<8x8x256xf32> to vector<1x8x256xf32>
    %91 = vector.shape_cast %90 : vector<1x8x256xf32> to vector<8x256xf32>
    %92 = arith.truncf %91 : vector<8x256xf32> to vector<8x256xbf16>
    %c6 = arith.constant 6 : index
    %c0_45 = arith.constant 0 : index
    %c0_46 = arith.constant 0 : index
    %93 = vector.load %arg7[%c6, %c0_45, %c0_46] : memref<8x256x64xf32, #tpu.memory_space<vmem>>, vector<1x256x64xf32>
    %94 = vector.shape_cast %93 : vector<1x256x64xf32> to vector<256x64xf32>
    %95 = arith.truncf %94 : vector<256x64xf32> to vector<256x64xbf16>
    %cst_47 = arith.constant dense<0.000000e+00> : vector<8x64xf32>
    %96 = tpu.matmul %92, %95, %cst_47 {dimension_numbers = #tpu.dot_dimension_numbers<[1], [0], [0], [1], [0, 0, 1, 1], [], []>} : vector<8x256xbf16>, vector<256x64xbf16>, vector<8x64xf32> -> vector<8x64xf32>
    %97 = arith.addf %89, %96 : vector<8x64xf32>
    %98 = vector.extract_strided_slice %0 {offsets = [7, 0, 0], sizes = [1, 8, 256], strides = [1, 1, 1]} : vector<8x8x256xf32> to vector<1x8x256xf32>
    %99 = vector.shape_cast %98 : vector<1x8x256xf32> to vector<8x256xf32>
    %100 = arith.truncf %99 : vector<8x256xf32> to vector<8x256xbf16>
    %c7 = arith.constant 7 : index
    %c0_48 = arith.constant 0 : index
    %c0_49 = arith.constant 0 : index
    %101 = vector.load %arg7[%c7, %c0_48, %c0_49] : memref<8x256x64xf32, #tpu.memory_space<vmem>>, vector<1x256x64xf32>
    %102 = vector.shape_cast %101 : vector<1x256x64xf32> to vector<256x64xf32>
    %103 = arith.truncf %102 : vector<256x64xf32> to vector<256x64xbf16>
    %cst_50 = arith.constant dense<0.000000e+00> : vector<8x64xf32>
    %104 = tpu.matmul %100, %103, %cst_50 {dimension_numbers = #tpu.dot_dimension_numbers<[1], [0], [0], [1], [0, 0, 1, 1], [], []>} : vector<8x256xbf16>, vector<256x64xbf16>, vector<8x64xf32> -> vector<8x64xf32>
    %105 = arith.addf %97, %104 : vector<8x64xf32>
    %c0_51 = arith.constant 0 : index
    %c0_52 = arith.constant 0 : index
    %106 = vector.load %arg8[%c0_51, %c0_52] : memref<1x64xf32, #tpu.memory_space<vmem>>, vector<1x64xf32>
    %107 = vector.broadcast %106 : vector<1x64xf32> to vector<8x64xf32>
    %108 = arith.addf %105, %107 : vector<8x64xf32>
    %cst_53 = arith.constant 5.000000e-01 : f32
    %109 = vector.broadcast %cst_53 : f32 to vector<8x64xf32>
    %110 = arith.mulf %109, %108 : vector<8x64xf32>
    %cst_54 = arith.constant 0.707106769 : f32
    %111 = vector.broadcast %cst_54 : f32 to vector<8x64xf32>
    %112 = arith.mulf %108, %111 : vector<8x64xf32>
    %113 = math.erf %112 : vector<8x64xf32>
    %cst_55 = arith.constant 1.000000e+00 : f32
    %114 = vector.broadcast %cst_55 : f32 to vector<8x64xf32>
    %115 = arith.addf %114, %113 : vector<8x64xf32>
    %116 = arith.mulf %110, %115 : vector<8x64xf32>
    %117 = arith.truncf %116 : vector<8x64xf32> to vector<8x64xbf16>
    %c0_56 = arith.constant 0 : index
    %c0_57 = arith.constant 0 : index
    %118 = vector.load %arg9[%c0_56, %c0_57] : memref<64x128xf32, #tpu.memory_space<vmem>>, vector<64x128xf32>
    %119 = arith.truncf %118 : vector<64x128xf32> to vector<64x128xbf16>
    %cst_58 = arith.constant dense<0.000000e+00> : vector<8x128xf32>
    %120 = tpu.matmul %117, %119, %cst_58 {dimension_numbers = #tpu.dot_dimension_numbers<[1], [0], [0], [1], [0, 0, 1, 1], [], []>} : vector<8x64xbf16>, vector<64x128xbf16>, vector<8x128xf32> -> vector<8x128xf32>
    %c0_59 = arith.constant 0 : index
    %c0_60 = arith.constant 0 : index
    %121 = vector.load %arg10[%c0_59, %c0_60] : memref<1x128xf32, #tpu.memory_space<vmem>>, vector<1x128xf32>
    %122 = vector.broadcast %121 : vector<1x128xf32> to vector<8x128xf32>
    %123 = arith.addf %120, %122 : vector<8x128xf32>
    %c0_61 = arith.constant 0 : index
    %c0_62 = arith.constant 0 : index
    %124 = vector.load %arg12[%c0_61, %c0_62] : memref<8x128xf32, #tpu.memory_space<vmem>>, vector<8x128xf32>
    tpu.vector_store %arg12[%c0_61, %c0_62], %123 {strides = array<i32>} : memref<8x128xf32, #tpu.memory_space<vmem>>, vector<8x128xf32>,
    return
  }
}

</mosaic_0001>

<llo_original>
// kernel: critic_classifier_forward.4
$region0: #{critic_classifier_forward.4}
  #allocation0 [shape = 'u32[]', space=smem, size = 0x4, offset = 0x4, fixed_abs, tag = 'smem constant byte address 0x4 - core index']
  #allocation1 [shape = 'u32[144,128]{1,0:T(1,128)}', space=vmem, size = 0x12000, scoped, tag = 'internal scratch']
  #allocation2 [shape = 'f32[8,8,512]{2,1,0:T(8,128)}', space=vmem, size = 0x20000, scoped, tag = 'scratch operand']
  #allocation3 [shape = 'bf16[128,512]{1,0:T(16,128)(2,1)}', space=vmem, size = 0x20000, scoped, tag = 'scratch operand']
  %s0 = inlined_call_operand.vmem [shape: f32[8,8,16], index: 0, kind: input, shape index: {}]
  %s1 = inlined_call_operand.hbm [shape: f32[2,16,512], index: 1, kind: input, shape index: {}]
  %s2 = inlined_call_operand.hbm [shape: f32[2,128,512], index: 2, kind: input, shape index: {}]
  %s3 = inlined_call_operand.hbm [shape: f32[2,1,512], index: 3, kind: input, shape index: {}]
  %s4 = inlined_call_operand.vmem [shape: f32[8,8,256], index: 4, kind: output, shape index: {}]
  %s5 = sld [smem:[#allocation0]]
  $region95: #{critic_classifier_forward.4} parent=0
    _
  %s7 = ssub.s32 1, %s5
  %s8 = scalar_select 0, %s7, %s5
  $region1: #{critic_classifier_forward.4} parent=0
    #allocation4 [shape = 'u8[65536]{0}', space=vmem, size = 0x10000, scoped, tag = 'input window, operand 1']
    #allocation5 [shape = 's32[2]{0}', space=sflag, size = 0x8, scoped, tag = 'scoped memory for critic_classifier_forward.4']
    #allocation6 [shape = 'u8[524288]{0}', space=vmem, size = 0x80000, scoped, tag = 'input window, operand 2']
    #allocation7 [shape = 's32[2]{0}', space=sflag, size = 0x8, scoped, tag = 'scoped memory for critic_classifier_forward.4']
    #allocation8 [shape = 'u8[4096]{0}', space=vmem, size = 0x1000, scoped, tag = 'input window, operand 3']
    #allocation9 [shape = 'u8[65536]{0}', space=vmem, size = 0x10000, scoped, tag = 'output window, operand 0']
    %9 = vsyncpa [#allocation5], 0
    %s10 = scalar_lea.sflag [#allocation5], 1
    %11 = vsyncpa %s10, 0
    %12 = vsyncpa [#allocation7], 0
    %s13 = scalar_lea.sflag [#allocation7], 1
    %14 = vsyncpa %s13, 0
    loop: start=0, step=1, limit=4
    $region2: #{critic_classifier_forward.4} parent=1 // loop_pre_header
      _
    $region3: #{critic_classifier_forward.4} parent=1 // loop_header
      %s16 = sphi 0, %s20
      %p17 = scmp.ge.s32.totalorder %s16, 4
      %s24 = sphi 0, %s24
      %s26 = sphi 0, %s24
      %s27 = sphi 0, %s26
      %s41 = sphi 0, %s27
      %s47 = sphi 0, %s49
      %s50 = sphi 0, %s47
      %s51 = sphi 0, %s50
      %s67 = sphi 0, %s51
      %s73 = sphi 0, %s75
      %s76 = sphi 0, %s73
      %s77 = sphi 0, %s76
      %s93 = sphi 0, %s77
      %s99 = sphi 0, %s101
      %s102 = sphi 0, %s99
      %s103 = sphi 0, %s102
      %s119 = sphi 0, %s103
      %s125 = sphi 0, %s127
      %s128 = sphi 0, %s125
      %s129 = sphi 0, %s128
      %s145 = sphi 0, %s129
    $region4: #{critic_classifier_forward.4} parent=1 // loop_header_branch
      %19 = sbr.rel (%p17) target = $region8
    $region5: #{critic_classifier_forward.4} parent=1 // loop_body
      %s21 = ssub.s32 %s16, 1
      %s22 = ssub.s32 %s16, 2
      %s23 = sadd.s32 %s16, 1
      %s25 = sadd.s32 %s24, 1
      %p28 = scmp.eq.s32.totalorder %s16, 1
      %p29 = scmp.ne.s32.totalorder %s24, %s26
      %p30 = scmp.eq.s32.totalorder %s16, 0
      %p31 = por %p29, %p30
      %p32 = scmp.ne.s32.totalorder %s24, %s26
      %p33 = scmp.eq.s32.totalorder %s21, 1
      %p34 = por %p32, %p33
      %p35 = scmp.ne.s32.totalorder %s26, %s27
      %p36 = scmp.eq.s32.totalorder %s21, 0
      %p37 = por %p35, %p36
      %p38 = scmp.ne.s32.totalorder %s26, %s27
      %p39 = scmp.eq.s32.totalorder %s22, 1
      %p40 = por %p38, %p39
      %p42 = scmp.ne.s32.totalorder %s27, %s41
      %p43 = scmp.eq.s32.totalorder %s22, 0
      %p44 = por %p42, %p43
      %s45 = ssub.s32 %s16, %s23
      %p46 = scmp.eq.s32.totalorder %s45, 0
      %s48 = sadd.s32 %s47, 1
      %s49 = scalar_select %p46, %s47, %s48
      %p52 = pneg %p46
      %p53 = scmp.eq.s32.totalorder %s16, 1
      %p54 = por %p52, %p53
      %p55 = scmp.ne.s32.totalorder %s47, %s50
      %p56 = scmp.eq.s32.totalorder %s16, 0
      %p57 = por %p55, %p56
      %p58 = scmp.ne.s32.totalorder %s47, %s50
      %p59 = scmp.eq.s32.totalorder %s21, 1
      %p60 = por %p58, %p59
      %p61 = scmp.ne.s32.totalorder %s50, %s51
      %p62 = scmp.eq.s32.totalorder %s21, 0
      %p63 = por %p61, %p62
      %p64 = scmp.ne.s32.totalorder %s50, %s51
      %p65 = scmp.eq.s32.totalorder %s22, 1
      %p66 = por %p64, %p65
      %p68 = scmp.ne.s32.totalorder %s51, %s67
      %p69 = scmp.eq.s32.totalorder %s22, 0
      %p70 = por %p68, %p69
      %s71 = ssub.s32 %s16, %s23
      %p72 = scmp.eq.s32.totalorder %s71, 0
      %s74 = sadd.s32 %s73, 1
      %s75 = scalar_select %p72, %s73, %s74
      %p78 = pneg %p72
      %p79 = scmp.eq.s32.totalorder %s16, 1
      %p80 = por %p78, %p79
      %p81 = scmp.ne.s32.totalorder %s73, %s76
      %p82 = scmp.eq.s32.totalorder %s16, 0
      %p83 = por %p81, %p82
      %p84 = scmp.ne.s32.totalorder %s73, %s76
      %p85 = scmp.eq.s32.totalorder %s21, 1
      %p86 = por %p84, %p85
      %p87 = scmp.ne.s32.totalorder %s76, %s77
      %p88 = scmp.eq.s32.totalorder %s21, 0
      %p89 = por %p87, %p88
      %p90 = scmp.ne.s32.totalorder %s76, %s77
      %p91 = scmp.eq.s32.totalorder %s22, 1
      %p92 = por %p90, %p91
      %p94 = scmp.ne.s32.totalorder %s77, %s93
      %p95 = scmp.eq.s32.totalorder %s22, 0
      %p96 = por %p94, %p95
      %s97 = ssub.s32 %s16, %s23
      %p98 = scmp.eq.s32.totalorder %s97, 0
      %s100 = sadd.s32 %s99, 1
      %s101 = scalar_select %p98, %s99, %s100
      %p104 = pneg %p98
      %p105 = scmp.eq.s32.totalorder %s16, 1
      %p106 = por %p104, %p105
      %p107 = scmp.ne.s32.totalorder %s99, %s102
      %p108 = scmp.eq.s32.totalorder %s16, 0
      %p109 = por %p107, %p108
      %p110 = scmp.ne.s32.totalorder %s99, %s102
      %p111 = scmp.eq.s32.totalorder %s21, 1
      %p112 = por %p110, %p111
      %p113 = scmp.ne.s32.totalorder %s102, %s103
      %p114 = scmp.eq.s32.totalorder %s21, 0
      %p115 = por %p113, %p114
      %p116 = scmp.ne.s32.totalorder %s102, %s103
      %p117 = scmp.eq.s32.totalorder %s22, 1
      %p118 = por %p116, %p117
      %p120 = scmp.ne.s32.totalorder %s103, %s119
      %p121 = scmp.eq.s32.totalorder %s22, 0
      %p122 = por %p120, %p121
      %s123 = ssub.s32 %s16, %s23
      %p124 = scmp.eq.s32.totalorder %s123, 0
      %s126 = sadd.s32 %s125, 1
      %s127 = scalar_select %p124, %s125, %s126
      %p130 = pneg %p124
      %p131 = scmp.eq.s32.totalorder %s16, 1
      %p132 = por %p130, %p131
      %p133 = scmp.ne.s32.totalorder %s125, %s128
      %p134 = scmp.eq.s32.totalorder %s16, 0
      %p135 = por %p133, %p134
      %p136 = scmp.ne.s32.totalorder %s125, %s128
      %p137 = scmp.eq.s32.totalorder %s21, 1
      %p138 = por %p136, %p137
      %p139 = scmp.ne.s32.totalorder %s128, %s129
      %p140 = scmp.eq.s32.totalorder %s21, 0
      %p141 = por %p139, %p140
      %p142 = scmp.ne.s32.totalorder %s128, %s129
      %p143 = scmp.eq.s32.totalorder %s22, 1
      %p144 = por %p142, %p143
      %p146 = scmp.ne.s32.totalorder %s129, %s145
      %p147 = scmp.eq.s32.totalorder %s22, 0
      %p148 = por %p146, %p147
      %p149 = scmp.le.s32.totalorder 1, %s16
      %p150 = scmp.lt.s32.totalorder %s16, 3
      %p151 = pnand %p149, %p150
      %p152 = pneg %p151
      // Predicated region
      $region9: #{critic_classifier_forward.4} parent=5 // pred_check
        _
      $region10: #{critic_classifier_forward.4} parent=5 // pred_check_branch
        %154 = sbr.rel (%p151) target = $region12
      $region11: #{critic_classifier_forward.4} parent=5 // pred_region
        %s155 = ssub.s32 %s16, 1
        // Predicated region
        $region13: #{critic_classifier_forward.4} parent=11 // pred_check
          %p156 = pneg %p37
        $region14: #{critic_classifier_forward.4} parent=11 // pred_check_branch
          %158 = sbr.rel (%p156) target = $region16
        $region15: #{critic_classifier_forward.4} parent=11 // pred_region
          _
        $region16: #{critic_classifier_forward.4} parent=11 // pred_fallthru
          _
      $region12: #{critic_classifier_forward.4} parent=5 // pred_fallthru
        _
      %p159 = scmp.lt.s32.totalorder %s16, 2
      // Predicated region
      $region17: #{critic_classifier_forward.4} parent=5 // pred_check
        %p160 = pneg %p159
      $region18: #{critic_classifier_forward.4} parent=5 // pred_check_branch
        %162 = sbr.rel (%p160) target = $region20
      $region19: #{critic_classifier_forward.4} parent=5 // pred_region
        // Predicated region
        $region21: #{critic_classifier_forward.4} parent=19 // pred_check
          %p163 = pneg %p57
        $region22: #{critic_classifier_forward.4} parent=19 // pred_check_branch
          %165 = sbr.rel (%p163) target = $region24
        $region23: #{critic_classifier_forward.4} parent=19 // pred_region
          %s166 = sand.u32 %s47, 1
          %s167 = scalar_lea.sflag [#allocation5], %s166
          %s168 = sand.u32 %s47, 1
          %s169 = smul.addr %s168, 64
          %s170 = scalar_lea.vmem [#allocation4], %s169
          %s172 = ssub.s32 1024, 1024
          %173 = vsyncadd %s167, %s172
          %s174 = smul.addr %s16, 8
          %s175 = smul.addr %s174, 128
          %s176 = scalar_lea.hbm %s1, %s175
          %s177 = sshll.u32 %s170, 4
          %s178 = int_to_ptr.vmem [resolvable:$true] %s177
          %183 = dma.hbm_to_vmem [thread:$0]  %s176, 1024, %s178, %s167, 512, 512, 32
        $region24: #{critic_classifier_forward.4} parent=19 // pred_fallthru
          _
        // Predicated region
        $region25: #{critic_classifier_forward.4} parent=19 // pred_check
          %p184 = pneg %p83
        $region26: #{critic_classifier_forward.4} parent=19 // pred_check_branch
          %186 = sbr.rel (%p184) target = $region28
        $region27: #{critic_classifier_forward.4} parent=19 // pred_region
          %s187 = sand.u32 %s16, 1
          %s188 = scalar_lea.sflag [#allocation7], %s187
          %s189 = sand.u32 %s73, 1
          %s190 = smul.addr %s189, 512
          %s191 = scalar_lea.vmem [#allocation6], %s190
          %s193 = ssub.s32 8192, 8192
          %194 = vsyncadd %s188, %s193
          %s195 = smul.addr %s16, 64
          %s196 = smul.addr %s195, 128
          %s197 = scalar_lea.hbm %s2, %s196
          %s198 = sshll.u32 %s191, 4
          %s199 = int_to_ptr.vmem [resolvable:$true] %s198
          %204 = dma.hbm_to_vmem [thread:$0]  %s197, 8192, %s199, %s188, 512, 512, 32
        $region28: #{critic_classifier_forward.4} parent=19 // pred_fallthru
          _
        // Predicated region
        $region29: #{critic_classifier_forward.4} parent=19 // pred_check
          %p205 = pneg %p109
        $region30: #{critic_classifier_forward.4} parent=19 // pred_check_branch
          %207 = sbr.rel (%p205) target = $region32
        $region31: #{critic_classifier_forward.4} parent=19 // pred_region
          %s208 = sand.u32 %s16, 1
          %s209 = scalar_lea.sflag [#allocation7], %s208
          %s210 = sand.u32 %s99, 1
          %s211 = smul.addr %s210, 4
          %s212 = scalar_lea.vmem [#allocation8], %s211
          %s214 = ssub.s32 64, 64
          %215 = vsyncadd %s209, %s214
          %s216 = smul.addr %s16, 4
          %s217 = smul.addr %s216, 16
          %s218 = scalar_lea.hbm %s3, %s217
          %s220 = sshll.u32 %s212, 4
          %s221 = int_to_ptr.vmem [resolvable:$true] %s220
          %223 = dma.hbm_to_vmem [thread:$0]  %s218, 64, %s221, %s209
        $region32: #{critic_classifier_forward.4} parent=19 // pred_fallthru
          _
      $region20: #{critic_classifier_forward.4} parent=5 // pred_fallthru
        _
      %p224 = scmp.le.s32.totalorder 1, %s16
      %p225 = scmp.lt.s32.totalorder %s16, 3
      %p226 = pnand %p224, %p225
      %p227 = pneg %p226
      // Predicated region
      $region33: #{critic_classifier_forward.4} parent=5 // pred_check
        _
      $region34: #{critic_classifier_forward.4} parent=5 // pred_check_branch
        %229 = sbr.rel (%p226) target = $region36
      $region35: #{critic_classifier_forward.4} parent=5 // pred_region
        %s230 = ssub.s32 %s16, 1
        %s231 = sand.u32 %s50, 1
        %s232 = scalar_lea.sflag [#allocation5], %s231
        %s233 = sand.u32 %s50, 1
        %s234 = smul.addr %s233, 64
        %s235 = scalar_lea.vmem [#allocation4], %s234
        // Predicated region
        $region37: #{critic_classifier_forward.4} parent=35 // pred_check
          %p236 = pneg %p63
        $region38: #{critic_classifier_forward.4} parent=35 // pred_check_branch
          %238 = sbr.rel (%p236) target = $region40
        $region39: #{critic_classifier_forward.4} parent=35 // pred_region
          %239 = dma.done %s232, 1024
        $region40: #{critic_classifier_forward.4} parent=35 // pred_fallthru
          _
        %s240 = sand.u32 %s21, 1
        %s241 = scalar_lea.sflag [#allocation7], %s240
        %s242 = sand.u32 %s76, 1
        %s243 = smul.addr %s242, 512
        %s244 = scalar_lea.vmem [#allocation6], %s243
        // Predicated region
        $region41: #{critic_classifier_forward.4} parent=35 // pred_check
          %p245 = pneg %p89
        $region42: #{critic_classifier_forward.4} parent=35 // pred_check_branch
          %247 = sbr.rel (%p245) target = $region44
        $region43: #{critic_classifier_forward.4} parent=35 // pred_region
          %248 = dma.done %s241, 8192
        $region44: #{critic_classifier_forward.4} parent=35 // pred_fallthru
          _
        %s249 = sand.u32 %s21, 1
        %s250 = scalar_lea.sflag [#allocation7], %s249
        %s251 = sand.u32 %s102, 1
        %s252 = smul.addr %s251, 4
        %s253 = scalar_lea.vmem [#allocation8], %s252
        // Predicated region
        $region45: #{critic_classifier_forward.4} parent=35 // pred_check
          %p254 = pneg %p115
        $region46: #{critic_classifier_forward.4} parent=35 // pred_check_branch
          %256 = sbr.rel (%p254) target = $region48
        $region47: #{critic_classifier_forward.4} parent=35 // pred_region
          %257 = dma.done %s250, 64
        $region48: #{critic_classifier_forward.4} parent=35 // pred_fallthru
          _
        %p258 = pneg %p37
        %p259 = pneg %p34
        %s260 = sand.u32 %s50, 1
        %s261 = scalar_lea.sflag [#allocation5], %s260
        %s262 = sand.u32 %s50, 1
        %s263 = smul.addr %s262, 64
        %s264 = scalar_lea.vmem [#allocation4], %s263
        %p265 = pneg %p63
        %p266 = pneg %p60
        %s267 = sand.u32 %s21, 1
        %s268 = scalar_lea.sflag [#allocation7], %s267
        %s269 = sand.u32 %s76, 1
        %s270 = smul.addr %s269, 512
        %s271 = scalar_lea.vmem [#allocation6], %s270
        %p272 = pneg %p89
        %p273 = pneg %p86
        %s274 = sand.u32 %s21, 1
        %s275 = scalar_lea.sflag [#allocation7], %s274
        %s276 = sand.u32 %s102, 1
        %s277 = smul.addr %s276, 4
        %s278 = scalar_lea.vmem [#allocation8], %s277
        %p279 = pneg %p115
        %p280 = pneg %p112
        %p281 = pneg %p141
        %p282 = pneg %p138
        %s283 = sand.u32 %s128, 1
        %s284 = sand.u32 %s128, 1
        %s285 = smul.addr %s284, 64
        %s286 = scalar_lea.vmem [#allocation9], %s285
        %v288 = vld [vmem:[%s0] sm:$0xff]
        %v289 = vld [vmem:[%s0 + $0x8] sm:$0xff]
        %v290 = vld [vmem:[%s0 + $0x10] sm:$0xff]
        %v291 = vld [vmem:[%s0 + $0x18] sm:$0xff]
        %v292 = vld [vmem:[%s0 + $0x20] sm:$0xff]
        %v293 = vld [vmem:[%s0 + $0x28] sm:$0xff]
        %v294 = vld [vmem:[%s0 + $0x30] sm:$0xff]
        %v295 = vld [vmem:[%s0 + $0x38] sm:$0xff]
        %v296 = vpack.c.bf16 %v289, %v288
        %v297 = vpack.c.bf16 %v291, %v290
        %v298 = vpack.c.bf16 %v293, %v292
        %v299 = vpack.c.bf16 %v295, %v294
        %v300 = vld [vmem:[%s235] sm:$0xff]
        %v301 = vld [vmem:[%s235 + $0x8] sm:$0xff]
        %v302 = vld [vmem:[%s235 + $0x10] sm:$0xff]
        %v303 = vld [vmem:[%s235 + $0x18] sm:$0xff]
        %v304 = vld [vmem:[%s235 + $0x20] sm:$0xff]
        %v305 = vld [vmem:[%s235 + $0x28] sm:$0xff]
        %v306 = vld [vmem:[%s235 + $0x30] sm:$0xff]
        %v307 = vld [vmem:[%s235 + $0x38] sm:$0xff]
        %v308 = vpack.c.bf16 %v304, %v300
        %v309 = vpack.c.bf16 %v305, %v301
        %v310 = vpack.c.bf16 %v306, %v302
        %v311 = vpack.c.bf16 %v307, %v303
        %v312 = vld [vmem:[%s253] sm:$0xf]
        %v314 = vlaneseq
        %v315 = vshrl.u32 %v314, 7
        %v316 = vsub.s32 0, %v315
        %v317 = vrot.slane %v312, %v316
        %v318 = vlaneseq
        %v319 = vshrl.u32 %v318, 7
        %v320 = vsub.s32 1, %v319
        %v321 = vrot.slane %v312, %v320
        %v322 = vlaneseq
        %v323 = vshrl.u32 %v322, 7
        %v324 = vsub.s32 2, %v323
        %v325 = vrot.slane %v312, %v324
        %v326 = vlaneseq
        %v327 = vshrl.u32 %v326, 7
        %v328 = vsub.s32 3, %v327
        %v329 = vrot.slane %v312, %v328
        %vm334 = vcmask 130048
        %v336 = vsel %vm334, %v296, 0
        %v339 = vsel %vm334, %v297, 0
        %v342 = vsel %vm334, %v298, 0
        %v345 = vsel %vm334, %v299, 0
        %347 = vmatprep.subr.bf16.mxu0 %v309
        %348 = vmatpush1.bf16.msra.mxu0 %v308
        %349 = vmatprep.subr.bf16.mxu0 0
        %350 = vmatpush1.bf16.msra.mxu0 0
        %351 = vmatprep.subr.bf16.mxu0 0
        %352 = vmatpush1.bf16.msra.mxu0 0
        %353 = vmatprep.subr.bf16.mxu0 0
        %354 = vmatpush1.bf16.msra.mxu0 0
        %355 = vmatprep.subr.bf16.mxu0 0
        %356 = vmatpush1.bf16.msra.mxu0 0
        %357 = vmatprep.subr.bf16.mxu0 0
        %358 = vmatpush1.bf16.msra.mxu0 0
        %359 = vmatprep.subr.bf16.mxu0 0
        %360 = vmatpush1.bf16.msra.mxu0 0
        %361 = vmatprep.subr.bf16.mxu0 0
        %362 = vmatpush1.bf16.msra.mxu0 0
        %363 = vmatprep.subr.bf16.mxu0 0
        %364 = vmatpush1.bf16.msra.mxu0 0
        %365 = vmatprep.subr.bf16.mxu0 0
        %366 = vmatpush1.bf16.msra.mxu0 0
        %367 = vmatprep.subr.bf16.mxu0 0
        %368 = vmatpush1.bf16.msra.mxu0 0
        %369 = vmatprep.subr.bf16.mxu0 0
        %370 = vmatpush1.bf16.msra.mxu0 0
        %371 = vmatprep.subr.bf16.mxu0 0
        %372 = vmatpush1.bf16.msra.mxu0 0
        %373 = vmatprep.subr.bf16.mxu0 0
        %374 = vmatpush1.bf16.msra.mxu0 0
        %375 = vmatprep.subr.bf16.mxu0 0
        %376 = vmatpush1.bf16.msra.mxu0 0
        %377 = vmatprep.subr.bf16.mxu0 0
        %378 = vmatpush1.bf16.msra.mxu0 0
        %379 = vmatprep.mubr.bf16.mxu0 0
        %380 = vmatmul.mubr.bf16.gmra.mrb[0].mxu0 %v336
        %v381 = vpop.f32.mrb[0].mxu0
        %v382 = vadd.f32 %v317, %v381
        %v383 = vpop.f32.mrb[0].mxu0
        %v384 = vadd.f32 %v321, %v383
        %v385 = vpop.f32.mrb[0].mxu0
        %v386 = vadd.f32 %v317, %v385
        %v387 = vpop.f32.mrb[0].mxu0
        %v388 = vadd.f32 %v321, %v387
        %389 = vmatprep.mubr.bf16.mxu0 0
        %390 = vmatmul.mubr.bf16.gmra.mrb[0].mxu0 %v339
        %v391 = vpop.f32.mrb[0].mxu0
        %v392 = vadd.f32 %v317, %v391
        %v393 = vpop.f32.mrb[0].mxu0
        %v394 = vadd.f32 %v321, %v393
        %v395 = vpop.f32.mrb[0].mxu0
        %v396 = vadd.f32 %v317, %v395
        %v397 = vpop.f32.mrb[0].mxu0
        %v398 = vadd.f32 %v321, %v397
        %399 = vmatprep.mubr.bf16.mxu0 0
        %400 = vmatmul.mubr.bf16.gmra.mrb[0].mxu0 %v342
        %v401 = vpop.f32.mrb[0].mxu0
        %v402 = vadd.f32 %v317, %v401
        %v403 = vpop.f32.mrb[0].mxu0
        %v404 = vadd.f32 %v321, %v403
        %v405 = vpop.f32.mrb[0].mxu0
        %v406 = vadd.f32 %v317, %v405
        %v407 = vpop.f32.mrb[0].mxu0
        %v408 = vadd.f32 %v321, %v407
        %409 = vmatprep.mubr.bf16.mxu0 0
        %410 = vmatmul.mubr.bf16.gmra.mrb[0].mxu0 %v345
        %v411 = vpop.f32.mrb[0].mxu0
        %v412 = vadd.f32 %v317, %v411
        %v413 = vpop.f32.mrb[0].mxu0
        %v414 = vadd.f32 %v321, %v413
        %v415 = vpop.f32.mrb[0].mxu0
        %v416 = vadd.f32 %v317, %v415
        %v417 = vpop.f32.mrb[0].mxu0
        %v418 = vadd.f32 %v321, %v417
        %419 = vdwg.mxu0
        %420 = vmatprep.subr.bf16.mxu0 %v311
        %421 = vmatpush1.bf16.msra.mxu0 %v310
        %422 = vmatprep.subr.bf16.mxu0 0
        %423 = vmatpush1.bf16.msra.mxu0 0
        %424 = vmatprep.subr.bf16.mxu0 0
        %425 = vmatpush1.bf16.msra.mxu0 0
        %426 = vmatprep.subr.bf16.mxu0 0
        %427 = vmatpush1.bf16.msra.mxu0 0
        %428 = vmatprep.subr.bf16.mxu0 0
        %429 = vmatpush1.bf16.msra.mxu0 0
        %430 = vmatprep.subr.bf16.mxu0 0
        %431 = vmatpush1.bf16.msra.mxu0 0
        %432 = vmatprep.subr.bf16.mxu0 0
        %433 = vmatpush1.bf16.msra.mxu0 0
        %434 = vmatprep.subr.bf16.mxu0 0
        %435 = vmatpush1.bf16.msra.mxu0 0
        %436 = vmatprep.subr.bf16.mxu0 0
        %437 = vmatpush1.bf16.msra.mxu0 0
        %438 = vmatprep.subr.bf16.mxu0 0
        %439 = vmatpush1.bf16.msra.mxu0 0
        %440 = vmatprep.subr.bf16.mxu0 0
        %441 = vmatpush1.bf16.msra.mxu0 0
        %442 = vmatprep.subr.bf16.mxu0 0
        %443 = vmatpush1.bf16.msra.mxu0 0
        %444 = vmatprep.subr.bf16.mxu0 0
        %445 = vmatpush1.bf16.msra.mxu0 0
        %446 = vmatprep.subr.bf16.mxu0 0
        %447 = vmatpush1.bf16.msra.mxu0 0
        %448 = vmatprep.subr.bf16.mxu0 0
        %449 = vmatpush1.bf16.msra.mxu0 0
        %450 = vmatprep.subr.bf16.mxu0 0
        %451 = vmatpush1.bf16.msra.mxu0 0
        %452 = vmatprep.mubr.bf16.mxu0 0
        %453 = vmatmul.mubr.bf16.gmra.mrb[0].mxu0 %v336
        %v454 = vpop.f32.mrb[0].mxu0
        %v455 = vadd.f32 %v325, %v454
        %v456 = vpop.f32.mrb[0].mxu0
        %v457 = vadd.f32 %v329, %v456
        %v458 = vpop.f32.mrb[0].mxu0
        %v459 = vadd.f32 %v325, %v458
        %v460 = vpop.f32.mrb[0].mxu0
        %v461 = vadd.f32 %v329, %v460
        %462 = vmatprep.mubr.bf16.mxu0 0
        %463 = vmatmul.mubr.bf16.gmra.mrb[0].mxu0 %v339
        %v464 = vpop.f32.mrb[0].mxu0
        %v465 = vadd.f32 %v325, %v464
        %v466 = vpop.f32.mrb[0].mxu0
        %v467 = vadd.f32 %v329, %v466
        %v468 = vpop.f32.mrb[0].mxu0
        %v469 = vadd.f32 %v325, %v468
        %v470 = vpop.f32.mrb[0].mxu0
        %v471 = vadd.f32 %v329, %v470
        %472 = vmatprep.mubr.bf16.mxu0 0
        %473 = vmatmul.mubr.bf16.gmra.mrb[0].mxu0 %v342
        %v474 = vpop.f32.mrb[0].mxu0
        %v475 = vadd.f32 %v325, %v474
        %v476 = vpop.f32.mrb[0].mxu0
        %v477 = vadd.f32 %v329, %v476
        %v478 = vpop.f32.mrb[0].mxu0
        %v479 = vadd.f32 %v325, %v478
        %v480 = vpop.f32.mrb[0].mxu0
        %v481 = vadd.f32 %v329, %v480
        %482 = vmatprep.mubr.bf16.mxu0 0
        %483 = vmatmul.mubr.bf16.gmra.mrb[0].mxu0 %v345
        %v484 = vpop.f32.mrb[0].mxu0
        %v485 = vadd.f32 %v325, %v484
        %v486 = vpop.f32.mrb[0].mxu0
        %v487 = vadd.f32 %v329, %v486
        %v488 = vpop.f32.mrb[0].mxu0
        %v489 = vadd.f32 %v325, %v488
        %v490 = vpop.f32.mrb[0].mxu0
        %v491 = vadd.f32 %v329, %v490
        %492 = vdwg.mxu0
        %493 = vst [vmem:[#allocation2] sm:$0xff] %v382
        %494 = vst [vmem:[#allocation2 + $0x8] sm:$0xff] %v384
        %495 = vst [vmem:[#allocation2 + $0x10] sm:$0xff] %v455
        %496 = vst [vmem:[#allocation2 + $0x18] sm:$0xff] %v457
        %497 = vst [vmem:[#allocation2 + $0x20] sm:$0xff] %v386
        %498 = vst [vmem:[#allocation2 + $0x28] sm:$0xff] %v388
        %499 = vst [vmem:[#allocation2 + $0x30] sm:$0xff] %v459
        %500 = vst [vmem:[#allocation2 + $0x38] sm:$0xff] %v461
        %501 = vst [vmem:[#allocation2 + $0x40] sm:$0xff] %v392
        %502 = vst [vmem:[#allocation2 + $0x48] sm:$0xff] %v394
        %503 = vst [vmem:[#allocation2 + $0x50] sm:$0xff] %v465
        %504 = vst [vmem:[#allocation2 + $0x58] sm:$0xff] %v467
        %505 = vst [vmem:[#allocation2 + $0x60] sm:$0xff] %v396
        %506 = vst [vmem:[#allocation2 + $0x68] sm:$0xff] %v398
        %507 = vst [vmem:[#allocation2 + $0x70] sm:$0xff] %v469
        %508 = vst [vmem:[#allocation2 + $0x78] sm:$0xff] %v471
        %509 = vst [vmem:[#allocation2 + $0x80] sm:$0xff] %v402
        %510 = vst [vmem:[#allocation2 + $0x88] sm:$0xff] %v404
        %511 = vst [vmem:[#allocation2 + $0x90] sm:$0xff] %v475
        %512 = vst [vmem:[#allocation2 + $0x98] sm:$0xff] %v477
        %513 = vst [vmem:[#allocation2 + $0xa0] sm:$0xff] %v406
        %514 = vst [vmem:[#allocation2 + $0xa8] sm:$0xff] %v408
        %515 = vst [vmem:[#allocation2 + $0xb0] sm:$0xff] %v479
        %516 = vst [vmem:[#allocation2 + $0xb8] sm:$0xff] %v481
        %517 = vst [vmem:[#allocation2 + $0xc0] sm:$0xff] %v412
        %518 = vst [vmem:[#allocation2 + $0xc8] sm:$0xff] %v414
        %519 = vst [vmem:[#allocation2 + $0xd0] sm:$0xff] %v485
        %520 = vst [vmem:[#allocation2 + $0xd8] sm:$0xff] %v487
        %521 = vst [vmem:[#allocation2 + $0xe0] sm:$0xff] %v416
        %522 = vst [vmem:[#allocation2 + $0xe8] sm:$0xff] %v418
        %523 = vst [vmem:[#allocation2 + $0xf0] sm:$0xff] %v489
        %524 = vst [vmem:[#allocation2 + $0xf8] sm:$0xff] %v491
        %v525 = vld [vmem:[%s244] sm:$0xff]
        %v526 = vld [vmem:[%s244 + $0x8] sm:$0xff]
        %v527 = vld [vmem:[%s244 + $0x10] sm:$0xff]
        %v528 = vld [vmem:[%s244 + $0x18] sm:$0xff]
        %v529 = vld [vmem:[%s244 + $0x20] sm:$0xff]
        %v530 = vld [vmem:[%s244 + $0x28] sm:$0xff]
        %v531 = vld [vmem:[%s244 + $0x30] sm:$0xff]
        %v532 = vld [vmem:[%s244 + $0x38] sm:$0xff]
        %v533 = vld [vmem:[%s244 + $0x40] sm:$0xff]
        %v534 = vld [vmem:[%s244 + $0x48] sm:$0xff]
        %v535 = vld [vmem:[%s244 + $0x50] sm:$0xff]
        %v536 = vld [vmem:[%s244 + $0x58] sm:$0xff]
        %v537 = vld [vmem:[%s244 + $0x60] sm:$0xff]
        %v538 = vld [vmem:[%s244 + $0x68] sm:$0xff]
        %v539 = vld [vmem:[%s244 + $0x70] sm:$0xff]
        %v540 = vld [vmem:[%s244 + $0x78] sm:$0xff]
        %v541 = vld [vmem:[%s244 + $0x80] sm:$0xff]
        %v542 = vld [vmem:[%s244 + $0x88] sm:$0xff]
        %v543 = vld [vmem:[%s244 + $0x90] sm:$0xff]
        %v544 = vld [vmem:[%s244 + $0x98] sm:$0xff]
        %v545 = vld [vmem:[%s244 + $0xa0] sm:$0xff]
        %v546 = vld [vmem:[%s244 + $0xa8] sm:$0xff]
        %v547 = vld [vmem:[%s244 + $0xb0] sm:$0xff]
        %v548 = vld [vmem:[%s244 + $0xb8] sm:$0xff]
        %v549 = vld [vmem:[%s244 + $0xc0] sm:$0xff]
        %v550 = vld [vmem:[%s244 + $0xc8] sm:$0xff]
        %v551 = vld [vmem:[%s244 + $0xd0] sm:$0xff]
        %v552 = vld [vmem:[%s244 + $0xd8] sm:$0xff]
        %v553 = vld [vmem:[%s244 + $0xe0] sm:$0xff]
        %v554 = vld [vmem:[%s244 + $0xe8] sm:$0xff]
        %v555 = vld [vmem:[%s244 + $0xf0] sm:$0xff]
        %v556 = vld [vmem:[%s244 + $0xf8] sm:$0xff]
        %v557 = vld [vmem:[%s244 + $0x100] sm:$0xff]
        %v558 = vld [vmem:[%s244 + $0x108] sm:$0xff]
        %v559 = vld [vmem:[%s244 + $0x110] sm:$0xff]
        %v560 = vld [vmem:[%s244 + $0x118] sm:$0xff]
        %v561 = vld [vmem:[%s244 + $0x120] sm:$0xff]
        %v562 = vld [vmem:[%s244 + $0x128] sm:$0xff]
        %v563 = vld [vmem:[%s244 + $0x130] sm:$0xff]
        %v564 = vld [vmem:[%s244 + $0x138] sm:$0xff]
        %v565 = vld [vmem:[%s244 + $0x140] sm:$0xff]
        %v566 = vld [vmem:[%s244 + $0x148] sm:$0xff]
        %v567 = vld [vmem:[%s244 + $0x150] sm:$0xff]
        %v568 = vld [vmem:[%s244 + $0x158] sm:$0xff]
        %v569 = vld [vmem:[%s244 + $0x160] sm:$0xff]
        %v570 = vld [vmem:[%s244 + $0x168] sm:$0xff]
        %v571 = vld [vmem:[%s244 + $0x170] sm:$0xff]
        %v572 = vld [vmem:[%s244 + $0x178] sm:$0xff]
        %v573 = vld [vmem:[%s244 + $0x180] sm:$0xff]
        %v574 = vld [vmem:[%s244 + $0x188] sm:$0xff]
        %v575 = vld [vmem:[%s244 + $0x190] sm:$0xff]
        %v576 = vld [vmem:[%s244 + $0x198] sm:$0xff]
        %v577 = vld [vmem:[%s244 + $0x1a0] sm:$0xff]
        %v578 = vld [vmem:[%s244 + $0x1a8] sm:$0xff]
        %v579 = vld [vmem:[%s244 + $0x1b0] sm:$0xff]
        %v580 = vld [vmem:[%s244 + $0x1b8] sm:$0xff]
        %v581 = vld [vmem:[%s244 + $0x1c0] sm:$0xff]
        %v582 = vld [vmem:[%s244 + $0x1c8] sm:$0xff]
        %v583 = vld [vmem:[%s244 + $0x1d0] sm:$0xff]
        %v584 = vld [vmem:[%s244 + $0x1d8] sm:$0xff]
        %v585 = vld [vmem:[%s244 + $0x1e0] sm:$0xff]
        %v586 = vld [vmem:[%s244 + $0x1e8] sm:$0xff]
        %v587 = vld [vmem:[%s244 + $0x1f0] sm:$0xff]
        %v588 = vld [vmem:[%s244 + $0x1f8] sm:$0xff]
        %v589 = vpack.c.bf16 %v529, %v525
        %v590 = vpack.c.bf16 %v530, %v526
        %v591 = vpack.c.bf16 %v531, %v527
        %v592 = vpack.c.bf16 %v532, %v528
        %v593 = vpack.c.bf16 %v537, %v533
        %v594 = vpack.c.bf16 %v538, %v534
        %v595 = vpack.c.bf16 %v539, %v535
        %v596 = vpack.c.bf16 %v540, %v536
        %v597 = vpack.c.bf16 %v545, %v541
        %v598 = vpack.c.bf16 %v546, %v542
        %v599 = vpack.c.bf16 %v547, %v543
        %v600 = vpack.c.bf16 %v548, %v544
        %v601 = vpack.c.bf16 %v553, %v549
        %v602 = vpack.c.bf16 %v554, %v550
        %v603 = vpack.c.bf16 %v555, %v551
        %v604 = vpack.c.bf16 %v556, %v552
        %v605 = vpack.c.bf16 %v561, %v557
        %v606 = vpack.c.bf16 %v562, %v558
        %v607 = vpack.c.bf16 %v563, %v559
        %v608 = vpack.c.bf16 %v564, %v560
        %v609 = vpack.c.bf16 %v569, %v565
        %v610 = vpack.c.bf16 %v570, %v566
        %v611 = vpack.c.bf16 %v571, %v567
        %v612 = vpack.c.bf16 %v572, %v568
        %v613 = vpack.c.bf16 %v577, %v573
        %v614 = vpack.c.bf16 %v578, %v574
        %v615 = vpack.c.bf16 %v579, %v575
        %v616 = vpack.c.bf16 %v580, %v576
        %v617 = vpack.c.bf16 %v585, %v581
        %v618 = vpack.c.bf16 %v586, %v582
        %v619 = vpack.c.bf16 %v587, %v583
        %v620 = vpack.c.bf16 %v588, %v584
        %621 = vst [vmem:[#allocation3] sm:$0xff] %v589
        %622 = vst [vmem:[#allocation3 + $0x8] sm:$0xff] %v590
        %623 = vst [vmem:[#allocation3 + $0x10] sm:$0xff] %v591
        %624 = vst [vmem:[#allocation3 + $0x18] sm:$0xff] %v592
        %625 = vst [vmem:[#allocation3 + $0x20] sm:$0xff] %v593
        %626 = vst [vmem:[#allocation3 + $0x28] sm:$0xff] %v594
        %627 = vst [vmem:[#allocation3 + $0x30] sm:$0xff] %v595
        %628 = vst [vmem:[#allocation3 + $0x38] sm:$0xff] %v596
        %629 = vst [vmem:[#allocation3 + $0x40] sm:$0xff] %v597
        %630 = vst [vmem:[#allocation3 + $0x48] sm:$0xff] %v598
        %631 = vst [vmem:[#allocation3 + $0x50] sm:$0xff] %v599
        %632 = vst [vmem:[#allocation3 + $0x58] sm:$0xff] %v600
        %633 = vst [vmem:[#allocation3 + $0x60] sm:$0xff] %v601
        %634 = vst [vmem:[#allocation3 + $0x68] sm:$0xff] %v602
        %635 = vst [vmem:[#allocation3 + $0x70] sm:$0xff] %v603
        %636 = vst [vmem:[#allocation3 + $0x78] sm:$0xff] %v604
        %637 = vst [vmem:[#allocation3 + $0x80] sm:$0xff] %v605
        %638 = vst [vmem:[#allocation3 + $0x88] sm:$0xff] %v606
        %639 = vst [vmem:[#allocation3 + $0x90] sm:$0xff] %v607
        %640 = vst [vmem:[#allocation3 + $0x98] sm:$0xff] %v608
        %641 = vst [vmem:[#allocation3 + $0xa0] sm:$0xff] %v609
        %642 = vst [vmem:[#allocation3 + $0xa8] sm:$0xff] %v610
        %643 = vst [vmem:[#allocation3 + $0xb0] sm:$0xff] %v611
        %644 = vst [vmem:[#allocation3 + $0xb8] sm:$0xff] %v612
        %645 = vst [vmem:[#allocation3 + $0xc0] sm:$0xff] %v613
        %646 = vst [vmem:[#allocation3 + $0xc8] sm:$0xff] %v614
        %647 = vst [vmem:[#allocation3 + $0xd0] sm:$0xff] %v615
        %648 = vst [vmem:[#allocation3 + $0xd8] sm:$0xff] %v616
        %649 = vst [vmem:[#allocation3 + $0xe0] sm:$0xff] %v617
        %650 = vst [vmem:[#allocation3 + $0xe8] sm:$0xff] %v618
        %651 = vst [vmem:[#allocation3 + $0xf0] sm:$0xff] %v619
        %652 = vst [vmem:[#allocation3 + $0xf8] sm:$0xff] %v620
        %p653 = scmp.eq.s32.totalorder %s21, 0
        %s654 = scalar_select %p653, 0, 7
        %s655 = smul.u32 %s654, 4
        %s656 = smul.addr %s655, 8
        %s657 = scalar_lea.vmem [#allocation2], %s656
        %v658 = vld [vmem:[%s657] sm:$0xff]
        %v659 = vld [vmem:[%s657 + $0x8] sm:$0xff]
        %v660 = vld [vmem:[%s657 + $0x10] sm:$0xff]
        %v661 = vld [vmem:[%s657 + $0x18] sm:$0xff]
        %v662 = vld [vmem:[#allocation3] sm:$0xff]
        %v663 = vld [vmem:[#allocation3 + $0x8] sm:$0xff]
        %v664 = vld [vmem:[#allocation3 + $0x10] sm:$0xff]
        %v665 = vld [vmem:[#allocation3 + $0x18] sm:$0xff]
        %v666 = vld [vmem:[#allocation3 + $0x20] sm:$0xff]
        %v667 = vld [vmem:[#allocation3 + $0x28] sm:$0xff]
        %v668 = vld [vmem:[#allocation3 + $0x30] sm:$0xff]
        %v669 = vld [vmem:[#allocation3 + $0x38] sm:$0xff]
        %v670 = vld [vmem:[#allocation3 + $0x40] sm:$0xff]
        %v671 = vld [vmem:[#allocation3 + $0x48] sm:$0xff]
        %v672 = vld [vmem:[#allocation3 + $0x50] sm:$0xff]
        %v673 = vld [vmem:[#allocation3 + $0x58] sm:$0xff]
        %v674 = vld [vmem:[#allocation3 + $0x60] sm:$0xff]
        %v675 = vld [vmem:[#allocation3 + $0x68] sm:$0xff]
        %v676 = vld [vmem:[#allocation3 + $0x70] sm:$0xff]
        %v677 = vld [vmem:[#allocation3 + $0x78] sm:$0xff]
        %v678 = vld [vmem:[#allocation3 + $0x80] sm:$0xff]
        %v679 = vld [vmem:[#allocation3 + $0x88] sm:$0xff]
        %v680 = vld [vmem:[#allocation3 + $0x90] sm:$0xff]
        %v681 = vld [vmem:[#allocation3 + $0x98] sm:$0xff]
        %v682 = vld [vmem:[#allocation3 + $0xa0] sm:$0xff]
        %v683 = vld [vmem:[#allocation3 + $0xa8] sm:$0xff]
        %v684 = vld [vmem:[#allocation3 + $0xb0] sm:$0xff]
        %v685 = vld [vmem:[#allocation3 + $0xb8] sm:$0xff]
        %v686 = vld [vmem:[#allocation3 + $0xc0] sm:$0xff]
        %v687 = vld [vmem:[#allocation3 + $0xc8] sm:$0xff]
        %v688 = vld [vmem:[#allocation3 + $0xd0] sm:$0xff]
        %v689 = vld [vmem:[#allocation3 + $0xd8] sm:$0xff]
        %v690 = vld [vmem:[#allocation3 + $0xe0] sm:$0xff]
        %v691 = vld [vmem:[#allocation3 + $0xe8] sm:$0xff]
        %v692 = vld [vmem:[#allocation3 + $0xf0] sm:$0xff]
        %v693 = vld [vmem:[#allocation3 + $0xf8] sm:$0xff]
        %694 = vmatprep.subr.bf16.mxu0 %v663
        %695 = vmatpush1.bf16.msra.mxu0 %v662
        %696 = vmatprep.subr.bf16.mxu0 %v667
        %697 = vmatpush1.bf16.msra.mxu0 %v666
        %698 = vmatprep.subr.bf16.mxu0 %v671
        %699 = vmatpush1.bf16.msra.mxu0 %v670
        %700 = vmatprep.subr.bf16.mxu0 %v675
        %701 = vmatpush1.bf16.msra.mxu0 %v674
        %702 = vmatprep.subr.bf16.mxu0 %v679
        %703 = vmatpush1.bf16.msra.mxu0 %v678
        %704 = vmatprep.subr.bf16.mxu0 %v683
        %705 = vmatpush1.bf16.msra.mxu0 %v682
        %706 = vmatprep.subr.bf16.mxu0 %v687
        %707 = vmatpush1.bf16.msra.mxu0 %v686
        %708 = vmatprep.subr.bf16.mxu0 %v691
        %709 = vmatpush1.bf16.msra.mxu0 %v690
        %710 = vmatprep.subr.bf16.mxu0 0
        %711 = vmatpush1.bf16.msra.mxu0 0
        %712 = vmatprep.subr.bf16.mxu0 0
        %713 = vmatpush1.bf16.msra.mxu0 0
        %714 = vmatprep.subr.bf16.mxu0 0
        %715 = vmatpush1.bf16.msra.mxu0 0
        %716 = vmatprep.subr.bf16.mxu0 0
        %717 = vmatpush1.bf16.msra.mxu0 0
        %718 = vmatprep.subr.bf16.mxu0 0
        %719 = vmatpush1.bf16.msra.mxu0 0
        %720 = vmatprep.subr.bf16.mxu0 0
        %721 = vmatpush1.bf16.msra.mxu0 0
        %722 = vmatprep.subr.bf16.mxu0 0
        %723 = vmatpush1.bf16.msra.mxu0 0
        %724 = vmatprep.subr.bf16.mxu0 0
        %725 = vmatpush1.bf16.msra.mxu0 0
        %726 = vmatprep.mubr.bf16.mxu0 0
        %727 = vmatmul.mubr.bf16.gmra.mrb[0].mxu0 0
        %v728 = vpop.f32.mrb[0].mxu0
        %v729 = vadd.f32 0.0, %v728
        %v730 = vpop.f32.mrb[0].mxu0
        %v731 = vadd.f32 0.0, %v730
        %v732 = vpop.f32.mrb[0].mxu0
        %v733 = vpop.f32.mrb[0].mxu0
        %734 = vdwg.mxu0
        %735 = vmatprep.subr.bf16.mxu0 %v665
        %736 = vmatpush1.bf16.msra.mxu0 %v664
        %737 = vmatprep.subr.bf16.mxu0 %v669
        %738 = vmatpush1.bf16.msra.mxu0 %v668
        %739 = vmatprep.subr.bf16.mxu0 %v673
        %740 = vmatpush1.bf16.msra.mxu0 %v672
        %741 = vmatprep.subr.bf16.mxu0 %v677
        %742 = vmatpush1.bf16.msra.mxu0 %v676
        %743 = vmatprep.subr.bf16.mxu0 %v681
        %744 = vmatpush1.bf16.msra.mxu0 %v680
        %745 = vmatprep.subr.bf16.mxu0 %v685
        %746 = vmatpush1.bf16.msra.mxu0 %v684
        %747 = vmatprep.subr.bf16.mxu0 %v689
        %748 = vmatpush1.bf16.msra.mxu0 %v688
        %749 = vmatprep.subr.bf16.mxu0 %v693
        %750 = vmatpush1.bf16.msra.mxu0 %v692
        %751 = vmatprep.subr.bf16.mxu0 0
        %752 = vmatpush1.bf16.msra.mxu0 0
        %753 = vmatprep.subr.bf16.mxu0 0
        %754 = vmatpush1.bf16.msra.mxu0 0
        %755 = vmatprep.subr.bf16.mxu0 0
        %756 = vmatpush1.bf16.msra.mxu0 0
        %757 = vmatprep.subr.bf16.mxu0 0
        %758 = vmatpush1.bf16.msra.mxu0 0
        %759 = vmatprep.subr.bf16.mxu0 0
        %760 = vmatpush1.bf16.msra.mxu0 0
        %761 = vmatprep.subr.bf16.mxu0 0
        %762 = vmatpush1.bf16.msra.mxu0 0
        %763 = vmatprep.subr.bf16.mxu0 0
        %764 = vmatpush1.bf16.msra.mxu0 0
        %765 = vmatprep.subr.bf16.mxu0 0
        %766 = vmatpush1.bf16.msra.mxu0 0
        %767 = vmatprep.mubr.bf16.mxu0 0
        %768 = vmatmul.mubr.bf16.gmra.mrb[0].mxu0 0
        %v769 = vpop.f32.mrb[0].mxu0
        %v770 = vadd.f32 0.0, %v769
        %v771 = vpop.f32.mrb[0].mxu0
        %v772 = vadd.f32 0.0, %v771
        %v773 = vpop.f32.mrb[0].mxu0
        %v774 = vpop.f32.mrb[0].mxu0
        %775 = vdwg.mxu0
        %v776 = vadd.f32 %v658, %v729
        %v777 = vadd.f32 %v659, %v731
        %v778 = vadd.f32 %v660, %v770
        %v779 = vadd.f32 %v661, %v772
        %v780 = vxor.u32 %v776, 2147483648
        %v781 = vmul.f32 %v780, 1.442695
        %v782 = vpow.pop %v781
        %v783 = vadd.f32 %v782, 1.0
        %v784 = vrcp.pop %v783
        %v785 = vmul.f32 1.0, %v784
        %v786 = vxor.u32 %v777, 2147483648
        %v787 = vmul.f32 %v786, 1.442695
        %v788 = vpow.pop %v787
        %v789 = vadd.f32 %v788, 1.0
        %v790 = vrcp.pop %v789
        %v791 = vmul.f32 1.0, %v790
        %v792 = vtanh.pop %v778
        %v793 = vxor.u32 %v779, 2147483648
        %v794 = vmul.f32 %v793, 1.442695
        %v795 = vpow.pop %v794
        %v796 = vadd.f32 %v795, 1.0
        %v797 = vrcp.pop %v796
        %v798 = vmul.f32 1.0, %v797
        %v799 = vmul.f32 %v791, 0.0
        %v800 = vmul.f32 %v785, %v792
        %v801 = vadd.f32 %v799, %v800
        %v802 = vtanh.pop %v801
        %v803 = vmul.f32 %v798, %v802
        %s804 = smul.u32 %s654, 8
        %s805 = scalar_lea.vmem %s286, %s804 [#allocation9]
        %806 = vst [vmem:[%s805] sm:$0xff] %v803
        %s807 = scalar_select %p653, 1, 6
        %s808 = smul.u32 %s807, 4
        %s809 = smul.addr %s808, 8
        %s810 = scalar_lea.vmem [#allocation2], %s809
        %v811 = vld [vmem:[%s810] sm:$0xff]
        %v812 = vld [vmem:[%s810 + $0x8] sm:$0xff]
        %v813 = vld [vmem:[%s810 + $0x10] sm:$0xff]
        %v814 = vld [vmem:[%s810 + $0x18] sm:$0xff]
        %v815 = vpack.c.bf16 %v803, %v803
        %v816 = vld [vmem:[#allocation3] sm:$0xff]
        %v817 = vld [vmem:[#allocation3 + $0x8] sm:$0xff]
        %v818 = vld [vmem:[#allocation3 + $0x10] sm:$0xff]
        %v819 = vld [vmem:[#allocation3 + $0x18] sm:$0xff]
        %v820 = vld [vmem:[#allocation3 + $0x20] sm:$0xff]
        %v821 = vld [vmem:[#allocation3 + $0x28] sm:$0xff]
        %v822 = vld [vmem:[#allocation3 + $0x30] sm:$0xff]
        %v823 = vld [vmem:[#allocation3 + $0x38] sm:$0xff]
        %v824 = vld [vmem:[#allocation3 + $0x40] sm:$0xff]
        %v825 = vld [vmem:[#allocation3 + $0x48] sm:$0xff]
        %v826 = vld [vmem:[#allocation3 + $0x50] sm:$0xff]
        %v827 = vld [vmem:[#allocation3 + $0x58] sm:$0xff]
        %v828 = vld [vmem:[#allocation3 + $0x60] sm:$0xff]
        %v829 = vld [vmem:[#allocation3 + $0x68] sm:$0xff]
        %v830 = vld [vmem:[#allocation3 + $0x70] sm:$0xff]
        %v831 = vld [vmem:[#allocation3 + $0x78] sm:$0xff]
        %v832 = vld [vmem:[#allocation3 + $0x80] sm:$0xff]
        %v833 = vld [vmem:[#allocation3 + $0x88] sm:$0xff]
        %v834 = vld [vmem:[#allocation3 + $0x90] sm:$0xff]
        %v835 = vld [vmem:[#allocation3 + $0x98] sm:$0xff]
        %v836 = vld [vmem:[#allocation3 + $0xa0] sm:$0xff]
        %v837 = vld [vmem:[#allocation3 + $0xa8] sm:$0xff]
        %v838 = vld [vmem:[#allocation3 + $0xb0] sm:$0xff]
        %v839 = vld [vmem:[#allocation3 + $0xb8] sm:$0xff]
        %v840 = vld [vmem:[#allocation3 + $0xc0] sm:$0xff]
        %v841 = vld [vmem:[#allocation3 + $0xc8] sm:$0xff]
        %v842 = vld [vmem:[#allocation3 + $0xd0] sm:$0xff]
        %v843 = vld [vmem:[#allocation3 + $0xd8] sm:$0xff]
        %v844 = vld [vmem:[#allocation3 + $0xe0] sm:$0xff]
        %v845 = vld [vmem:[#allocation3 + $0xe8] sm:$0xff]
        %v846 = vld [vmem:[#allocation3 + $0xf0] sm:$0xff]
        %v847 = vld [vmem:[#allocation3 + $0xf8] sm:$0xff]
        %848 = vmatprep.subr.bf16.mxu0 %v817
        %849 = vmatpush1.bf16.msra.mxu0 %v816
        %850 = vmatprep.subr.bf16.mxu0 %v821
        %851 = vmatpush1.bf16.msra.mxu0 %v820
        %852 = vmatprep.subr.bf16.mxu0 %v825
        %853 = vmatpush1.bf16.msra.mxu0 %v824
        %854 = vmatprep.subr.bf16.mxu0 %v829
        %855 = vmatpush1.bf16.msra.mxu0 %v828
        %856 = vmatprep.subr.bf16.mxu0 %v833
        %857 = vmatpush1.bf16.msra.mxu0 %v832
        %858 = vmatprep.subr.bf16.mxu0 %v837
        %859 = vmatpush1.bf16.msra.mxu0 %v836
        %860 = vmatprep.subr.bf16.mxu0 %v841
        %861 = vmatpush1.bf16.msra.mxu0 %v840
        %862 = vmatprep.subr.bf16.mxu0 %v845
        %863 = vmatpush1.bf16.msra.mxu0 %v844
        %864 = vmatprep.subr.bf16.mxu0 0
        %865 = vmatpush1.bf16.msra.mxu0 0
        %866 = vmatprep.subr.bf16.mxu0 0
        %867 = vmatpush1.bf16.msra.mxu0 0
        %868 = vmatprep.subr.bf16.mxu0 0
        %869 = vmatpush1.bf16.msra.mxu0 0
        %870 = vmatprep.subr.bf16.mxu0 0
        %871 = vmatpush1.bf16.msra.mxu0 0
        %872 = vmatprep.subr.bf16.mxu0 0
        %873 = vmatpush1.bf16.msra.mxu0 0
        %874 = vmatprep.subr.bf16.mxu0 0
        %875 = vmatpush1.bf16.msra.mxu0 0
        %876 = vmatprep.subr.bf16.mxu0 0
        %877 = vmatpush1.bf16.msra.mxu0 0
        %878 = vmatprep.subr.bf16.mxu0 0
        %879 = vmatpush1.bf16.msra.mxu0 0
        %880 = vmatprep.mubr.bf16.mxu0 0
        %881 = vmatmul.mubr.bf16.gmra.mrb[0].mxu0 %v815
        %v882 = vpop.f32.mrb[0].mxu0
        %v883 = vadd.f32 0.0, %v882
        %v884 = vpop.f32.mrb[0].mxu0
        %v885 = vadd.f32 0.0, %v884
        %v886 = vpop.f32.mrb[0].mxu0
        %v887 = vpop.f32.mrb[0].mxu0
        %888 = vdwg.mxu0
        %889 = vmatprep.subr.bf16.mxu0 %v819
        %890 = vmatpush1.bf16.msra.mxu0 %v818
        %891 = vmatprep.subr.bf16.mxu0 %v823
        %892 = vmatpush1.bf16.msra.mxu0 %v822
        %893 = vmatprep.subr.bf16.mxu0 %v827
        %894 = vmatpush1.bf16.msra.mxu0 %v826
        %895 = vmatprep.subr.bf16.mxu0 %v831
        %896 = vmatpush1.bf16.msra.mxu0 %v830
        %897 = vmatprep.subr.bf16.mxu0 %v835
        %898 = vmatpush1.bf16.msra.mxu0 %v834
        %899 = vmatprep.subr.bf16.mxu0 %v839
        %900 = vmatpush1.bf16.msra.mxu0 %v838
        %901 = vmatprep.subr.bf16.mxu0 %v843
        %902 = vmatpush1.bf16.msra.mxu0 %v842
        %903 = vmatprep.subr.bf16.mxu0 %v847
        %904 = vmatpush1.bf16.msra.mxu0 %v846
        %905 = vmatprep.subr.bf16.mxu0 0
        %906 = vmatpush1.bf16.msra.mxu0 0
        %907 = vmatprep.subr.bf16.mxu0 0
        %908 = vmatpush1.bf16.msra.mxu0 0
        %909 = vmatprep.subr.bf16.mxu0 0
        %910 = vmatpush1.bf16.msra.mxu0 0
        %911 = vmatprep.subr.bf16.mxu0 0
        %912 = vmatpush1.bf16.msra.mxu0 0
        %913 = vmatprep.subr.bf16.mxu0 0
        %914 = vmatpush1.bf16.msra.mxu0 0
        %915 = vmatprep.subr.bf16.mxu0 0
        %916 = vmatpush1.bf16.msra.mxu0 0
        %917 = vmatprep.subr.bf16.mxu0 0
        %918 = vmatpush1.bf16.msra.mxu0 0
        %919 = vmatprep.subr.bf16.mxu0 0
        %920 = vmatpush1.bf16.msra.mxu0 0
        %921 = vmatprep.mubr.bf16.mxu0 0
        %922 = vmatmul.mubr.bf16.gmra.mrb[0].mxu0 %v815
        %v923 = vpop.f32.mrb[0].mxu0
        %v924 = vadd.f32 0.0, %v923
        %v925 = vpop.f32.mrb[0].mxu0
        %v926 = vadd.f32 0.0, %v925
        %v927 = vpop.f32.mrb[0].mxu0
        %v928 = vpop.f32.mrb[0].mxu0
        %929 = vdwg.mxu0
        %v930 = vadd.f32 %v811, %v883
        %v931 = vadd.f32 %v812, %v885
        %v932 = vadd.f32 %v813, %v924
        %v933 = vadd.f32 %v814, %v926
        %v934 = vxor.u32 %v930, 2147483648
        %v935 = vmul.f32 %v934, 1.442695
        %v936 = vpow.pop %v935
        %v937 = vadd.f32 %v936, 1.0
        %v938 = vrcp.pop %v937
        %v939 = vmul.f32 1.0, %v938
        %v940 = vxor.u32 %v931, 2147483648
        %v941 = vmul.f32 %v940, 1.442695
        %v942 = vpow.pop %v941
        %v943 = vadd.f32 %v942, 1.0
        %v944 = vrcp.pop %v943
        %v945 = vmul.f32 1.0, %v944
        %v946 = vtanh.pop %v932
        %v947 = vxor.u32 %v933, 2147483648
        %v948 = vmul.f32 %v947, 1.442695
        %v949 = vpow.pop %v948
        %v950 = vadd.f32 %v949, 1.0
        %v951 = vrcp.pop %v950
        %v952 = vmul.f32 1.0, %v951
        %v953 = vmul.f32 %v945, %v801
        %v954 = vmul.f32 %v939, %v946
        %v955 = vadd.f32 %v953, %v954
        %v956 = vtanh.pop %v955
        %v957 = vmul.f32 %v952, %v956
        %s958 = smul.u32 %s807, 8
        %s959 = scalar_lea.vmem %s286, %s958 [#allocation9]
        %960 = vst [vmem:[%s959] sm:$0xff] %v957
        %s961 = scalar_select %p653, 2, 5
        %s962 = smul.u32 %s961, 4
        %s963 = smul.addr %s962, 8
        %s964 = scalar_lea.vmem [#allocation2], %s963
        %v965 = vld [vmem:[%s964] sm:$0xff]
        %v966 = vld [vmem:[%s964 + $0x8] sm:$0xff]
        %v967 = vld [vmem:[%s964 + $0x10] sm:$0xff]
        %v968 = vld [vmem:[%s964 + $0x18] sm:$0xff]
        %v969 = vpack.c.bf16 %v957, %v957
        %v970 = vld [vmem:[#allocation3] sm:$0xff]
        %v971 = vld [vmem:[#allocation3 + $0x8] sm:$0xff]
        %v972 = vld [vmem:[#allocation3 + $0x10] sm:$0xff]
        %v973 = vld [vmem:[#allocation3 + $0x18] sm:$0xff]
        %v974 = vld [vmem:[#allocation3 + $0x20] sm:$0xff]
        %v975 = vld [vmem:[#allocation3 + $0x28] sm:$0xff]
        %v976 = vld [vmem:[#allocation3 + $0x30] sm:$0xff]
        %v977 = vld [vmem:[#allocation3 + $0x38] sm:$0xff]
        %v978 = vld [vmem:[#allocation3 + $0x40] sm:$0xff]
        %v979 = vld [vmem:[#allocation3 + $0x48] sm:$0xff]
        %v980 = vld [vmem:[#allocation3 + $0x50] sm:$0xff]
        %v981 = vld [vmem:[#allocation3 + $0x58] sm:$0xff]
        %v982 = vld [vmem:[#allocation3 + $0x60] sm:$0xff]
        %v983 = vld [vmem:[#allocation3 + $0x68] sm:$0xff]
        %v984 = vld [vmem:[#allocation3 + $0x70] sm:$0xff]
        %v985 = vld [vmem:[#allocation3 + $0x78] sm:$0xff]
        %v986 = vld [vmem:[#allocation3 + $0x80] sm:$0xff]
        %v987 = vld [vmem:[#allocation3 + $0x88] sm:$0xff]
        %v988 = vld [vmem:[#allocation3 + $0x90] sm:$0xff]
        %v989 = vld [vmem:[#allocation3 + $0x98] sm:$0xff]
        %v990 = vld [vmem:[#allocation3 + $0xa0] sm:$0xff]
        %v991 = vld [vmem:[#allocation3 + $0xa8] sm:$0xff]
        %v992 = vld [vmem:[#allocation3 + $0xb0] sm:$0xff]
        %v993 = vld [vmem:[#allocation3 + $0xb8] sm:$0xff]
        %v994 = vld [vmem:[#allocation3 + $0xc0] sm:$0xff]
        %v995 = vld [vmem:[#allocation3 + $0xc8] sm:$0xff]
        %v996 = vld [vmem:[#allocation3 + $0xd0] sm:$0xff]
        %v997 = vld [vmem:[#allocation3 + $0xd8] sm:$0xff]
        %v998 = vld [vmem:[#allocation3 + $0xe0] sm:$0xff]
        %v999 = vld [vmem:[#allocation3 + $0xe8] sm:$0xff]
        %v1000 = vld [vmem:[#allocation3 + $0xf0] sm:$0xff]
        %v1001 = vld [vmem:[#allocation3 + $0xf8] sm:$0xff]
        %1002 = vmatprep.subr.bf16.mxu0 %v971
        %1003 = vmatpush1.bf16.msra.mxu0 %v970
        %1004 = vmatprep.subr.bf16.mxu0 %v975
        %1005 = vmatpush1.bf16.msra.mxu0 %v974
        %1006 = vmatprep.subr.bf16.mxu0 %v979
        %1007 = vmatpush1.bf16.msra.mxu0 %v978
        %1008 = vmatprep.subr.bf16.mxu0 %v983
        %1009 = vmatpush1.bf16.msra.mxu0 %v982
        %1010 = vmatprep.subr.bf16.mxu0 %v987
        %1011 = vmatpush1.bf16.msra.mxu0 %v986
        %1012 = vmatprep.subr.bf16.mxu0 %v991
        %1013 = vmatpush1.bf16.msra.mxu0 %v990
        %1014 = vmatprep.subr.bf16.mxu0 %v995
        %1015 = vmatpush1.bf16.msra.mxu0 %v994
        %1016 = vmatprep.subr.bf16.mxu0 %v999
        %1017 = vmatpush1.bf16.msra.mxu0 %v998
        %1018 = vmatprep.subr.bf16.mxu0 0
        %1019 = vmatpush1.bf16.msra.mxu0 0
        %1020 = vmatprep.subr.bf16.mxu0 0
        %1021 = vmatpush1.bf16.msra.mxu0 0
        %1022 = vmatprep.subr.bf16.mxu0 0
        %1023 = vmatpush1.bf16.msra.mxu0 0
        %1024 = vmatprep.subr.bf16.mxu0 0
        %1025 = vmatpush1.bf16.msra.mxu0 0
        %1026 = vmatprep.subr.bf16.mxu0 0
        %1027 = vmatpush1.bf16.msra.mxu0 0
        %1028 = vmatprep.subr.bf16.mxu0 0
        %1029 = vmatpush1.bf16.msra.mxu0 0
        %1030 = vmatprep.subr.bf16.mxu0 0
        %1031 = vmatpush1.bf16.msra.mxu0 0
        %1032 = vmatprep.subr.bf16.mxu0 0
        %1033 = vmatpush1.bf16.msra.mxu0 0
        %1034 = vmatprep.mubr.bf16.mxu0 0
        %1035 = vmatmul.mubr.bf16.gmra.mrb[0].mxu0 %v969
        %v1036 = vpop.f32.mrb[0].mxu0
        %v1037 = vadd.f32 0.0, %v1036
        %v1038 = vpop.f32.mrb[0].mxu0
        %v1039 = vadd.f32 0.0, %v1038
        %v1040 = vpop.f32.mrb[0].mxu0
        %v1041 = vpop.f32.mrb[0].mxu0
        %1042 = vdwg.mxu0
        %1043 = vmatprep.subr.bf16.mxu0 %v973
        %1044 = vmatpush1.bf16.msra.mxu0 %v972
        %1045 = vmatprep.subr.bf16.mxu0 %v977
        %1046 = vmatpush1.bf16.msra.mxu0 %v976
        %1047 = vmatprep.subr.bf16.mxu0 %v981
        %1048 = vmatpush1.bf16.msra.mxu0 %v980
        %1049 = vmatprep.subr.bf16.mxu0 %v985
        %1050 = vmatpush1.bf16.msra.mxu0 %v984
        %1051 = vmatprep.subr.bf16.mxu0 %v989
        %1052 = vmatpush1.bf16.msra.mxu0 %v988
        %1053 = vmatprep.subr.bf16.mxu0 %v993
        %1054 = vmatpush1.bf16.msra.mxu0 %v992
        %1055 = vmatprep.subr.bf16.mxu0 %v997
        %1056 = vmatpush1.bf16.msra.mxu0 %v996
        %1057 = vmatprep.subr.bf16.mxu0 %v1001
        %1058 = vmatpush1.bf16.msra.mxu0 %v1000
        %1059 = vmatprep.subr.bf16.mxu0 0
        %1060 = vmatpush1.bf16.msra.mxu0 0
        %1061 = vmatprep.subr.bf16.mxu0 0
        %1062 = vmatpush1.bf16.msra.mxu0 0
        %1063 = vmatprep.subr.bf16.mxu0 0
        %1064 = vmatpush1.bf16.msra.mxu0 0
        %1065 = vmatprep.subr.bf16.mxu0 0
        %1066 = vmatpush1.bf16.msra.mxu0 0
        %1067 = vmatprep.subr.bf16.mxu0 0
        %1068 = vmatpush1.bf16.msra.mxu0 0
        %1069 = vmatprep.subr.bf16.mxu0 0
        %1070 = vmatpush1.bf16.msra.mxu0 0
        %1071 = vmatprep.subr.bf16.mxu0 0
        %1072 = vmatpush1.bf16.msra.mxu0 0
        %1073 = vmatprep.subr.bf16.mxu0 0
        %1074 = vmatpush1.bf16.msra.mxu0 0
        %1075 = vmatprep.mubr.bf16.mxu0 0
        %1076 = vmatmul.mubr.bf16.gmra.mrb[0].mxu0 %v969
        %v1077 = vpop.f32.mrb[0].mxu0
        %v1078 = vadd.f32 0.0, %v1077
        %v1079 = vpop.f32.mrb[0].mxu0
        %v1080 = vadd.f32 0.0, %v1079
        %v1081 = vpop.f32.mrb[0].mxu0
        %v1082 = vpop.f32.mrb[0].mxu0
        %1083 = vdwg.mxu0
        %v1084 = vadd.f32 %v965, %v1037
        %v1085 = vadd.f32 %v966, %v1039
        %v1086 = vadd.f32 %v967, %v1078
        %v1087 = vadd.f32 %v968, %v1080
        %v1088 = vxor.u32 %v1084, 2147483648
        %v1089 = vmul.f32 %v1088, 1.442695
        %v1090 = vpow.pop %v1089
        %v1091 = vadd.f32 %v1090, 1.0
        %v1092 = vrcp.pop %v1091
        %v1093 = vmul.f32 1.0, %v1092
        %v1094 = vxor.u32 %v1085, 2147483648
        %v1095 = vmul.f32 %v1094, 1.442695
        %v1096 = vpow.pop %v1095
        %v1097 = vadd.f32 %v1096, 1.0
        %v1098 = vrcp.pop %v1097
        %v1099 = vmul.f32 1.0, %v1098
        %v1100 = vtanh.pop %v1086
        %v1101 = vxor.u32 %v1087, 2147483648
        %v1102 = vmul.f32 %v1101, 1.442695
        %v1103 = vpow.pop %v1102
        %v1104 = vadd.f32 %v1103, 1.0
        %v1105 = vrcp.pop %v1104
        %v1106 = vmul.f32 1.0, %v1105
        %v1107 = vmul.f32 %v1099, %v955
        %v1108 = vmul.f32 %v1093, %v1100
        %v1109 = vadd.f32 %v1107, %v1108
        %v1110 = vtanh.pop %v1109
        %v1111 = vmul.f32 %v1106, %v1110
        %s1112 = smul.u32 %s961, 8
        %s1113 = scalar_lea.vmem %s286, %s1112 [#allocation9]
        %1114 = vst [vmem:[%s1113] sm:$0xff] %v1111
        %s1115 = scalar_select %p653, 3, 4
        %s1116 = smul.u32 %s1115, 4
        %s1117 = smul.addr %s1116, 8
        %s1118 = scalar_lea.vmem [#allocation2], %s1117
        %v1119 = vld [vmem:[%s1118] sm:$0xff]
        %v1120 = vld [vmem:[%s1118 + $0x8] sm:$0xff]
        %v1121 = vld [vmem:[%s1118 + $0x10] sm:$0xff]
        %v1122 = vld [vmem:[%s1118 + $0x18] sm:$0xff]
        %v1123 = vpack.c.bf16 %v1111, %v1111
        %v1124 = vld [vmem:[#allocation3] sm:$0xff]
        %v1125 = vld [vmem:[#allocation3 + $0x8] sm:$0xff]
        %v1126 = vld [vmem:[#allocation3 + $0x10] sm:$0xff]
        %v1127 = vld [vmem:[#allocation3 + $0x18] sm:$0xff]
        %v1128 = vld [vmem:[#allocation3 + $0x20] sm:$0xff]
        %v1129 = vld [vmem:[#allocation3 + $0x28] sm:$0xff]
        %v1130 = vld [vmem:[#allocation3 + $0x30] sm:$0xff]
        %v1131 = vld [vmem:[#allocation3 + $0x38] sm:$0xff]
        %v1132 = vld [vmem:[#allocation3 + $0x40] sm:$0xff]
        %v1133 = vld [vmem:[#allocation3 + $0x48] sm:$0xff]
        %v1134 = vld [vmem:[#allocation3 + $0x50] sm:$0xff]
        %v1135 = vld [vmem:[#allocation3 + $0x58] sm:$0xff]
        %v1136 = vld [vmem:[#allocation3 + $0x60] sm:$0xff]
        %v1137 = vld [vmem:[#allocation3 + $0x68] sm:$0xff]
        %v1138 = vld [vmem:[#allocation3 + $0x70] sm:$0xff]
        %v1139 = vld [vmem:[#allocation3 + $0x78] sm:$0xff]
        %v1140 = vld [vmem:[#allocation3 + $0x80] sm:$0xff]
        %v1141 = vld [vmem:[#allocation3 + $0x88] sm:$0xff]
        %v1142 = vld [vmem:[#allocation3 + $0x90] sm:$0xff]
        %v1143 = vld [vmem:[#allocation3 + $0x98] sm:$0xff]
        %v1144 = vld [vmem:[#allocation3 + $0xa0] sm:$0xff]
        %v1145 = vld [vmem:[#allocation3 + $0xa8] sm:$0xff]
        %v1146 = vld [vmem:[#allocation3 + $0xb0] sm:$0xff]
        %v1147 = vld [vmem:[#allocation3 + $0xb8] sm:$0xff]
        %v1148 = vld [vmem:[#allocation3 + $0xc0] sm:$0xff]
        %v1149 = vld [vmem:[#allocation3 + $0xc8] sm:$0xff]
        %v1150 = vld [vmem:[#allocation3 + $0xd0] sm:$0xff]
        %v1151 = vld [vmem:[#allocation3 + $0xd8] sm:$0xff]
        %v1152 = vld [vmem:[#allocation3 + $0xe0] sm:$0xff]
        %v1153 = vld [vmem:[#allocation3 + $0xe8] sm:$0xff]
        %v1154 = vld [vmem:[#allocation3 + $0xf0] sm:$0xff]
        %v1155 = vld [vmem:[#allocation3 + $0xf8] sm:$0xff]
        %1156 = vmatprep.subr.bf16.mxu0 %v1125
        %1157 = vmatpush1.bf16.msra.mxu0 %v1124
        %1158 = vmatprep.subr.bf16.mxu0 %v1129
        %1159 = vmatpush1.bf16.msra.mxu0 %v1128
        %1160 = vmatprep.subr.bf16.mxu0 %v1133
        %1161 = vmatpush1.bf16.msra.mxu0 %v1132
        %1162 = vmatprep.subr.bf16.mxu0 %v1137
        %1163 = vmatpush1.bf16.msra.mxu0 %v1136
        %1164 = vmatprep.subr.bf16.mxu0 %v1141
        %1165 = vmatpush1.bf16.msra.mxu0 %v1140
        %1166 = vmatprep.subr.bf16.mxu0 %v1145
        %1167 = vmatpush1.bf16.msra.mxu0 %v1144
        %1168 = vmatprep.subr.bf16.mxu0 %v1149
        %1169 = vmatpush1.bf16.msra.mxu0 %v1148
        %1170 = vmatprep.subr.bf16.mxu0 %v1153
        %1171 = vmatpush1.bf16.msra.mxu0 %v1152
        %1172 = vmatprep.subr.bf16.mxu0 0
        %1173 = vmatpush1.bf16.msra.mxu0 0
        %1174 = vmatprep.subr.bf16.mxu0 0
        %1175 = vmatpush1.bf16.msra.mxu0 0
        %1176 = vmatprep.subr.bf16.mxu0 0
        %1177 = vmatpush1.bf16.msra.mxu0 0
        %1178 = vmatprep.subr.bf16.mxu0 0
        %1179 = vmatpush1.bf16.msra.mxu0 0
        %1180 = vmatprep.subr.bf16.mxu0 0
        %1181 = vmatpush1.bf16.msra.mxu0 0
        %1182 = vmatprep.subr.bf16.mxu0 0
        %1183 = vmatpush1.bf16.msra.mxu0 0
        %1184 = vmatprep.subr.bf16.mxu0 0
        %1185 = vmatpush1.bf16.msra.mxu0 0
        %1186 = vmatprep.subr.bf16.mxu0 0
        %1187 = vmatpush1.bf16.msra.mxu0 0
        %1188 = vmatprep.mubr.bf16.mxu0 0
        %1189 = vmatmul.mubr.bf16.gmra.mrb[0].mxu0 %v1123
        %v1190 = vpop.f32.mrb[0].mxu0
        %v1191 = vadd.f32 0.0, %v1190
        %v1192 = vpop.f32.mrb[0].mxu0
        %v1193 = vadd.f32 0.0, %v1192
        %v1194 = vpop.f32.mrb[0].mxu0
        %v1195 = vpop.f32.mrb[0].mxu0
        %1196 = vdwg.mxu0
        %1197 = vmatprep.subr.bf16.mxu0 %v1127
        %1198 = vmatpush1.bf16.msra.mxu0 %v1126
        %1199 = vmatprep.subr.bf16.mxu0 %v1131
        %1200 = vmatpush1.bf16.msra.mxu0 %v1130
        %1201 = vmatprep.subr.bf16.mxu0 %v1135
        %1202 = vmatpush1.bf16.msra.mxu0 %v1134
        %1203 = vmatprep.subr.bf16.mxu0 %v1139
        %1204 = vmatpush1.bf16.msra.mxu0 %v1138
        %1205 = vmatprep.subr.bf16.mxu0 %v1143
        %1206 = vmatpush1.bf16.msra.mxu0 %v1142
        %1207 = vmatprep.subr.bf16.mxu0 %v1147
        %1208 = vmatpush1.bf16.msra.mxu0 %v1146
        %1209 = vmatprep.subr.bf16.mxu0 %v1151
        %1210 = vmatpush1.bf16.msra.mxu0 %v1150
        %1211 = vmatprep.subr.bf16.mxu0 %v1155
        %1212 = vmatpush1.bf16.msra.mxu0 %v1154
        %1213 = vmatprep.subr.bf16.mxu0 0
        %1214 = vmatpush1.bf16.msra.mxu0 0
        %1215 = vmatprep.subr.bf16.mxu0 0
        %1216 = vmatpush1.bf16.msra.mxu0 0
        %1217 = vmatprep.subr.bf16.mxu0 0
        %1218 = vmatpush1.bf16.msra.mxu0 0
        %1219 = vmatprep.subr.bf16.mxu0 0
        %1220 = vmatpush1.bf16.msra.mxu0 0
        %1221 = vmatprep.subr.bf16.mxu0 0
        %1222 = vmatpush1.bf16.msra.mxu0 0
        %1223 = vmatprep.subr.bf16.mxu0 0
        %1224 = vmatpush1.bf16.msra.mxu0 0
        %1225 = vmatprep.subr.bf16.mxu0 0
        %1226 = vmatpush1.bf16.msra.mxu0 0
        %1227 = vmatprep.subr.bf16.mxu0 0
        %1228 = vmatpush1.bf16.msra.mxu0 0
        %1229 = vmatprep.mubr.bf16.mxu0 0
        %1230 = vmatmul.mubr.bf16.gmra.mrb[0].mxu0 %v1123
        %v1231 = vpop.f32.mrb[0].mxu0
        %v1232 = vadd.f32 0.0, %v1231
        %v1233 = vpop.f32.mrb[0].mxu0
        %v1234 = vadd.f32 0.0, %v1233
        %v1235 = vpop.f32.mrb[0].mxu0
        %v1236 = vpop.f32.mrb[0].mxu0
        %1237 = vdwg.mxu0
        %v1238 = vadd.f32 %v1119, %v1191
        %v1239 = vadd.f32 %v1120, %v1193
        %v1240 = vadd.f32 %v1121, %v1232
        %v1241 = vadd.f32 %v1122, %v1234
        %v1242 = vxor.u32 %v1238, 2147483648
        %v1243 = vmul.f32 %v1242, 1.442695
        %v1244 = vpow.pop %v1243
        %v1245 = vadd.f32 %v1244, 1.0
        %v1246 = vrcp.pop %v1245
        %v1247 = vmul.f32 1.0, %v1246
        %v1248 = vxor.u32 %v1239, 2147483648
        %v1249 = vmul.f32 %v1248, 1.442695
        %v1250 = vpow.pop %v1249
        %v1251 = vadd.f32 %v1250, 1.0
        %v1252 = vrcp.pop %v1251
        %v1253 = vmul.f32 1.0, %v1252
        %v1254 = vtanh.pop %v1240
        %v1255 = vxor.u32 %v1241, 2147483648
        %v1256 = vmul.f32 %v1255, 1.442695
        %v1257 = vpow.pop %v1256
        %v1258 = vadd.f32 %v1257, 1.0
        %v1259 = vrcp.pop %v1258
        %v1260 = vmul.f32 1.0, %v1259
        %v1261 = vmul.f32 %v1253, %v1109
        %v1262 = vmul.f32 %v1247, %v1254
        %v1263 = vadd.f32 %v1261, %v1262
        %v1264 = vtanh.pop %v1263
        %v1265 = vmul.f32 %v1260, %v1264
        %s1266 = smul.u32 %s1115, 8
        %s1267 = scalar_lea.vmem %s286, %s1266 [#allocation9]
        %1268 = vst [vmem:[%s1267] sm:$0xff] %v1265
        %s1269 = scalar_select %p653, 4, 3
        %s1270 = smul.u32 %s1269, 4
        %s1271 = smul.addr %s1270, 8
        %s1272 = scalar_lea.vmem [#allocation2], %s1271
        %v1273 = vld [vmem:[%s1272] sm:$0xff]
        %v1274 = vld [vmem:[%s1272 + $0x8] sm:$0xff]
        %v1275 = vld [vmem:[%s1272 + $0x10] sm:$0xff]
        %v1276 = vld [vmem:[%s1272 + $0x18] sm:$0xff]
        %v1277 = vpack.c.bf16 %v1265, %v1265
        %v1278 = vld [vmem:[#allocation3] sm:$0xff]
        %v1279 = vld [vmem:[#allocation3 + $0x8] sm:$0xff]
        %v1280 = vld [vmem:[#allocation3 + $0x10] sm:$0xff]
        %v1281 = vld [vmem:[#allocation3 + $0x18] sm:$0xff]
        %v1282 = vld [vmem:[#allocation3 + $0x20] sm:$0xff]
        %v1283 = vld [vmem:[#allocation3 + $0x28] sm:$0xff]
        %v1284 = vld [vmem:[#allocation3 + $0x30] sm:$0xff]
        %v1285 = vld [vmem:[#allocation3 + $0x38] sm:$0xff]
        %v1286 = vld [vmem:[#allocation3 + $0x40] sm:$0xff]
        %v1287 = vld [vmem:[#allocation3 + $0x48] sm:$0xff]
        %v1288 = vld [vmem:[#allocation3 + $0x50] sm:$0xff]
        %v1289 = vld [vmem:[#allocation3 + $0x58] sm:$0xff]
        %v1290 = vld [vmem:[#allocation3 + $0x60] sm:$0xff]
        %v1291 = vld [vmem:[#allocation3 + $0x68] sm:$0xff]
        %v1292 = vld [vmem:[#allocation3 + $0x70] sm:$0xff]
        %v1293 = vld [vmem:[#allocation3 + $0x78] sm:$0xff]
        %v1294 = vld [vmem:[#allocation3 + $0x80] sm:$0xff]
        %v1295 = vld [vmem:[#allocation3 + $0x88] sm:$0xff]
        %v1296 = vld [vmem:[#allocation3 + $0x90] sm:$0xff]
        %v1297 = vld [vmem:[#allocation3 + $0x98] sm:$0xff]
        %v1298 = vld [vmem:[#allocation3 + $0xa0] sm:$0xff]
        %v1299 = vld [vmem:[#allocation3 + $0xa8] sm:$0xff]
        %v1300 = vld [vmem:[#allocation3 + $0xb0] sm:$0xff]
        %v1301 = vld [vmem:[#allocation3 + $0xb8] sm:$0xff]
        %v1302 = vld [vmem:[#allocation3 + $0xc0] sm:$0xff]
        %v1303 = vld [vmem:[#allocation3 + $0xc8] sm:$0xff]
        %v1304 = vld [vmem:[#allocation3 + $0xd0] sm:$0xff]
        %v1305 = vld [vmem:[#allocation3 + $0xd8] sm:$0xff]
        %v1306 = vld [vmem:[#allocation3 + $0xe0] sm:$0xff]
        %v1307 = vld [vmem:[#allocation3 + $0xe8] sm:$0xff]
        %v1308 = vld [vmem:[#allocation3 + $0xf0] sm:$0xff]
        %v1309 = vld [vmem:[#allocation3 + $0xf8] sm:$0xff]
        %1310 = vmatprep.subr.bf16.mxu0 %v1279
        %1311 = vmatpush1.bf16.msra.mxu0 %v1278
        %1312 = vmatprep.subr.bf16.mxu0 %v1283
        %1313 = vmatpush1.bf16.msra.mxu0 %v1282
        %1314 = vmatprep.subr.bf16.mxu0 %v1287
        %1315 = vmatpush1.bf16.msra.mxu0 %v1286
        %1316 = vmatprep.subr.bf16.mxu0 %v1291
        %1317 = vmatpush1.bf16.msra.mxu0 %v1290
        %1318 = vmatprep.subr.bf16.mxu0 %v1295
        %1319 = vmatpush1.bf16.msra.mxu0 %v1294
        %1320 = vmatprep.subr.bf16.mxu0 %v1299
        %1321 = vmatpush1.bf16.msra.mxu0 %v1298
        %1322 = vmatprep.subr.bf16.mxu0 %v1303
        %1323 = vmatpush1.bf16.msra.mxu0 %v1302
        %1324 = vmatprep.subr.bf16.mxu0 %v1307
        %1325 = vmatpush1.bf16.msra.mxu0 %v1306
        %1326 = vmatprep.subr.bf16.mxu0 0
        %1327 = vmatpush1.bf16.msra.mxu0 0
        %1328 = vmatprep.subr.bf16.mxu0 0
        %1329 = vmatpush1.bf16.msra.mxu0 0
        %1330 = vmatprep.subr.bf16.mxu0 0
        %1331 = vmatpush1.bf16.msra.mxu0 0
        %1332 = vmatprep.subr.bf16.mxu0 0
        %1333 = vmatpush1.bf16.msra.mxu0 0
        %1334 = vmatprep.subr.bf16.mxu0 0
        %1335 = vmatpush1.bf16.msra.mxu0 0
        %1336 = vmatprep.subr.bf16.mxu0 0
        %1337 = vmatpush1.bf16.msra.mxu0 0
        %1338 = vmatprep.subr.bf16.mxu0 0
        %1339 = vmatpush1.bf16.msra.mxu0 0
        %1340 = vmatprep.subr.bf16.mxu0 0
        %1341 = vmatpush1.bf16.msra.mxu0 0
        %1342 = vmatprep.mubr.bf16.mxu0 0
        %1343 = vmatmul.mubr.bf16.gmra.mrb[0].mxu0 %v1277
        %v1344 = vpop.f32.mrb[0].mxu0
        %v1345 = vadd.f32 0.0, %v1344
        %v1346 = vpop.f32.mrb[0].mxu0
        %v1347 = vadd.f32 0.0, %v1346
        %v1348 = vpop.f32.mrb[0].mxu0
        %v1349 = vpop.f32.mrb[0].mxu0
        %1350 = vdwg.mxu0
        %1351 = vmatprep.subr.bf16.mxu0 %v1281
        %1352 = vmatpush1.bf16.msra.mxu0 %v1280
        %1353 = vmatprep.subr.bf16.mxu0 %v1285
        %1354 = vmatpush1.bf16.msra.mxu0 %v1284
        %1355 = vmatprep.subr.bf16.mxu0 %v1289
        %1356 = vmatpush1.bf16.msra.mxu0 %v1288
        %1357 = vmatprep.subr.bf16.mxu0 %v1293
        %1358 = vmatpush1.bf16.msra.mxu0 %v1292
        %1359 = vmatprep.subr.bf16.mxu0 %v1297
        %1360 = vmatpush1.bf16.msra.mxu0 %v1296
        %1361 = vmatprep.subr.bf16.mxu0 %v1301
        %1362 = vmatpush1.bf16.msra.mxu0 %v1300
        %1363 = vmatprep.subr.bf16.mxu0 %v1305
        %1364 = vmatpush1.bf16.msra.mxu0 %v1304
        %1365 = vmatprep.subr.bf16.mxu0 %v1309
        %1366 = vmatpush1.bf16.msra.mxu0 %v1308
        %1367 = vmatprep.subr.bf16.mxu0 0
        %1368 = vmatpush1.bf16.msra.mxu0 0
        %1369 = vmatprep.subr.bf16.mxu0 0
        %1370 = vmatpush1.bf16.msra.mxu0 0
        %1371 = vmatprep.subr.bf16.mxu0 0
        %1372 = vmatpush1.bf16.msra.mxu0 0
        %1373 = vmatprep.subr.bf16.mxu0 0
        %1374 = vmatpush1.bf16.msra.mxu0 0
        %1375 = vmatprep.subr.bf16.mxu0 0
        %1376 = vmatpush1.bf16.msra.mxu0 0
        %1377 = vmatprep.subr.bf16.mxu0 0
        %1378 = vmatpush1.bf16.msra.mxu0 0
        %1379 = vmatprep.subr.bf16.mxu0 0
        %1380 = vmatpush1.bf16.msra.mxu0 0
        %1381 = vmatprep.subr.bf16.mxu0 0
        %1382 = vmatpush1.bf16.msra.mxu0 0
        %1383 = vmatprep.mubr.bf16.mxu0 0
        %1384 = vmatmul.mubr.bf16.gmra.mrb[0].mxu0 %v1277
        %v1385 = vpop.f32.mrb[0].mxu0
        %v1386 = vadd.f32 0.0, %v1385
        %v1387 = vpop.f32.mrb[0].mxu0
        %v1388 = vadd.f32 0.0, %v1387
        %v1389 = vpop.f32.mrb[0].mxu0
        %v1390 = vpop.f32.mrb[0].mxu0
        %1391 = vdwg.mxu0
        %v1392 = vadd.f32 %v1273, %v1345
        %v1393 = vadd.f32 %v1274, %v1347
        %v1394 = vadd.f32 %v1275, %v1386
        %v1395 = vadd.f32 %v1276, %v1388
        %v1396 = vxor.u32 %v1392, 2147483648
        %v1397 = vmul.f32 %v1396, 1.442695
        %v1398 = vpow.pop %v1397
        %v1399 = vadd.f32 %v1398, 1.0
        %v1400 = vrcp.pop %v1399
        %v1401 = vmul.f32 1.0, %v1400
        %v1402 = vxor.u32 %v1393, 2147483648
        %v1403 = vmul.f32 %v1402, 1.442695
        %v1404 = vpow.pop %v1403
        %v1405 = vadd.f32 %v1404, 1.0
        %v1406 = vrcp.pop %v1405
        %v1407 = vmul.f32 1.0, %v1406
        %v1408 = vtanh.pop %v1394
        %v1409 = vxor.u32 %v1395, 2147483648
        %v1410 = vmul.f32 %v1409, 1.442695
        %v1411 = vpow.pop %v1410
        %v1412 = vadd.f32 %v1411, 1.0
        %v1413 = vrcp.pop %v1412
        %v1414 = vmul.f32 1.0, %v1413
        %v1415 = vmul.f32 %v1407, %v1263
        %v1416 = vmul.f32 %v1401, %v1408
        %v1417 = vadd.f32 %v1415, %v1416
        %v1418 = vtanh.pop %v1417
        %v1419 = vmul.f32 %v1414, %v1418
        %s1420 = smul.u32 %s1269, 8
        %s1421 = scalar_lea.vmem %s286, %s1420 [#allocation9]
        %1422 = vst [vmem:[%s1421] sm:$0xff] %v1419
        %s1423 = scalar_select %p653, 5, 2
        %s1424 = smul.u32 %s1423, 4
        %s1425 = smul.addr %s1424, 8
        %s1426 = scalar_lea.vmem [#allocation2], %s1425
        %v1427 = vld [vmem:[%s1426] sm:$0xff]
        %v1428 = vld [vmem:[%s1426 + $0x8] sm:$0xff]
        %v1429 = vld [vmem:[%s1426 + $0x10] sm:$0xff]
        %v1430 = vld [vmem:[%s1426 + $0x18] sm:$0xff]
        %v1431 = vpack.c.bf16 %v1419, %v1419
        %v1432 = vld [vmem:[#allocation3] sm:$0xff]
        %v1433 = vld [vmem:[#allocation3 + $0x8] sm:$0xff]
        %v1434 = vld [vmem:[#allocation3 + $0x10] sm:$0xff]
        %v1435 = vld [vmem:[#allocation3 + $0x18] sm:$0xff]
        %v1436 = vld [vmem:[#allocation3 + $0x20] sm:$0xff]
        %v1437 = vld [vmem:[#allocation3 + $0x28] sm:$0xff]
        %v1438 = vld [vmem:[#allocation3 + $0x30] sm:$0xff]
        %v1439 = vld [vmem:[#allocation3 + $0x38] sm:$0xff]
        %v1440 = vld [vmem:[#allocation3 + $0x40] sm:$0xff]
        %v1441 = vld [vmem:[#allocation3 + $0x48] sm:$0xff]
        %v1442 = vld [vmem:[#allocation3 + $0x50] sm:$0xff]
        %v1443 = vld [vmem:[#allocation3 + $0x58] sm:$0xff]
        %v1444 = vld [vmem:[#allocation3 + $0x60] sm:$0xff]
        %v1445 = vld [vmem:[#allocation3 + $0x68] sm:$0xff]
        %v1446 = vld [vmem:[#allocation3 + $0x70] sm:$0xff]
        %v1447 = vld [vmem:[#allocation3 + $0x78] sm:$0xff]
        %v1448 = vld [vmem:[#allocation3 + $0x80] sm:$0xff]
        %v1449 = vld [vmem:[#allocation3 + $0x88] sm:$0xff]
        %v1450 = vld [vmem:[#allocation3 + $0x90] sm:$0xff]
        %v1451 = vld [vmem:[#allocation3 + $0x98] sm:$0xff]
        %v1452 = vld [vmem:[#allocation3 + $0xa0] sm:$0xff]
        %v1453 = vld [vmem:[#allocation3 + $0xa8] sm:$0xff]
        %v1454 = vld [vmem:[#allocation3 + $0xb0] sm:$0xff]
        %v1455 = vld [vmem:[#allocation3 + $0xb8] sm:$0xff]
        %v1456 = vld [vmem:[#allocation3 + $0xc0] sm:$0xff]
        %v1457 = vld [vmem:[#allocation3 + $0xc8] sm:$0xff]
        %v1458 = vld [vmem:[#allocation3 + $0xd0] sm:$0xff]
        %v1459 = vld [vmem:[#allocation3 + $0xd8] sm:$0xff]
        %v1460 = vld [vmem:[#allocation3 + $0xe0] sm:$0xff]
        %v1461 = vld [vmem:[#allocation3 + $0xe8] sm:$0xff]
        %v1462 = vld [vmem:[#allocation3 + $0xf0] sm:$0xff]
        %v1463 = vld [vmem:[#allocation3 + $0xf8] sm:$0xff]
        %1464 = vmatprep.subr.bf16.mxu0 %v1433
        %1465 = vmatpush1.bf16.msra.mxu0 %v1432
        %1466 = vmatprep.subr.bf16.mxu0 %v1437
        %1467 = vmatpush1.bf16.msra.mxu0 %v1436
        %1468 = vmatprep.subr.bf16.mxu0 %v1441
        %1469 = vmatpush1.bf16.msra.mxu0 %v1440
        %1470 = vmatprep.subr.bf16.mxu0 %v1445
        %1471 = vmatpush1.bf16.msra.mxu0 %v1444
        %1472 = vmatprep.subr.bf16.mxu0 %v1449
        %1473 = vmatpush1.bf16.msra.mxu0 %v1448
        %1474 = vmatprep.subr.bf16.mxu0 %v1453
        %1475 = vmatpush1.bf16.msra.mxu0 %v1452
        %1476 = vmatprep.subr.bf16.mxu0 %v1457
        %1477 = vmatpush1.bf16.msra.mxu0 %v1456
        %1478 = vmatprep.subr.bf16.mxu0 %v1461
        %1479 = vmatpush1.bf16.msra.mxu0 %v1460
        %1480 = vmatprep.subr.bf16.mxu0 0
        %1481 = vmatpush1.bf16.msra.mxu0 0
        %1482 = vmatprep.subr.bf16.mxu0 0
        %1483 = vmatpush1.bf16.msra.mxu0 0
        %1484 = vmatprep.subr.bf16.mxu0 0
        %1485 = vmatpush1.bf16.msra.mxu0 0
        %1486 = vmatprep.subr.bf16.mxu0 0
        %1487 = vmatpush1.bf16.msra.mxu0 0
        %1488 = vmatprep.subr.bf16.mxu0 0
        %1489 = vmatpush1.bf16.msra.mxu0 0
        %1490 = vmatprep.subr.bf16.mxu0 0
        %1491 = vmatpush1.bf16.msra.mxu0 0
        %1492 = vmatprep.subr.bf16.mxu0 0
        %1493 = vmatpush1.bf16.msra.mxu0 0
        %1494 = vmatprep.subr.bf16.mxu0 0
        %1495 = vmatpush1.bf16.msra.mxu0 0
        %1496 = vmatprep.mubr.bf16.mxu0 0
        %1497 = vmatmul.mubr.bf16.gmra.mrb[0].mxu0 %v1431
        %v1498 = vpop.f32.mrb[0].mxu0
        %v1499 = vadd.f32 0.0, %v1498
        %v1500 = vpop.f32.mrb[0].mxu0
        %v1501 = vadd.f32 0.0, %v1500
        %v1502 = vpop.f32.mrb[0].mxu0
        %v1503 = vpop.f32.mrb[0].mxu0
        %1504 = vdwg.mxu0
        %1505 = vmatprep.subr.bf16.mxu0 %v1435
        %1506 = vmatpush1.bf16.msra.mxu0 %v1434
        %1507 = vmatprep.subr.bf16.mxu0 %v1439
        %1508 = vmatpush1.bf16.msra.mxu0 %v1438
        %1509 = vmatprep.subr.bf16.mxu0 %v1443
        %1510 = vmatpush1.bf16.msra.mxu0 %v1442
        %1511 = vmatprep.subr.bf16.mxu0 %v1447
        %1512 = vmatpush1.bf16.msra.mxu0 %v1446
        %1513 = vmatprep.subr.bf16.mxu0 %v1451
        %1514 = vmatpush1.bf16.msra.mxu0 %v1450
        %1515 = vmatprep.subr.bf16.mxu0 %v1455
        %1516 = vmatpush1.bf16.msra.mxu0 %v1454
        %1517 = vmatprep.subr.bf16.mxu0 %v1459
        %1518 = vmatpush1.bf16.msra.mxu0 %v1458
        %1519 = vmatprep.subr.bf16.mxu0 %v1463
        %1520 = vmatpush1.bf16.msra.mxu0 %v1462
        %1521 = vmatprep.subr.bf16.mxu0 0
        %1522 = vmatpush1.bf16.msra.mxu0 0
        %1523 = vmatprep.subr.bf16.mxu0 0
        %1524 = vmatpush1.bf16.msra.mxu0 0
        %1525 = vmatprep.subr.bf16.mxu0 0
        %1526 = vmatpush1.bf16.msra.mxu0 0
        %1527 = vmatprep.subr.bf16.mxu0 0
        %1528 = vmatpush1.bf16.msra.mxu0 0
        %1529 = vmatprep.subr.bf16.mxu0 0
        %1530 = vmatpush1.bf16.msra.mxu0 0
        %1531 = vmatprep.subr.bf16.mxu0 0
        %1532 = vmatpush1.bf16.msra.mxu0 0
        %1533 = vmatprep.subr.bf16.mxu0 0
        %1534 = vmatpush1.bf16.msra.mxu0 0
        %1535 = vmatprep.subr.bf16.mxu0 0
        %1536 = vmatpush1.bf16.msra.mxu0 0
        %1537 = vmatprep.mubr.bf16.mxu0 0
        %1538 = vmatmul.mubr.bf16.gmra.mrb[0].mxu0 %v1431
        %v1539 = vpop.f32.mrb[0].mxu0
        %v1540 = vadd.f32 0.0, %v1539
        %v1541 = vpop.f32.mrb[0].mxu0
        %v1542 = vadd.f32 0.0, %v1541
        %v1543 = vpop.f32.mrb[0].mxu0
        %v1544 = vpop.f32.mrb[0].mxu0
        %1545 = vdwg.mxu0
        %v1546 = vadd.f32 %v1427, %v1499
        %v1547 = vadd.f32 %v1428, %v1501
        %v1548 = vadd.f32 %v1429, %v1540
        %v1549 = vadd.f32 %v1430, %v1542
        %v1550 = vxor.u32 %v1546, 2147483648
        %v1551 = vmul.f32 %v1550, 1.442695
        %v1552 = vpow.pop %v1551
        %v1553 = vadd.f32 %v1552, 1.0
        %v1554 = vrcp.pop %v1553
        %v1555 = vmul.f32 1.0, %v1554
        %v1556 = vxor.u32 %v1547, 2147483648
        %v1557 = vmul.f32 %v1556, 1.442695
        %v1558 = vpow.pop %v1557
        %v1559 = vadd.f32 %v1558, 1.0
        %v1560 = vrcp.pop %v1559
        %v1561 = vmul.f32 1.0, %v1560
        %v1562 = vtanh.pop %v1548
        %v1563 = vxor.u32 %v1549, 2147483648
        %v1564 = vmul.f32 %v1563, 1.442695
        %v1565 = vpow.pop %v1564
        %v1566 = vadd.f32 %v1565, 1.0
        %v1567 = vrcp.pop %v1566
        %v1568 = vmul.f32 1.0, %v1567
        %v1569 = vmul.f32 %v1561, %v1417
        %v1570 = vmul.f32 %v1555, %v1562
        %v1571 = vadd.f32 %v1569, %v1570
        %v1572 = vtanh.pop %v1571
        %v1573 = vmul.f32 %v1568, %v1572
        %s1574 = smul.u32 %s1423, 8
        %s1575 = scalar_lea.vmem %s286, %s1574 [#allocation9]
        %1576 = vst [vmem:[%s1575] sm:$0xff] %v1573
        %s1577 = scalar_select %p653, 6, 1
        %s1578 = smul.u32 %s1577, 4
        %s1579 = smul.addr %s1578, 8
        %s1580 = scalar_lea.vmem [#allocation2], %s1579
        %v1581 = vld [vmem:[%s1580] sm:$0xff]
        %v1582 = vld [vmem:[%s1580 + $0x8] sm:$0xff]
        %v1583 = vld [vmem:[%s1580 + $0x10] sm:$0xff]
        %v1584 = vld [vmem:[%s1580 + $0x18] sm:$0xff]
        %v1585 = vpack.c.bf16 %v1573, %v1573
        %v1586 = vld [vmem:[#allocation3] sm:$0xff]
        %v1587 = vld [vmem:[#allocation3 + $0x8] sm:$0xff]
        %v1588 = vld [vmem:[#allocation3 + $0x10] sm:$0xff]
        %v1589 = vld [vmem:[#allocation3 + $0x18] sm:$0xff]
        %v1590 = vld [vmem:[#allocation3 + $0x20] sm:$0xff]
        %v1591 = vld [vmem:[#allocation3 + $0x28] sm:$0xff]
        %v1592 = vld [vmem:[#allocation3 + $0x30] sm:$0xff]
        %v1593 = vld [vmem:[#allocation3 + $0x38] sm:$0xff]
        %v1594 = vld [vmem:[#allocation3 + $0x40] sm:$0xff]
        %v1595 = vld [vmem:[#allocation3 + $0x48] sm:$0xff]
        %v1596 = vld [vmem:[#allocation3 + $0x50] sm:$0xff]
        %v1597 = vld [vmem:[#allocation3 + $0x58] sm:$0xff]
        %v1598 = vld [vmem:[#allocation3 + $0x60] sm:$0xff]
        %v1599 = vld [vmem:[#allocation3 + $0x68] sm:$0xff]
        %v1600 = vld [vmem:[#allocation3 + $0x70] sm:$0xff]
        %v1601 = vld [vmem:[#allocation3 + $0x78] sm:$0xff]
        %v1602 = vld [vmem:[#allocation3 + $0x80] sm:$0xff]
        %v1603 = vld [vmem:[#allocation3 + $0x88] sm:$0xff]
        %v1604 = vld [vmem:[#allocation3 + $0x90] sm:$0xff]
        %v1605 = vld [vmem:[#allocation3 + $0x98] sm:$0xff]
        %v1606 = vld [vmem:[#allocation3 + $0xa0] sm:$0xff]
        %v1607 = vld [vmem:[#allocation3 + $0xa8] sm:$0xff]
        %v1608 = vld [vmem:[#allocation3 + $0xb0] sm:$0xff]
        %v1609 = vld [vmem:[#allocation3 + $0xb8] sm:$0xff]
        %v1610 = vld [vmem:[#allocation3 + $0xc0] sm:$0xff]
        %v1611 = vld [vmem:[#allocation3 + $0xc8] sm:$0xff]
        %v1612 = vld [vmem:[#allocation3 + $0xd0] sm:$0xff]
        %v1613 = vld [vmem:[#allocation3 + $0xd8] sm:$0xff]
        %v1614 = vld [vmem:[#allocation3 + $0xe0] sm:$0xff]
        %v1615 = vld [vmem:[#allocation3 + $0xe8] sm:$0xff]
        %v1616 = vld [vmem:[#allocation3 + $0xf0] sm:$0xff]
        %v1617 = vld [vmem:[#allocation3 + $0xf8] sm:$0xff]
        %1618 = vmatprep.subr.bf16.mxu0 %v1587
        %1619 = vmatpush1.bf16.msra.mxu0 %v1586
        %1620 = vmatprep.subr.bf16.mxu0 %v1591
        %1621 = vmatpush1.bf16.msra.mxu0 %v1590
        %1622 = vmatprep.subr.bf16.mxu0 %v1595
        %1623 = vmatpush1.bf16.msra.mxu0 %v1594
        %1624 = vmatprep.subr.bf16.mxu0 %v1599
        %1625 = vmatpush1.bf16.msra.mxu0 %v1598
        %1626 = vmatprep.subr.bf16.mxu0 %v1603
        %1627 = vmatpush1.bf16.msra.mxu0 %v1602
        %1628 = vmatprep.subr.bf16.mxu0 %v1607
        %1629 = vmatpush1.bf16.msra.mxu0 %v1606
        %1630 = vmatprep.subr.bf16.mxu0 %v1611
        %1631 = vmatpush1.bf16.msra.mxu0 %v1610
        %1632 = vmatprep.subr.bf16.mxu0 %v1615
        %1633 = vmatpush1.bf16.msra.mxu0 %v1614
        %1634 = vmatprep.subr.bf16.mxu0 0
        %1635 = vmatpush1.bf16.msra.mxu0 0
        %1636 = vmatprep.subr.bf16.mxu0 0
        %1637 = vmatpush1.bf16.msra.mxu0 0
        %1638 = vmatprep.subr.bf16.mxu0 0
        %1639 = vmatpush1.bf16.msra.mxu0 0
        %1640 = vmatprep.subr.bf16.mxu0 0
        %1641 = vmatpush1.bf16.msra.mxu0 0
        %1642 = vmatprep.subr.bf16.mxu0 0
        %1643 = vmatpush1.bf16.msra.mxu0 0
        %1644 = vmatprep.subr.bf16.mxu0 0
        %1645 = vmatpush1.bf16.msra.mxu0 0
        %1646 = vmatprep.subr.bf16.mxu0 0
        %1647 = vmatpush1.bf16.msra.mxu0 0
        %1648 = vmatprep.subr.bf16.mxu0 0
        %1649 = vmatpush1.bf16.msra.mxu0 0
        %1650 = vmatprep.mubr.bf16.mxu0 0
        %1651 = vmatmul.mubr.bf16.gmra.mrb[0].mxu0 %v1585
        %v1652 = vpop.f32.mrb[0].mxu0
        %v1653 = vadd.f32 0.0, %v1652
        %v1654 = vpop.f32.mrb[0].mxu0
        %v1655 = vadd.f32 0.0, %v1654
        %v1656 = vpop.f32.mrb[0].mxu0
        %v1657 = vpop.f32.mrb[0].mxu0
        %1658 = vdwg.mxu0
        %1659 = vmatprep.subr.bf16.mxu0 %v1589
        %1660 = vmatpush1.bf16.msra.mxu0 %v1588
        %1661 = vmatprep.subr.bf16.mxu0 %v1593
        %1662 = vmatpush1.bf16.msra.mxu0 %v1592
        %1663 = vmatprep.subr.bf16.mxu0 %v1597
        %1664 = vmatpush1.bf16.msra.mxu0 %v1596
        %1665 = vmatprep.subr.bf16.mxu0 %v1601
        %1666 = vmatpush1.bf16.msra.mxu0 %v1600
        %1667 = vmatprep.subr.bf16.mxu0 %v1605
        %1668 = vmatpush1.bf16.msra.mxu0 %v1604
        %1669 = vmatprep.subr.bf16.mxu0 %v1609
        %1670 = vmatpush1.bf16.msra.mxu0 %v1608
        %1671 = vmatprep.subr.bf16.mxu0 %v1613
        %1672 = vmatpush1.bf16.msra.mxu0 %v1612
        %1673 = vmatprep.subr.bf16.mxu0 %v1617
        %1674 = vmatpush1.bf16.msra.mxu0 %v1616
        %1675 = vmatprep.subr.bf16.mxu0 0
        %1676 = vmatpush1.bf16.msra.mxu0 0
        %1677 = vmatprep.subr.bf16.mxu0 0
        %1678 = vmatpush1.bf16.msra.mxu0 0
        %1679 = vmatprep.subr.bf16.mxu0 0
        %1680 = vmatpush1.bf16.msra.mxu0 0
        %1681 = vmatprep.subr.bf16.mxu0 0
        %1682 = vmatpush1.bf16.msra.mxu0 0
        %1683 = vmatprep.subr.bf16.mxu0 0
        %1684 = vmatpush1.bf16.msra.mxu0 0
        %1685 = vmatprep.subr.bf16.mxu0 0
        %1686 = vmatpush1.bf16.msra.mxu0 0
        %1687 = vmatprep.subr.bf16.mxu0 0
        %1688 = vmatpush1.bf16.msra.mxu0 0
        %1689 = vmatprep.subr.bf16.mxu0 0
        %1690 = vmatpush1.bf16.msra.mxu0 0
        %1691 = vmatprep.mubr.bf16.mxu0 0
        %1692 = vmatmul.mubr.bf16.gmra.mrb[0].mxu0 %v1585
        %v1693 = vpop.f32.mrb[0].mxu0
        %v1694 = vadd.f32 0.0, %v1693
        %v1695 = vpop.f32.mrb[0].mxu0
        %v1696 = vadd.f32 0.0, %v1695
        %v1697 = vpop.f32.mrb[0].mxu0
        %v1698 = vpop.f32.mrb[0].mxu0
        %1699 = vdwg.mxu0
        %v1700 = vadd.f32 %v1581, %v1653
        %v1701 = vadd.f32 %v1582, %v1655
        %v1702 = vadd.f32 %v1583, %v1694
        %v1703 = vadd.f32 %v1584, %v1696
        %v1704 = vxor.u32 %v1700, 2147483648
        %v1705 = vmul.f32 %v1704, 1.442695
        %v1706 = vpow.pop %v1705
        %v1707 = vadd.f32 %v1706, 1.0
        %v1708 = vrcp.pop %v1707
        %v1709 = vmul.f32 1.0, %v1708
        %v1710 = vxor.u32 %v1701, 2147483648
        %v1711 = vmul.f32 %v1710, 1.442695
        %v1712 = vpow.pop %v1711
        %v1713 = vadd.f32 %v1712, 1.0
        %v1714 = vrcp.pop %v1713
        %v1715 = vmul.f32 1.0, %v1714
        %v1716 = vtanh.pop %v1702
        %v1717 = vxor.u32 %v1703, 2147483648
        %v1718 = vmul.f32 %v1717, 1.442695
        %v1719 = vpow.pop %v1718
        %v1720 = vadd.f32 %v1719, 1.0
        %v1721 = vrcp.pop %v1720
        %v1722 = vmul.f32 1.0, %v1721
        %v1723 = vmul.f32 %v1715, %v1571
        %v1724 = vmul.f32 %v1709, %v1716
        %v1725 = vadd.f32 %v1723, %v1724
        %v1726 = vtanh.pop %v1725
        %v1727 = vmul.f32 %v1722, %v1726
        %s1728 = smul.u32 %s1577, 8
        %s1729 = scalar_lea.vmem %s286, %s1728 [#allocation9]
        %1730 = vst [vmem:[%s1729] sm:$0xff] %v1727
        %s1731 = scalar_select %p653, 7, 0
        %s1732 = smul.u32 %s1731, 4
        %s1733 = smul.addr %s1732, 8
        %s1734 = scalar_lea.vmem [#allocation2], %s1733
        %v1735 = vld [vmem:[%s1734] sm:$0xff]
        %v1736 = vld [vmem:[%s1734 + $0x8] sm:$0xff]
        %v1737 = vld [vmem:[%s1734 + $0x10] sm:$0xff]
        %v1738 = vld [vmem:[%s1734 + $0x18] sm:$0xff]
        %v1739 = vpack.c.bf16 %v1727, %v1727
        %v1740 = vld [vmem:[#allocation3] sm:$0xff]
        %v1741 = vld [vmem:[#allocation3 + $0x8] sm:$0xff]
        %v1742 = vld [vmem:[#allocation3 + $0x10] sm:$0xff]
        %v1743 = vld [vmem:[#allocation3 + $0x18] sm:$0xff]
        %v1744 = vld [vmem:[#allocation3 + $0x20] sm:$0xff]
        %v1745 = vld [vmem:[#allocation3 + $0x28] sm:$0xff]
        %v1746 = vld [vmem:[#allocation3 + $0x30] sm:$0xff]
        %v1747 = vld [vmem:[#allocation3 + $0x38] sm:$0xff]
        %v1748 = vld [vmem:[#allocation3 + $0x40] sm:$0xff]
        %v1749 = vld [vmem:[#allocation3 + $0x48] sm:$0xff]
        %v1750 = vld [vmem:[#allocation3 + $0x50] sm:$0xff]
        %v1751 = vld [vmem:[#allocation3 + $0x58] sm:$0xff]
        %v1752 = vld [vmem:[#allocation3 + $0x60] sm:$0xff]
        %v1753 = vld [vmem:[#allocation3 + $0x68] sm:$0xff]
        %v1754 = vld [vmem:[#allocation3 + $0x70] sm:$0xff]
        %v1755 = vld [vmem:[#allocation3 + $0x78] sm:$0xff]
        %v1756 = vld [vmem:[#allocation3 + $0x80] sm:$0xff]
        %v1757 = vld [vmem:[#allocation3 + $0x88] sm:$0xff]
        %v1758 = vld [vmem:[#allocation3 + $0x90] sm:$0xff]
        %v1759 = vld [vmem:[#allocation3 + $0x98] sm:$0xff]
        %v1760 = vld [vmem:[#allocation3 + $0xa0] sm:$0xff]
        %v1761 = vld [vmem:[#allocation3 + $0xa8] sm:$0xff]
        %v1762 = vld [vmem:[#allocation3 + $0xb0] sm:$0xff]
        %v1763 = vld [vmem:[#allocation3 + $0xb8] sm:$0xff]
        %v1764 = vld [vmem:[#allocation3 + $0xc0] sm:$0xff]
        %v1765 = vld [vmem:[#allocation3 + $0xc8] sm:$0xff]
        %v1766 = vld [vmem:[#allocation3 + $0xd0] sm:$0xff]
        %v1767 = vld [vmem:[#allocation3 + $0xd8] sm:$0xff]
        %v1768 = vld [vmem:[#allocation3 + $0xe0] sm:$0xff]
        %v1769 = vld [vmem:[#allocation3 + $0xe8] sm:$0xff]
        %v1770 = vld [vmem:[#allocation3 + $0xf0] sm:$0xff]
        %v1771 = vld [vmem:[#allocation3 + $0xf8] sm:$0xff]
        %1772 = vmatprep.subr.bf16.mxu0 %v1741
        %1773 = vmatpush1.bf16.msra.mxu0 %v1740
        %1774 = vmatprep.subr.bf16.mxu0 %v1745
        %1775 = vmatpush1.bf16.msra.mxu0 %v1744
        %1776 = vmatprep.subr.bf16.mxu0 %v1749
        %1777 = vmatpush1.bf16.msra.mxu0 %v1748
        %1778 = vmatprep.subr.bf16.mxu0 %v1753
        %1779 = vmatpush1.bf16.msra.mxu0 %v1752
        %1780 = vmatprep.subr.bf16.mxu0 %v1757
        %1781 = vmatpush1.bf16.msra.mxu0 %v1756
        %1782 = vmatprep.subr.bf16.mxu0 %v1761
        %1783 = vmatpush1.bf16.msra.mxu0 %v1760
        %1784 = vmatprep.subr.bf16.mxu0 %v1765
        %1785 = vmatpush1.bf16.msra.mxu0 %v1764
        %1786 = vmatprep.subr.bf16.mxu0 %v1769
        %1787 = vmatpush1.bf16.msra.mxu0 %v1768
        %1788 = vmatprep.subr.bf16.mxu0 0
        %1789 = vmatpush1.bf16.msra.mxu0 0
        %1790 = vmatprep.subr.bf16.mxu0 0
        %1791 = vmatpush1.bf16.msra.mxu0 0
        %1792 = vmatprep.subr.bf16.mxu0 0
        %1793 = vmatpush1.bf16.msra.mxu0 0
        %1794 = vmatprep.subr.bf16.mxu0 0
        %1795 = vmatpush1.bf16.msra.mxu0 0
        %1796 = vmatprep.subr.bf16.mxu0 0
        %1797 = vmatpush1.bf16.msra.mxu0 0
        %1798 = vmatprep.subr.bf16.mxu0 0
        %1799 = vmatpush1.bf16.msra.mxu0 0
        %1800 = vmatprep.subr.bf16.mxu0 0
        %1801 = vmatpush1.bf16.msra.mxu0 0
        %1802 = vmatprep.subr.bf16.mxu0 0
        %1803 = vmatpush1.bf16.msra.mxu0 0
        %1804 = vmatprep.mubr.bf16.mxu0 0
        %1805 = vmatmul.mubr.bf16.gmra.mrb[0].mxu0 %v1739
        %v1806 = vpop.f32.mrb[0].mxu0
        %v1807 = vadd.f32 0.0, %v1806
        %v1808 = vpop.f32.mrb[0].mxu0
        %v1809 = vadd.f32 0.0, %v1808
        %v1810 = vpop.f32.mrb[0].mxu0
        %v1811 = vpop.f32.mrb[0].mxu0
        %1812 = vdwg.mxu0
        %1813 = vmatprep.subr.bf16.mxu0 %v1743
        %1814 = vmatpush1.bf16.msra.mxu0 %v1742
        %1815 = vmatprep.subr.bf16.mxu0 %v1747
        %1816 = vmatpush1.bf16.msra.mxu0 %v1746
        %1817 = vmatprep.subr.bf16.mxu0 %v1751
        %1818 = vmatpush1.bf16.msra.mxu0 %v1750
        %1819 = vmatprep.subr.bf16.mxu0 %v1755
        %1820 = vmatpush1.bf16.msra.mxu0 %v1754
        %1821 = vmatprep.subr.bf16.mxu0 %v1759
        %1822 = vmatpush1.bf16.msra.mxu0 %v1758
        %1823 = vmatprep.subr.bf16.mxu0 %v1763
        %1824 = vmatpush1.bf16.msra.mxu0 %v1762
        %1825 = vmatprep.subr.bf16.mxu0 %v1767
        %1826 = vmatpush1.bf16.msra.mxu0 %v1766
        %1827 = vmatprep.subr.bf16.mxu0 %v1771
        %1828 = vmatpush1.bf16.msra.mxu0 %v1770
        %1829 = vmatprep.subr.bf16.mxu0 0
        %1830 = vmatpush1.bf16.msra.mxu0 0
        %1831 = vmatprep.subr.bf16.mxu0 0
        %1832 = vmatpush1.bf16.msra.mxu0 0
        %1833 = vmatprep.subr.bf16.mxu0 0
        %1834 = vmatpush1.bf16.msra.mxu0 0
        %1835 = vmatprep.subr.bf16.mxu0 0
        %1836 = vmatpush1.bf16.msra.mxu0 0
        %1837 = vmatprep.subr.bf16.mxu0 0
        %1838 = vmatpush1.bf16.msra.mxu0 0
        %1839 = vmatprep.subr.bf16.mxu0 0
        %1840 = vmatpush1.bf16.msra.mxu0 0
        %1841 = vmatprep.subr.bf16.mxu0 0
        %1842 = vmatpush1.bf16.msra.mxu0 0
        %1843 = vmatprep.subr.bf16.mxu0 0
        %1844 = vmatpush1.bf16.msra.mxu0 0
        %1845 = vmatprep.mubr.bf16.mxu0 0
        %1846 = vmatmul.mubr.bf16.gmra.mrb[0].mxu0 %v1739
        %v1847 = vpop.f32.mrb[0].mxu0
        %v1848 = vadd.f32 0.0, %v1847
        %v1849 = vpop.f32.mrb[0].mxu0
        %v1850 = vadd.f32 0.0, %v1849
        %v1851 = vpop.f32.mrb[0].mxu0
        %v1852 = vpop.f32.mrb[0].mxu0
        %1853 = vdwg.mxu0
        %v1854 = vadd.f32 %v1735, %v1807
        %v1855 = vadd.f32 %v1736, %v1809
        %v1856 = vadd.f32 %v1737, %v1848
        %v1857 = vadd.f32 %v1738, %v1850
        %v1858 = vxor.u32 %v1854, 2147483648
        %v1859 = vmul.f32 %v1858, 1.442695
        %v1860 = vpow.pop %v1859
        %v1861 = vadd.f32 %v1860, 1.0
        %v1862 = vrcp.pop %v1861
        %v1863 = vmul.f32 1.0, %v1862
        %v1864 = vxor.u32 %v1855, 2147483648
        %v1865 = vmul.f32 %v1864, 1.442695
        %v1866 = vpow.pop %v1865
        %v1867 = vadd.f32 %v1866, 1.0
        %v1868 = vrcp.pop %v1867
        %v1869 = vmul.f32 1.0, %v1868
        %v1870 = vtanh.pop %v1856
        %v1871 = vxor.u32 %v1857, 2147483648
        %v1872 = vmul.f32 %v1871, 1.442695
        %v1873 = vpow.pop %v1872
        %v1874 = vadd.f32 %v1873, 1.0
        %v1875 = vrcp.pop %v1874
        %v1876 = vmul.f32 1.0, %v1875
        %v1877 = vmul.f32 %v1869, %v1725
        %v1878 = vmul.f32 %v1863, %v1870
        %v1879 = vadd.f32 %v1877, %v1878
        %v1880 = vtanh.pop %v1879
        %v1881 = vmul.f32 %v1876, %v1880
        %s1882 = smul.u32 %s1731, 8
        %s1883 = scalar_lea.vmem %s286, %s1882 [#allocation9]
        %1884 = vst [vmem:[%s1883] sm:$0xff] %v1881
        %s1885 = sand.u32 %s128, 1
        %s1886 = sand.u32 %s128, 1
        %s1887 = smul.addr %s1886, 64
        %s1888 = scalar_lea.vmem [#allocation9], %s1887
        // Predicated region
        $region49: #{critic_classifier_forward.4} parent=35 // pred_check
          %p1889 = pneg %p138
        $region50: #{critic_classifier_forward.4} parent=35 // pred_check_branch
          %1891 = sbr.rel (%p1889) target = $region52
        $region51: #{critic_classifier_forward.4} parent=35 // pred_region
          %s1892 = smul.addr %s21, 8
          %s1893 = scalar_lea.vmem %s4, %s1892
          // Predicated region
          $region53: #{critic_classifier_forward.4} parent=51 // pred_check
            _
          $region54: #{critic_classifier_forward.4} parent=51 // pred_check_branch
            %1895 = sbr.rel (0) target = $region56
          $region55: #{critic_classifier_forward.4} parent=51 // pred_region
            // Predicated region
            $region57: #{critic_classifier_forward.4} parent=55 // pred_check
              _
            $region58: #{critic_classifier_forward.4} parent=55 // pred_check_branch
              %1897 = sbr.rel (0) target = $region60
            $region59: #{critic_classifier_forward.4} parent=55 // pred_region
              // Predicated region
              $region72: #{critic_classifier_forward.4} parent=59 // pred_check
                _
              $region73: #{critic_classifier_forward.4} parent=59 // pred_check_branch
                %1926 = sbr.rel (0) target = $region75
              $region74: #{critic_classifier_forward.4} parent=59 // pred_region
                loop: start=0, step=1, limit=1
                $region76: #{critic_classifier_forward.4} parent=74 // loop_pre_header
                  _
                $region77: #{critic_classifier_forward.4} parent=74 // loop_header
                  %s1928 = sphi 0, %s1932
                  %p1929 = scmp.ge.s32.totalorder %s1928, 1
                  %s1933 = sphi %s1888, %s1888
                  %s1934 = sphi %s1893, %s1893
                $region78: #{critic_classifier_forward.4} parent=74 // loop_header_branch
                  %1931 = sbr.rel (%p1929) target = $region82
                $region79: #{critic_classifier_forward.4} parent=74 // loop_body
                  %v1935 = vld [vmem:[%s1933] sm:$0xff]
                  %1936 = vst [vmem:[%s1934] sm:$0xff] %v1935
                  %v1937 = vld [vmem:[%s1933 + $0x8] sm:$0xff]
                  %1938 = vst [vmem:[%s1934 + $0x10] sm:$0xff] %v1937
                  %v1939 = vld [vmem:[%s1933 + $0x10] sm:$0xff]
                  %1940 = vst [vmem:[%s1934 + $0x20] sm:$0xff] %v1939
                  %v1941 = vld [vmem:[%s1933 + $0x18] sm:$0xff]
                  %1942 = vst [vmem:[%s1934 + $0x30] sm:$0xff] %v1941
                  %v1943 = vld [vmem:[%s1933 + $0x20] sm:$0xff]
                  %1944 = vst [vmem:[%s1934 + $0x40] sm:$0xff] %v1943
                  %v1945 = vld [vmem:[%s1933 + $0x28] sm:$0xff]
                  %1946 = vst [vmem:[%s1934 + $0x50] sm:$0xff] %v1945
                  %v1947 = vld [vmem:[%s1933 + $0x30] sm:$0xff]
                  %1948 = vst [vmem:[%s1934 + $0x60] sm:$0xff] %v1947
                  %v1949 = vld [vmem:[%s1933 + $0x38] sm:$0xff]
                  %1950 = vst [vmem:[%s1934 + $0x70] sm:$0xff] %v1949
                $region80: #{critic_classifier_forward.4} parent=74 // loop_footer
                  %s1932 = sadd.s32 1, %s1928
                $region81: #{critic_classifier_forward.4} parent=74 // loop_footer_branch
                  %1927 = sbr.rel target = $region77
                $region82: #{critic_classifier_forward.4} parent=74 // loop_exit
                  _
              $region75: #{critic_classifier_forward.4} parent=59 // pred_fallthru
                _
              // Predicated region
              $region83: #{critic_classifier_forward.4} parent=59 // pred_check
                _
              $region84: #{critic_classifier_forward.4} parent=59 // pred_check_branch
                %1952 = sbr.rel target = $region86
              $region85: #{critic_classifier_forward.4} parent=59 // pred_region
                _
              $region86: #{critic_classifier_forward.4} parent=59 // pred_fallthru
                _
            $region60: #{critic_classifier_forward.4} parent=55 // pred_fallthru
              _
            // Predicated region
            $region61: #{critic_classifier_forward.4} parent=55 // pred_check
              _
            $region62: #{critic_classifier_forward.4} parent=55 // pred_check_branch
              %1899 = sbr.rel target = $region64
            $region63: #{critic_classifier_forward.4} parent=55 // pred_region
              loop: start=0, step=1, limit=1
              $region65: #{critic_classifier_forward.4} parent=63 // loop_pre_header
                _
              $region66: #{critic_classifier_forward.4} parent=63 // loop_header
                %s1902 = sphi 0, %s1906
                %p1903 = scmp.ge.s32.totalorder %s1902, 1
                %s1907 = sphi %s1888, %s1888
                %s1908 = sphi %s1893, %s1893
              $region67: #{critic_classifier_forward.4} parent=63 // loop_header_branch
                %1905 = sbr.rel (%p1903) target = $region71
              $region68: #{critic_classifier_forward.4} parent=63 // loop_body
                %v1909 = vld [vmem:[%s1907] sm:$0xff]
                %1910 = vst [vmem:[%s1908] sm:$0xff] %v1909
                %v1911 = vld [vmem:[%s1907 + $0x8] sm:$0xff]
                %1912 = vst [vmem:[%s1908 + $0x10] sm:$0xff] %v1911
                %v1913 = vld [vmem:[%s1907 + $0x10] sm:$0xff]
                %1914 = vst [vmem:[%s1908 + $0x20] sm:$0xff] %v1913
                %v1915 = vld [vmem:[%s1907 + $0x18] sm:$0xff]
                %1916 = vst [vmem:[%s1908 + $0x30] sm:$0xff] %v1915
                %v1917 = vld [vmem:[%s1907 + $0x20] sm:$0xff]
                %1918 = vst [vmem:[%s1908 + $0x40] sm:$0xff] %v1917
                %v1919 = vld [vmem:[%s1907 + $0x28] sm:$0xff]
                %1920 = vst [vmem:[%s1908 + $0x50] sm:$0xff] %v1919
                %v1921 = vld [vmem:[%s1907 + $0x30] sm:$0xff]
                %1922 = vst [vmem:[%s1908 + $0x60] sm:$0xff] %v1921
                %v1923 = vld [vmem:[%s1907 + $0x38] sm:$0xff]
                %1924 = vst [vmem:[%s1908 + $0x70] sm:$0xff] %v1923
              $region69: #{critic_classifier_forward.4} parent=63 // loop_footer
                %s1906 = sadd.s32 1, %s1902
              $region70: #{critic_classifier_forward.4} parent=63 // loop_footer_branch
                %1901 = sbr.rel target = $region66
              $region71: #{critic_classifier_forward.4} parent=63 // loop_exit
                _
            $region64: #{critic_classifier_forward.4} parent=55 // pred_fallthru
              _
          $region56: #{critic_classifier_forward.4} parent=51 // pred_fallthru
            _
          %1953 = vnop
        $region52: #{critic_classifier_forward.4} parent=35 // pred_fallthru
          _
      $region36: #{critic_classifier_forward.4} parent=5 // pred_fallthru
        _
      %p1954 = scmp.le.s32.totalorder 2, %s16
      // Predicated region
      $region87: #{critic_classifier_forward.4} parent=5 // pred_check
        %p1955 = pneg %p1954
      $region88: #{critic_classifier_forward.4} parent=5 // pred_check_branch
        %1957 = sbr.rel (%p1955) target = $region90
      $region89: #{critic_classifier_forward.4} parent=5 // pred_region
        %s1958 = ssub.s32 %s16, 2
        // Predicated region
        $region91: #{critic_classifier_forward.4} parent=89 // pred_check
          %p1959 = pneg %p144
        $region92: #{critic_classifier_forward.4} parent=89 // pred_check_branch
          %1961 = sbr.rel (%p1959) target = $region94
        $region93: #{critic_classifier_forward.4} parent=89 // pred_region
          %s1962 = sand.u32 %s129, 1
          %s1963 = sand.u32 %s129, 1
          %s1964 = smul.addr %s1963, 64
          %s1965 = scalar_lea.vmem [#allocation9], %s1964
        $region94: #{critic_classifier_forward.4} parent=89 // pred_fallthru
          _
      $region90: #{critic_classifier_forward.4} parent=5 // pred_fallthru
        _
    $region6: #{critic_classifier_forward.4} parent=1 // loop_footer
      %s20 = sadd.s32 1, %s16
    $region7: #{critic_classifier_forward.4} parent=1 // loop_footer_branch
      %15 = sbr.rel target = $region3
    $region8: #{critic_classifier_forward.4} parent=1 // loop_exit
      _
    %1966 = vsyncpa [#allocation5], 1
    %s1967 = scalar_lea.sflag [#allocation5], 1
    %1968 = vsyncpa %s1967, 1
    %1969 = vsyncpa [#allocation7], 1
    %s1970 = scalar_lea.sflag [#allocation7], 1
    %1971 = vsyncpa %s1970, 1

// kernel: critic_classifier_forward.6
$region0: #{critic_classifier_forward.6}
  #allocation0 [shape = 'u32[]', space=smem, size = 0x4, offset = 0x4, fixed_abs, tag = 'smem constant byte address 0x4 - core index']
  #allocation1 [shape = 'u32[144,128]{1,0:T(1,128)}', space=vmem, size = 0x12000, scoped, tag = 'internal scratch']
  #allocation2 [shape = 'f32[8,8,512]{2,1,0:T(8,128)}', space=vmem, size = 0x20000, scoped, tag = 'scratch operand']
  #allocation3 [shape = 'bf16[128,512]{1,0:T(16,128)(2,1)}', space=vmem, size = 0x20000, scoped, tag = 'scratch operand']
  %s0 = inlined_call_operand.vmem [shape: f32[8,8,256], index: 0, kind: input, shape index: {}]
  %s1 = inlined_call_operand.vmem [shape: f32[2,256,512], index: 1, kind: input, shape index: {}]
  %s2 = inlined_call_operand.vmem [shape: f32[2,128,512], index: 2, kind: input, shape index: {}]
  %s3 = inlined_call_operand.vmem [shape: f32[2,1,512], index: 3, kind: input, shape index: {}]
  %s4 = inlined_call_operand.vmem [shape: f32[8,8,256], index: 4, kind: output, shape index: {}]
  %s5 = sld [smem:[#allocation0]]
  $region83: #{critic_classifier_forward.6} parent=0
    _
  %s7 = ssub.s32 1, %s5
  %s8 = scalar_select 0, %s7, %s5
  $region1: #{critic_classifier_forward.6} parent=0
    #allocation4 [shape = 'u8[65536]{0}', space=vmem, size = 0x10000, scoped, tag = 'output window, operand 0']
    loop: start=0, step=1, limit=4
    $region2: #{critic_classifier_forward.6} parent=1 // loop_pre_header
      _
    $region3: #{critic_classifier_forward.6} parent=1 // loop_header
      %s10 = sphi 0, %s14
      %p11 = scmp.ge.s32.totalorder %s10, 4
      %s18 = sphi 0, %s18
      %s20 = sphi 0, %s18
      %s21 = sphi 0, %s20
      %s35 = sphi 0, %s21
      %s41 = sphi 0, %s43
      %s44 = sphi 0, %s41
      %s45 = sphi 0, %s44
      %s61 = sphi 0, %s45
      %s67 = sphi 0, %s69
      %s70 = sphi 0, %s67
      %s71 = sphi 0, %s70
      %s87 = sphi 0, %s71
      %s93 = sphi 0, %s95
      %s96 = sphi 0, %s93
      %s97 = sphi 0, %s96
      %s113 = sphi 0, %s97
      %s119 = sphi 0, %s121
      %s122 = sphi 0, %s119
      %s123 = sphi 0, %s122
      %s139 = sphi 0, %s123
    $region4: #{critic_classifier_forward.6} parent=1 // loop_header_branch
      %13 = sbr.rel (%p11) target = $region8
    $region5: #{critic_classifier_forward.6} parent=1 // loop_body
      %s15 = ssub.s32 %s10, 1
      %s16 = ssub.s32 %s10, 2
      %s17 = sadd.s32 %s10, 1
      %s19 = sadd.s32 %s18, 1
      %p22 = scmp.eq.s32.totalorder %s10, 1
      %p23 = scmp.ne.s32.totalorder %s18, %s20
      %p24 = scmp.eq.s32.totalorder %s10, 0
      %p25 = por %p23, %p24
      %p26 = scmp.ne.s32.totalorder %s18, %s20
      %p27 = scmp.eq.s32.totalorder %s15, 1
      %p28 = por %p26, %p27
      %p29 = scmp.ne.s32.totalorder %s20, %s21
      %p30 = scmp.eq.s32.totalorder %s15, 0
      %p31 = por %p29, %p30
      %p32 = scmp.ne.s32.totalorder %s20, %s21
      %p33 = scmp.eq.s32.totalorder %s16, 1
      %p34 = por %p32, %p33
      %p36 = scmp.ne.s32.totalorder %s21, %s35
      %p37 = scmp.eq.s32.totalorder %s16, 0
      %p38 = por %p36, %p37
      %s39 = ssub.s32 %s10, %s17
      %p40 = scmp.eq.s32.totalorder %s39, 0
      %s42 = sadd.s32 %s41, 1
      %s43 = scalar_select %p40, %s41, %s42
      %p46 = pneg %p40
      %p47 = scmp.eq.s32.totalorder %s10, 1
      %p48 = por %p46, %p47
      %p49 = scmp.ne.s32.totalorder %s41, %s44
      %p50 = scmp.eq.s32.totalorder %s10, 0
      %p51 = por %p49, %p50
      %p52 = scmp.ne.s32.totalorder %s41, %s44
      %p53 = scmp.eq.s32.totalorder %s15, 1
      %p54 = por %p52, %p53
      %p55 = scmp.ne.s32.totalorder %s44, %s45
      %p56 = scmp.eq.s32.totalorder %s15, 0
      %p57 = por %p55, %p56
      %p58 = scmp.ne.s32.totalorder %s44, %s45
      %p59 = scmp.eq.s32.totalorder %s16, 1
      %p60 = por %p58, %p59
      %p62 = scmp.ne.s32.totalorder %s45, %s61
      %p63 = scmp.eq.s32.totalorder %s16, 0
      %p64 = por %p62, %p63
      %s65 = ssub.s32 %s10, %s17
      %p66 = scmp.eq.s32.totalorder %s65, 0
      %s68 = sadd.s32 %s67, 1
      %s69 = scalar_select %p66, %s67, %s68
      %p72 = pneg %p66
      %p73 = scmp.eq.s32.totalorder %s10, 1
      %p74 = por %p72, %p73
      %p75 = scmp.ne.s32.totalorder %s67, %s70
      %p76 = scmp.eq.s32.totalorder %s10, 0
      %p77 = por %p75, %p76
      %p78 = scmp.ne.s32.totalorder %s67, %s70
      %p79 = scmp.eq.s32.totalorder %s15, 1
      %p80 = por %p78, %p79
      %p81 = scmp.ne.s32.totalorder %s70, %s71
      %p82 = scmp.eq.s32.totalorder %s15, 0
      %p83 = por %p81, %p82
      %p84 = scmp.ne.s32.totalorder %s70, %s71
      %p85 = scmp.eq.s32.totalorder %s16, 1
      %p86 = por %p84, %p85
      %p88 = scmp.ne.s32.totalorder %s71, %s87
      %p89 = scmp.eq.s32.totalorder %s16, 0
      %p90 = por %p88, %p89
      %s91 = ssub.s32 %s10, %s17
      %p92 = scmp.eq.s32.totalorder %s91, 0
      %s94 = sadd.s32 %s93, 1
      %s95 = scalar_select %p92, %s93, %s94
      %p98 = pneg %p92
      %p99 = scmp.eq.s32.totalorder %s10, 1
      %p100 = por %p98, %p99
      %p101 = scmp.ne.s32.totalorder %s93, %s96
      %p102 = scmp.eq.s32.totalorder %s10, 0
      %p103 = por %p101, %p102
      %p104 = scmp.ne.s32.totalorder %s93, %s96
      %p105 = scmp.eq.s32.totalorder %s15, 1
      %p106 = por %p104, %p105
      %p107 = scmp.ne.s32.totalorder %s96, %s97
      %p108 = scmp.eq.s32.totalorder %s15, 0
      %p109 = por %p107, %p108
      %p110 = scmp.ne.s32.totalorder %s96, %s97
      %p111 = scmp.eq.s32.totalorder %s16, 1
      %p112 = por %p110, %p111
      %p114 = scmp.ne.s32.totalorder %s97, %s113
      %p115 = scmp.eq.s32.totalorder %s16, 0
      %p116 = por %p114, %p115
      %s117 = ssub.s32 %s10, %s17
      %p118 = scmp.eq.s32.totalorder %s117, 0
      %s120 = sadd.s32 %s119, 1
      %s121 = scalar_select %p118, %s119, %s120
      %p124 = pneg %p118
      %p125 = scmp.eq.s32.totalorder %s10, 1
      %p126 = por %p124, %p125
      %p127 = scmp.ne.s32.totalorder %s119, %s122
      %p128 = scmp.eq.s32.totalorder %s10, 0
      %p129 = por %p127, %p128
      %p130 = scmp.ne.s32.totalorder %s119, %s122
      %p131 = scmp.eq.s32.totalorder %s15, 1
      %p132 = por %p130, %p131
      %p133 = scmp.ne.s32.totalorder %s122, %s123
      %p134 = scmp.eq.s32.totalorder %s15, 0
      %p135 = por %p133, %p134
      %p136 = scmp.ne.s32.totalorder %s122, %s123
      %p137 = scmp.eq.s32.totalorder %s16, 1
      %p138 = por %p136, %p137
      %p140 = scmp.ne.s32.totalorder %s123, %s139
      %p141 = scmp.eq.s32.totalorder %s16, 0
      %p142 = por %p140, %p141
      %p143 = scmp.le.s32.totalorder 1, %s10
      %p144 = scmp.lt.s32.totalorder %s10, 3
      %p145 = pnand %p143, %p144
      %p146 = pneg %p145
      // Predicated region
      $region9: #{critic_classifier_forward.6} parent=5 // pred_check
        _
      $region10: #{critic_classifier_forward.6} parent=5 // pred_check_branch
        %148 = sbr.rel (%p145) target = $region12
      $region11: #{critic_classifier_forward.6} parent=5 // pred_region
        %s149 = ssub.s32 %s10, 1
        // Predicated region
        $region13: #{critic_classifier_forward.6} parent=11 // pred_check
          %p150 = pneg %p31
        $region14: #{critic_classifier_forward.6} parent=11 // pred_check_branch
          %152 = sbr.rel (%p150) target = $region16
        $region15: #{critic_classifier_forward.6} parent=11 // pred_region
          _
        $region16: #{critic_classifier_forward.6} parent=11 // pred_fallthru
          _
      $region12: #{critic_classifier_forward.6} parent=5 // pred_fallthru
        _
      %p153 = scmp.lt.s32.totalorder %s10, 2
      // Predicated region
      $region17: #{critic_classifier_forward.6} parent=5 // pred_check
        %p154 = pneg %p153
      $region18: #{critic_classifier_forward.6} parent=5 // pred_check_branch
        %156 = sbr.rel (%p154) target = $region20
      $region19: #{critic_classifier_forward.6} parent=5 // pred_region
        // Predicated region
        $region21: #{critic_classifier_forward.6} parent=19 // pred_check
          %p157 = pneg %p51
        $region22: #{critic_classifier_forward.6} parent=19 // pred_check_branch
          %159 = sbr.rel (%p157) target = $region24
        $region23: #{critic_classifier_forward.6} parent=19 // pred_region
          %p160 = scmp.lt.s32.totalorder %s10, 1
          %s161 = scalar_select %p160, %s10, 1
          %s162 = smul.addr %s161, 128
          %s163 = smul.addr %s162, 8
          %s164 = scalar_lea.vmem %s1, %s163
        $region24: #{critic_classifier_forward.6} parent=19 // pred_fallthru
          _
        // Predicated region
        $region25: #{critic_classifier_forward.6} parent=19 // pred_check
          %p165 = pneg %p77
        $region26: #{critic_classifier_forward.6} parent=19 // pred_check_branch
          %167 = sbr.rel (%p165) target = $region28
        $region27: #{critic_classifier_forward.6} parent=19 // pred_region
          %p168 = scmp.lt.s32.totalorder %s10, 1
          %s169 = scalar_select %p168, %s10, 1
          %s170 = smul.addr %s169, 64
          %s171 = smul.addr %s170, 8
          %s172 = scalar_lea.vmem %s2, %s171
        $region28: #{critic_classifier_forward.6} parent=19 // pred_fallthru
          _
        // Predicated region
        $region29: #{critic_classifier_forward.6} parent=19 // pred_check
          %p173 = pneg %p103
        $region30: #{critic_classifier_forward.6} parent=19 // pred_check_branch
          %175 = sbr.rel (%p173) target = $region32
        $region31: #{critic_classifier_forward.6} parent=19 // pred_region
          %p176 = scmp.lt.s32.totalorder %s10, 1
          %s177 = scalar_select %p176, %s10, 1
          %s178 = smul.addr %s177, 4
          %s179 = scalar_lea.vmem %s3, %s178
        $region32: #{critic_classifier_forward.6} parent=19 // pred_fallthru
          _
      $region20: #{critic_classifier_forward.6} parent=5 // pred_fallthru
        _
      %p180 = scmp.le.s32.totalorder 1, %s10
      %p181 = scmp.lt.s32.totalorder %s10, 3
      %p182 = pnand %p180, %p181
      %p183 = pneg %p182
      // Predicated region
      $region33: #{critic_classifier_forward.6} parent=5 // pred_check
        _
      $region34: #{critic_classifier_forward.6} parent=5 // pred_check_branch
        %185 = sbr.rel (%p182) target = $region36
      $region35: #{critic_classifier_forward.6} parent=5 // pred_region
        %s186 = ssub.s32 %s10, 1
        %p187 = pneg %p31
        %p188 = pneg %p28
        %p189 = scmp.lt.s32.totalorder %s15, 1
        %s190 = scalar_select %p189, %s15, 1
        %s191 = smul.addr %s190, 128
        %s192 = smul.addr %s191, 8
        %s193 = scalar_lea.vmem %s1, %s192
        %p194 = pneg %p57
        %p195 = pneg %p54
        %p196 = scmp.lt.s32.totalorder %s15, 1
        %s197 = scalar_select %p196, %s15, 1
        %s198 = smul.addr %s197, 64
        %s199 = smul.addr %s198, 8
        %s200 = scalar_lea.vmem %s2, %s199
        %p201 = pneg %p83
        %p202 = pneg %p80
        %p203 = scmp.lt.s32.totalorder %s15, 1
        %s204 = scalar_select %p203, %s15, 1
        %s205 = smul.addr %s204, 4
        %s206 = scalar_lea.vmem %s3, %s205
        %p207 = pneg %p109
        %p208 = pneg %p106
        %p209 = pneg %p135
        %p210 = pneg %p132
        %s211 = sand.u32 %s122, 1
        %s212 = sand.u32 %s122, 1
        %s213 = smul.addr %s212, 64
        %s214 = scalar_lea.vmem [#allocation4], %s213
        %p215 = scmp.lt.s32.totalorder %s15, 1
        %s216 = scalar_select %p215, %s15, 1
        %s217 = smul.addr %s216, 128
        %s218 = smul.addr %s217, 8
        %s219 = scalar_lea.vmem %s1, %s218
        %p220 = scmp.lt.s32.totalorder %s15, 1
        %s221 = scalar_select %p220, %s15, 1
        %s222 = smul.addr %s221, 64
        %s223 = smul.addr %s222, 8
        %s224 = scalar_lea.vmem %s2, %s223
        %p225 = scmp.lt.s32.totalorder %s15, 1
        %s226 = scalar_select %p225, %s15, 1
        %s227 = smul.addr %s226, 4
        %s228 = scalar_lea.vmem %s3, %s227
        %v230 = vld [vmem:[%s0] sm:$0xff]
        %v231 = vld [vmem:[%s0 + $0x8] sm:$0xff]
        %v232 = vld [vmem:[%s0 + $0x10] sm:$0xff]
        %v233 = vld [vmem:[%s0 + $0x18] sm:$0xff]
        %v234 = vld [vmem:[%s0 + $0x20] sm:$0xff]
        %v235 = vld [vmem:[%s0 + $0x28] sm:$0xff]
        %v236 = vld [vmem:[%s0 + $0x30] sm:$0xff]
        %v237 = vld [vmem:[%s0 + $0x38] sm:$0xff]
        %v238 = vld [vmem:[%s0 + $0x40] sm:$0xff]
        %v239 = vld [vmem:[%s0 + $0x48] sm:$0xff]
        %v240 = vld [vmem:[%s0 + $0x50] sm:$0xff]
        %v241 = vld [vmem:[%s0 + $0x58] sm:$0xff]
        %v242 = vld [vmem:[%s0 + $0x60] sm:$0xff]
        %v243 = vld [vmem:[%s0 + $0x68] sm:$0xff]
        %v244 = vld [vmem:[%s0 + $0x70] sm:$0xff]
        %v245 = vld [vmem:[%s0 + $0x78] sm:$0xff]
        %v246 = vpack.c.bf16 %v232, %v230
        %v247 = vpack.c.bf16 %v233, %v231
        %v248 = vpack.c.bf16 %v236, %v234
        %v249 = vpack.c.bf16 %v237, %v235
        %v250 = vpack.c.bf16 %v240, %v238
        %v251 = vpack.c.bf16 %v241, %v239
        %v252 = vpack.c.bf16 %v244, %v242
        %v253 = vpack.c.bf16 %v245, %v243
        %v254 = vld [vmem:[%s219] sm:$0xff]
        %v255 = vld [vmem:[%s219 + $0x8] sm:$0xff]
        %v256 = vld [vmem:[%s219 + $0x10] sm:$0xff]
        %v257 = vld [vmem:[%s219 + $0x18] sm:$0xff]
        %v258 = vld [vmem:[%s219 + $0x20] sm:$0xff]
        %v259 = vld [vmem:[%s219 + $0x28] sm:$0xff]
        %v260 = vld [vmem:[%s219 + $0x30] sm:$0xff]
        %v261 = vld [vmem:[%s219 + $0x38] sm:$0xff]
        %v262 = vld [vmem:[%s219 + $0x40] sm:$0xff]
        %v263 = vld [vmem:[%s219 + $0x48] sm:$0xff]
        %v264 = vld [vmem:[%s219 + $0x50] sm:$0xff]
        %v265 = vld [vmem:[%s219 + $0x58] sm:$0xff]
        %v266 = vld [vmem:[%s219 + $0x60] sm:$0xff]
        %v267 = vld [vmem:[%s219 + $0x68] sm:$0xff]
        %v268 = vld [vmem:[%s219 + $0x70] sm:$0xff]
        %v269 = vld [vmem:[%s219 + $0x78] sm:$0xff]
        %v270 = vld [vmem:[%s219 + $0x80] sm:$0xff]
        %v271 = vld [vmem:[%s219 + $0x88] sm:$0xff]
        %v272 = vld [vmem:[%s219 + $0x90] sm:$0xff]
        %v273 = vld [vmem:[%s219 + $0x98] sm:$0xff]
        %v274 = vld [vmem:[%s219 + $0xa0] sm:$0xff]
        %v275 = vld [vmem:[%s219 + $0xa8] sm:$0xff]
        %v276 = vld [vmem:[%s219 + $0xb0] sm:$0xff]
        %v277 = vld [vmem:[%s219 + $0xb8] sm:$0xff]
        %v278 = vld [vmem:[%s219 + $0xc0] sm:$0xff]
        %v279 = vld [vmem:[%s219 + $0xc8] sm:$0xff]
        %v280 = vld [vmem:[%s219 + $0xd0] sm:$0xff]
        %v281 = vld [vmem:[%s219 + $0xd8] sm:$0xff]
        %v282 = vld [vmem:[%s219 + $0xe0] sm:$0xff]
        %v283 = vld [vmem:[%s219 + $0xe8] sm:$0xff]
        %v284 = vld [vmem:[%s219 + $0xf0] sm:$0xff]
        %v285 = vld [vmem:[%s219 + $0xf8] sm:$0xff]
        %v286 = vld [vmem:[%s219 + $0x100] sm:$0xff]
        %v287 = vld [vmem:[%s219 + $0x108] sm:$0xff]
        %v288 = vld [vmem:[%s219 + $0x110] sm:$0xff]
        %v289 = vld [vmem:[%s219 + $0x118] sm:$0xff]
        %v290 = vld [vmem:[%s219 + $0x120] sm:$0xff]
        %v291 = vld [vmem:[%s219 + $0x128] sm:$0xff]
        %v292 = vld [vmem:[%s219 + $0x130] sm:$0xff]
        %v293 = vld [vmem:[%s219 + $0x138] sm:$0xff]
        %v294 = vld [vmem:[%s219 + $0x140] sm:$0xff]
        %v295 = vld [vmem:[%s219 + $0x148] sm:$0xff]
        %v296 = vld [vmem:[%s219 + $0x150] sm:$0xff]
        %v297 = vld [vmem:[%s219 + $0x158] sm:$0xff]
        %v298 = vld [vmem:[%s219 + $0x160] sm:$0xff]
        %v299 = vld [vmem:[%s219 + $0x168] sm:$0xff]
        %v300 = vld [vmem:[%s219 + $0x170] sm:$0xff]
        %v301 = vld [vmem:[%s219 + $0x178] sm:$0xff]
        %v302 = vld [vmem:[%s219 + $0x180] sm:$0xff]
        %v303 = vld [vmem:[%s219 + $0x188] sm:$0xff]
        %v304 = vld [vmem:[%s219 + $0x190] sm:$0xff]
        %v305 = vld [vmem:[%s219 + $0x198] sm:$0xff]
        %v306 = vld [vmem:[%s219 + $0x1a0] sm:$0xff]
        %v307 = vld [vmem:[%s219 + $0x1a8] sm:$0xff]
        %v308 = vld [vmem:[%s219 + $0x1b0] sm:$0xff]
        %v309 = vld [vmem:[%s219 + $0x1b8] sm:$0xff]
        %v310 = vld [vmem:[%s219 + $0x1c0] sm:$0xff]
        %v311 = vld [vmem:[%s219 + $0x1c8] sm:$0xff]
        %v312 = vld [vmem:[%s219 + $0x1d0] sm:$0xff]
        %v313 = vld [vmem:[%s219 + $0x1d8] sm:$0xff]
        %v314 = vld [vmem:[%s219 + $0x1e0] sm:$0xff]
        %v315 = vld [vmem:[%s219 + $0x1e8] sm:$0xff]
        %v316 = vld [vmem:[%s219 + $0x1f0] sm:$0xff]
        %v317 = vld [vmem:[%s219 + $0x1f8] sm:$0xff]
        %v318 = vld [vmem:[%s219 + $0x200] sm:$0xff]
        %v319 = vld [vmem:[%s219 + $0x208] sm:$0xff]
        %v320 = vld [vmem:[%s219 + $0x210] sm:$0xff]
        %v321 = vld [vmem:[%s219 + $0x218] sm:$0xff]
        %v322 = vld [vmem:[%s219 + $0x220] sm:$0xff]
        %v323 = vld [vmem:[%s219 + $0x228] sm:$0xff]
        %v324 = vld [vmem:[%s219 + $0x230] sm:$0xff]
        %v325 = vld [vmem:[%s219 + $0x238] sm:$0xff]
        %v326 = vld [vmem:[%s219 + $0x240] sm:$0xff]
        %v327 = vld [vmem:[%s219 + $0x248] sm:$0xff]
        %v328 = vld [vmem:[%s219 + $0x250] sm:$0xff]
        %v329 = vld [vmem:[%s219 + $0x258] sm:$0xff]
        %v330 = vld [vmem:[%s219 + $0x260] sm:$0xff]
        %v331 = vld [vmem:[%s219 + $0x268] sm:$0xff]
        %v332 = vld [vmem:[%s219 + $0x270] sm:$0xff]
        %v333 = vld [vmem:[%s219 + $0x278] sm:$0xff]
        %v334 = vld [vmem:[%s219 + $0x280] sm:$0xff]
        %v335 = vld [vmem:[%s219 + $0x288] sm:$0xff]
        %v336 = vld [vmem:[%s219 + $0x290] sm:$0xff]
        %v337 = vld [vmem:[%s219 + $0x298] sm:$0xff]
        %v338 = vld [vmem:[%s219 + $0x2a0] sm:$0xff]
        %v339 = vld [vmem:[%s219 + $0x2a8] sm:$0xff]
        %v340 = vld [vmem:[%s219 + $0x2b0] sm:$0xff]
        %v341 = vld [vmem:[%s219 + $0x2b8] sm:$0xff]
        %v342 = vld [vmem:[%s219 + $0x2c0] sm:$0xff]
        %v343 = vld [vmem:[%s219 + $0x2c8] sm:$0xff]
        %v344 = vld [vmem:[%s219 + $0x2d0] sm:$0xff]
        %v345 = vld [vmem:[%s219 + $0x2d8] sm:$0xff]
        %v346 = vld [vmem:[%s219 + $0x2e0] sm:$0xff]
        %v347 = vld [vmem:[%s219 + $0x2e8] sm:$0xff]
        %v348 = vld [vmem:[%s219 + $0x2f0] sm:$0xff]
        %v349 = vld [vmem:[%s219 + $0x2f8] sm:$0xff]
        %v350 = vld [vmem:[%s219 + $0x300] sm:$0xff]
        %v351 = vld [vmem:[%s219 + $0x308] sm:$0xff]
        %v352 = vld [vmem:[%s219 + $0x310] sm:$0xff]
        %v353 = vld [vmem:[%s219 + $0x318] sm:$0xff]
        %v354 = vld [vmem:[%s219 + $0x320] sm:$0xff]
        %v355 = vld [vmem:[%s219 + $0x328] sm:$0xff]
        %v356 = vld [vmem:[%s219 + $0x330] sm:$0xff]
        %v357 = vld [vmem:[%s219 + $0x338] sm:$0xff]
        %v358 = vld [vmem:[%s219 + $0x340] sm:$0xff]
        %v359 = vld [vmem:[%s219 + $0x348] sm:$0xff]
        %v360 = vld [vmem:[%s219 + $0x350] sm:$0xff]
        %v361 = vld [vmem:[%s219 + $0x358] sm:$0xff]
        %v362 = vld [vmem:[%s219 + $0x360] sm:$0xff]
        %v363 = vld [vmem:[%s219 + $0x368] sm:$0xff]
        %v364 = vld [vmem:[%s219 + $0x370] sm:$0xff]
        %v365 = vld [vmem:[%s219 + $0x378] sm:$0xff]
        %v366 = vld [vmem:[%s219 + $0x380] sm:$0xff]
        %v367 = vld [vmem:[%s219 + $0x388] sm:$0xff]
        %v368 = vld [vmem:[%s219 + $0x390] sm:$0xff]
        %v369 = vld [vmem:[%s219 + $0x398] sm:$0xff]
        %v370 = vld [vmem:[%s219 + $0x3a0] sm:$0xff]
        %v371 = vld [vmem:[%s219 + $0x3a8] sm:$0xff]
        %v372 = vld [vmem:[%s219 + $0x3b0] sm:$0xff]
        %v373 = vld [vmem:[%s219 + $0x3b8] sm:$0xff]
        %v374 = vld [vmem:[%s219 + $0x3c0] sm:$0xff]
        %v375 = vld [vmem:[%s219 + $0x3c8] sm:$0xff]
        %v376 = vld [vmem:[%s219 + $0x3d0] sm:$0xff]
        %v377 = vld [vmem:[%s219 + $0x3d8] sm:$0xff]
        %v378 = vld [vmem:[%s219 + $0x3e0] sm:$0xff]
        %v379 = vld [vmem:[%s219 + $0x3e8] sm:$0xff]
        %v380 = vld [vmem:[%s219 + $0x3f0] sm:$0xff]
        %v381 = vld [vmem:[%s219 + $0x3f8] sm:$0xff]
        %v382 = vpack.c.bf16 %v258, %v254
        %v383 = vpack.c.bf16 %v259, %v255
        %v384 = vpack.c.bf16 %v260, %v256
        %v385 = vpack.c.bf16 %v261, %v257
        %v386 = vpack.c.bf16 %v266, %v262
        %v387 = vpack.c.bf16 %v267, %v263
        %v388 = vpack.c.bf16 %v268, %v264
        %v389 = vpack.c.bf16 %v269, %v265
        %v390 = vpack.c.bf16 %v274, %v270
        %v391 = vpack.c.bf16 %v275, %v271
        %v392 = vpack.c.bf16 %v276, %v272
        %v393 = vpack.c.bf16 %v277, %v273
        %v394 = vpack.c.bf16 %v282, %v278
        %v395 = vpack.c.bf16 %v283, %v279
        %v396 = vpack.c.bf16 %v284, %v280
        %v397 = vpack.c.bf16 %v285, %v281
        %v398 = vpack.c.bf16 %v290, %v286
        %v399 = vpack.c.bf16 %v291, %v287
        %v400 = vpack.c.bf16 %v292, %v288
        %v401 = vpack.c.bf16 %v293, %v289
        %v402 = vpack.c.bf16 %v298, %v294
        %v403 = vpack.c.bf16 %v299, %v295
        %v404 = vpack.c.bf16 %v300, %v296
        %v405 = vpack.c.bf16 %v301, %v297
        %v406 = vpack.c.bf16 %v306, %v302
        %v407 = vpack.c.bf16 %v307, %v303
        %v408 = vpack.c.bf16 %v308, %v304
        %v409 = vpack.c.bf16 %v309, %v305
        %v410 = vpack.c.bf16 %v314, %v310
        %v411 = vpack.c.bf16 %v315, %v311
        %v412 = vpack.c.bf16 %v316, %v312
        %v413 = vpack.c.bf16 %v317, %v313
        %v414 = vpack.c.bf16 %v322, %v318
        %v415 = vpack.c.bf16 %v323, %v319
        %v416 = vpack.c.bf16 %v324, %v320
        %v417 = vpack.c.bf16 %v325, %v321
        %v418 = vpack.c.bf16 %v330, %v326
        %v419 = vpack.c.bf16 %v331, %v327
        %v420 = vpack.c.bf16 %v332, %v328
        %v421 = vpack.c.bf16 %v333, %v329
        %v422 = vpack.c.bf16 %v338, %v334
        %v423 = vpack.c.bf16 %v339, %v335
        %v424 = vpack.c.bf16 %v340, %v336
        %v425 = vpack.c.bf16 %v341, %v337
        %v426 = vpack.c.bf16 %v346, %v342
        %v427 = vpack.c.bf16 %v347, %v343
        %v428 = vpack.c.bf16 %v348, %v344
        %v429 = vpack.c.bf16 %v349, %v345
        %v430 = vpack.c.bf16 %v354, %v350
        %v431 = vpack.c.bf16 %v355, %v351
        %v432 = vpack.c.bf16 %v356, %v352
        %v433 = vpack.c.bf16 %v357, %v353
        %v434 = vpack.c.bf16 %v362, %v358
        %v435 = vpack.c.bf16 %v363, %v359
        %v436 = vpack.c.bf16 %v364, %v360
        %v437 = vpack.c.bf16 %v365, %v361
        %v438 = vpack.c.bf16 %v370, %v366
        %v439 = vpack.c.bf16 %v371, %v367
        %v440 = vpack.c.bf16 %v372, %v368
        %v441 = vpack.c.bf16 %v373, %v369
        %v442 = vpack.c.bf16 %v378, %v374
        %v443 = vpack.c.bf16 %v379, %v375
        %v444 = vpack.c.bf16 %v380, %v376
        %v445 = vpack.c.bf16 %v381, %v377
        %v446 = vld [vmem:[%s228] sm:$0xf]
        %v448 = vlaneseq
        %v449 = vshrl.u32 %v448, 7
        %v450 = vsub.s32 0, %v449
        %v451 = vrot.slane %v446, %v450
        %v452 = vlaneseq
        %v453 = vshrl.u32 %v452, 7
        %v454 = vsub.s32 1, %v453
        %v455 = vrot.slane %v446, %v454
        %v456 = vlaneseq
        %v457 = vshrl.u32 %v456, 7
        %v458 = vsub.s32 2, %v457
        %v459 = vrot.slane %v446, %v458
        %v460 = vlaneseq
        %v461 = vshrl.u32 %v460, 7
        %v462 = vsub.s32 3, %v461
        %v463 = vrot.slane %v446, %v462
        %468 = vmatprep.subr.bf16.mxu0 %v383
        %469 = vmatpush1.bf16.msra.mxu0 %v382
        %470 = vmatprep.subr.bf16.mxu0 %v387
        %471 = vmatpush1.bf16.msra.mxu0 %v386
        %472 = vmatprep.subr.bf16.mxu0 %v391
        %473 = vmatpush1.bf16.msra.mxu0 %v390
        %474 = vmatprep.subr.bf16.mxu0 %v395
        %475 = vmatpush1.bf16.msra.mxu0 %v394
        %476 = vmatprep.subr.bf16.mxu0 %v399
        %477 = vmatpush1.bf16.msra.mxu0 %v398
        %478 = vmatprep.subr.bf16.mxu0 %v403
        %479 = vmatpush1.bf16.msra.mxu0 %v402
        %480 = vmatprep.subr.bf16.mxu0 %v407
        %481 = vmatpush1.bf16.msra.mxu0 %v406
        %482 = vmatprep.subr.bf16.mxu0 %v411
        %483 = vmatpush1.bf16.msra.mxu0 %v410
        %484 = vmatprep.subr.bf16.mxu0 %v415
        %485 = vmatpush1.bf16.msra.mxu0 %v414
        %486 = vmatprep.subr.bf16.mxu0 %v419
        %487 = vmatpush1.bf16.msra.mxu0 %v418
        %488 = vmatprep.subr.bf16.mxu0 %v423
        %489 = vmatpush1.bf16.msra.mxu0 %v422
        %490 = vmatprep.subr.bf16.mxu0 %v427
        %491 = vmatpush1.bf16.msra.mxu0 %v426
        %492 = vmatprep.subr.bf16.mxu0 %v431
        %493 = vmatpush1.bf16.msra.mxu0 %v430
        %494 = vmatprep.subr.bf16.mxu0 %v435
        %495 = vmatpush1.bf16.msra.mxu0 %v434
        %496 = vmatprep.subr.bf16.mxu0 %v439
        %497 = vmatpush1.bf16.msra.mxu0 %v438
        %498 = vmatprep.subr.bf16.mxu0 %v443
        %499 = vmatpush1.bf16.msra.mxu0 %v442
        %500 = vmatprep.mubr.bf16.mxu0 %v247
        %501 = vmatmul.mubr.bf16.gmra.mrb[0].mxu0 %v246
        %v502 = vpop.f32.mrb[0].mxu0
        %v503 = vadd.f32 %v451, %v502
        %v504 = vpop.f32.mrb[0].mxu0
        %v505 = vadd.f32 %v455, %v504
        %v506 = vpop.f32.mrb[0].mxu0
        %v507 = vadd.f32 %v451, %v506
        %v508 = vpop.f32.mrb[0].mxu0
        %v509 = vadd.f32 %v455, %v508
        %510 = vmatprep.mubr.bf16.mxu0 %v249
        %511 = vmatmul.mubr.bf16.gmra.mrb[0].mxu0 %v248
        %v512 = vpop.f32.mrb[0].mxu0
        %v513 = vadd.f32 %v451, %v512
        %v514 = vpop.f32.mrb[0].mxu0
        %v515 = vadd.f32 %v455, %v514
        %v516 = vpop.f32.mrb[0].mxu0
        %v517 = vadd.f32 %v451, %v516
        %v518 = vpop.f32.mrb[0].mxu0
        %v519 = vadd.f32 %v455, %v518
        %520 = vmatprep.mubr.bf16.mxu0 %v251
        %521 = vmatmul.mubr.bf16.gmra.mrb[0].mxu0 %v250
        %v522 = vpop.f32.mrb[0].mxu0
        %v523 = vadd.f32 %v451, %v522
        %v524 = vpop.f32.mrb[0].mxu0
        %v525 = vadd.f32 %v455, %v524
        %v526 = vpop.f32.mrb[0].mxu0
        %v527 = vadd.f32 %v451, %v526
        %v528 = vpop.f32.mrb[0].mxu0
        %v529 = vadd.f32 %v455, %v528
        %530 = vmatprep.mubr.bf16.mxu0 %v253
        %531 = vmatmul.mubr.bf16.gmra.mrb[0].mxu0 %v252
        %v532 = vpop.f32.mrb[0].mxu0
        %v533 = vadd.f32 %v451, %v532
        %v534 = vpop.f32.mrb[0].mxu0
        %v535 = vadd.f32 %v455, %v534
        %v536 = vpop.f32.mrb[0].mxu0
        %v537 = vadd.f32 %v451, %v536
        %v538 = vpop.f32.mrb[0].mxu0
        %v539 = vadd.f32 %v455, %v538
        %540 = vdwg.mxu0
        %541 = vmatprep.subr.bf16.mxu0 %v385
        %542 = vmatpush1.bf16.msra.mxu0 %v384
        %543 = vmatprep.subr.bf16.mxu0 %v389
        %544 = vmatpush1.bf16.msra.mxu0 %v388
        %545 = vmatprep.subr.bf16.mxu0 %v393
        %546 = vmatpush1.bf16.msra.mxu0 %v392
        %547 = vmatprep.subr.bf16.mxu0 %v397
        %548 = vmatpush1.bf16.msra.mxu0 %v396
        %549 = vmatprep.subr.bf16.mxu0 %v401
        %550 = vmatpush1.bf16.msra.mxu0 %v400
        %551 = vmatprep.subr.bf16.mxu0 %v405
        %552 = vmatpush1.bf16.msra.mxu0 %v404
        %553 = vmatprep.subr.bf16.mxu0 %v409
        %554 = vmatpush1.bf16.msra.mxu0 %v408
        %555 = vmatprep.subr.bf16.mxu0 %v413
        %556 = vmatpush1.bf16.msra.mxu0 %v412
        %557 = vmatprep.subr.bf16.mxu0 %v417
        %558 = vmatpush1.bf16.msra.mxu0 %v416
        %559 = vmatprep.subr.bf16.mxu0 %v421
        %560 = vmatpush1.bf16.msra.mxu0 %v420
        %561 = vmatprep.subr.bf16.mxu0 %v425
        %562 = vmatpush1.bf16.msra.mxu0 %v424
        %563 = vmatprep.subr.bf16.mxu0 %v429
        %564 = vmatpush1.bf16.msra.mxu0 %v428
        %565 = vmatprep.subr.bf16.mxu0 %v433
        %566 = vmatpush1.bf16.msra.mxu0 %v432
        %567 = vmatprep.subr.bf16.mxu0 %v437
        %568 = vmatpush1.bf16.msra.mxu0 %v436
        %569 = vmatprep.subr.bf16.mxu0 %v441
        %570 = vmatpush1.bf16.msra.mxu0 %v440
        %571 = vmatprep.subr.bf16.mxu0 %v445
        %572 = vmatpush1.bf16.msra.mxu0 %v444
        %573 = vmatprep.mubr.bf16.mxu0 %v247
        %574 = vmatmul.mubr.bf16.gmra.mrb[0].mxu0 %v246
        %v575 = vpop.f32.mrb[0].mxu0
        %v576 = vadd.f32 %v459, %v575
        %v577 = vpop.f32.mrb[0].mxu0
        %v578 = vadd.f32 %v463, %v577
        %v579 = vpop.f32.mrb[0].mxu0
        %v580 = vadd.f32 %v459, %v579
        %v581 = vpop.f32.mrb[0].mxu0
        %v582 = vadd.f32 %v463, %v581
        %583 = vmatprep.mubr.bf16.mxu0 %v249
        %584 = vmatmul.mubr.bf16.gmra.mrb[0].mxu0 %v248
        %v585 = vpop.f32.mrb[0].mxu0
        %v586 = vadd.f32 %v459, %v585
        %v587 = vpop.f32.mrb[0].mxu0
        %v588 = vadd.f32 %v463, %v587
        %v589 = vpop.f32.mrb[0].mxu0
        %v590 = vadd.f32 %v459, %v589
        %v591 = vpop.f32.mrb[0].mxu0
        %v592 = vadd.f32 %v463, %v591
        %593 = vmatprep.mubr.bf16.mxu0 %v251
        %594 = vmatmul.mubr.bf16.gmra.mrb[0].mxu0 %v250
        %v595 = vpop.f32.mrb[0].mxu0
        %v596 = vadd.f32 %v459, %v595
        %v597 = vpop.f32.mrb[0].mxu0
        %v598 = vadd.f32 %v463, %v597
        %v599 = vpop.f32.mrb[0].mxu0
        %v600 = vadd.f32 %v459, %v599
        %v601 = vpop.f32.mrb[0].mxu0
        %v602 = vadd.f32 %v463, %v601
        %603 = vmatprep.mubr.bf16.mxu0 %v253
        %604 = vmatmul.mubr.bf16.gmra.mrb[0].mxu0 %v252
        %v605 = vpop.f32.mrb[0].mxu0
        %v606 = vadd.f32 %v459, %v605
        %v607 = vpop.f32.mrb[0].mxu0
        %v608 = vadd.f32 %v463, %v607
        %v609 = vpop.f32.mrb[0].mxu0
        %v610 = vadd.f32 %v459, %v609
        %v611 = vpop.f32.mrb[0].mxu0
        %v612 = vadd.f32 %v463, %v611
        %613 = vdwg.mxu0
        %614 = vst [vmem:[#allocation2] sm:$0xff] %v503
        %615 = vst [vmem:[#allocation2 + $0x8] sm:$0xff] %v505
        %616 = vst [vmem:[#allocation2 + $0x10] sm:$0xff] %v576
        %617 = vst [vmem:[#allocation2 + $0x18] sm:$0xff] %v578
        %618 = vst [vmem:[#allocation2 + $0x20] sm:$0xff] %v507
        %619 = vst [vmem:[#allocation2 + $0x28] sm:$0xff] %v509
        %620 = vst [vmem:[#allocation2 + $0x30] sm:$0xff] %v580
        %621 = vst [vmem:[#allocation2 + $0x38] sm:$0xff] %v582
        %622 = vst [vmem:[#allocation2 + $0x40] sm:$0xff] %v513
        %623 = vst [vmem:[#allocation2 + $0x48] sm:$0xff] %v515
        %624 = vst [vmem:[#allocation2 + $0x50] sm:$0xff] %v586
        %625 = vst [vmem:[#allocation2 + $0x58] sm:$0xff] %v588
        %626 = vst [vmem:[#allocation2 + $0x60] sm:$0xff] %v517
        %627 = vst [vmem:[#allocation2 + $0x68] sm:$0xff] %v519
        %628 = vst [vmem:[#allocation2 + $0x70] sm:$0xff] %v590
        %629 = vst [vmem:[#allocation2 + $0x78] sm:$0xff] %v592
        %630 = vst [vmem:[#allocation2 + $0x80] sm:$0xff] %v523
        %631 = vst [vmem:[#allocation2 + $0x88] sm:$0xff] %v525
        %632 = vst [vmem:[#allocation2 + $0x90] sm:$0xff] %v596
        %633 = vst [vmem:[#allocation2 + $0x98] sm:$0xff] %v598
        %634 = vst [vmem:[#allocation2 + $0xa0] sm:$0xff] %v527
        %635 = vst [vmem:[#allocation2 + $0xa8] sm:$0xff] %v529
        %636 = vst [vmem:[#allocation2 + $0xb0] sm:$0xff] %v600
        %637 = vst [vmem:[#allocation2 + $0xb8] sm:$0xff] %v602
        %638 = vst [vmem:[#allocation2 + $0xc0] sm:$0xff] %v533
        %639 = vst [vmem:[#allocation2 + $0xc8] sm:$0xff] %v535
        %640 = vst [vmem:[#allocation2 + $0xd0] sm:$0xff] %v606
        %641 = vst [vmem:[#allocation2 + $0xd8] sm:$0xff] %v608
        %642 = vst [vmem:[#allocation2 + $0xe0] sm:$0xff] %v537
        %643 = vst [vmem:[#allocation2 + $0xe8] sm:$0xff] %v539
        %644 = vst [vmem:[#allocation2 + $0xf0] sm:$0xff] %v610
        %645 = vst [vmem:[#allocation2 + $0xf8] sm:$0xff] %v612
        %v646 = vld [vmem:[%s224] sm:$0xff]
        %v647 = vld [vmem:[%s224 + $0x8] sm:$0xff]
        %v648 = vld [vmem:[%s224 + $0x10] sm:$0xff]
        %v649 = vld [vmem:[%s224 + $0x18] sm:$0xff]
        %v650 = vld [vmem:[%s224 + $0x20] sm:$0xff]
        %v651 = vld [vmem:[%s224 + $0x28] sm:$0xff]
        %v652 = vld [vmem:[%s224 + $0x30] sm:$0xff]
        %v653 = vld [vmem:[%s224 + $0x38] sm:$0xff]
        %v654 = vld [vmem:[%s224 + $0x40] sm:$0xff]
        %v655 = vld [vmem:[%s224 + $0x48] sm:$0xff]
        %v656 = vld [vmem:[%s224 + $0x50] sm:$0xff]
        %v657 = vld [vmem:[%s224 + $0x58] sm:$0xff]
        %v658 = vld [vmem:[%s224 + $0x60] sm:$0xff]
        %v659 = vld [vmem:[%s224 + $0x68] sm:$0xff]
        %v660 = vld [vmem:[%s224 + $0x70] sm:$0xff]
        %v661 = vld [vmem:[%s224 + $0x78] sm:$0xff]
        %v662 = vld [vmem:[%s224 + $0x80] sm:$0xff]
        %v663 = vld [vmem:[%s224 + $0x88] sm:$0xff]
        %v664 = vld [vmem:[%s224 + $0x90] sm:$0xff]
        %v665 = vld [vmem:[%s224 + $0x98] sm:$0xff]
        %v666 = vld [vmem:[%s224 + $0xa0] sm:$0xff]
        %v667 = vld [vmem:[%s224 + $0xa8] sm:$0xff]
        %v668 = vld [vmem:[%s224 + $0xb0] sm:$0xff]
        %v669 = vld [vmem:[%s224 + $0xb8] sm:$0xff]
        %v670 = vld [vmem:[%s224 + $0xc0] sm:$0xff]
        %v671 = vld [vmem:[%s224 + $0xc8] sm:$0xff]
        %v672 = vld [vmem:[%s224 + $0xd0] sm:$0xff]
        %v673 = vld [vmem:[%s224 + $0xd8] sm:$0xff]
        %v674 = vld [vmem:[%s224 + $0xe0] sm:$0xff]
        %v675 = vld [vmem:[%s224 + $0xe8] sm:$0xff]
        %v676 = vld [vmem:[%s224 + $0xf0] sm:$0xff]
        %v677 = vld [vmem:[%s224 + $0xf8] sm:$0xff]
        %v678 = vld [vmem:[%s224 + $0x100] sm:$0xff]
        %v679 = vld [vmem:[%s224 + $0x108] sm:$0xff]
        %v680 = vld [vmem:[%s224 + $0x110] sm:$0xff]
        %v681 = vld [vmem:[%s224 + $0x118] sm:$0xff]
        %v682 = vld [vmem:[%s224 + $0x120] sm:$0xff]
        %v683 = vld [vmem:[%s224 + $0x128] sm:$0xff]
        %v684 = vld [vmem:[%s224 + $0x130] sm:$0xff]
        %v685 = vld [vmem:[%s224 + $0x138] sm:$0xff]
        %v686 = vld [vmem:[%s224 + $0x140] sm:$0xff]
        %v687 = vld [vmem:[%s224 + $0x148] sm:$0xff]
        %v688 = vld [vmem:[%s224 + $0x150] sm:$0xff]
        %v689 = vld [vmem:[%s224 + $0x158] sm:$0xff]
        %v690 = vld [vmem:[%s224 + $0x160] sm:$0xff]
        %v691 = vld [vmem:[%s224 + $0x168] sm:$0xff]
        %v692 = vld [vmem:[%s224 + $0x170] sm:$0xff]
        %v693 = vld [vmem:[%s224 + $0x178] sm:$0xff]
        %v694 = vld [vmem:[%s224 + $0x180] sm:$0xff]
        %v695 = vld [vmem:[%s224 + $0x188] sm:$0xff]
        %v696 = vld [vmem:[%s224 + $0x190] sm:$0xff]
        %v697 = vld [vmem:[%s224 + $0x198] sm:$0xff]
        %v698 = vld [vmem:[%s224 + $0x1a0] sm:$0xff]
        %v699 = vld [vmem:[%s224 + $0x1a8] sm:$0xff]
        %v700 = vld [vmem:[%s224 + $0x1b0] sm:$0xff]
        %v701 = vld [vmem:[%s224 + $0x1b8] sm:$0xff]
        %v702 = vld [vmem:[%s224 + $0x1c0] sm:$0xff]
        %v703 = vld [vmem:[%s224 + $0x1c8] sm:$0xff]
        %v704 = vld [vmem:[%s224 + $0x1d0] sm:$0xff]
        %v705 = vld [vmem:[%s224 + $0x1d8] sm:$0xff]
        %v706 = vld [vmem:[%s224 + $0x1e0] sm:$0xff]
        %v707 = vld [vmem:[%s224 + $0x1e8] sm:$0xff]
        %v708 = vld [vmem:[%s224 + $0x1f0] sm:$0xff]
        %v709 = vld [vmem:[%s224 + $0x1f8] sm:$0xff]
        %v710 = vpack.c.bf16 %v650, %v646
        %v711 = vpack.c.bf16 %v651, %v647
        %v712 = vpack.c.bf16 %v652, %v648
        %v713 = vpack.c.bf16 %v653, %v649
        %v714 = vpack.c.bf16 %v658, %v654
        %v715 = vpack.c.bf16 %v659, %v655
        %v716 = vpack.c.bf16 %v660, %v656
        %v717 = vpack.c.bf16 %v661, %v657
        %v718 = vpack.c.bf16 %v666, %v662
        %v719 = vpack.c.bf16 %v667, %v663
        %v720 = vpack.c.bf16 %v668, %v664
        %v721 = vpack.c.bf16 %v669, %v665
        %v722 = vpack.c.bf16 %v674, %v670
        %v723 = vpack.c.bf16 %v675, %v671
        %v724 = vpack.c.bf16 %v676, %v672
        %v725 = vpack.c.bf16 %v677, %v673
        %v726 = vpack.c.bf16 %v682, %v678
        %v727 = vpack.c.bf16 %v683, %v679
        %v728 = vpack.c.bf16 %v684, %v680
        %v729 = vpack.c.bf16 %v685, %v681
        %v730 = vpack.c.bf16 %v690, %v686
        %v731 = vpack.c.bf16 %v691, %v687
        %v732 = vpack.c.bf16 %v692, %v688
        %v733 = vpack.c.bf16 %v693, %v689
        %v734 = vpack.c.bf16 %v698, %v694
        %v735 = vpack.c.bf16 %v699, %v695
        %v736 = vpack.c.bf16 %v700, %v696
        %v737 = vpack.c.bf16 %v701, %v697
        %v738 = vpack.c.bf16 %v706, %v702
        %v739 = vpack.c.bf16 %v707, %v703
        %v740 = vpack.c.bf16 %v708, %v704
        %v741 = vpack.c.bf16 %v709, %v705
        %742 = vst [vmem:[#allocation3] sm:$0xff] %v710
        %743 = vst [vmem:[#allocation3 + $0x8] sm:$0xff] %v711
        %744 = vst [vmem:[#allocation3 + $0x10] sm:$0xff] %v712
        %745 = vst [vmem:[#allocation3 + $0x18] sm:$0xff] %v713
        %746 = vst [vmem:[#allocation3 + $0x20] sm:$0xff] %v714
        %747 = vst [vmem:[#allocation3 + $0x28] sm:$0xff] %v715
        %748 = vst [vmem:[#allocation3 + $0x30] sm:$0xff] %v716
        %749 = vst [vmem:[#allocation3 + $0x38] sm:$0xff] %v717
        %750 = vst [vmem:[#allocation3 + $0x40] sm:$0xff] %v718
        %751 = vst [vmem:[#allocation3 + $0x48] sm:$0xff] %v719
        %752 = vst [vmem:[#allocation3 + $0x50] sm:$0xff] %v720
        %753 = vst [vmem:[#allocation3 + $0x58] sm:$0xff] %v721
        %754 = vst [vmem:[#allocation3 + $0x60] sm:$0xff] %v722
        %755 = vst [vmem:[#allocation3 + $0x68] sm:$0xff] %v723
        %756 = vst [vmem:[#allocation3 + $0x70] sm:$0xff] %v724
        %757 = vst [vmem:[#allocation3 + $0x78] sm:$0xff] %v725
        %758 = vst [vmem:[#allocation3 + $0x80] sm:$0xff] %v726
        %759 = vst [vmem:[#allocation3 + $0x88] sm:$0xff] %v727
        %760 = vst [vmem:[#allocation3 + $0x90] sm:$0xff] %v728
        %761 = vst [vmem:[#allocation3 + $0x98] sm:$0xff] %v729
        %762 = vst [vmem:[#allocation3 + $0xa0] sm:$0xff] %v730
        %763 = vst [vmem:[#allocation3 + $0xa8] sm:$0xff] %v731
        %764 = vst [vmem:[#allocation3 + $0xb0] sm:$0xff] %v732
        %765 = vst [vmem:[#allocation3 + $0xb8] sm:$0xff] %v733
        %766 = vst [vmem:[#allocation3 + $0xc0] sm:$0xff] %v734
        %767 = vst [vmem:[#allocation3 + $0xc8] sm:$0xff] %v735
        %768 = vst [vmem:[#allocation3 + $0xd0] sm:$0xff] %v736
        %769 = vst [vmem:[#allocation3 + $0xd8] sm:$0xff] %v737
        %770 = vst [vmem:[#allocation3 + $0xe0] sm:$0xff] %v738
        %771 = vst [vmem:[#allocation3 + $0xe8] sm:$0xff] %v739
        %772 = vst [vmem:[#allocation3 + $0xf0] sm:$0xff] %v740
        %773 = vst [vmem:[#allocation3 + $0xf8] sm:$0xff] %v741
        %p774 = scmp.eq.s32.totalorder %s15, 0
        %s775 = scalar_select %p774, 0, 7
        %s776 = smul.u32 %s775, 4
        %s777 = smul.addr %s776, 8
        %s778 = scalar_lea.vmem [#allocation2], %s777
        %v779 = vld [vmem:[%s778] sm:$0xff]
        %v780 = vld [vmem:[%s778 + $0x8] sm:$0xff]
        %v781 = vld [vmem:[%s778 + $0x10] sm:$0xff]
        %v782 = vld [vmem:[%s778 + $0x18] sm:$0xff]
        %v783 = vld [vmem:[#allocation3] sm:$0xff]
        %v784 = vld [vmem:[#allocation3 + $0x8] sm:$0xff]
        %v785 = vld [vmem:[#allocation3 + $0x10] sm:$0xff]
        %v786 = vld [vmem:[#allocation3 + $0x18] sm:$0xff]
        %v787 = vld [vmem:[#allocation3 + $0x20] sm:$0xff]
        %v788 = vld [vmem:[#allocation3 + $0x28] sm:$0xff]
        %v789 = vld [vmem:[#allocation3 + $0x30] sm:$0xff]
        %v790 = vld [vmem:[#allocation3 + $0x38] sm:$0xff]
        %v791 = vld [vmem:[#allocation3 + $0x40] sm:$0xff]
        %v792 = vld [vmem:[#allocation3 + $0x48] sm:$0xff]
        %v793 = vld [vmem:[#allocation3 + $0x50] sm:$0xff]
        %v794 = vld [vmem:[#allocation3 + $0x58] sm:$0xff]
        %v795 = vld [vmem:[#allocation3 + $0x60] sm:$0xff]
        %v796 = vld [vmem:[#allocation3 + $0x68] sm:$0xff]
        %v797 = vld [vmem:[#allocation3 + $0x70] sm:$0xff]
        %v798 = vld [vmem:[#allocation3 + $0x78] sm:$0xff]
        %v799 = vld [vmem:[#allocation3 + $0x80] sm:$0xff]
        %v800 = vld [vmem:[#allocation3 + $0x88] sm:$0xff]
        %v801 = vld [vmem:[#allocation3 + $0x90] sm:$0xff]
        %v802 = vld [vmem:[#allocation3 + $0x98] sm:$0xff]
        %v803 = vld [vmem:[#allocation3 + $0xa0] sm:$0xff]
        %v804 = vld [vmem:[#allocation3 + $0xa8] sm:$0xff]
        %v805 = vld [vmem:[#allocation3 + $0xb0] sm:$0xff]
        %v806 = vld [vmem:[#allocation3 + $0xb8] sm:$0xff]
        %v807 = vld [vmem:[#allocation3 + $0xc0] sm:$0xff]
        %v808 = vld [vmem:[#allocation3 + $0xc8] sm:$0xff]
        %v809 = vld [vmem:[#allocation3 + $0xd0] sm:$0xff]
        %v810 = vld [vmem:[#allocation3 + $0xd8] sm:$0xff]
        %v811 = vld [vmem:[#allocation3 + $0xe0] sm:$0xff]
        %v812 = vld [vmem:[#allocation3 + $0xe8] sm:$0xff]
        %v813 = vld [vmem:[#allocation3 + $0xf0] sm:$0xff]
        %v814 = vld [vmem:[#allocation3 + $0xf8] sm:$0xff]
        %815 = vmatprep.subr.bf16.mxu0 %v784
        %816 = vmatpush1.bf16.msra.mxu0 %v783
        %817 = vmatprep.subr.bf16.mxu0 %v788
        %818 = vmatpush1.bf16.msra.mxu0 %v787
        %819 = vmatprep.subr.bf16.mxu0 %v792
        %820 = vmatpush1.bf16.msra.mxu0 %v791
        %821 = vmatprep.subr.bf16.mxu0 %v796
        %822 = vmatpush1.bf16.msra.mxu0 %v795
        %823 = vmatprep.subr.bf16.mxu0 %v800
        %824 = vmatpush1.bf16.msra.mxu0 %v799
        %825 = vmatprep.subr.bf16.mxu0 %v804
        %826 = vmatpush1.bf16.msra.mxu0 %v803
        %827 = vmatprep.subr.bf16.mxu0 %v808
        %828 = vmatpush1.bf16.msra.mxu0 %v807
        %829 = vmatprep.subr.bf16.mxu0 %v812
        %830 = vmatpush1.bf16.msra.mxu0 %v811
        %831 = vmatprep.subr.bf16.mxu0 0
        %832 = vmatpush1.bf16.msra.mxu0 0
        %833 = vmatprep.subr.bf16.mxu0 0
        %834 = vmatpush1.bf16.msra.mxu0 0
        %835 = vmatprep.subr.bf16.mxu0 0
        %836 = vmatpush1.bf16.msra.mxu0 0
        %837 = vmatprep.subr.bf16.mxu0 0
        %838 = vmatpush1.bf16.msra.mxu0 0
        %839 = vmatprep.subr.bf16.mxu0 0
        %840 = vmatpush1.bf16.msra.mxu0 0
        %841 = vmatprep.subr.bf16.mxu0 0
        %842 = vmatpush1.bf16.msra.mxu0 0
        %843 = vmatprep.subr.bf16.mxu0 0
        %844 = vmatpush1.bf16.msra.mxu0 0
        %845 = vmatprep.subr.bf16.mxu0 0
        %846 = vmatpush1.bf16.msra.mxu0 0
        %847 = vmatprep.mubr.bf16.mxu0 0
        %848 = vmatmul.mubr.bf16.gmra.mrb[0].mxu0 0
        %v849 = vpop.f32.mrb[0].mxu0
        %v850 = vadd.f32 0.0, %v849
        %v851 = vpop.f32.mrb[0].mxu0
        %v852 = vadd.f32 0.0, %v851
        %v853 = vpop.f32.mrb[0].mxu0
        %v854 = vpop.f32.mrb[0].mxu0
        %855 = vdwg.mxu0
        %856 = vmatprep.subr.bf16.mxu0 %v786
        %857 = vmatpush1.bf16.msra.mxu0 %v785
        %858 = vmatprep.subr.bf16.mxu0 %v790
        %859 = vmatpush1.bf16.msra.mxu0 %v789
        %860 = vmatprep.subr.bf16.mxu0 %v794
        %861 = vmatpush1.bf16.msra.mxu0 %v793
        %862 = vmatprep.subr.bf16.mxu0 %v798
        %863 = vmatpush1.bf16.msra.mxu0 %v797
        %864 = vmatprep.subr.bf16.mxu0 %v802
        %865 = vmatpush1.bf16.msra.mxu0 %v801
        %866 = vmatprep.subr.bf16.mxu0 %v806
        %867 = vmatpush1.bf16.msra.mxu0 %v805
        %868 = vmatprep.subr.bf16.mxu0 %v810
        %869 = vmatpush1.bf16.msra.mxu0 %v809
        %870 = vmatprep.subr.bf16.mxu0 %v814
        %871 = vmatpush1.bf16.msra.mxu0 %v813
        %872 = vmatprep.subr.bf16.mxu0 0
        %873 = vmatpush1.bf16.msra.mxu0 0
        %874 = vmatprep.subr.bf16.mxu0 0
        %875 = vmatpush1.bf16.msra.mxu0 0
        %876 = vmatprep.subr.bf16.mxu0 0
        %877 = vmatpush1.bf16.msra.mxu0 0
        %878 = vmatprep.subr.bf16.mxu0 0
        %879 = vmatpush1.bf16.msra.mxu0 0
        %880 = vmatprep.subr.bf16.mxu0 0
        %881 = vmatpush1.bf16.msra.mxu0 0
        %882 = vmatprep.subr.bf16.mxu0 0
        %883 = vmatpush1.bf16.msra.mxu0 0
        %884 = vmatprep.subr.bf16.mxu0 0
        %885 = vmatpush1.bf16.msra.mxu0 0
        %886 = vmatprep.subr.bf16.mxu0 0
        %887 = vmatpush1.bf16.msra.mxu0 0
        %888 = vmatprep.mubr.bf16.mxu0 0
        %889 = vmatmul.mubr.bf16.gmra.mrb[0].mxu0 0
        %v890 = vpop.f32.mrb[0].mxu0
        %v891 = vadd.f32 0.0, %v890
        %v892 = vpop.f32.mrb[0].mxu0
        %v893 = vadd.f32 0.0, %v892
        %v894 = vpop.f32.mrb[0].mxu0
        %v895 = vpop.f32.mrb[0].mxu0
        %896 = vdwg.mxu0
        %v897 = vadd.f32 %v779, %v850
        %v898 = vadd.f32 %v780, %v852
        %v899 = vadd.f32 %v781, %v891
        %v900 = vadd.f32 %v782, %v893
        %v901 = vxor.u32 %v897, 2147483648
        %v902 = vmul.f32 %v901, 1.442695
        %v903 = vpow.pop %v902
        %v904 = vadd.f32 %v903, 1.0
        %v905 = vrcp.pop %v904
        %v906 = vmul.f32 1.0, %v905
        %v907 = vxor.u32 %v898, 2147483648
        %v908 = vmul.f32 %v907, 1.442695
        %v909 = vpow.pop %v908
        %v910 = vadd.f32 %v909, 1.0
        %v911 = vrcp.pop %v910
        %v912 = vmul.f32 1.0, %v911
        %v913 = vtanh.pop %v899
        %v914 = vxor.u32 %v900, 2147483648
        %v915 = vmul.f32 %v914, 1.442695
        %v916 = vpow.pop %v915
        %v917 = vadd.f32 %v916, 1.0
        %v918 = vrcp.pop %v917
        %v919 = vmul.f32 1.0, %v918
        %v920 = vmul.f32 %v912, 0.0
        %v921 = vmul.f32 %v906, %v913
        %v922 = vadd.f32 %v920, %v921
        %v923 = vtanh.pop %v922
        %v924 = vmul.f32 %v919, %v923
        %s925 = smul.u32 %s775, 8
        %s926 = scalar_lea.vmem %s214, %s925 [#allocation4]
        %927 = vst [vmem:[%s926] sm:$0xff] %v924
        %s928 = scalar_select %p774, 1, 6
        %s929 = smul.u32 %s928, 4
        %s930 = smul.addr %s929, 8
        %s931 = scalar_lea.vmem [#allocation2], %s930
        %v932 = vld [vmem:[%s931] sm:$0xff]
        %v933 = vld [vmem:[%s931 + $0x8] sm:$0xff]
        %v934 = vld [vmem:[%s931 + $0x10] sm:$0xff]
        %v935 = vld [vmem:[%s931 + $0x18] sm:$0xff]
        %v936 = vpack.c.bf16 %v924, %v924
        %v937 = vld [vmem:[#allocation3] sm:$0xff]
        %v938 = vld [vmem:[#allocation3 + $0x8] sm:$0xff]
        %v939 = vld [vmem:[#allocation3 + $0x10] sm:$0xff]
        %v940 = vld [vmem:[#allocation3 + $0x18] sm:$0xff]
        %v941 = vld [vmem:[#allocation3 + $0x20] sm:$0xff]
        %v942 = vld [vmem:[#allocation3 + $0x28] sm:$0xff]
        %v943 = vld [vmem:[#allocation3 + $0x30] sm:$0xff]
        %v944 = vld [vmem:[#allocation3 + $0x38] sm:$0xff]
        %v945 = vld [vmem:[#allocation3 + $0x40] sm:$0xff]
        %v946 = vld [vmem:[#allocation3 + $0x48] sm:$0xff]
        %v947 = vld [vmem:[#allocation3 + $0x50] sm:$0xff]
        %v948 = vld [vmem:[#allocation3 + $0x58] sm:$0xff]
        %v949 = vld [vmem:[#allocation3 + $0x60] sm:$0xff]
        %v950 = vld [vmem:[#allocation3 + $0x68] sm:$0xff]
        %v951 = vld [vmem:[#allocation3 + $0x70] sm:$0xff]
        %v952 = vld [vmem:[#allocation3 + $0x78] sm:$0xff]
        %v953 = vld [vmem:[#allocation3 + $0x80] sm:$0xff]
        %v954 = vld [vmem:[#allocation3 + $0x88] sm:$0xff]
        %v955 = vld [vmem:[#allocation3 + $0x90] sm:$0xff]
        %v956 = vld [vmem:[#allocation3 + $0x98] sm:$0xff]
        %v957 = vld [vmem:[#allocation3 + $0xa0] sm:$0xff]
        %v958 = vld [vmem:[#allocation3 + $0xa8] sm:$0xff]
        %v959 = vld [vmem:[#allocation3 + $0xb0] sm:$0xff]
        %v960 = vld [vmem:[#allocation3 + $0xb8] sm:$0xff]
        %v961 = vld [vmem:[#allocation3 + $0xc0] sm:$0xff]
        %v962 = vld [vmem:[#allocation3 + $0xc8] sm:$0xff]
        %v963 = vld [vmem:[#allocation3 + $0xd0] sm:$0xff]
        %v964 = vld [vmem:[#allocation3 + $0xd8] sm:$0xff]
        %v965 = vld [vmem:[#allocation3 + $0xe0] sm:$0xff]
        %v966 = vld [vmem:[#allocation3 + $0xe8] sm:$0xff]
        %v967 = vld [vmem:[#allocation3 + $0xf0] sm:$0xff]
        %v968 = vld [vmem:[#allocation3 + $0xf8] sm:$0xff]
        %969 = vmatprep.subr.bf16.mxu0 %v938
        %970 = vmatpush1.bf16.msra.mxu0 %v937
        %971 = vmatprep.subr.bf16.mxu0 %v942
        %972 = vmatpush1.bf16.msra.mxu0 %v941
        %973 = vmatprep.subr.bf16.mxu0 %v946
        %974 = vmatpush1.bf16.msra.mxu0 %v945
        %975 = vmatprep.subr.bf16.mxu0 %v950
        %976 = vmatpush1.bf16.msra.mxu0 %v949
        %977 = vmatprep.subr.bf16.mxu0 %v954
        %978 = vmatpush1.bf16.msra.mxu0 %v953
        %979 = vmatprep.subr.bf16.mxu0 %v958
        %980 = vmatpush1.bf16.msra.mxu0 %v957
        %981 = vmatprep.subr.bf16.mxu0 %v962
        %982 = vmatpush1.bf16.msra.mxu0 %v961
        %983 = vmatprep.subr.bf16.mxu0 %v966
        %984 = vmatpush1.bf16.msra.mxu0 %v965
        %985 = vmatprep.subr.bf16.mxu0 0
        %986 = vmatpush1.bf16.msra.mxu0 0
        %987 = vmatprep.subr.bf16.mxu0 0
        %988 = vmatpush1.bf16.msra.mxu0 0
        %989 = vmatprep.subr.bf16.mxu0 0
        %990 = vmatpush1.bf16.msra.mxu0 0
        %991 = vmatprep.subr.bf16.mxu0 0
        %992 = vmatpush1.bf16.msra.mxu0 0
        %993 = vmatprep.subr.bf16.mxu0 0
        %994 = vmatpush1.bf16.msra.mxu0 0
        %995 = vmatprep.subr.bf16.mxu0 0
        %996 = vmatpush1.bf16.msra.mxu0 0
        %997 = vmatprep.subr.bf16.mxu0 0
        %998 = vmatpush1.bf16.msra.mxu0 0
        %999 = vmatprep.subr.bf16.mxu0 0
        %1000 = vmatpush1.bf16.msra.mxu0 0
        %1001 = vmatprep.mubr.bf16.mxu0 0
        %1002 = vmatmul.mubr.bf16.gmra.mrb[0].mxu0 %v936
        %v1003 = vpop.f32.mrb[0].mxu0
        %v1004 = vadd.f32 0.0, %v1003
        %v1005 = vpop.f32.mrb[0].mxu0
        %v1006 = vadd.f32 0.0, %v1005
        %v1007 = vpop.f32.mrb[0].mxu0
        %v1008 = vpop.f32.mrb[0].mxu0
        %1009 = vdwg.mxu0
        %1010 = vmatprep.subr.bf16.mxu0 %v940
        %1011 = vmatpush1.bf16.msra.mxu0 %v939
        %1012 = vmatprep.subr.bf16.mxu0 %v944
        %1013 = vmatpush1.bf16.msra.mxu0 %v943
        %1014 = vmatprep.subr.bf16.mxu0 %v948
        %1015 = vmatpush1.bf16.msra.mxu0 %v947
        %1016 = vmatprep.subr.bf16.mxu0 %v952
        %1017 = vmatpush1.bf16.msra.mxu0 %v951
        %1018 = vmatprep.subr.bf16.mxu0 %v956
        %1019 = vmatpush1.bf16.msra.mxu0 %v955
        %1020 = vmatprep.subr.bf16.mxu0 %v960
        %1021 = vmatpush1.bf16.msra.mxu0 %v959
        %1022 = vmatprep.subr.bf16.mxu0 %v964
        %1023 = vmatpush1.bf16.msra.mxu0 %v963
        %1024 = vmatprep.subr.bf16.mxu0 %v968
        %1025 = vmatpush1.bf16.msra.mxu0 %v967
        %1026 = vmatprep.subr.bf16.mxu0 0
        %1027 = vmatpush1.bf16.msra.mxu0 0
        %1028 = vmatprep.subr.bf16.mxu0 0
        %1029 = vmatpush1.bf16.msra.mxu0 0
        %1030 = vmatprep.subr.bf16.mxu0 0
        %1031 = vmatpush1.bf16.msra.mxu0 0
        %1032 = vmatprep.subr.bf16.mxu0 0
        %1033 = vmatpush1.bf16.msra.mxu0 0
        %1034 = vmatprep.subr.bf16.mxu0 0
        %1035 = vmatpush1.bf16.msra.mxu0 0
        %1036 = vmatprep.subr.bf16.mxu0 0
        %1037 = vmatpush1.bf16.msra.mxu0 0
        %1038 = vmatprep.subr.bf16.mxu0 0
        %1039 = vmatpush1.bf16.msra.mxu0 0
        %1040 = vmatprep.subr.bf16.mxu0 0
        %1041 = vmatpush1.bf16.msra.mxu0 0
        %1042 = vmatprep.mubr.bf16.mxu0 0
        %1043 = vmatmul.mubr.bf16.gmra.mrb[0].mxu0 %v936
        %v1044 = vpop.f32.mrb[0].mxu0
        %v1045 = vadd.f32 0.0, %v1044
        %v1046 = vpop.f32.mrb[0].mxu0
        %v1047 = vadd.f32 0.0, %v1046
        %v1048 = vpop.f32.mrb[0].mxu0
        %v1049 = vpop.f32.mrb[0].mxu0
        %1050 = vdwg.mxu0
        %v1051 = vadd.f32 %v932, %v1004
        %v1052 = vadd.f32 %v933, %v1006
        %v1053 = vadd.f32 %v934, %v1045
        %v1054 = vadd.f32 %v935, %v1047
        %v1055 = vxor.u32 %v1051, 2147483648
        %v1056 = vmul.f32 %v1055, 1.442695
        %v1057 = vpow.pop %v1056
        %v1058 = vadd.f32 %v1057, 1.0
        %v1059 = vrcp.pop %v1058
        %v1060 = vmul.f32 1.0, %v1059
        %v1061 = vxor.u32 %v1052, 2147483648
        %v1062 = vmul.f32 %v1061, 1.442695
        %v1063 = vpow.pop %v1062
        %v1064 = vadd.f32 %v1063, 1.0
        %v1065 = vrcp.pop %v1064
        %v1066 = vmul.f32 1.0, %v1065
        %v1067 = vtanh.pop %v1053
        %v1068 = vxor.u32 %v1054, 2147483648
        %v1069 = vmul.f32 %v1068, 1.442695
        %v1070 = vpow.pop %v1069
        %v1071 = vadd.f32 %v1070, 1.0
        %v1072 = vrcp.pop %v1071
        %v1073 = vmul.f32 1.0, %v1072
        %v1074 = vmul.f32 %v1066, %v922
        %v1075 = vmul.f32 %v1060, %v1067
        %v1076 = vadd.f32 %v1074, %v1075
        %v1077 = vtanh.pop %v1076
        %v1078 = vmul.f32 %v1073, %v1077
        %s1079 = smul.u32 %s928, 8
        %s1080 = scalar_lea.vmem %s214, %s1079 [#allocation4]
        %1081 = vst [vmem:[%s1080] sm:$0xff] %v1078
        %s1082 = scalar_select %p774, 2, 5
        %s1083 = smul.u32 %s1082, 4
        %s1084 = smul.addr %s1083, 8
        %s1085 = scalar_lea.vmem [#allocation2], %s1084
        %v1086 = vld [vmem:[%s1085] sm:$0xff]
        %v1087 = vld [vmem:[%s1085 + $0x8] sm:$0xff]
        %v1088 = vld [vmem:[%s1085 + $0x10] sm:$0xff]
        %v1089 = vld [vmem:[%s1085 + $0x18] sm:$0xff]
        %v1090 = vpack.c.bf16 %v1078, %v1078
        %v1091 = vld [vmem:[#allocation3] sm:$0xff]
        %v1092 = vld [vmem:[#allocation3 + $0x8] sm:$0xff]
        %v1093 = vld [vmem:[#allocation3 + $0x10] sm:$0xff]
        %v1094 = vld [vmem:[#allocation3 + $0x18] sm:$0xff]
        %v1095 = vld [vmem:[#allocation3 + $0x20] sm:$0xff]
        %v1096 = vld [vmem:[#allocation3 + $0x28] sm:$0xff]
        %v1097 = vld [vmem:[#allocation3 + $0x30] sm:$0xff]
        %v1098 = vld [vmem:[#allocation3 + $0x38] sm:$0xff]
        %v1099 = vld [vmem:[#allocation3 + $0x40] sm:$0xff]
        %v1100 = vld [vmem:[#allocation3 + $0x48] sm:$0xff]
        %v1101 = vld [vmem:[#allocation3 + $0x50] sm:$0xff]
        %v1102 = vld [vmem:[#allocation3 + $0x58] sm:$0xff]
        %v1103 = vld [vmem:[#allocation3 + $0x60] sm:$0xff]
        %v1104 = vld [vmem:[#allocation3 + $0x68] sm:$0xff]
        %v1105 = vld [vmem:[#allocation3 + $0x70] sm:$0xff]
        %v1106 = vld [vmem:[#allocation3 + $0x78] sm:$0xff]
        %v1107 = vld [vmem:[#allocation3 + $0x80] sm:$0xff]
        %v1108 = vld [vmem:[#allocation3 + $0x88] sm:$0xff]
        %v1109 = vld [vmem:[#allocation3 + $0x90] sm:$0xff]
        %v1110 = vld [vmem:[#allocation3 + $0x98] sm:$0xff]
        %v1111 = vld [vmem:[#allocation3 + $0xa0] sm:$0xff]
        %v1112 = vld [vmem:[#allocation3 + $0xa8] sm:$0xff]
        %v1113 = vld [vmem:[#allocation3 + $0xb0] sm:$0xff]
        %v1114 = vld [vmem:[#allocation3 + $0xb8] sm:$0xff]
        %v1115 = vld [vmem:[#allocation3 + $0xc0] sm:$0xff]
        %v1116 = vld [vmem:[#allocation3 + $0xc8] sm:$0xff]
        %v1117 = vld [vmem:[#allocation3 + $0xd0] sm:$0xff]
        %v1118 = vld [vmem:[#allocation3 + $0xd8] sm:$0xff]
        %v1119 = vld [vmem:[#allocation3 + $0xe0] sm:$0xff]
        %v1120 = vld [vmem:[#allocation3 + $0xe8] sm:$0xff]
        %v1121 = vld [vmem:[#allocation3 + $0xf0] sm:$0xff]
        %v1122 = vld [vmem:[#allocation3 + $0xf8] sm:$0xff]
        %1123 = vmatprep.subr.bf16.mxu0 %v1092
        %1124 = vmatpush1.bf16.msra.mxu0 %v1091
        %1125 = vmatprep.subr.bf16.mxu0 %v1096
        %1126 = vmatpush1.bf16.msra.mxu0 %v1095
        %1127 = vmatprep.subr.bf16.mxu0 %v1100
        %1128 = vmatpush1.bf16.msra.mxu0 %v1099
        %1129 = vmatprep.subr.bf16.mxu0 %v1104
        %1130 = vmatpush1.bf16.msra.mxu0 %v1103
        %1131 = vmatprep.subr.bf16.mxu0 %v1108
        %1132 = vmatpush1.bf16.msra.mxu0 %v1107
        %1133 = vmatprep.subr.bf16.mxu0 %v1112
        %1134 = vmatpush1.bf16.msra.mxu0 %v1111
        %1135 = vmatprep.subr.bf16.mxu0 %v1116
        %1136 = vmatpush1.bf16.msra.mxu0 %v1115
        %1137 = vmatprep.subr.bf16.mxu0 %v1120
        %1138 = vmatpush1.bf16.msra.mxu0 %v1119
        %1139 = vmatprep.subr.bf16.mxu0 0
        %1140 = vmatpush1.bf16.msra.mxu0 0
        %1141 = vmatprep.subr.bf16.mxu0 0
        %1142 = vmatpush1.bf16.msra.mxu0 0
        %1143 = vmatprep.subr.bf16.mxu0 0
        %1144 = vmatpush1.bf16.msra.mxu0 0
        %1145 = vmatprep.subr.bf16.mxu0 0
        %1146 = vmatpush1.bf16.msra.mxu0 0
        %1147 = vmatprep.subr.bf16.mxu0 0
        %1148 = vmatpush1.bf16.msra.mxu0 0
        %1149 = vmatprep.subr.bf16.mxu0 0
        %1150 = vmatpush1.bf16.msra.mxu0 0
        %1151 = vmatprep.subr.bf16.mxu0 0
        %1152 = vmatpush1.bf16.msra.mxu0 0
        %1153 = vmatprep.subr.bf16.mxu0 0
        %1154 = vmatpush1.bf16.msra.mxu0 0
        %1155 = vmatprep.mubr.bf16.mxu0 0
        %1156 = vmatmul.mubr.bf16.gmra.mrb[0].mxu0 %v1090
        %v1157 = vpop.f32.mrb[0].mxu0
        %v1158 = vadd.f32 0.0, %v1157
        %v1159 = vpop.f32.mrb[0].mxu0
        %v1160 = vadd.f32 0.0, %v1159
        %v1161 = vpop.f32.mrb[0].mxu0
        %v1162 = vpop.f32.mrb[0].mxu0
        %1163 = vdwg.mxu0
        %1164 = vmatprep.subr.bf16.mxu0 %v1094
        %1165 = vmatpush1.bf16.msra.mxu0 %v1093
        %1166 = vmatprep.subr.bf16.mxu0 %v1098
        %1167 = vmatpush1.bf16.msra.mxu0 %v1097
        %1168 = vmatprep.subr.bf16.mxu0 %v1102
        %1169 = vmatpush1.bf16.msra.mxu0 %v1101
        %1170 = vmatprep.subr.bf16.mxu0 %v1106
        %1171 = vmatpush1.bf16.msra.mxu0 %v1105
        %1172 = vmatprep.subr.bf16.mxu0 %v1110
        %1173 = vmatpush1.bf16.msra.mxu0 %v1109
        %1174 = vmatprep.subr.bf16.mxu0 %v1114
        %1175 = vmatpush1.bf16.msra.mxu0 %v1113
        %1176 = vmatprep.subr.bf16.mxu0 %v1118
        %1177 = vmatpush1.bf16.msra.mxu0 %v1117
        %1178 = vmatprep.subr.bf16.mxu0 %v1122
        %1179 = vmatpush1.bf16.msra.mxu0 %v1121
        %1180 = vmatprep.subr.bf16.mxu0 0
        %1181 = vmatpush1.bf16.msra.mxu0 0
        %1182 = vmatprep.subr.bf16.mxu0 0
        %1183 = vmatpush1.bf16.msra.mxu0 0
        %1184 = vmatprep.subr.bf16.mxu0 0
        %1185 = vmatpush1.bf16.msra.mxu0 0
        %1186 = vmatprep.subr.bf16.mxu0 0
        %1187 = vmatpush1.bf16.msra.mxu0 0
        %1188 = vmatprep.subr.bf16.mxu0 0
        %1189 = vmatpush1.bf16.msra.mxu0 0
        %1190 = vmatprep.subr.bf16.mxu0 0
        %1191 = vmatpush1.bf16.msra.mxu0 0
        %1192 = vmatprep.subr.bf16.mxu0 0
        %1193 = vmatpush1.bf16.msra.mxu0 0
        %1194 = vmatprep.subr.bf16.mxu0 0
        %1195 = vmatpush1.bf16.msra.mxu0 0
        %1196 = vmatprep.mubr.bf16.mxu0 0
        %1197 = vmatmul.mubr.bf16.gmra.mrb[0].mxu0 %v1090
        %v1198 = vpop.f32.mrb[0].mxu0
        %v1199 = vadd.f32 0.0, %v1198
        %v1200 = vpop.f32.mrb[0].mxu0
        %v1201 = vadd.f32 0.0, %v1200
        %v1202 = vpop.f32.mrb[0].mxu0
        %v1203 = vpop.f32.mrb[0].mxu0
        %1204 = vdwg.mxu0
        %v1205 = vadd.f32 %v1086, %v1158
        %v1206 = vadd.f32 %v1087, %v1160
        %v1207 = vadd.f32 %v1088, %v1199
        %v1208 = vadd.f32 %v1089, %v1201
        %v1209 = vxor.u32 %v1205, 2147483648
        %v1210 = vmul.f32 %v1209, 1.442695
        %v1211 = vpow.pop %v1210
        %v1212 = vadd.f32 %v1211, 1.0
        %v1213 = vrcp.pop %v1212
        %v1214 = vmul.f32 1.0, %v1213
        %v1215 = vxor.u32 %v1206, 2147483648
        %v1216 = vmul.f32 %v1215, 1.442695
        %v1217 = vpow.pop %v1216
        %v1218 = vadd.f32 %v1217, 1.0
        %v1219 = vrcp.pop %v1218
        %v1220 = vmul.f32 1.0, %v1219
        %v1221 = vtanh.pop %v1207
        %v1222 = vxor.u32 %v1208, 2147483648
        %v1223 = vmul.f32 %v1222, 1.442695
        %v1224 = vpow.pop %v1223
        %v1225 = vadd.f32 %v1224, 1.0
        %v1226 = vrcp.pop %v1225
        %v1227 = vmul.f32 1.0, %v1226
        %v1228 = vmul.f32 %v1220, %v1076
        %v1229 = vmul.f32 %v1214, %v1221
        %v1230 = vadd.f32 %v1228, %v1229
        %v1231 = vtanh.pop %v1230
        %v1232 = vmul.f32 %v1227, %v1231
        %s1233 = smul.u32 %s1082, 8
        %s1234 = scalar_lea.vmem %s214, %s1233 [#allocation4]
        %1235 = vst [vmem:[%s1234] sm:$0xff] %v1232
        %s1236 = scalar_select %p774, 3, 4
        %s1237 = smul.u32 %s1236, 4
        %s1238 = smul.addr %s1237, 8
        %s1239 = scalar_lea.vmem [#allocation2], %s1238
        %v1240 = vld [vmem:[%s1239] sm:$0xff]
        %v1241 = vld [vmem:[%s1239 + $0x8] sm:$0xff]
        %v1242 = vld [vmem:[%s1239 + $0x10] sm:$0xff]
        %v1243 = vld [vmem:[%s1239 + $0x18] sm:$0xff]
        %v1244 = vpack.c.bf16 %v1232, %v1232
        %v1245 = vld [vmem:[#allocation3] sm:$0xff]
        %v1246 = vld [vmem:[#allocation3 + $0x8] sm:$0xff]
        %v1247 = vld [vmem:[#allocation3 + $0x10] sm:$0xff]
        %v1248 = vld [vmem:[#allocation3 + $0x18] sm:$0xff]
        %v1249 = vld [vmem:[#allocation3 + $0x20] sm:$0xff]
        %v1250 = vld [vmem:[#allocation3 + $0x28] sm:$0xff]
        %v1251 = vld [vmem:[#allocation3 + $0x30] sm:$0xff]
        %v1252 = vld [vmem:[#allocation3 + $0x38] sm:$0xff]
        %v1253 = vld [vmem:[#allocation3 + $0x40] sm:$0xff]
        %v1254 = vld [vmem:[#allocation3 + $0x48] sm:$0xff]
        %v1255 = vld [vmem:[#allocation3 + $0x50] sm:$0xff]
        %v1256 = vld [vmem:[#allocation3 + $0x58] sm:$0xff]
        %v1257 = vld [vmem:[#allocation3 + $0x60] sm:$0xff]
        %v1258 = vld [vmem:[#allocation3 + $0x68] sm:$0xff]
        %v1259 = vld [vmem:[#allocation3 + $0x70] sm:$0xff]
        %v1260 = vld [vmem:[#allocation3 + $0x78] sm:$0xff]
        %v1261 = vld [vmem:[#allocation3 + $0x80] sm:$0xff]
        %v1262 = vld [vmem:[#allocation3 + $0x88] sm:$0xff]
        %v1263 = vld [vmem:[#allocation3 + $0x90] sm:$0xff]
        %v1264 = vld [vmem:[#allocation3 + $0x98] sm:$0xff]
        %v1265 = vld [vmem:[#allocation3 + $0xa0] sm:$0xff]
        %v1266 = vld [vmem:[#allocation3 + $0xa8] sm:$0xff]
        %v1267 = vld [vmem:[#allocation3 + $0xb0] sm:$0xff]
        %v1268 = vld [vmem:[#allocation3 + $0xb8] sm:$0xff]
        %v1269 = vld [vmem:[#allocation3 + $0xc0] sm:$0xff]
        %v1270 = vld [vmem:[#allocation3 + $0xc8] sm:$0xff]
        %v1271 = vld [vmem:[#allocation3 + $0xd0] sm:$0xff]
        %v1272 = vld [vmem:[#allocation3 + $0xd8] sm:$0xff]
        %v1273 = vld [vmem:[#allocation3 + $0xe0] sm:$0xff]
        %v1274 = vld [vmem:[#allocation3 + $0xe8] sm:$0xff]
        %v1275 = vld [vmem:[#allocation3 + $0xf0] sm:$0xff]
        %v1276 = vld [vmem:[#allocation3 + $0xf8] sm:$0xff]
        %1277 = vmatprep.subr.bf16.mxu0 %v1246
        %1278 = vmatpush1.bf16.msra.mxu0 %v1245
        %1279 = vmatprep.subr.bf16.mxu0 %v1250
        %1280 = vmatpush1.bf16.msra.mxu0 %v1249
        %1281 = vmatprep.subr.bf16.mxu0 %v1254
        %1282 = vmatpush1.bf16.msra.mxu0 %v1253
        %1283 = vmatprep.subr.bf16.mxu0 %v1258
        %1284 = vmatpush1.bf16.msra.mxu0 %v1257
        %1285 = vmatprep.subr.bf16.mxu0 %v1262
        %1286 = vmatpush1.bf16.msra.mxu0 %v1261
        %1287 = vmatprep.subr.bf16.mxu0 %v1266
        %1288 = vmatpush1.bf16.msra.mxu0 %v1265
        %1289 = vmatprep.subr.bf16.mxu0 %v1270
        %1290 = vmatpush1.bf16.msra.mxu0 %v1269
        %1291 = vmatprep.subr.bf16.mxu0 %v1274
        %1292 = vmatpush1.bf16.msra.mxu0 %v1273
        %1293 = vmatprep.subr.bf16.mxu0 0
        %1294 = vmatpush1.bf16.msra.mxu0 0
        %1295 = vmatprep.subr.bf16.mxu0 0
        %1296 = vmatpush1.bf16.msra.mxu0 0
        %1297 = vmatprep.subr.bf16.mxu0 0
        %1298 = vmatpush1.bf16.msra.mxu0 0
        %1299 = vmatprep.subr.bf16.mxu0 0
        %1300 = vmatpush1.bf16.msra.mxu0 0
        %1301 = vmatprep.subr.bf16.mxu0 0
        %1302 = vmatpush1.bf16.msra.mxu0 0
        %1303 = vmatprep.subr.bf16.mxu0 0
        %1304 = vmatpush1.bf16.msra.mxu0 0
        %1305 = vmatprep.subr.bf16.mxu0 0
        %1306 = vmatpush1.bf16.msra.mxu0 0
        %1307 = vmatprep.subr.bf16.mxu0 0
        %1308 = vmatpush1.bf16.msra.mxu0 0
        %1309 = vmatprep.mubr.bf16.mxu0 0
        %1310 = vmatmul.mubr.bf16.gmra.mrb[0].mxu0 %v1244
        %v1311 = vpop.f32.mrb[0].mxu0
        %v1312 = vadd.f32 0.0, %v1311
        %v1313 = vpop.f32.mrb[0].mxu0
        %v1314 = vadd.f32 0.0, %v1313
        %v1315 = vpop.f32.mrb[0].mxu0
        %v1316 = vpop.f32.mrb[0].mxu0
        %1317 = vdwg.mxu0
        %1318 = vmatprep.subr.bf16.mxu0 %v1248
        %1319 = vmatpush1.bf16.msra.mxu0 %v1247
        %1320 = vmatprep.subr.bf16.mxu0 %v1252
        %1321 = vmatpush1.bf16.msra.mxu0 %v1251
        %1322 = vmatprep.subr.bf16.mxu0 %v1256
        %1323 = vmatpush1.bf16.msra.mxu0 %v1255
        %1324 = vmatprep.subr.bf16.mxu0 %v1260
        %1325 = vmatpush1.bf16.msra.mxu0 %v1259
        %1326 = vmatprep.subr.bf16.mxu0 %v1264
        %1327 = vmatpush1.bf16.msra.mxu0 %v1263
        %1328 = vmatprep.subr.bf16.mxu0 %v1268
        %1329 = vmatpush1.bf16.msra.mxu0 %v1267
        %1330 = vmatprep.subr.bf16.mxu0 %v1272
        %1331 = vmatpush1.bf16.msra.mxu0 %v1271
        %1332 = vmatprep.subr.bf16.mxu0 %v1276
        %1333 = vmatpush1.bf16.msra.mxu0 %v1275
        %1334 = vmatprep.subr.bf16.mxu0 0
        %1335 = vmatpush1.bf16.msra.mxu0 0
        %1336 = vmatprep.subr.bf16.mxu0 0
        %1337 = vmatpush1.bf16.msra.mxu0 0
        %1338 = vmatprep.subr.bf16.mxu0 0
        %1339 = vmatpush1.bf16.msra.mxu0 0
        %1340 = vmatprep.subr.bf16.mxu0 0
        %1341 = vmatpush1.bf16.msra.mxu0 0
        %1342 = vmatprep.subr.bf16.mxu0 0
        %1343 = vmatpush1.bf16.msra.mxu0 0
        %1344 = vmatprep.subr.bf16.mxu0 0
        %1345 = vmatpush1.bf16.msra.mxu0 0
        %1346 = vmatprep.subr.bf16.mxu0 0
        %1347 = vmatpush1.bf16.msra.mxu0 0
        %1348 = vmatprep.subr.bf16.mxu0 0
        %1349 = vmatpush1.bf16.msra.mxu0 0
        %1350 = vmatprep.mubr.bf16.mxu0 0
        %1351 = vmatmul.mubr.bf16.gmra.mrb[0].mxu0 %v1244
        %v1352 = vpop.f32.mrb[0].mxu0
        %v1353 = vadd.f32 0.0, %v1352
        %v1354 = vpop.f32.mrb[0].mxu0
        %v1355 = vadd.f32 0.0, %v1354
        %v1356 = vpop.f32.mrb[0].mxu0
        %v1357 = vpop.f32.mrb[0].mxu0
        %1358 = vdwg.mxu0
        %v1359 = vadd.f32 %v1240, %v1312
        %v1360 = vadd.f32 %v1241, %v1314
        %v1361 = vadd.f32 %v1242, %v1353
        %v1362 = vadd.f32 %v1243, %v1355
        %v1363 = vxor.u32 %v1359, 2147483648
        %v1364 = vmul.f32 %v1363, 1.442695
        %v1365 = vpow.pop %v1364
        %v1366 = vadd.f32 %v1365, 1.0
        %v1367 = vrcp.pop %v1366
        %v1368 = vmul.f32 1.0, %v1367
        %v1369 = vxor.u32 %v1360, 2147483648
        %v1370 = vmul.f32 %v1369, 1.442695
        %v1371 = vpow.pop %v1370
        %v1372 = vadd.f32 %v1371, 1.0
        %v1373 = vrcp.pop %v1372
        %v1374 = vmul.f32 1.0, %v1373
        %v1375 = vtanh.pop %v1361
        %v1376 = vxor.u32 %v1362, 2147483648
        %v1377 = vmul.f32 %v1376, 1.442695
        %v1378 = vpow.pop %v1377
        %v1379 = vadd.f32 %v1378, 1.0
        %v1380 = vrcp.pop %v1379
        %v1381 = vmul.f32 1.0, %v1380
        %v1382 = vmul.f32 %v1374, %v1230
        %v1383 = vmul.f32 %v1368, %v1375
        %v1384 = vadd.f32 %v1382, %v1383
        %v1385 = vtanh.pop %v1384
        %v1386 = vmul.f32 %v1381, %v1385
        %s1387 = smul.u32 %s1236, 8
        %s1388 = scalar_lea.vmem %s214, %s1387 [#allocation4]
        %1389 = vst [vmem:[%s1388] sm:$0xff] %v1386
        %s1390 = scalar_select %p774, 4, 3
        %s1391 = smul.u32 %s1390, 4
        %s1392 = smul.addr %s1391, 8
        %s1393 = scalar_lea.vmem [#allocation2], %s1392
        %v1394 = vld [vmem:[%s1393] sm:$0xff]
        %v1395 = vld [vmem:[%s1393 + $0x8] sm:$0xff]
        %v1396 = vld [vmem:[%s1393 + $0x10] sm:$0xff]
        %v1397 = vld [vmem:[%s1393 + $0x18] sm:$0xff]
        %v1398 = vpack.c.bf16 %v1386, %v1386
        %v1399 = vld [vmem:[#allocation3] sm:$0xff]
        %v1400 = vld [vmem:[#allocation3 + $0x8] sm:$0xff]
        %v1401 = vld [vmem:[#allocation3 + $0x10] sm:$0xff]
        %v1402 = vld [vmem:[#allocation3 + $0x18] sm:$0xff]
        %v1403 = vld [vmem:[#allocation3 + $0x20] sm:$0xff]
        %v1404 = vld [vmem:[#allocation3 + $0x28] sm:$0xff]
        %v1405 = vld [vmem:[#allocation3 + $0x30] sm:$0xff]
        %v1406 = vld [vmem:[#allocation3 + $0x38] sm:$0xff]
        %v1407 = vld [vmem:[#allocation3 + $0x40] sm:$0xff]
        %v1408 = vld [vmem:[#allocation3 + $0x48] sm:$0xff]
        %v1409 = vld [vmem:[#allocation3 + $0x50] sm:$0xff]
        %v1410 = vld [vmem:[#allocation3 + $0x58] sm:$0xff]
        %v1411 = vld [vmem:[#allocation3 + $0x60] sm:$0xff]
        %v1412 = vld [vmem:[#allocation3 + $0x68] sm:$0xff]
        %v1413 = vld [vmem:[#allocation3 + $0x70] sm:$0xff]
        %v1414 = vld [vmem:[#allocation3 + $0x78] sm:$0xff]
        %v1415 = vld [vmem:[#allocation3 + $0x80] sm:$0xff]
        %v1416 = vld [vmem:[#allocation3 + $0x88] sm:$0xff]
        %v1417 = vld [vmem:[#allocation3 + $0x90] sm:$0xff]
        %v1418 = vld [vmem:[#allocation3 + $0x98] sm:$0xff]
        %v1419 = vld [vmem:[#allocation3 + $0xa0] sm:$0xff]
        %v1420 = vld [vmem:[#allocation3 + $0xa8] sm:$0xff]
        %v1421 = vld [vmem:[#allocation3 + $0xb0] sm:$0xff]
        %v1422 = vld [vmem:[#allocation3 + $0xb8] sm:$0xff]
        %v1423 = vld [vmem:[#allocation3 + $0xc0] sm:$0xff]
        %v1424 = vld [vmem:[#allocation3 + $0xc8] sm:$0xff]
        %v1425 = vld [vmem:[#allocation3 + $0xd0] sm:$0xff]
        %v1426 = vld [vmem:[#allocation3 + $0xd8] sm:$0xff]
        %v1427 = vld [vmem:[#allocation3 + $0xe0] sm:$0xff]
        %v1428 = vld [vmem:[#allocation3 + $0xe8] sm:$0xff]
        %v1429 = vld [vmem:[#allocation3 + $0xf0] sm:$0xff]
        %v1430 = vld [vmem:[#allocation3 + $0xf8] sm:$0xff]
        %1431 = vmatprep.subr.bf16.mxu0 %v1400
        %1432 = vmatpush1.bf16.msra.mxu0 %v1399
        %1433 = vmatprep.subr.bf16.mxu0 %v1404
        %1434 = vmatpush1.bf16.msra.mxu0 %v1403
        %1435 = vmatprep.subr.bf16.mxu0 %v1408
        %1436 = vmatpush1.bf16.msra.mxu0 %v1407
        %1437 = vmatprep.subr.bf16.mxu0 %v1412
        %1438 = vmatpush1.bf16.msra.mxu0 %v1411
        %1439 = vmatprep.subr.bf16.mxu0 %v1416
        %1440 = vmatpush1.bf16.msra.mxu0 %v1415
        %1441 = vmatprep.subr.bf16.mxu0 %v1420
        %1442 = vmatpush1.bf16.msra.mxu0 %v1419
        %1443 = vmatprep.subr.bf16.mxu0 %v1424
        %1444 = vmatpush1.bf16.msra.mxu0 %v1423
        %1445 = vmatprep.subr.bf16.mxu0 %v1428
        %1446 = vmatpush1.bf16.msra.mxu0 %v1427
        %1447 = vmatprep.subr.bf16.mxu0 0
        %1448 = vmatpush1.bf16.msra.mxu0 0
        %1449 = vmatprep.subr.bf16.mxu0 0
        %1450 = vmatpush1.bf16.msra.mxu0 0
        %1451 = vmatprep.subr.bf16.mxu0 0
        %1452 = vmatpush1.bf16.msra.mxu0 0
        %1453 = vmatprep.subr.bf16.mxu0 0
        %1454 = vmatpush1.bf16.msra.mxu0 0
        %1455 = vmatprep.subr.bf16.mxu0 0
        %1456 = vmatpush1.bf16.msra.mxu0 0
        %1457 = vmatprep.subr.bf16.mxu0 0
        %1458 = vmatpush1.bf16.msra.mxu0 0
        %1459 = vmatprep.subr.bf16.mxu0 0
        %1460 = vmatpush1.bf16.msra.mxu0 0
        %1461 = vmatprep.subr.bf16.mxu0 0
        %1462 = vmatpush1.bf16.msra.mxu0 0
        %1463 = vmatprep.mubr.bf16.mxu0 0
        %1464 = vmatmul.mubr.bf16.gmra.mrb[0].mxu0 %v1398
        %v1465 = vpop.f32.mrb[0].mxu0
        %v1466 = vadd.f32 0.0, %v1465
        %v1467 = vpop.f32.mrb[0].mxu0
        %v1468 = vadd.f32 0.0, %v1467
        %v1469 = vpop.f32.mrb[0].mxu0
        %v1470 = vpop.f32.mrb[0].mxu0
        %1471 = vdwg.mxu0
        %1472 = vmatprep.subr.bf16.mxu0 %v1402
        %1473 = vmatpush1.bf16.msra.mxu0 %v1401
        %1474 = vmatprep.subr.bf16.mxu0 %v1406
        %1475 = vmatpush1.bf16.msra.mxu0 %v1405
        %1476 = vmatprep.subr.bf16.mxu0 %v1410
        %1477 = vmatpush1.bf16.msra.mxu0 %v1409
        %1478 = vmatprep.subr.bf16.mxu0 %v1414
        %1479 = vmatpush1.bf16.msra.mxu0 %v1413
        %1480 = vmatprep.subr.bf16.mxu0 %v1418
        %1481 = vmatpush1.bf16.msra.mxu0 %v1417
        %1482 = vmatprep.subr.bf16.mxu0 %v1422
        %1483 = vmatpush1.bf16.msra.mxu0 %v1421
        %1484 = vmatprep.subr.bf16.mxu0 %v1426
        %1485 = vmatpush1.bf16.msra.mxu0 %v1425
        %1486 = vmatprep.subr.bf16.mxu0 %v1430
        %1487 = vmatpush1.bf16.msra.mxu0 %v1429
        %1488 = vmatprep.subr.bf16.mxu0 0
        %1489 = vmatpush1.bf16.msra.mxu0 0
        %1490 = vmatprep.subr.bf16.mxu0 0
        %1491 = vmatpush1.bf16.msra.mxu0 0
        %1492 = vmatprep.subr.bf16.mxu0 0
        %1493 = vmatpush1.bf16.msra.mxu0 0
        %1494 = vmatprep.subr.bf16.mxu0 0
        %1495 = vmatpush1.bf16.msra.mxu0 0
        %1496 = vmatprep.subr.bf16.mxu0 0
        %1497 = vmatpush1.bf16.msra.mxu0 0
        %1498 = vmatprep.subr.bf16.mxu0 0
        %1499 = vmatpush1.bf16.msra.mxu0 0
        %1500 = vmatprep.subr.bf16.mxu0 0
        %1501 = vmatpush1.bf16.msra.mxu0 0
        %1502 = vmatprep.subr.bf16.mxu0 0
        %1503 = vmatpush1.bf16.msra.mxu0 0
        %1504 = vmatprep.mubr.bf16.mxu0 0
        %1505 = vmatmul.mubr.bf16.gmra.mrb[0].mxu0 %v1398
        %v1506 = vpop.f32.mrb[0].mxu0
        %v1507 = vadd.f32 0.0, %v1506
        %v1508 = vpop.f32.mrb[0].mxu0
        %v1509 = vadd.f32 0.0, %v1508
        %v1510 = vpop.f32.mrb[0].mxu0
        %v1511 = vpop.f32.mrb[0].mxu0
        %1512 = vdwg.mxu0
        %v1513 = vadd.f32 %v1394, %v1466
        %v1514 = vadd.f32 %v1395, %v1468
        %v1515 = vadd.f32 %v1396, %v1507
        %v1516 = vadd.f32 %v1397, %v1509
        %v1517 = vxor.u32 %v1513, 2147483648
        %v1518 = vmul.f32 %v1517, 1.442695
        %v1519 = vpow.pop %v1518
        %v1520 = vadd.f32 %v1519, 1.0
        %v1521 = vrcp.pop %v1520
        %v1522 = vmul.f32 1.0, %v1521
        %v1523 = vxor.u32 %v1514, 2147483648
        %v1524 = vmul.f32 %v1523, 1.442695
        %v1525 = vpow.pop %v1524
        %v1526 = vadd.f32 %v1525, 1.0
        %v1527 = vrcp.pop %v1526
        %v1528 = vmul.f32 1.0, %v1527
        %v1529 = vtanh.pop %v1515
        %v1530 = vxor.u32 %v1516, 2147483648
        %v1531 = vmul.f32 %v1530, 1.442695
        %v1532 = vpow.pop %v1531
        %v1533 = vadd.f32 %v1532, 1.0
        %v1534 = vrcp.pop %v1533
        %v1535 = vmul.f32 1.0, %v1534
        %v1536 = vmul.f32 %v1528, %v1384
        %v1537 = vmul.f32 %v1522, %v1529
        %v1538 = vadd.f32 %v1536, %v1537
        %v1539 = vtanh.pop %v1538
        %v1540 = vmul.f32 %v1535, %v1539
        %s1541 = smul.u32 %s1390, 8
        %s1542 = scalar_lea.vmem %s214, %s1541 [#allocation4]
        %1543 = vst [vmem:[%s1542] sm:$0xff] %v1540
        %s1544 = scalar_select %p774, 5, 2
        %s1545 = smul.u32 %s1544, 4
        %s1546 = smul.addr %s1545, 8
        %s1547 = scalar_lea.vmem [#allocation2], %s1546
        %v1548 = vld [vmem:[%s1547] sm:$0xff]
        %v1549 = vld [vmem:[%s1547 + $0x8] sm:$0xff]
        %v1550 = vld [vmem:[%s1547 + $0x10] sm:$0xff]
        %v1551 = vld [vmem:[%s1547 + $0x18] sm:$0xff]
        %v1552 = vpack.c.bf16 %v1540, %v1540
        %v1553 = vld [vmem:[#allocation3] sm:$0xff]
        %v1554 = vld [vmem:[#allocation3 + $0x8] sm:$0xff]
        %v1555 = vld [vmem:[#allocation3 + $0x10] sm:$0xff]
        %v1556 = vld [vmem:[#allocation3 + $0x18] sm:$0xff]
        %v1557 = vld [vmem:[#allocation3 + $0x20] sm:$0xff]
        %v1558 = vld [vmem:[#allocation3 + $0x28] sm:$0xff]
        %v1559 = vld [vmem:[#allocation3 + $0x30] sm:$0xff]
        %v1560 = vld [vmem:[#allocation3 + $0x38] sm:$0xff]
        %v1561 = vld [vmem:[#allocation3 + $0x40] sm:$0xff]
        %v1562 = vld [vmem:[#allocation3 + $0x48] sm:$0xff]
        %v1563 = vld [vmem:[#allocation3 + $0x50] sm:$0xff]
        %v1564 = vld [vmem:[#allocation3 + $0x58] sm:$0xff]
        %v1565 = vld [vmem:[#allocation3 + $0x60] sm:$0xff]
        %v1566 = vld [vmem:[#allocation3 + $0x68] sm:$0xff]
        %v1567 = vld [vmem:[#allocation3 + $0x70] sm:$0xff]
        %v1568 = vld [vmem:[#allocation3 + $0x78] sm:$0xff]
        %v1569 = vld [vmem:[#allocation3 + $0x80] sm:$0xff]
        %v1570 = vld [vmem:[#allocation3 + $0x88] sm:$0xff]
        %v1571 = vld [vmem:[#allocation3 + $0x90] sm:$0xff]
        %v1572 = vld [vmem:[#allocation3 + $0x98] sm:$0xff]
        %v1573 = vld [vmem:[#allocation3 + $0xa0] sm:$0xff]
        %v1574 = vld [vmem:[#allocation3 + $0xa8] sm:$0xff]
        %v1575 = vld [vmem:[#allocation3 + $0xb0] sm:$0xff]
        %v1576 = vld [vmem:[#allocation3 + $0xb8] sm:$0xff]
        %v1577 = vld [vmem:[#allocation3 + $0xc0] sm:$0xff]
        %v1578 = vld [vmem:[#allocation3 + $0xc8] sm:$0xff]
        %v1579 = vld [vmem:[#allocation3 + $0xd0] sm:$0xff]
        %v1580 = vld [vmem:[#allocation3 + $0xd8] sm:$0xff]
        %v1581 = vld [vmem:[#allocation3 + $0xe0] sm:$0xff]
        %v1582 = vld [vmem:[#allocation3 + $0xe8] sm:$0xff]
        %v1583 = vld [vmem:[#allocation3 + $0xf0] sm:$0xff]
        %v1584 = vld [vmem:[#allocation3 + $0xf8] sm:$0xff]
        %1585 = vmatprep.subr.bf16.mxu0 %v1554
        %1586 = vmatpush1.bf16.msra.mxu0 %v1553
        %1587 = vmatprep.subr.bf16.mxu0 %v1558
        %1588 = vmatpush1.bf16.msra.mxu0 %v1557
        %1589 = vmatprep.subr.bf16.mxu0 %v1562
        %1590 = vmatpush1.bf16.msra.mxu0 %v1561
        %1591 = vmatprep.subr.bf16.mxu0 %v1566
        %1592 = vmatpush1.bf16.msra.mxu0 %v1565
        %1593 = vmatprep.subr.bf16.mxu0 %v1570
        %1594 = vmatpush1.bf16.msra.mxu0 %v1569
        %1595 = vmatprep.subr.bf16.mxu0 %v1574
        %1596 = vmatpush1.bf16.msra.mxu0 %v1573
        %1597 = vmatprep.subr.bf16.mxu0 %v1578
        %1598 = vmatpush1.bf16.msra.mxu0 %v1577
        %1599 = vmatprep.subr.bf16.mxu0 %v1582
        %1600 = vmatpush1.bf16.msra.mxu0 %v1581
        %1601 = vmatprep.subr.bf16.mxu0 0
        %1602 = vmatpush1.bf16.msra.mxu0 0
        %1603 = vmatprep.subr.bf16.mxu0 0
        %1604 = vmatpush1.bf16.msra.mxu0 0
        %1605 = vmatprep.subr.bf16.mxu0 0
        %1606 = vmatpush1.bf16.msra.mxu0 0
        %1607 = vmatprep.subr.bf16.mxu0 0
        %1608 = vmatpush1.bf16.msra.mxu0 0
        %1609 = vmatprep.subr.bf16.mxu0 0
        %1610 = vmatpush1.bf16.msra.mxu0 0
        %1611 = vmatprep.subr.bf16.mxu0 0
        %1612 = vmatpush1.bf16.msra.mxu0 0
        %1613 = vmatprep.subr.bf16.mxu0 0
        %1614 = vmatpush1.bf16.msra.mxu0 0
        %1615 = vmatprep.subr.bf16.mxu0 0
        %1616 = vmatpush1.bf16.msra.mxu0 0
        %1617 = vmatprep.mubr.bf16.mxu0 0
        %1618 = vmatmul.mubr.bf16.gmra.mrb[0].mxu0 %v1552
        %v1619 = vpop.f32.mrb[0].mxu0
        %v1620 = vadd.f32 0.0, %v1619
        %v1621 = vpop.f32.mrb[0].mxu0
        %v1622 = vadd.f32 0.0, %v1621
        %v1623 = vpop.f32.mrb[0].mxu0
        %v1624 = vpop.f32.mrb[0].mxu0
        %1625 = vdwg.mxu0
        %1626 = vmatprep.subr.bf16.mxu0 %v1556
        %1627 = vmatpush1.bf16.msra.mxu0 %v1555
        %1628 = vmatprep.subr.bf16.mxu0 %v1560
        %1629 = vmatpush1.bf16.msra.mxu0 %v1559
        %1630 = vmatprep.subr.bf16.mxu0 %v1564
        %1631 = vmatpush1.bf16.msra.mxu0 %v1563
        %1632 = vmatprep.subr.bf16.mxu0 %v1568
        %1633 = vmatpush1.bf16.msra.mxu0 %v1567
        %1634 = vmatprep.subr.bf16.mxu0 %v1572
        %1635 = vmatpush1.bf16.msra.mxu0 %v1571
        %1636 = vmatprep.subr.bf16.mxu0 %v1576
        %1637 = vmatpush1.bf16.msra.mxu0 %v1575
        %1638 = vmatprep.subr.bf16.mxu0 %v1580
        %1639 = vmatpush1.bf16.msra.mxu0 %v1579
        %1640 = vmatprep.subr.bf16.mxu0 %v1584
        %1641 = vmatpush1.bf16.msra.mxu0 %v1583
        %1642 = vmatprep.subr.bf16.mxu0 0
        %1643 = vmatpush1.bf16.msra.mxu0 0
        %1644 = vmatprep.subr.bf16.mxu0 0
        %1645 = vmatpush1.bf16.msra.mxu0 0
        %1646 = vmatprep.subr.bf16.mxu0 0
        %1647 = vmatpush1.bf16.msra.mxu0 0
        %1648 = vmatprep.subr.bf16.mxu0 0
        %1649 = vmatpush1.bf16.msra.mxu0 0
        %1650 = vmatprep.subr.bf16.mxu0 0
        %1651 = vmatpush1.bf16.msra.mxu0 0
        %1652 = vmatprep.subr.bf16.mxu0 0
        %1653 = vmatpush1.bf16.msra.mxu0 0
        %1654 = vmatprep.subr.bf16.mxu0 0
        %1655 = vmatpush1.bf16.msra.mxu0 0
        %1656 = vmatprep.subr.bf16.mxu0 0
        %1657 = vmatpush1.bf16.msra.mxu0 0
        %1658 = vmatprep.mubr.bf16.mxu0 0
        %1659 = vmatmul.mubr.bf16.gmra.mrb[0].mxu0 %v1552
        %v1660 = vpop.f32.mrb[0].mxu0
        %v1661 = vadd.f32 0.0, %v1660
        %v1662 = vpop.f32.mrb[0].mxu0
        %v1663 = vadd.f32 0.0, %v1662
        %v1664 = vpop.f32.mrb[0].mxu0
        %v1665 = vpop.f32.mrb[0].mxu0
        %1666 = vdwg.mxu0
        %v1667 = vadd.f32 %v1548, %v1620
        %v1668 = vadd.f32 %v1549, %v1622
        %v1669 = vadd.f32 %v1550, %v1661
        %v1670 = vadd.f32 %v1551, %v1663
        %v1671 = vxor.u32 %v1667, 2147483648
        %v1672 = vmul.f32 %v1671, 1.442695
        %v1673 = vpow.pop %v1672
        %v1674 = vadd.f32 %v1673, 1.0
        %v1675 = vrcp.pop %v1674
        %v1676 = vmul.f32 1.0, %v1675
        %v1677 = vxor.u32 %v1668, 2147483648
        %v1678 = vmul.f32 %v1677, 1.442695
        %v1679 = vpow.pop %v1678
        %v1680 = vadd.f32 %v1679, 1.0
        %v1681 = vrcp.pop %v1680
        %v1682 = vmul.f32 1.0, %v1681
        %v1683 = vtanh.pop %v1669
        %v1684 = vxor.u32 %v1670, 2147483648
        %v1685 = vmul.f32 %v1684, 1.442695
        %v1686 = vpow.pop %v1685
        %v1687 = vadd.f32 %v1686, 1.0
        %v1688 = vrcp.pop %v1687
        %v1689 = vmul.f32 1.0, %v1688
        %v1690 = vmul.f32 %v1682, %v1538
        %v1691 = vmul.f32 %v1676, %v1683
        %v1692 = vadd.f32 %v1690, %v1691
        %v1693 = vtanh.pop %v1692
        %v1694 = vmul.f32 %v1689, %v1693
        %s1695 = smul.u32 %s1544, 8
        %s1696 = scalar_lea.vmem %s214, %s1695 [#allocation4]
        %1697 = vst [vmem:[%s1696] sm:$0xff] %v1694
        %s1698 = scalar_select %p774, 6, 1
        %s1699 = smul.u32 %s1698, 4
        %s1700 = smul.addr %s1699, 8
        %s1701 = scalar_lea.vmem [#allocation2], %s1700
        %v1702 = vld [vmem:[%s1701] sm:$0xff]
        %v1703 = vld [vmem:[%s1701 + $0x8] sm:$0xff]
        %v1704 = vld [vmem:[%s1701 + $0x10] sm:$0xff]
        %v1705 = vld [vmem:[%s1701 + $0x18] sm:$0xff]
        %v1706 = vpack.c.bf16 %v1694, %v1694
        %v1707 = vld [vmem:[#allocation3] sm:$0xff]
        %v1708 = vld [vmem:[#allocation3 + $0x8] sm:$0xff]
        %v1709 = vld [vmem:[#allocation3 + $0x10] sm:$0xff]
        %v1710 = vld [vmem:[#allocation3 + $0x18] sm:$0xff]
        %v1711 = vld [vmem:[#allocation3 + $0x20] sm:$0xff]
        %v1712 = vld [vmem:[#allocation3 + $0x28] sm:$0xff]
        %v1713 = vld [vmem:[#allocation3 + $0x30] sm:$0xff]
        %v1714 = vld [vmem:[#allocation3 + $0x38] sm:$0xff]
        %v1715 = vld [vmem:[#allocation3 + $0x40] sm:$0xff]
        %v1716 = vld [vmem:[#allocation3 + $0x48] sm:$0xff]
        %v1717 = vld [vmem:[#allocation3 + $0x50] sm:$0xff]
        %v1718 = vld [vmem:[#allocation3 + $0x58] sm:$0xff]
        %v1719 = vld [vmem:[#allocation3 + $0x60] sm:$0xff]
        %v1720 = vld [vmem:[#allocation3 + $0x68] sm:$0xff]
        %v1721 = vld [vmem:[#allocation3 + $0x70] sm:$0xff]
        %v1722 = vld [vmem:[#allocation3 + $0x78] sm:$0xff]
        %v1723 = vld [vmem:[#allocation3 + $0x80] sm:$0xff]
        %v1724 = vld [vmem:[#allocation3 + $0x88] sm:$0xff]
        %v1725 = vld [vmem:[#allocation3 + $0x90] sm:$0xff]
        %v1726 = vld [vmem:[#allocation3 + $0x98] sm:$0xff]
        %v1727 = vld [vmem:[#allocation3 + $0xa0] sm:$0xff]
        %v1728 = vld [vmem:[#allocation3 + $0xa8] sm:$0xff]
        %v1729 = vld [vmem:[#allocation3 + $0xb0] sm:$0xff]
        %v1730 = vld [vmem:[#allocation3 + $0xb8] sm:$0xff]
        %v1731 = vld [vmem:[#allocation3 + $0xc0] sm:$0xff]
        %v1732 = vld [vmem:[#allocation3 + $0xc8] sm:$0xff]
        %v1733 = vld [vmem:[#allocation3 + $0xd0] sm:$0xff]
        %v1734 = vld [vmem:[#allocation3 + $0xd8] sm:$0xff]
        %v1735 = vld [vmem:[#allocation3 + $0xe0] sm:$0xff]
        %v1736 = vld [vmem:[#allocation3 + $0xe8] sm:$0xff]
        %v1737 = vld [vmem:[#allocation3 + $0xf0] sm:$0xff]
        %v1738 = vld [vmem:[#allocation3 + $0xf8] sm:$0xff]
        %1739 = vmatprep.subr.bf16.mxu0 %v1708
        %1740 = vmatpush1.bf16.msra.mxu0 %v1707
        %1741 = vmatprep.subr.bf16.mxu0 %v1712
        %1742 = vmatpush1.bf16.msra.mxu0 %v1711
        %1743 = vmatprep.subr.bf16.mxu0 %v1716
        %1744 = vmatpush1.bf16.msra.mxu0 %v1715
        %1745 = vmatprep.subr.bf16.mxu0 %v1720
        %1746 = vmatpush1.bf16.msra.mxu0 %v1719
        %1747 = vmatprep.subr.bf16.mxu0 %v1724
        %1748 = vmatpush1.bf16.msra.mxu0 %v1723
        %1749 = vmatprep.subr.bf16.mxu0 %v1728
        %1750 = vmatpush1.bf16.msra.mxu0 %v1727
        %1751 = vmatprep.subr.bf16.mxu0 %v1732
        %1752 = vmatpush1.bf16.msra.mxu0 %v1731
        %1753 = vmatprep.subr.bf16.mxu0 %v1736
        %1754 = vmatpush1.bf16.msra.mxu0 %v1735
        %1755 = vmatprep.subr.bf16.mxu0 0
        %1756 = vmatpush1.bf16.msra.mxu0 0
        %1757 = vmatprep.subr.bf16.mxu0 0
        %1758 = vmatpush1.bf16.msra.mxu0 0
        %1759 = vmatprep.subr.bf16.mxu0 0
        %1760 = vmatpush1.bf16.msra.mxu0 0
        %1761 = vmatprep.subr.bf16.mxu0 0
        %1762 = vmatpush1.bf16.msra.mxu0 0
        %1763 = vmatprep.subr.bf16.mxu0 0
        %1764 = vmatpush1.bf16.msra.mxu0 0
        %1765 = vmatprep.subr.bf16.mxu0 0
        %1766 = vmatpush1.bf16.msra.mxu0 0
        %1767 = vmatprep.subr.bf16.mxu0 0
        %1768 = vmatpush1.bf16.msra.mxu0 0
        %1769 = vmatprep.subr.bf16.mxu0 0
        %1770 = vmatpush1.bf16.msra.mxu0 0
        %1771 = vmatprep.mubr.bf16.mxu0 0
        %1772 = vmatmul.mubr.bf16.gmra.mrb[0].mxu0 %v1706
        %v1773 = vpop.f32.mrb[0].mxu0
        %v1774 = vadd.f32 0.0, %v1773
        %v1775 = vpop.f32.mrb[0].mxu0
        %v1776 = vadd.f32 0.0, %v1775
        %v1777 = vpop.f32.mrb[0].mxu0
        %v1778 = vpop.f32.mrb[0].mxu0
        %1779 = vdwg.mxu0
        %1780 = vmatprep.subr.bf16.mxu0 %v1710
        %1781 = vmatpush1.bf16.msra.mxu0 %v1709
        %1782 = vmatprep.subr.bf16.mxu0 %v1714
        %1783 = vmatpush1.bf16.msra.mxu0 %v1713
        %1784 = vmatprep.subr.bf16.mxu0 %v1718
        %1785 = vmatpush1.bf16.msra.mxu0 %v1717
        %1786 = vmatprep.subr.bf16.mxu0 %v1722
        %1787 = vmatpush1.bf16.msra.mxu0 %v1721
        %1788 = vmatprep.subr.bf16.mxu0 %v1726
        %1789 = vmatpush1.bf16.msra.mxu0 %v1725
        %1790 = vmatprep.subr.bf16.mxu0 %v1730
        %1791 = vmatpush1.bf16.msra.mxu0 %v1729
        %1792 = vmatprep.subr.bf16.mxu0 %v1734
        %1793 = vmatpush1.bf16.msra.mxu0 %v1733
        %1794 = vmatprep.subr.bf16.mxu0 %v1738
        %1795 = vmatpush1.bf16.msra.mxu0 %v1737
        %1796 = vmatprep.subr.bf16.mxu0 0
        %1797 = vmatpush1.bf16.msra.mxu0 0
        %1798 = vmatprep.subr.bf16.mxu0 0
        %1799 = vmatpush1.bf16.msra.mxu0 0
        %1800 = vmatprep.subr.bf16.mxu0 0
        %1801 = vmatpush1.bf16.msra.mxu0 0
        %1802 = vmatprep.subr.bf16.mxu0 0
        %1803 = vmatpush1.bf16.msra.mxu0 0
        %1804 = vmatprep.subr.bf16.mxu0 0
        %1805 = vmatpush1.bf16.msra.mxu0 0
        %1806 = vmatprep.subr.bf16.mxu0 0
        %1807 = vmatpush1.bf16.msra.mxu0 0
        %1808 = vmatprep.subr.bf16.mxu0 0
        %1809 = vmatpush1.bf16.msra.mxu0 0
        %1810 = vmatprep.subr.bf16.mxu0 0
        %1811 = vmatpush1.bf16.msra.mxu0 0
        %1812 = vmatprep.mubr.bf16.mxu0 0
        %1813 = vmatmul.mubr.bf16.gmra.mrb[0].mxu0 %v1706
        %v1814 = vpop.f32.mrb[0].mxu0
        %v1815 = vadd.f32 0.0, %v1814
        %v1816 = vpop.f32.mrb[0].mxu0
        %v1817 = vadd.f32 0.0, %v1816
        %v1818 = vpop.f32.mrb[0].mxu0
        %v1819 = vpop.f32.mrb[0].mxu0
        %1820 = vdwg.mxu0
        %v1821 = vadd.f32 %v1702, %v1774
        %v1822 = vadd.f32 %v1703, %v1776
        %v1823 = vadd.f32 %v1704, %v1815
        %v1824 = vadd.f32 %v1705, %v1817
        %v1825 = vxor.u32 %v1821, 2147483648
        %v1826 = vmul.f32 %v1825, 1.442695
        %v1827 = vpow.pop %v1826
        %v1828 = vadd.f32 %v1827, 1.0
        %v1829 = vrcp.pop %v1828
        %v1830 = vmul.f32 1.0, %v1829
        %v1831 = vxor.u32 %v1822, 2147483648
        %v1832 = vmul.f32 %v1831, 1.442695
        %v1833 = vpow.pop %v1832
        %v1834 = vadd.f32 %v1833, 1.0
        %v1835 = vrcp.pop %v1834
        %v1836 = vmul.f32 1.0, %v1835
        %v1837 = vtanh.pop %v1823
        %v1838 = vxor.u32 %v1824, 2147483648
        %v1839 = vmul.f32 %v1838, 1.442695
        %v1840 = vpow.pop %v1839
        %v1841 = vadd.f32 %v1840, 1.0
        %v1842 = vrcp.pop %v1841
        %v1843 = vmul.f32 1.0, %v1842
        %v1844 = vmul.f32 %v1836, %v1692
        %v1845 = vmul.f32 %v1830, %v1837
        %v1846 = vadd.f32 %v1844, %v1845
        %v1847 = vtanh.pop %v1846
        %v1848 = vmul.f32 %v1843, %v1847
        %s1849 = smul.u32 %s1698, 8
        %s1850 = scalar_lea.vmem %s214, %s1849 [#allocation4]
        %1851 = vst [vmem:[%s1850] sm:$0xff] %v1848
        %s1852 = scalar_select %p774, 7, 0
        %s1853 = smul.u32 %s1852, 4
        %s1854 = smul.addr %s1853, 8
        %s1855 = scalar_lea.vmem [#allocation2], %s1854
        %v1856 = vld [vmem:[%s1855] sm:$0xff]
        %v1857 = vld [vmem:[%s1855 + $0x8] sm:$0xff]
        %v1858 = vld [vmem:[%s1855 + $0x10] sm:$0xff]
        %v1859 = vld [vmem:[%s1855 + $0x18] sm:$0xff]
        %v1860 = vpack.c.bf16 %v1848, %v1848
        %v1861 = vld [vmem:[#allocation3] sm:$0xff]
        %v1862 = vld [vmem:[#allocation3 + $0x8] sm:$0xff]
        %v1863 = vld [vmem:[#allocation3 + $0x10] sm:$0xff]
        %v1864 = vld [vmem:[#allocation3 + $0x18] sm:$0xff]
        %v1865 = vld [vmem:[#allocation3 + $0x20] sm:$0xff]
        %v1866 = vld [vmem:[#allocation3 + $0x28] sm:$0xff]
        %v1867 = vld [vmem:[#allocation3 + $0x30] sm:$0xff]
        %v1868 = vld [vmem:[#allocation3 + $0x38] sm:$0xff]
        %v1869 = vld [vmem:[#allocation3 + $0x40] sm:$0xff]
        %v1870 = vld [vmem:[#allocation3 + $0x48] sm:$0xff]
        %v1871 = vld [vmem:[#allocation3 + $0x50] sm:$0xff]
        %v1872 = vld [vmem:[#allocation3 + $0x58] sm:$0xff]
        %v1873 = vld [vmem:[#allocation3 + $0x60] sm:$0xff]
        %v1874 = vld [vmem:[#allocation3 + $0x68] sm:$0xff]
        %v1875 = vld [vmem:[#allocation3 + $0x70] sm:$0xff]
        %v1876 = vld [vmem:[#allocation3 + $0x78] sm:$0xff]
        %v1877 = vld [vmem:[#allocation3 + $0x80] sm:$0xff]
        %v1878 = vld [vmem:[#allocation3 + $0x88] sm:$0xff]
        %v1879 = vld [vmem:[#allocation3 + $0x90] sm:$0xff]
        %v1880 = vld [vmem:[#allocation3 + $0x98] sm:$0xff]
        %v1881 = vld [vmem:[#allocation3 + $0xa0] sm:$0xff]
        %v1882 = vld [vmem:[#allocation3 + $0xa8] sm:$0xff]
        %v1883 = vld [vmem:[#allocation3 + $0xb0] sm:$0xff]
        %v1884 = vld [vmem:[#allocation3 + $0xb8] sm:$0xff]
        %v1885 = vld [vmem:[#allocation3 + $0xc0] sm:$0xff]
        %v1886 = vld [vmem:[#allocation3 + $0xc8] sm:$0xff]
        %v1887 = vld [vmem:[#allocation3 + $0xd0] sm:$0xff]
        %v1888 = vld [vmem:[#allocation3 + $0xd8] sm:$0xff]
        %v1889 = vld [vmem:[#allocation3 + $0xe0] sm:$0xff]
        %v1890 = vld [vmem:[#allocation3 + $0xe8] sm:$0xff]
        %v1891 = vld [vmem:[#allocation3 + $0xf0] sm:$0xff]
        %v1892 = vld [vmem:[#allocation3 + $0xf8] sm:$0xff]
        %1893 = vmatprep.subr.bf16.mxu0 %v1862
        %1894 = vmatpush1.bf16.msra.mxu0 %v1861
        %1895 = vmatprep.subr.bf16.mxu0 %v1866
        %1896 = vmatpush1.bf16.msra.mxu0 %v1865
        %1897 = vmatprep.subr.bf16.mxu0 %v1870
        %1898 = vmatpush1.bf16.msra.mxu0 %v1869
        %1899 = vmatprep.subr.bf16.mxu0 %v1874
        %1900 = vmatpush1.bf16.msra.mxu0 %v1873
        %1901 = vmatprep.subr.bf16.mxu0 %v1878
        %1902 = vmatpush1.bf16.msra.mxu0 %v1877
        %1903 = vmatprep.subr.bf16.mxu0 %v1882
        %1904 = vmatpush1.bf16.msra.mxu0 %v1881
        %1905 = vmatprep.subr.bf16.mxu0 %v1886
        %1906 = vmatpush1.bf16.msra.mxu0 %v1885
        %1907 = vmatprep.subr.bf16.mxu0 %v1890
        %1908 = vmatpush1.bf16.msra.mxu0 %v1889
        %1909 = vmatprep.subr.bf16.mxu0 0
        %1910 = vmatpush1.bf16.msra.mxu0 0
        %1911 = vmatprep.subr.bf16.mxu0 0
        %1912 = vmatpush1.bf16.msra.mxu0 0
        %1913 = vmatprep.subr.bf16.mxu0 0
        %1914 = vmatpush1.bf16.msra.mxu0 0
        %1915 = vmatprep.subr.bf16.mxu0 0
        %1916 = vmatpush1.bf16.msra.mxu0 0
        %1917 = vmatprep.subr.bf16.mxu0 0
        %1918 = vmatpush1.bf16.msra.mxu0 0
        %1919 = vmatprep.subr.bf16.mxu0 0
        %1920 = vmatpush1.bf16.msra.mxu0 0
        %1921 = vmatprep.subr.bf16.mxu0 0
        %1922 = vmatpush1.bf16.msra.mxu0 0
        %1923 = vmatprep.subr.bf16.mxu0 0
        %1924 = vmatpush1.bf16.msra.mxu0 0
        %1925 = vmatprep.mubr.bf16.mxu0 0
        %1926 = vmatmul.mubr.bf16.gmra.mrb[0].mxu0 %v1860
        %v1927 = vpop.f32.mrb[0].mxu0
        %v1928 = vadd.f32 0.0, %v1927
        %v1929 = vpop.f32.mrb[0].mxu0
        %v1930 = vadd.f32 0.0, %v1929
        %v1931 = vpop.f32.mrb[0].mxu0
        %v1932 = vpop.f32.mrb[0].mxu0
        %1933 = vdwg.mxu0
        %1934 = vmatprep.subr.bf16.mxu0 %v1864
        %1935 = vmatpush1.bf16.msra.mxu0 %v1863
        %1936 = vmatprep.subr.bf16.mxu0 %v1868
        %1937 = vmatpush1.bf16.msra.mxu0 %v1867
        %1938 = vmatprep.subr.bf16.mxu0 %v1872
        %1939 = vmatpush1.bf16.msra.mxu0 %v1871
        %1940 = vmatprep.subr.bf16.mxu0 %v1876
        %1941 = vmatpush1.bf16.msra.mxu0 %v1875
        %1942 = vmatprep.subr.bf16.mxu0 %v1880
        %1943 = vmatpush1.bf16.msra.mxu0 %v1879
        %1944 = vmatprep.subr.bf16.mxu0 %v1884
        %1945 = vmatpush1.bf16.msra.mxu0 %v1883
        %1946 = vmatprep.subr.bf16.mxu0 %v1888
        %1947 = vmatpush1.bf16.msra.mxu0 %v1887
        %1948 = vmatprep.subr.bf16.mxu0 %v1892
        %1949 = vmatpush1.bf16.msra.mxu0 %v1891
        %1950 = vmatprep.subr.bf16.mxu0 0
        %1951 = vmatpush1.bf16.msra.mxu0 0
        %1952 = vmatprep.subr.bf16.mxu0 0
        %1953 = vmatpush1.bf16.msra.mxu0 0
        %1954 = vmatprep.subr.bf16.mxu0 0
        %1955 = vmatpush1.bf16.msra.mxu0 0
        %1956 = vmatprep.subr.bf16.mxu0 0
        %1957 = vmatpush1.bf16.msra.mxu0 0
        %1958 = vmatprep.subr.bf16.mxu0 0
        %1959 = vmatpush1.bf16.msra.mxu0 0
        %1960 = vmatprep.subr.bf16.mxu0 0
        %1961 = vmatpush1.bf16.msra.mxu0 0
        %1962 = vmatprep.subr.bf16.mxu0 0
        %1963 = vmatpush1.bf16.msra.mxu0 0
        %1964 = vmatprep.subr.bf16.mxu0 0
        %1965 = vmatpush1.bf16.msra.mxu0 0
        %1966 = vmatprep.mubr.bf16.mxu0 0
        %1967 = vmatmul.mubr.bf16.gmra.mrb[0].mxu0 %v1860
        %v1968 = vpop.f32.mrb[0].mxu0
        %v1969 = vadd.f32 0.0, %v1968
        %v1970 = vpop.f32.mrb[0].mxu0
        %v1971 = vadd.f32 0.0, %v1970
        %v1972 = vpop.f32.mrb[0].mxu0
        %v1973 = vpop.f32.mrb[0].mxu0
        %1974 = vdwg.mxu0
        %v1975 = vadd.f32 %v1856, %v1928
        %v1976 = vadd.f32 %v1857, %v1930
        %v1977 = vadd.f32 %v1858, %v1969
        %v1978 = vadd.f32 %v1859, %v1971
        %v1979 = vxor.u32 %v1975, 2147483648
        %v1980 = vmul.f32 %v1979, 1.442695
        %v1981 = vpow.pop %v1980
        %v1982 = vadd.f32 %v1981, 1.0
        %v1983 = vrcp.pop %v1982
        %v1984 = vmul.f32 1.0, %v1983
        %v1985 = vxor.u32 %v1976, 2147483648
        %v1986 = vmul.f32 %v1985, 1.442695
        %v1987 = vpow.pop %v1986
        %v1988 = vadd.f32 %v1987, 1.0
        %v1989 = vrcp.pop %v1988
        %v1990 = vmul.f32 1.0, %v1989
        %v1991 = vtanh.pop %v1977
        %v1992 = vxor.u32 %v1978, 2147483648
        %v1993 = vmul.f32 %v1992, 1.442695
        %v1994 = vpow.pop %v1993
        %v1995 = vadd.f32 %v1994, 1.0
        %v1996 = vrcp.pop %v1995
        %v1997 = vmul.f32 1.0, %v1996
        %v1998 = vmul.f32 %v1990, %v1846
        %v1999 = vmul.f32 %v1984, %v1991
        %v2000 = vadd.f32 %v1998, %v1999
        %v2001 = vtanh.pop %v2000
        %v2002 = vmul.f32 %v1997, %v2001
        %s2003 = smul.u32 %s1852, 8
        %s2004 = scalar_lea.vmem %s214, %s2003 [#allocation4]
        %2005 = vst [vmem:[%s2004] sm:$0xff] %v2002
        %s2006 = sand.u32 %s122, 1
        %s2007 = sand.u32 %s122, 1
        %s2008 = smul.addr %s2007, 64
        %s2009 = scalar_lea.vmem [#allocation4], %s2008
        // Predicated region
        $region37: #{critic_classifier_forward.6} parent=35 // pred_check
          %p2010 = pneg %p132
        $region38: #{critic_classifier_forward.6} parent=35 // pred_check_branch
          %2012 = sbr.rel (%p2010) target = $region40
        $region39: #{critic_classifier_forward.6} parent=35 // pred_region
          %s2013 = smul.addr %s15, 8
          %s2014 = scalar_lea.vmem %s4, %s2013
          // Predicated region
          $region41: #{critic_classifier_forward.6} parent=39 // pred_check
            _
          $region42: #{critic_classifier_forward.6} parent=39 // pred_check_branch
            %2016 = sbr.rel (0) target = $region44
          $region43: #{critic_classifier_forward.6} parent=39 // pred_region
            // Predicated region
            $region45: #{critic_classifier_forward.6} parent=43 // pred_check
              _
            $region46: #{critic_classifier_forward.6} parent=43 // pred_check_branch
              %2018 = sbr.rel (0) target = $region48
            $region47: #{critic_classifier_forward.6} parent=43 // pred_region
              // Predicated region
              $region60: #{critic_classifier_forward.6} parent=47 // pred_check
                _
              $region61: #{critic_classifier_forward.6} parent=47 // pred_check_branch
                %2047 = sbr.rel (0) target = $region63
              $region62: #{critic_classifier_forward.6} parent=47 // pred_region
                loop: start=0, step=1, limit=1
                $region64: #{critic_classifier_forward.6} parent=62 // loop_pre_header
                  _
                $region65: #{critic_classifier_forward.6} parent=62 // loop_header
                  %s2049 = sphi 0, %s2053
                  %p2050 = scmp.ge.s32.totalorder %s2049, 1
                  %s2054 = sphi %s2009, %s2009
                  %s2055 = sphi %s2014, %s2014
                $region66: #{critic_classifier_forward.6} parent=62 // loop_header_branch
                  %2052 = sbr.rel (%p2050) target = $region70
                $region67: #{critic_classifier_forward.6} parent=62 // loop_body
                  %v2056 = vld [vmem:[%s2054] sm:$0xff]
                  %2057 = vst [vmem:[%s2055] sm:$0xff] %v2056
                  %v2058 = vld [vmem:[%s2054 + $0x8] sm:$0xff]
                  %2059 = vst [vmem:[%s2055 + $0x10] sm:$0xff] %v2058
                  %v2060 = vld [vmem:[%s2054 + $0x10] sm:$0xff]
                  %2061 = vst [vmem:[%s2055 + $0x20] sm:$0xff] %v2060
                  %v2062 = vld [vmem:[%s2054 + $0x18] sm:$0xff]
                  %2063 = vst [vmem:[%s2055 + $0x30] sm:$0xff] %v2062
                  %v2064 = vld [vmem:[%s2054 + $0x20] sm:$0xff]
                  %2065 = vst [vmem:[%s2055 + $0x40] sm:$0xff] %v2064
                  %v2066 = vld [vmem:[%s2054 + $0x28] sm:$0xff]
                  %2067 = vst [vmem:[%s2055 + $0x50] sm:$0xff] %v2066
                  %v2068 = vld [vmem:[%s2054 + $0x30] sm:$0xff]
                  %2069 = vst [vmem:[%s2055 + $0x60] sm:$0xff] %v2068
                  %v2070 = vld [vmem:[%s2054 + $0x38] sm:$0xff]
                  %2071 = vst [vmem:[%s2055 + $0x70] sm:$0xff] %v2070
                $region68: #{critic_classifier_forward.6} parent=62 // loop_footer
                  %s2053 = sadd.s32 1, %s2049
                $region69: #{critic_classifier_forward.6} parent=62 // loop_footer_branch
                  %2048 = sbr.rel target = $region65
                $region70: #{critic_classifier_forward.6} parent=62 // loop_exit
                  _
              $region63: #{critic_classifier_forward.6} parent=47 // pred_fallthru
                _
              // Predicated region
              $region71: #{critic_classifier_forward.6} parent=47 // pred_check
                _
              $region72: #{critic_classifier_forward.6} parent=47 // pred_check_branch
                %2073 = sbr.rel target = $region74
              $region73: #{critic_classifier_forward.6} parent=47 // pred_region
                _
              $region74: #{critic_classifier_forward.6} parent=47 // pred_fallthru
                _
            $region48: #{critic_classifier_forward.6} parent=43 // pred_fallthru
              _
            // Predicated region
            $region49: #{critic_classifier_forward.6} parent=43 // pred_check
              _
            $region50: #{critic_classifier_forward.6} parent=43 // pred_check_branch
              %2020 = sbr.rel target = $region52
            $region51: #{critic_classifier_forward.6} parent=43 // pred_region
              loop: start=0, step=1, limit=1
              $region53: #{critic_classifier_forward.6} parent=51 // loop_pre_header
                _
              $region54: #{critic_classifier_forward.6} parent=51 // loop_header
                %s2023 = sphi 0, %s2027
                %p2024 = scmp.ge.s32.totalorder %s2023, 1
                %s2028 = sphi %s2009, %s2009
                %s2029 = sphi %s2014, %s2014
              $region55: #{critic_classifier_forward.6} parent=51 // loop_header_branch
                %2026 = sbr.rel (%p2024) target = $region59
              $region56: #{critic_classifier_forward.6} parent=51 // loop_body
                %v2030 = vld [vmem:[%s2028] sm:$0xff]
                %2031 = vst [vmem:[%s2029] sm:$0xff] %v2030
                %v2032 = vld [vmem:[%s2028 + $0x8] sm:$0xff]
                %2033 = vst [vmem:[%s2029 + $0x10] sm:$0xff] %v2032
                %v2034 = vld [vmem:[%s2028 + $0x10] sm:$0xff]
                %2035 = vst [vmem:[%s2029 + $0x20] sm:$0xff] %v2034
                %v2036 = vld [vmem:[%s2028 + $0x18] sm:$0xff]
                %2037 = vst [vmem:[%s2029 + $0x30] sm:$0xff] %v2036
                %v2038 = vld [vmem:[%s2028 + $0x20] sm:$0xff]
                %2039 = vst [vmem:[%s2029 + $0x40] sm:$0xff] %v2038
                %v2040 = vld [vmem:[%s2028 + $0x28] sm:$0xff]
                %2041 = vst [vmem:[%s2029 + $0x50] sm:$0xff] %v2040
                %v2042 = vld [vmem:[%s2028 + $0x30] sm:$0xff]
                %2043 = vst [vmem:[%s2029 + $0x60] sm:$0xff] %v2042
                %v2044 = vld [vmem:[%s2028 + $0x38] sm:$0xff]
                %2045 = vst [vmem:[%s2029 + $0x70] sm:$0xff] %v2044
              $region57: #{critic_classifier_forward.6} parent=51 // loop_footer
                %s2027 = sadd.s32 1, %s2023
              $region58: #{critic_classifier_forward.6} parent=51 // loop_footer_branch
                %2022 = sbr.rel target = $region54
              $region59: #{critic_classifier_forward.6} parent=51 // loop_exit
                _
            $region52: #{critic_classifier_forward.6} parent=43 // pred_fallthru
              _
          $region44: #{critic_classifier_forward.6} parent=39 // pred_fallthru
            _
          %2074 = vnop
        $region40: #{critic_classifier_forward.6} parent=35 // pred_fallthru
          _
      $region36: #{critic_classifier_forward.6} parent=5 // pred_fallthru
        _
      %p2075 = scmp.le.s32.totalorder 2, %s10
      // Predicated region
      $region75: #{critic_classifier_forward.6} parent=5 // pred_check
        %p2076 = pneg %p2075
      $region76: #{critic_classifier_forward.6} parent=5 // pred_check_branch
        %2078 = sbr.rel (%p2076) target = $region78
      $region77: #{critic_classifier_forward.6} parent=5 // pred_region
        %s2079 = ssub.s32 %s10, 2
        // Predicated region
        $region79: #{critic_classifier_forward.6} parent=77 // pred_check
          %p2080 = pneg %p138
        $region80: #{critic_classifier_forward.6} parent=77 // pred_check_branch
          %2082 = sbr.rel (%p2080) target = $region82
        $region81: #{critic_classifier_forward.6} parent=77 // pred_region
          %s2083 = sand.u32 %s123, 1
          %s2084 = sand.u32 %s123, 1
          %s2085 = smul.addr %s2084, 64
          %s2086 = scalar_lea.vmem [#allocation4], %s2085
        $region82: #{critic_classifier_forward.6} parent=77 // pred_fallthru
          _
      $region78: #{critic_classifier_forward.6} parent=5 // pred_fallthru
        _
    $region6: #{critic_classifier_forward.6} parent=1 // loop_footer
      %s14 = sadd.s32 1, %s10
    $region7: #{critic_classifier_forward.6} parent=1 // loop_footer_branch
      %9 = sbr.rel target = $region3
    $region8: #{critic_classifier_forward.6} parent=1 // loop_exit
      _

// kernel: critic_classifier_forward.7
$region0: #{critic_classifier_forward.7}
  #allocation0 [shape = 'u32[]', space=smem, size = 0x4, offset = 0x4, fixed_abs, tag = 'smem constant byte address 0x4 - core index']
  #allocation1 [shape = 'u32[144,128]{1,0:T(1,128)}', space=vmem, size = 0x12000, scoped, tag = 'internal scratch']
  %s0 = inlined_call_operand.vmem [shape: f32[8,8,256], index: 0, kind: input, shape index: {}]
  %s1 = inlined_call_operand.vmem [shape: f32[256,256], index: 1, kind: input, shape index: {}]
  %s2 = inlined_call_operand.vmem [shape: f32[1,256], index: 2, kind: input, shape index: {}]
  %s3 = inlined_call_operand.vmem [shape: f32[256,128], index: 3, kind: input, shape index: {}]
  %s4 = inlined_call_operand.vmem [shape: f32[1,128], index: 4, kind: input, shape index: {}]
  %s5 = inlined_call_operand.vmem [shape: f32[128,128], index: 5, kind: input, shape index: {}]
  %s6 = inlined_call_operand.vmem [shape: f32[1,128], index: 6, kind: input, shape index: {}]
  %s7 = inlined_call_operand.vmem [shape: f32[8,256,64], index: 7, kind: input, shape index: {}]
  %s8 = inlined_call_operand.vmem [shape: f32[1,64], index: 8, kind: input, shape index: {}]
  %s9 = inlined_call_operand.vmem [shape: f32[64,128], index: 9, kind: input, shape index: {}]
  %s10 = inlined_call_operand.vmem [shape: f32[1,128], index: 10, kind: input, shape index: {}]
  %s11 = inlined_call_operand.vmem [shape: f32[8,8,128], index: 11, kind: output, shape index: {0}]
  %s12 = inlined_call_operand.vmem [shape: f32[8,128], index: 12, kind: output, shape index: {1}]
  %13 = xla_tuple %s11, %s12
  %s14 = sld [smem:[#allocation0]]
  $region62: #{critic_classifier_forward.7} parent=0
    _
  %s16 = ssub.s32 1, %s14
  %s17 = scalar_select 0, %s16, %s14
  // Predicated region
  $region2: #{critic_classifier_forward.7} parent=0 // pred_check
    _
  $region3: #{critic_classifier_forward.7} parent=0 // pred_check_branch
    %19 = sbr.rel (0) target = $region5
  $region4: #{critic_classifier_forward.7} parent=0 // pred_region
    _
  $region5: #{critic_classifier_forward.7} parent=0 // pred_fallthru
    _
  // Predicated region
  $region6: #{critic_classifier_forward.7} parent=0 // pred_check
    _
  $region7: #{critic_classifier_forward.7} parent=0 // pred_check_branch
    %21 = sbr.rel (0) target = $region9
  $region8: #{critic_classifier_forward.7} parent=0 // pred_region
    _
  $region9: #{critic_classifier_forward.7} parent=0 // pred_fallthru
    _
  // Predicated region
  $region10: #{critic_classifier_forward.7} parent=0 // pred_check
    _
  $region11: #{critic_classifier_forward.7} parent=0 // pred_check_branch
    %23 = sbr.rel (0) target = $region13
  $region12: #{critic_classifier_forward.7} parent=0 // pred_region
    _
  $region13: #{critic_classifier_forward.7} parent=0 // pred_fallthru
    _
  // Predicated region
  $region14: #{critic_classifier_forward.7} parent=0 // pred_check
    _
  $region15: #{critic_classifier_forward.7} parent=0 // pred_check_branch
    %25 = sbr.rel (0) target = $region17
  $region16: #{critic_classifier_forward.7} parent=0 // pred_region
    _
  $region17: #{critic_classifier_forward.7} parent=0 // pred_fallthru
    _
  // Predicated region
  $region18: #{critic_classifier_forward.7} parent=0 // pred_check
    _
  $region19: #{critic_classifier_forward.7} parent=0 // pred_check_branch
    %27 = sbr.rel (0) target = $region21
  $region20: #{critic_classifier_forward.7} parent=0 // pred_region
    _
  $region21: #{critic_classifier_forward.7} parent=0 // pred_fallthru
    _
  // Predicated region
  $region22: #{critic_classifier_forward.7} parent=0 // pred_check
    _
  $region23: #{critic_classifier_forward.7} parent=0 // pred_check_branch
    %29 = sbr.rel (0) target = $region25
  $region24: #{critic_classifier_forward.7} parent=0 // pred_region
    _
  $region25: #{critic_classifier_forward.7} parent=0 // pred_fallthru
    _
  // Predicated region
  $region26: #{critic_classifier_forward.7} parent=0 // pred_check
    _
  $region27: #{critic_classifier_forward.7} parent=0 // pred_check_branch
    %31 = sbr.rel (0) target = $region29
  $region28: #{critic_classifier_forward.7} parent=0 // pred_region
    _
  $region29: #{critic_classifier_forward.7} parent=0 // pred_fallthru
    _
  // Predicated region
  $region30: #{critic_classifier_forward.7} parent=0 // pred_check
    _
  $region31: #{critic_classifier_forward.7} parent=0 // pred_check_branch
    %33 = sbr.rel (0) target = $region33
  $region32: #{critic_classifier_forward.7} parent=0 // pred_region
    _
  $region33: #{critic_classifier_forward.7} parent=0 // pred_fallthru
    _
  // Predicated region
  $region34: #{critic_classifier_forward.7} parent=0 // pred_check
    _
  $region35: #{critic_classifier_forward.7} parent=0 // pred_check_branch
    %35 = sbr.rel (0) target = $region37
  $region36: #{critic_classifier_forward.7} parent=0 // pred_region
    _
  $region37: #{critic_classifier_forward.7} parent=0 // pred_fallthru
    _
  // Predicated region
  $region38: #{critic_classifier_forward.7} parent=0 // pred_check
    _
  $region39: #{critic_classifier_forward.7} parent=0 // pred_check_branch
    %37 = sbr.rel (0) target = $region41
  $region40: #{critic_classifier_forward.7} parent=0 // pred_region
    _
  $region41: #{critic_classifier_forward.7} parent=0 // pred_fallthru
    _
  // Predicated region
  $region42: #{critic_classifier_forward.7} parent=0 // pred_check
    _
  $region43: #{critic_classifier_forward.7} parent=0 // pred_check_branch
    %39 = sbr.rel (0) target = $region45
  $region44: #{critic_classifier_forward.7} parent=0 // pred_region
    _
  $region45: #{critic_classifier_forward.7} parent=0 // pred_fallthru
    _
  %v41 = vld [vmem:[%s0] sm:$0xff]
  %v42 = vld [vmem:[%s0 + $0x8] sm:$0xff]
  %v43 = vld [vmem:[%s0 + $0x10] sm:$0xff]
  %v44 = vld [vmem:[%s0 + $0x18] sm:$0xff]
  %v45 = vld [vmem:[%s0 + $0x20] sm:$0xff]
  %v46 = vld [vmem:[%s0 + $0x28] sm:$0xff]
  %v47 = vld [vmem:[%s0 + $0x30] sm:$0xff]
  %v48 = vld [vmem:[%s0 + $0x38] sm:$0xff]
  %v49 = vld [vmem:[%s0 + $0x40] sm:$0xff]
  %v50 = vld [vmem:[%s0 + $0x48] sm:$0xff]
  %v51 = vld [vmem:[%s0 + $0x50] sm:$0xff]
  %v52 = vld [vmem:[%s0 + $0x58] sm:$0xff]
  %v53 = vld [vmem:[%s0 + $0x60] sm:$0xff]
  %v54 = vld [vmem:[%s0 + $0x68] sm:$0xff]
  %v55 = vld [vmem:[%s0 + $0x70] sm:$0xff]
  %v56 = vld [vmem:[%s0 + $0x78] sm:$0xff]
  %v57 = vpack.c.bf16 %v43, %v41
  %v58 = vpack.c.bf16 %v44, %v42
  %v59 = vpack.c.bf16 %v47, %v45
  %v60 = vpack.c.bf16 %v48, %v46
  %v61 = vpack.c.bf16 %v51, %v49
  %v62 = vpack.c.bf16 %v52, %v50
  %v63 = vpack.c.bf16 %v55, %v53
  %v64 = vpack.c.bf16 %v56, %v54
  %v65 = vld [vmem:[%s1] sm:$0xff]
  %v66 = vld [vmem:[%s1 + $0x8] sm:$0xff]
  %v67 = vld [vmem:[%s1 + $0x10] sm:$0xff]
  %v68 = vld [vmem:[%s1 + $0x18] sm:$0xff]
  %v69 = vld [vmem:[%s1 + $0x20] sm:$0xff]
  %v70 = vld [vmem:[%s1 + $0x28] sm:$0xff]
  %v71 = vld [vmem:[%s1 + $0x30] sm:$0xff]
  %v72 = vld [vmem:[%s1 + $0x38] sm:$0xff]
  %v73 = vld [vmem:[%s1 + $0x40] sm:$0xff]
  %v74 = vld [vmem:[%s1 + $0x48] sm:$0xff]
  %v75 = vld [vmem:[%s1 + $0x50] sm:$0xff]
  %v76 = vld [vmem:[%s1 + $0x58] sm:$0xff]
  %v77 = vld [vmem:[%s1 + $0x60] sm:$0xff]
  %v78 = vld [vmem:[%s1 + $0x68] sm:$0xff]
  %v79 = vld [vmem:[%s1 + $0x70] sm:$0xff]
  %v80 = vld [vmem:[%s1 + $0x78] sm:$0xff]
  %v81 = vld [vmem:[%s1 + $0x80] sm:$0xff]
  %v82 = vld [vmem:[%s1 + $0x88] sm:$0xff]
  %v83 = vld [vmem:[%s1 + $0x90] sm:$0xff]
  %v84 = vld [vmem:[%s1 + $0x98] sm:$0xff]
  %v85 = vld [vmem:[%s1 + $0xa0] sm:$0xff]
  %v86 = vld [vmem:[%s1 + $0xa8] sm:$0xff]
  %v87 = vld [vmem:[%s1 + $0xb0] sm:$0xff]
  %v88 = vld [vmem:[%s1 + $0xb8] sm:$0xff]
  %v89 = vld [vmem:[%s1 + $0xc0] sm:$0xff]
  %v90 = vld [vmem:[%s1 + $0xc8] sm:$0xff]
  %v91 = vld [vmem:[%s1 + $0xd0] sm:$0xff]
  %v92 = vld [vmem:[%s1 + $0xd8] sm:$0xff]
  %v93 = vld [vmem:[%s1 + $0xe0] sm:$0xff]
  %v94 = vld [vmem:[%s1 + $0xe8] sm:$0xff]
  %v95 = vld [vmem:[%s1 + $0xf0] sm:$0xff]
  %v96 = vld [vmem:[%s1 + $0xf8] sm:$0xff]
  %v97 = vld [vmem:[%s1 + $0x100] sm:$0xff]
  %v98 = vld [vmem:[%s1 + $0x108] sm:$0xff]
  %v99 = vld [vmem:[%s1 + $0x110] sm:$0xff]
  %v100 = vld [vmem:[%s1 + $0x118] sm:$0xff]
  %v101 = vld [vmem:[%s1 + $0x120] sm:$0xff]
  %v102 = vld [vmem:[%s1 + $0x128] sm:$0xff]
  %v103 = vld [vmem:[%s1 + $0x130] sm:$0xff]
  %v104 = vld [vmem:[%s1 + $0x138] sm:$0xff]
  %v105 = vld [vmem:[%s1 + $0x140] sm:$0xff]
  %v106 = vld [vmem:[%s1 + $0x148] sm:$0xff]
  %v107 = vld [vmem:[%s1 + $0x150] sm:$0xff]
  %v108 = vld [vmem:[%s1 + $0x158] sm:$0xff]
  %v109 = vld [vmem:[%s1 + $0x160] sm:$0xff]
  %v110 = vld [vmem:[%s1 + $0x168] sm:$0xff]
  %v111 = vld [vmem:[%s1 + $0x170] sm:$0xff]
  %v112 = vld [vmem:[%s1 + $0x178] sm:$0xff]
  %v113 = vld [vmem:[%s1 + $0x180] sm:$0xff]
  %v114 = vld [vmem:[%s1 + $0x188] sm:$0xff]
  %v115 = vld [vmem:[%s1 + $0x190] sm:$0xff]
  %v116 = vld [vmem:[%s1 + $0x198] sm:$0xff]
  %v117 = vld [vmem:[%s1 + $0x1a0] sm:$0xff]
  %v118 = vld [vmem:[%s1 + $0x1a8] sm:$0xff]
  %v119 = vld [vmem:[%s1 + $0x1b0] sm:$0xff]
  %v120 = vld [vmem:[%s1 + $0x1b8] sm:$0xff]
  %v121 = vld [vmem:[%s1 + $0x1c0] sm:$0xff]
  %v122 = vld [vmem:[%s1 + $0x1c8] sm:$0xff]
  %v123 = vld [vmem:[%s1 + $0x1d0] sm:$0xff]
  %v124 = vld [vmem:[%s1 + $0x1d8] sm:$0xff]
  %v125 = vld [vmem:[%s1 + $0x1e0] sm:$0xff]
  %v126 = vld [vmem:[%s1 + $0x1e8] sm:$0xff]
  %v127 = vld [vmem:[%s1 + $0x1f0] sm:$0xff]
  %v128 = vld [vmem:[%s1 + $0x1f8] sm:$0xff]
  %v129 = vpack.c.bf16 %v67, %v65
  %v130 = vpack.c.bf16 %v68, %v66
  %v131 = vpack.c.bf16 %v71, %v69
  %v132 = vpack.c.bf16 %v72, %v70
  %v133 = vpack.c.bf16 %v75, %v73
  %v134 = vpack.c.bf16 %v76, %v74
  %v135 = vpack.c.bf16 %v79, %v77
  %v136 = vpack.c.bf16 %v80, %v78
  %v137 = vpack.c.bf16 %v83, %v81
  %v138 = vpack.c.bf16 %v84, %v82
  %v139 = vpack.c.bf16 %v87, %v85
  %v140 = vpack.c.bf16 %v88, %v86
  %v141 = vpack.c.bf16 %v91, %v89
  %v142 = vpack.c.bf16 %v92, %v90
  %v143 = vpack.c.bf16 %v95, %v93
  %v144 = vpack.c.bf16 %v96, %v94
  %v145 = vpack.c.bf16 %v99, %v97
  %v146 = vpack.c.bf16 %v100, %v98
  %v147 = vpack.c.bf16 %v103, %v101
  %v148 = vpack.c.bf16 %v104, %v102
  %v149 = vpack.c.bf16 %v107, %v105
  %v150 = vpack.c.bf16 %v108, %v106
  %v151 = vpack.c.bf16 %v111, %v109
  %v152 = vpack.c.bf16 %v112, %v110
  %v153 = vpack.c.bf16 %v115, %v113
  %v154 = vpack.c.bf16 %v116, %v114
  %v155 = vpack.c.bf16 %v119, %v117
  %v156 = vpack.c.bf16 %v120, %v118
  %v157 = vpack.c.bf16 %v123, %v121
  %v158 = vpack.c.bf16 %v124, %v122
  %v159 = vpack.c.bf16 %v127, %v125
  %v160 = vpack.c.bf16 %v128, %v126
  %v161 = vld [vmem:[%s2] sm:$0x3]
  %v163 = vlaneseq
  %v164 = vshrl.u32 %v163, 7
  %v165 = vsub.s32 0, %v164
  %v166 = vrot.slane %v161, %v165
  %v167 = vlaneseq
  %v168 = vshrl.u32 %v167, 7
  %v169 = vsub.s32 1, %v168
  %v170 = vrot.slane %v161, %v169
  %173 = vmatprep.subr.bf16.mxu0 %v130
  %174 = vmatpush1.bf16.msra.mxu0 %v129
  %175 = vmatprep.subr.bf16.mxu0 %v132
  %176 = vmatpush1.bf16.msra.mxu0 %v131
  %177 = vmatprep.subr.bf16.mxu0 %v134
  %178 = vmatpush1.bf16.msra.mxu0 %v133
  %179 = vmatprep.subr.bf16.mxu0 %v136
  %180 = vmatpush1.bf16.msra.mxu0 %v135
  %181 = vmatprep.subr.bf16.mxu0 %v138
  %182 = vmatpush1.bf16.msra.mxu0 %v137
  %183 = vmatprep.subr.bf16.mxu0 %v140
  %184 = vmatpush1.bf16.msra.mxu0 %v139
  %185 = vmatprep.subr.bf16.mxu0 %v142
  %186 = vmatpush1.bf16.msra.mxu0 %v141
  %187 = vmatprep.subr.bf16.mxu0 %v144
  %188 = vmatpush1.bf16.msra.mxu0 %v143
  %189 = vmatprep.subr.bf16.mxu0 %v146
  %190 = vmatpush1.bf16.msra.mxu0 %v145
  %191 = vmatprep.subr.bf16.mxu0 %v148
  %192 = vmatpush1.bf16.msra.mxu0 %v147
  %193 = vmatprep.subr.bf16.mxu0 %v150
  %194 = vmatpush1.bf16.msra.mxu0 %v149
  %195 = vmatprep.subr.bf16.mxu0 %v152
  %196 = vmatpush1.bf16.msra.mxu0 %v151
  %197 = vmatprep.subr.bf16.mxu0 %v154
  %198 = vmatpush1.bf16.msra.mxu0 %v153
  %199 = vmatprep.subr.bf16.mxu0 %v156
  %200 = vmatpush1.bf16.msra.mxu0 %v155
  %201 = vmatprep.subr.bf16.mxu0 %v158
  %202 = vmatpush1.bf16.msra.mxu0 %v157
  %203 = vmatprep.subr.bf16.mxu0 %v160
  %204 = vmatpush1.bf16.msra.mxu0 %v159
  %205 = vmatprep.mubr.bf16.mxu0 %v58
  %206 = vmatmul.mubr.bf16.gmra.mrb[0].mxu0 %v57
  %v207 = vpop.f32.mrb[0].mxu0
  %v208 = vadd.f32 %v166, %v207
  %v209 = vpop.f32.mrb[0].mxu0
  %v210 = vadd.f32 %v170, %v209
  %v211 = vpop.f32.mrb[0].mxu0
  %v212 = vadd.f32 %v166, %v211
  %v213 = vpop.f32.mrb[0].mxu0
  %v214 = vadd.f32 %v170, %v213
  %215 = vmatprep.mubr.bf16.mxu0 %v60
  %216 = vmatmul.mubr.bf16.gmra.mrb[0].mxu0 %v59
  %v217 = vpop.f32.mrb[0].mxu0
  %v218 = vadd.f32 %v166, %v217
  %v219 = vpop.f32.mrb[0].mxu0
  %v220 = vadd.f32 %v170, %v219
  %v221 = vpop.f32.mrb[0].mxu0
  %v222 = vadd.f32 %v166, %v221
  %v223 = vpop.f32.mrb[0].mxu0
  %v224 = vadd.f32 %v170, %v223
  %225 = vmatprep.mubr.bf16.mxu0 %v62
  %226 = vmatmul.mubr.bf16.gmra.mrb[0].mxu0 %v61
  %v227 = vpop.f32.mrb[0].mxu0
  %v228 = vadd.f32 %v166, %v227
  %v229 = vpop.f32.mrb[0].mxu0
  %v230 = vadd.f32 %v170, %v229
  %v231 = vpop.f32.mrb[0].mxu0
  %v232 = vadd.f32 %v166, %v231
  %v233 = vpop.f32.mrb[0].mxu0
  %v234 = vadd.f32 %v170, %v233
  %235 = vmatprep.mubr.bf16.mxu0 %v64
  %236 = vmatmul.mubr.bf16.gmra.mrb[0].mxu0 %v63
  %v237 = vpop.f32.mrb[0].mxu0
  %v238 = vadd.f32 %v166, %v237
  %v239 = vpop.f32.mrb[0].mxu0
  %v240 = vadd.f32 %v170, %v239
  %v241 = vpop.f32.mrb[0].mxu0
  %v242 = vadd.f32 %v166, %v241
  %v243 = vpop.f32.mrb[0].mxu0
  %v244 = vadd.f32 %v170, %v243
  %245 = vdwg.mxu0
  %v246 = vmul.f32 %v208, 0.5
  %v247 = vmul.f32 %v210, 0.5
  %v248 = vmul.f32 %v212, 0.5
  %v249 = vmul.f32 %v214, 0.5
  %v250 = vmul.f32 %v218, 0.5
  %v251 = vmul.f32 %v220, 0.5
  %v252 = vmul.f32 %v222, 0.5
  %v253 = vmul.f32 %v224, 0.5
  %v254 = vmul.f32 %v228, 0.5
  %v255 = vmul.f32 %v230, 0.5
  %v256 = vmul.f32 %v232, 0.5
  %v257 = vmul.f32 %v234, 0.5
  %v258 = vmul.f32 %v238, 0.5
  %v259 = vmul.f32 %v240, 0.5
  %v260 = vmul.f32 %v242, 0.5
  %v261 = vmul.f32 %v244, 0.5
  %v262 = vmul.f32 %v208, 0.70710677
  %v263 = vmul.f32 %v210, 0.70710677
  %v264 = vmul.f32 %v212, 0.70710677
  %v265 = vmul.f32 %v214, 0.70710677
  %v266 = vmul.f32 %v218, 0.70710677
  %v267 = vmul.f32 %v220, 0.70710677
  %v268 = vmul.f32 %v222, 0.70710677
  %v269 = vmul.f32 %v224, 0.70710677
  %v270 = vmul.f32 %v228, 0.70710677
  %v271 = vmul.f32 %v230, 0.70710677
  %v272 = vmul.f32 %v232, 0.70710677
  %v273 = vmul.f32 %v234, 0.70710677
  %v274 = vmul.f32 %v238, 0.70710677
  %v275 = vmul.f32 %v240, 0.70710677
  %v276 = vmul.f32 %v242, 0.70710677
  %v277 = vmul.f32 %v244, 0.70710677
  %v278 = verf.f32.pop %v262
  %v279 = verf.f32.pop %v263
  %v280 = verf.f32.pop %v264
  %v281 = verf.f32.pop %v265
  %v282 = verf.f32.pop %v266
  %v283 = verf.f32.pop %v267
  %v284 = verf.f32.pop %v268
  %v285 = verf.f32.pop %v269
  %v286 = verf.f32.pop %v270
  %v287 = verf.f32.pop %v271
  %v288 = verf.f32.pop %v272
  %v289 = verf.f32.pop %v273
  %v290 = verf.f32.pop %v274
  %v291 = verf.f32.pop %v275
  %v292 = verf.f32.pop %v276
  %v293 = verf.f32.pop %v277
  %v294 = vadd.f32 %v278, 1.0
  %v295 = vadd.f32 %v279, 1.0
  %v296 = vadd.f32 %v280, 1.0
  %v297 = vadd.f32 %v281, 1.0
  %v298 = vadd.f32 %v282, 1.0
  %v299 = vadd.f32 %v283, 1.0
  %v300 = vadd.f32 %v284, 1.0
  %v301 = vadd.f32 %v285, 1.0
  %v302 = vadd.f32 %v286, 1.0
  %v303 = vadd.f32 %v287, 1.0
  %v304 = vadd.f32 %v288, 1.0
  %v305 = vadd.f32 %v289, 1.0
  %v306 = vadd.f32 %v290, 1.0
  %v307 = vadd.f32 %v291, 1.0
  %v308 = vadd.f32 %v292, 1.0
  %v309 = vadd.f32 %v293, 1.0
  %v310 = vmul.f32 %v246, %v294
  %v311 = vmul.f32 %v247, %v295
  %v312 = vmul.f32 %v248, %v296
  %v313 = vmul.f32 %v249, %v297
  %v314 = vmul.f32 %v250, %v298
  %v315 = vmul.f32 %v251, %v299
  %v316 = vmul.f32 %v252, %v300
  %v317 = vmul.f32 %v253, %v301
  %v318 = vmul.f32 %v254, %v302
  %v319 = vmul.f32 %v255, %v303
  %v320 = vmul.f32 %v256, %v304
  %v321 = vmul.f32 %v257, %v305
  %v322 = vmul.f32 %v258, %v306
  %v323 = vmul.f32 %v259, %v307
  %v324 = vmul.f32 %v260, %v308
  %v325 = vmul.f32 %v261, %v309
  %v326 = vpack.c.bf16 %v312, %v310
  %v327 = vpack.c.bf16 %v313, %v311
  %v328 = vpack.c.bf16 %v316, %v314
  %v329 = vpack.c.bf16 %v317, %v315
  %v330 = vpack.c.bf16 %v320, %v318
  %v331 = vpack.c.bf16 %v321, %v319
  %v332 = vpack.c.bf16 %v324, %v322
  %v333 = vpack.c.bf16 %v325, %v323
  %v334 = vld [vmem:[%s3] sm:$0xff]
  %v335 = vld [vmem:[%s3 + $0x8] sm:$0xff]
  %v336 = vld [vmem:[%s3 + $0x10] sm:$0xff]
  %v337 = vld [vmem:[%s3 + $0x18] sm:$0xff]
  %v338 = vld [vmem:[%s3 + $0x20] sm:$0xff]
  %v339 = vld [vmem:[%s3 + $0x28] sm:$0xff]
  %v340 = vld [vmem:[%s3 + $0x30] sm:$0xff]
  %v341 = vld [vmem:[%s3 + $0x38] sm:$0xff]
  %v342 = vld [vmem:[%s3 + $0x40] sm:$0xff]
  %v343 = vld [vmem:[%s3 + $0x48] sm:$0xff]
  %v344 = vld [vmem:[%s3 + $0x50] sm:$0xff]
  %v345 = vld [vmem:[%s3 + $0x58] sm:$0xff]
  %v346 = vld [vmem:[%s3 + $0x60] sm:$0xff]
  %v347 = vld [vmem:[%s3 + $0x68] sm:$0xff]
  %v348 = vld [vmem:[%s3 + $0x70] sm:$0xff]
  %v349 = vld [vmem:[%s3 + $0x78] sm:$0xff]
  %v350 = vld [vmem:[%s3 + $0x80] sm:$0xff]
  %v351 = vld [vmem:[%s3 + $0x88] sm:$0xff]
  %v352 = vld [vmem:[%s3 + $0x90] sm:$0xff]
  %v353 = vld [vmem:[%s3 + $0x98] sm:$0xff]
  %v354 = vld [vmem:[%s3 + $0xa0] sm:$0xff]
  %v355 = vld [vmem:[%s3 + $0xa8] sm:$0xff]
  %v356 = vld [vmem:[%s3 + $0xb0] sm:$0xff]
  %v357 = vld [vmem:[%s3 + $0xb8] sm:$0xff]
  %v358 = vld [vmem:[%s3 + $0xc0] sm:$0xff]
  %v359 = vld [vmem:[%s3 + $0xc8] sm:$0xff]
  %v360 = vld [vmem:[%s3 + $0xd0] sm:$0xff]
  %v361 = vld [vmem:[%s3 + $0xd8] sm:$0xff]
  %v362 = vld [vmem:[%s3 + $0xe0] sm:$0xff]
  %v363 = vld [vmem:[%s3 + $0xe8] sm:$0xff]
  %v364 = vld [vmem:[%s3 + $0xf0] sm:$0xff]
  %v365 = vld [vmem:[%s3 + $0xf8] sm:$0xff]
  %v366 = vpack.c.bf16 %v335, %v334
  %v367 = vpack.c.bf16 %v337, %v336
  %v368 = vpack.c.bf16 %v339, %v338
  %v369 = vpack.c.bf16 %v341, %v340
  %v370 = vpack.c.bf16 %v343, %v342
  %v371 = vpack.c.bf16 %v345, %v344
  %v372 = vpack.c.bf16 %v347, %v346
  %v373 = vpack.c.bf16 %v349, %v348
  %v374 = vpack.c.bf16 %v351, %v350
  %v375 = vpack.c.bf16 %v353, %v352
  %v376 = vpack.c.bf16 %v355, %v354
  %v377 = vpack.c.bf16 %v357, %v356
  %v378 = vpack.c.bf16 %v359, %v358
  %v379 = vpack.c.bf16 %v361, %v360
  %v380 = vpack.c.bf16 %v363, %v362
  %v381 = vpack.c.bf16 %v365, %v364
  %v382 = vld [vmem:[%s4] sm:$0x1]
  %v384 = vlaneseq
  %v385 = vshrl.u32 %v384, 7
  %v386 = vsub.s32 0, %v385
  %v387 = vrot.slane %v382, %v386
  %389 = vmatprep.subr.bf16.mxu0 0
  %390 = vmatpush1.bf16.msra.mxu0 %v366
  %391 = vmatprep.subr.bf16.mxu0 0
  %392 = vmatpush1.bf16.msra.mxu0 %v367
  %393 = vmatprep.subr.bf16.mxu0 0
  %394 = vmatpush1.bf16.msra.mxu0 %v368
  %395 = vmatprep.subr.bf16.mxu0 0
  %396 = vmatpush1.bf16.msra.mxu0 %v369
  %397 = vmatprep.subr.bf16.mxu0 0
  %398 = vmatpush1.bf16.msra.mxu0 %v370
  %399 = vmatprep.subr.bf16.mxu0 0
  %400 = vmatpush1.bf16.msra.mxu0 %v371
  %401 = vmatprep.subr.bf16.mxu0 0
  %402 = vmatpush1.bf16.msra.mxu0 %v372
  %403 = vmatprep.subr.bf16.mxu0 0
  %404 = vmatpush1.bf16.msra.mxu0 %v373
  %405 = vmatprep.subr.bf16.mxu0 0
  %406 = vmatpush1.bf16.msra.mxu0 %v374
  %407 = vmatprep.subr.bf16.mxu0 0
  %408 = vmatpush1.bf16.msra.mxu0 %v375
  %409 = vmatprep.subr.bf16.mxu0 0
  %410 = vmatpush1.bf16.msra.mxu0 %v376
  %411 = vmatprep.subr.bf16.mxu0 0
  %412 = vmatpush1.bf16.msra.mxu0 %v377
  %413 = vmatprep.subr.bf16.mxu0 0
  %414 = vmatpush1.bf16.msra.mxu0 %v378
  %415 = vmatprep.subr.bf16.mxu0 0
  %416 = vmatpush1.bf16.msra.mxu0 %v379
  %417 = vmatprep.subr.bf16.mxu0 0
  %418 = vmatpush1.bf16.msra.mxu0 %v380
  %419 = vmatprep.subr.bf16.mxu0 0
  %420 = vmatpush1.bf16.msra.mxu0 %v381
  %421 = vmatprep.mubr.bf16.mxu0 %v327
  %422 = vmatmul.mubr.bf16.gmra.mrb[0].mxu0 %v326
  %v423 = vpop.f32.mrb[0].mxu0
  %v424 = vadd.f32 %v387, %v423
  %v425 = vpop.f32.mrb[0].mxu0
  %v426 = vpop.f32.mrb[0].mxu0
  %v427 = vadd.f32 %v387, %v426
  %v428 = vpop.f32.mrb[0].mxu0
  %429 = vmatprep.mubr.bf16.mxu0 %v329
  %430 = vmatmul.mubr.bf16.gmra.mrb[0].mxu0 %v328
  %v431 = vpop.f32.mrb[0].mxu0
  %v432 = vadd.f32 %v387, %v431
  %v433 = vpop.f32.mrb[0].mxu0
  %v434 = vpop.f32.mrb[0].mxu0
  %v435 = vadd.f32 %v387, %v434
  %v436 = vpop.f32.mrb[0].mxu0
  %437 = vmatprep.mubr.bf16.mxu0 %v331
  %438 = vmatmul.mubr.bf16.gmra.mrb[0].mxu0 %v330
  %v439 = vpop.f32.mrb[0].mxu0
  %v440 = vadd.f32 %v387, %v439
  %v441 = vpop.f32.mrb[0].mxu0
  %v442 = vpop.f32.mrb[0].mxu0
  %v443 = vadd.f32 %v387, %v442
  %v444 = vpop.f32.mrb[0].mxu0
  %445 = vmatprep.mubr.bf16.mxu0 %v333
  %446 = vmatmul.mubr.bf16.gmra.mrb[0].mxu0 %v332
  %v447 = vpop.f32.mrb[0].mxu0
  %v448 = vadd.f32 %v387, %v447
  %v449 = vpop.f32.mrb[0].mxu0
  %v450 = vpop.f32.mrb[0].mxu0
  %v451 = vadd.f32 %v387, %v450
  %v452 = vpop.f32.mrb[0].mxu0
  %453 = vdwg.mxu0
  %v454 = vmul.f32 %v424, 0.5
  %v455 = vmul.f32 %v427, 0.5
  %v456 = vmul.f32 %v432, 0.5
  %v457 = vmul.f32 %v435, 0.5
  %v458 = vmul.f32 %v440, 0.5
  %v459 = vmul.f32 %v443, 0.5
  %v460 = vmul.f32 %v448, 0.5
  %v461 = vmul.f32 %v451, 0.5
  %v462 = vmul.f32 %v424, 0.70710677
  %v463 = vmul.f32 %v427, 0.70710677
  %v464 = vmul.f32 %v432, 0.70710677
  %v465 = vmul.f32 %v435, 0.70710677
  %v466 = vmul.f32 %v440, 0.70710677
  %v467 = vmul.f32 %v443, 0.70710677
  %v468 = vmul.f32 %v448, 0.70710677
  %v469 = vmul.f32 %v451, 0.70710677
  %v470 = verf.f32.pop %v462
  %v471 = verf.f32.pop %v463
  %v472 = verf.f32.pop %v464
  %v473 = verf.f32.pop %v465
  %v474 = verf.f32.pop %v466
  %v475 = verf.f32.pop %v467
  %v476 = verf.f32.pop %v468
  %v477 = verf.f32.pop %v469
  %v478 = vadd.f32 %v470, 1.0
  %v479 = vadd.f32 %v471, 1.0
  %v480 = vadd.f32 %v472, 1.0
  %v481 = vadd.f32 %v473, 1.0
  %v482 = vadd.f32 %v474, 1.0
  %v483 = vadd.f32 %v475, 1.0
  %v484 = vadd.f32 %v476, 1.0
  %v485 = vadd.f32 %v477, 1.0
  %v486 = vmul.f32 %v454, %v478
  %v487 = vmul.f32 %v455, %v479
  %v488 = vmul.f32 %v456, %v480
  %v489 = vmul.f32 %v457, %v481
  %v490 = vmul.f32 %v458, %v482
  %v491 = vmul.f32 %v459, %v483
  %v492 = vmul.f32 %v460, %v484
  %v493 = vmul.f32 %v461, %v485
  %v494 = vpack.c.bf16 %v487, %v486
  %v495 = vpack.c.bf16 %v489, %v488
  %v496 = vpack.c.bf16 %v491, %v490
  %v497 = vpack.c.bf16 %v493, %v492
  %v498 = vld [vmem:[%s5] sm:$0xff]
  %v499 = vld [vmem:[%s5 + $0x8] sm:$0xff]
  %v500 = vld [vmem:[%s5 + $0x10] sm:$0xff]
  %v501 = vld [vmem:[%s5 + $0x18] sm:$0xff]
  %v502 = vld [vmem:[%s5 + $0x20] sm:$0xff]
  %v503 = vld [vmem:[%s5 + $0x28] sm:$0xff]
  %v504 = vld [vmem:[%s5 + $0x30] sm:$0xff]
  %v505 = vld [vmem:[%s5 + $0x38] sm:$0xff]
  %v506 = vld [vmem:[%s5 + $0x40] sm:$0xff]
  %v507 = vld [vmem:[%s5 + $0x48] sm:$0xff]
  %v508 = vld [vmem:[%s5 + $0x50] sm:$0xff]
  %v509 = vld [vmem:[%s5 + $0x58] sm:$0xff]
  %v510 = vld [vmem:[%s5 + $0x60] sm:$0xff]
  %v511 = vld [vmem:[%s5 + $0x68] sm:$0xff]
  %v512 = vld [vmem:[%s5 + $0x70] sm:$0xff]
  %v513 = vld [vmem:[%s5 + $0x78] sm:$0xff]
  %v514 = vpack.c.bf16 %v499, %v498
  %v515 = vpack.c.bf16 %v501, %v500
  %v516 = vpack.c.bf16 %v503, %v502
  %v517 = vpack.c.bf16 %v505, %v504
  %v518 = vpack.c.bf16 %v507, %v506
  %v519 = vpack.c.bf16 %v509, %v508
  %v520 = vpack.c.bf16 %v511, %v510
  %v521 = vpack.c.bf16 %v513, %v512
  %v522 = vld [vmem:[%s6] sm:$0x1]
  %v524 = vlaneseq
  %v525 = vshrl.u32 %v524, 7
  %v526 = vsub.s32 0, %v525
  %v527 = vrot.slane %v522, %v526
  %529 = vmatprep.subr.bf16.mxu0 0
  %530 = vmatpush1.bf16.msra.mxu0 %v514
  %531 = vmatprep.subr.bf16.mxu0 0
  %532 = vmatpush1.bf16.msra.mxu0 %v515
  %533 = vmatprep.subr.bf16.mxu0 0
  %534 = vmatpush1.bf16.msra.mxu0 %v516
  %535 = vmatprep.subr.bf16.mxu0 0
  %536 = vmatpush1.bf16.msra.mxu0 %v517
  %537 = vmatprep.subr.bf16.mxu0 0
  %538 = vmatpush1.bf16.msra.mxu0 %v518
  %539 = vmatprep.subr.bf16.mxu0 0
  %540 = vmatpush1.bf16.msra.mxu0 %v519
  %541 = vmatprep.subr.bf16.mxu0 0
  %542 = vmatpush1.bf16.msra.mxu0 %v520
  %543 = vmatprep.subr.bf16.mxu0 0
  %544 = vmatpush1.bf16.msra.mxu0 %v521
  %545 = vmatprep.subr.bf16.mxu0 0
  %546 = vmatpush1.bf16.msra.mxu0 0
  %547 = vmatprep.subr.bf16.mxu0 0
  %548 = vmatpush1.bf16.msra.mxu0 0
  %549 = vmatprep.subr.bf16.mxu0 0
  %550 = vmatpush1.bf16.msra.mxu0 0
  %551 = vmatprep.subr.bf16.mxu0 0
  %552 = vmatpush1.bf16.msra.mxu0 0
  %553 = vmatprep.subr.bf16.mxu0 0
  %554 = vmatpush1.bf16.msra.mxu0 0
  %555 = vmatprep.subr.bf16.mxu0 0
  %556 = vmatpush1.bf16.msra.mxu0 0
  %557 = vmatprep.subr.bf16.mxu0 0
  %558 = vmatpush1.bf16.msra.mxu0 0
  %559 = vmatprep.subr.bf16.mxu0 0
  %560 = vmatpush1.bf16.msra.mxu0 0
  %561 = vmatprep.mubr.bf16.mxu0 0
  %562 = vmatmul.mubr.bf16.gmra.mrb[0].mxu0 %v494
  %v563 = vpop.f32.mrb[0].mxu0
  %v564 = vadd.f32 %v527, %v563
  %v565 = vpop.f32.mrb[0].mxu0
  %v566 = vpop.f32.mrb[0].mxu0
  %v567 = vadd.f32 %v527, %v566
  %v568 = vpop.f32.mrb[0].mxu0
  %569 = vmatprep.mubr.bf16.mxu0 0
  %570 = vmatmul.mubr.bf16.gmra.mrb[0].mxu0 %v495
  %v571 = vpop.f32.mrb[0].mxu0
  %v572 = vadd.f32 %v527, %v571
  %v573 = vpop.f32.mrb[0].mxu0
  %v574 = vpop.f32.mrb[0].mxu0
  %v575 = vadd.f32 %v527, %v574
  %v576 = vpop.f32.mrb[0].mxu0
  %577 = vmatprep.mubr.bf16.mxu0 0
  %578 = vmatmul.mubr.bf16.gmra.mrb[0].mxu0 %v496
  %v579 = vpop.f32.mrb[0].mxu0
  %v580 = vadd.f32 %v527, %v579
  %v581 = vpop.f32.mrb[0].mxu0
  %v582 = vpop.f32.mrb[0].mxu0
  %v583 = vadd.f32 %v527, %v582
  %v584 = vpop.f32.mrb[0].mxu0
  %585 = vmatprep.mubr.bf16.mxu0 0
  %586 = vmatmul.mubr.bf16.gmra.mrb[0].mxu0 %v497
  %v587 = vpop.f32.mrb[0].mxu0
  %v588 = vadd.f32 %v527, %v587
  %v589 = vpop.f32.mrb[0].mxu0
  %v590 = vpop.f32.mrb[0].mxu0
  %v591 = vadd.f32 %v527, %v590
  %v592 = vpop.f32.mrb[0].mxu0
  %593 = vdwg.mxu0
  %594 = vst [vmem:[%s11] sm:$0xff] %v564
  %595 = vst [vmem:[%s11 + $0x8] sm:$0xff] %v567
  %596 = vst [vmem:[%s11 + $0x10] sm:$0xff] %v572
  %597 = vst [vmem:[%s11 + $0x18] sm:$0xff] %v575
  %598 = vst [vmem:[%s11 + $0x20] sm:$0xff] %v580
  %599 = vst [vmem:[%s11 + $0x28] sm:$0xff] %v583
  %600 = vst [vmem:[%s11 + $0x30] sm:$0xff] %v588
  %601 = vst [vmem:[%s11 + $0x38] sm:$0xff] %v591
  %v602 = vpack.c.bf16 %v41, %v41
  %v603 = vpack.c.bf16 %v42, %v42
  %v604 = vld [vmem:[%s7] sm:$0xff]
  %v605 = vld [vmem:[%s7 + $0x8] sm:$0xff]
  %v606 = vld [vmem:[%s7 + $0x10] sm:$0xff]
  %v607 = vld [vmem:[%s7 + $0x18] sm:$0xff]
  %v608 = vld [vmem:[%s7 + $0x20] sm:$0xff]
  %v609 = vld [vmem:[%s7 + $0x28] sm:$0xff]
  %v610 = vld [vmem:[%s7 + $0x30] sm:$0xff]
  %v611 = vld [vmem:[%s7 + $0x38] sm:$0xff]
  %v612 = vld [vmem:[%s7 + $0x40] sm:$0xff]
  %v613 = vld [vmem:[%s7 + $0x48] sm:$0xff]
  %v614 = vld [vmem:[%s7 + $0x50] sm:$0xff]
  %v615 = vld [vmem:[%s7 + $0x58] sm:$0xff]
  %v616 = vld [vmem:[%s7 + $0x60] sm:$0xff]
  %v617 = vld [vmem:[%s7 + $0x68] sm:$0xff]
  %v618 = vld [vmem:[%s7 + $0x70] sm:$0xff]
  %v619 = vld [vmem:[%s7 + $0x78] sm:$0xff]
  %v620 = vld [vmem:[%s7 + $0x80] sm:$0xff]
  %v621 = vld [vmem:[%s7 + $0x88] sm:$0xff]
  %v622 = vld [vmem:[%s7 + $0x90] sm:$0xff]
  %v623 = vld [vmem:[%s7 + $0x98] sm:$0xff]
  %v624 = vld [vmem:[%s7 + $0xa0] sm:$0xff]
  %v625 = vld [vmem:[%s7 + $0xa8] sm:$0xff]
  %v626 = vld [vmem:[%s7 + $0xb0] sm:$0xff]
  %v627 = vld [vmem:[%s7 + $0xb8] sm:$0xff]
  %v628 = vld [vmem:[%s7 + $0xc0] sm:$0xff]
  %v629 = vld [vmem:[%s7 + $0xc8] sm:$0xff]
  %v630 = vld [vmem:[%s7 + $0xd0] sm:$0xff]
  %v631 = vld [vmem:[%s7 + $0xd8] sm:$0xff]
  %v632 = vld [vmem:[%s7 + $0xe0] sm:$0xff]
  %v633 = vld [vmem:[%s7 + $0xe8] sm:$0xff]
  %v634 = vld [vmem:[%s7 + $0xf0] sm:$0xff]
  %v635 = vld [vmem:[%s7 + $0xf8] sm:$0xff]
  %v636 = vpack.c.bf16 %v605, %v604
  %v637 = vpack.c.bf16 %v607, %v606
  %v638 = vpack.c.bf16 %v609, %v608
  %v639 = vpack.c.bf16 %v611, %v610
  %v640 = vpack.c.bf16 %v613, %v612
  %v641 = vpack.c.bf16 %v615, %v614
  %v642 = vpack.c.bf16 %v617, %v616
  %v643 = vpack.c.bf16 %v619, %v618
  %v644 = vpack.c.bf16 %v621, %v620
  %v645 = vpack.c.bf16 %v623, %v622
  %v646 = vpack.c.bf16 %v625, %v624
  %v647 = vpack.c.bf16 %v627, %v626
  %v648 = vpack.c.bf16 %v629, %v628
  %v649 = vpack.c.bf16 %v631, %v630
  %v650 = vpack.c.bf16 %v633, %v632
  %v651 = vpack.c.bf16 %v635, %v634
  %v652 = vpack.c.bf16 %v43, %v43
  %v653 = vpack.c.bf16 %v44, %v44
  %s654 = scalar_lea.vmem %s7, 256
  %v655 = vld [vmem:[%s654] sm:$0xff]
  %v656 = vld [vmem:[%s654 + $0x8] sm:$0xff]
  %v657 = vld [vmem:[%s654 + $0x10] sm:$0xff]
  %v658 = vld [vmem:[%s654 + $0x18] sm:$0xff]
  %v659 = vld [vmem:[%s654 + $0x20] sm:$0xff]
  %v660 = vld [vmem:[%s654 + $0x28] sm:$0xff]
  %v661 = vld [vmem:[%s654 + $0x30] sm:$0xff]
  %v662 = vld [vmem:[%s654 + $0x38] sm:$0xff]
  %v663 = vld [vmem:[%s654 + $0x40] sm:$0xff]
  %v664 = vld [vmem:[%s654 + $0x48] sm:$0xff]
  %v665 = vld [vmem:[%s654 + $0x50] sm:$0xff]
  %v666 = vld [vmem:[%s654 + $0x58] sm:$0xff]
  %v667 = vld [vmem:[%s654 + $0x60] sm:$0xff]
  %v668 = vld [vmem:[%s654 + $0x68] sm:$0xff]
  %v669 = vld [vmem:[%s654 + $0x70] sm:$0xff]
  %v670 = vld [vmem:[%s654 + $0x78] sm:$0xff]
  %v671 = vld [vmem:[%s654 + $0x80] sm:$0xff]
  %v672 = vld [vmem:[%s654 + $0x88] sm:$0xff]
  %v673 = vld [vmem:[%s654 + $0x90] sm:$0xff]
  %v674 = vld [vmem:[%s654 + $0x98] sm:$0xff]
  %v675 = vld [vmem:[%s654 + $0xa0] sm:$0xff]
  %v676 = vld [vmem:[%s654 + $0xa8] sm:$0xff]
  %v677 = vld [vmem:[%s654 + $0xb0] sm:$0xff]
  %v678 = vld [vmem:[%s654 + $0xb8] sm:$0xff]
  %v679 = vld [vmem:[%s654 + $0xc0] sm:$0xff]
  %v680 = vld [vmem:[%s654 + $0xc8] sm:$0xff]
  %v681 = vld [vmem:[%s654 + $0xd0] sm:$0xff]
  %v682 = vld [vmem:[%s654 + $0xd8] sm:$0xff]
  %v683 = vld [vmem:[%s654 + $0xe0] sm:$0xff]
  %v684 = vld [vmem:[%s654 + $0xe8] sm:$0xff]
  %v685 = vld [vmem:[%s654 + $0xf0] sm:$0xff]
  %v686 = vld [vmem:[%s654 + $0xf8] sm:$0xff]
  %v687 = vpack.c.bf16 %v656, %v655
  %v688 = vpack.c.bf16 %v658, %v657
  %v689 = vpack.c.bf16 %v660, %v659
  %v690 = vpack.c.bf16 %v662, %v661
  %v691 = vpack.c.bf16 %v664, %v663
  %v692 = vpack.c.bf16 %v666, %v665
  %v693 = vpack.c.bf16 %v668, %v667
  %v694 = vpack.c.bf16 %v670, %v669
  %v695 = vpack.c.bf16 %v672, %v671
  %v696 = vpack.c.bf16 %v674, %v673
  %v697 = vpack.c.bf16 %v676, %v675
  %v698 = vpack.c.bf16 %v678, %v677
  %v699 = vpack.c.bf16 %v680, %v679
  %v700 = vpack.c.bf16 %v682, %v681
  %v701 = vpack.c.bf16 %v684, %v683
  %v702 = vpack.c.bf16 %v686, %v685
  %703 = vmatprep.subr.bf16.mxu0 0
  %704 = vmatpush1.bf16.msra.mxu0 %v687
  %705 = vmatprep.subr.bf16.mxu0 0
  %706 = vmatpush1.bf16.msra.mxu0 %v688
  %707 = vmatprep.subr.bf16.mxu0 0
  %708 = vmatpush1.bf16.msra.mxu0 %v689
  %709 = vmatprep.subr.bf16.mxu0 0
  %710 = vmatpush1.bf16.msra.mxu0 %v690
  %711 = vmatprep.subr.bf16.mxu0 0
  %712 = vmatpush1.bf16.msra.mxu0 %v691
  %713 = vmatprep.subr.bf16.mxu0 0
  %714 = vmatpush1.bf16.msra.mxu0 %v692
  %715 = vmatprep.subr.bf16.mxu0 0
  %716 = vmatpush1.bf16.msra.mxu0 %v693
  %717 = vmatprep.subr.bf16.mxu0 0
  %718 = vmatpush1.bf16.msra.mxu0 %v694
  %719 = vmatprep.subr.bf16.mxu0 0
  %720 = vmatpush1.bf16.msra.mxu0 %v695
  %721 = vmatprep.subr.bf16.mxu0 0
  %722 = vmatpush1.bf16.msra.mxu0 %v696
  %723 = vmatprep.subr.bf16.mxu0 0
  %724 = vmatpush1.bf16.msra.mxu0 %v697
  %725 = vmatprep.subr.bf16.mxu0 0
  %726 = vmatpush1.bf16.msra.mxu0 %v698
  %727 = vmatprep.subr.bf16.mxu0 0
  %728 = vmatpush1.bf16.msra.mxu0 %v699
  %729 = vmatprep.subr.bf16.mxu0 0
  %730 = vmatpush1.bf16.msra.mxu0 %v700
  %731 = vmatprep.subr.bf16.mxu0 0
  %732 = vmatpush1.bf16.msra.mxu0 %v701
  %733 = vmatprep.subr.bf16.mxu0 0
  %734 = vmatpush1.bf16.msra.mxu0 %v702
  %735 = vmatprep.mubr.bf16.mxu0 %v653
  %736 = vmatmul.mubr.bf16.gmra.mrb[0].mxu0 %v652
  %v737 = vpop.f32.mrb[0].mxu0
  %v738 = vadd.f32 0.0, %v737
  %v739 = vpop.f32.mrb[0].mxu0
  %v740 = vpop.f32.mrb[0].mxu0
  %v741 = vpop.f32.mrb[0].mxu0
  %742 = vdwg.mxu0
  %743 = vmatprep.subr.bf16.mxu0 0
  %744 = vmatpush1.bf16.msra.mxu0 %v636
  %745 = vmatprep.subr.bf16.mxu0 0
  %746 = vmatpush1.bf16.msra.mxu0 %v637
  %747 = vmatprep.subr.bf16.mxu0 0
  %748 = vmatpush1.bf16.msra.mxu0 %v638
  %749 = vmatprep.subr.bf16.mxu0 0
  %750 = vmatpush1.bf16.msra.mxu0 %v639
  %751 = vmatprep.subr.bf16.mxu0 0
  %752 = vmatpush1.bf16.msra.mxu0 %v640
  %753 = vmatprep.subr.bf16.mxu0 0
  %754 = vmatpush1.bf16.msra.mxu0 %v641
  %755 = vmatprep.subr.bf16.mxu0 0
  %756 = vmatpush1.bf16.msra.mxu0 %v642
  %757 = vmatprep.subr.bf16.mxu0 0
  %758 = vmatpush1.bf16.msra.mxu0 %v643
  %759 = vmatprep.subr.bf16.mxu0 0
  %760 = vmatpush1.bf16.msra.mxu0 %v644
  %761 = vmatprep.subr.bf16.mxu0 0
  %762 = vmatpush1.bf16.msra.mxu0 %v645
  %763 = vmatprep.subr.bf16.mxu0 0
  %764 = vmatpush1.bf16.msra.mxu0 %v646
  %765 = vmatprep.subr.bf16.mxu0 0
  %766 = vmatpush1.bf16.msra.mxu0 %v647
  %767 = vmatprep.subr.bf16.mxu0 0
  %768 = vmatpush1.bf16.msra.mxu0 %v648
  %769 = vmatprep.subr.bf16.mxu0 0
  %770 = vmatpush1.bf16.msra.mxu0 %v649
  %771 = vmatprep.subr.bf16.mxu0 0
  %772 = vmatpush1.bf16.msra.mxu0 %v650
  %773 = vmatprep.subr.bf16.mxu0 0
  %774 = vmatpush1.bf16.msra.mxu0 %v651
  %775 = vmatprep.mubr.bf16.mxu0 %v603
  %776 = vmatmul.mubr.bf16.gmra.mrb[0].mxu0 %v602
  %v777 = vpop.f32.mrb[0].mxu0
  %v778 = vadd.f32 %v738, %v777
  %v779 = vpop.f32.mrb[0].mxu0
  %v780 = vpop.f32.mrb[0].mxu0
  %v781 = vpop.f32.mrb[0].mxu0
  %782 = vdwg.mxu0
  %v783 = vpack.c.bf16 %v45, %v45
  %v784 = vpack.c.bf16 %v46, %v46
  %s785 = scalar_lea.vmem %s7, 512
  %v786 = vld [vmem:[%s785] sm:$0xff]
  %v787 = vld [vmem:[%s785 + $0x8] sm:$0xff]
  %v788 = vld [vmem:[%s785 + $0x10] sm:$0xff]
  %v789 = vld [vmem:[%s785 + $0x18] sm:$0xff]
  %v790 = vld [vmem:[%s785 + $0x20] sm:$0xff]
  %v791 = vld [vmem:[%s785 + $0x28] sm:$0xff]
  %v792 = vld [vmem:[%s785 + $0x30] sm:$0xff]
  %v793 = vld [vmem:[%s785 + $0x38] sm:$0xff]
  %v794 = vld [vmem:[%s785 + $0x40] sm:$0xff]
  %v795 = vld [vmem:[%s785 + $0x48] sm:$0xff]
  %v796 = vld [vmem:[%s785 + $0x50] sm:$0xff]
  %v797 = vld [vmem:[%s785 + $0x58] sm:$0xff]
  %v798 = vld [vmem:[%s785 + $0x60] sm:$0xff]
  %v799 = vld [vmem:[%s785 + $0x68] sm:$0xff]
  %v800 = vld [vmem:[%s785 + $0x70] sm:$0xff]
  %v801 = vld [vmem:[%s785 + $0x78] sm:$0xff]
  %v802 = vld [vmem:[%s785 + $0x80] sm:$0xff]
  %v803 = vld [vmem:[%s785 + $0x88] sm:$0xff]
  %v804 = vld [vmem:[%s785 + $0x90] sm:$0xff]
  %v805 = vld [vmem:[%s785 + $0x98] sm:$0xff]
  %v806 = vld [vmem:[%s785 + $0xa0] sm:$0xff]
  %v807 = vld [vmem:[%s785 + $0xa8] sm:$0xff]
  %v808 = vld [vmem:[%s785 + $0xb0] sm:$0xff]
  %v809 = vld [vmem:[%s785 + $0xb8] sm:$0xff]
  %v810 = vld [vmem:[%s785 + $0xc0] sm:$0xff]
  %v811 = vld [vmem:[%s785 + $0xc8] sm:$0xff]
  %v812 = vld [vmem:[%s785 + $0xd0] sm:$0xff]
  %v813 = vld [vmem:[%s785 + $0xd8] sm:$0xff]
  %v814 = vld [vmem:[%s785 + $0xe0] sm:$0xff]
  %v815 = vld [vmem:[%s785 + $0xe8] sm:$0xff]
  %v816 = vld [vmem:[%s785 + $0xf0] sm:$0xff]
  %v817 = vld [vmem:[%s785 + $0xf8] sm:$0xff]
  %v818 = vpack.c.bf16 %v787, %v786
  %v819 = vpack.c.bf16 %v789, %v788
  %v820 = vpack.c.bf16 %v791, %v790
  %v821 = vpack.c.bf16 %v793, %v792
  %v822 = vpack.c.bf16 %v795, %v794
  %v823 = vpack.c.bf16 %v797, %v796
  %v824 = vpack.c.bf16 %v799, %v798
  %v825 = vpack.c.bf16 %v801, %v800
  %v826 = vpack.c.bf16 %v803, %v802
  %v827 = vpack.c.bf16 %v805, %v804
  %v828 = vpack.c.bf16 %v807, %v806
  %v829 = vpack.c.bf16 %v809, %v808
  %v830 = vpack.c.bf16 %v811, %v810
  %v831 = vpack.c.bf16 %v813, %v812
  %v832 = vpack.c.bf16 %v815, %v814
  %v833 = vpack.c.bf16 %v817, %v816
  %834 = vmatprep.subr.bf16.mxu0 0
  %835 = vmatpush1.bf16.msra.mxu0 %v818
  %836 = vmatprep.subr.bf16.mxu0 0
  %837 = vmatpush1.bf16.msra.mxu0 %v819
  %838 = vmatprep.subr.bf16.mxu0 0
  %839 = vmatpush1.bf16.msra.mxu0 %v820
  %840 = vmatprep.subr.bf16.mxu0 0
  %841 = vmatpush1.bf16.msra.mxu0 %v821
  %842 = vmatprep.subr.bf16.mxu0 0
  %843 = vmatpush1.bf16.msra.mxu0 %v822
  %844 = vmatprep.subr.bf16.mxu0 0
  %845 = vmatpush1.bf16.msra.mxu0 %v823
  %846 = vmatprep.subr.bf16.mxu0 0
  %847 = vmatpush1.bf16.msra.mxu0 %v824
  %848 = vmatprep.subr.bf16.mxu0 0
  %849 = vmatpush1.bf16.msra.mxu0 %v825
  %850 = vmatprep.subr.bf16.mxu0 0
  %851 = vmatpush1.bf16.msra.mxu0 %v826
  %852 = vmatprep.subr.bf16.mxu0 0
  %853 = vmatpush1.bf16.msra.mxu0 %v827
  %854 = vmatprep.subr.bf16.mxu0 0
  %855 = vmatpush1.bf16.msra.mxu0 %v828
  %856 = vmatprep.subr.bf16.mxu0 0
  %857 = vmatpush1.bf16.msra.mxu0 %v829
  %858 = vmatprep.subr.bf16.mxu0 0
  %859 = vmatpush1.bf16.msra.mxu0 %v830
  %860 = vmatprep.subr.bf16.mxu0 0
  %861 = vmatpush1.bf16.msra.mxu0 %v831
  %862 = vmatprep.subr.bf16.mxu0 0
  %863 = vmatpush1.bf16.msra.mxu0 %v832
  %864 = vmatprep.subr.bf16.mxu0 0
  %865 = vmatpush1.bf16.msra.mxu0 %v833
  %866 = vmatprep.mubr.bf16.mxu0 %v784
  %867 = vmatmul.mubr.bf16.gmra.mrb[0].mxu0 %v783
  %v868 = vpop.f32.mrb[0].mxu0
  %v869 = vadd.f32 0.0, %v868
  %v870 = vpop.f32.mrb[0].mxu0
  %v871 = vpop.f32.mrb[0].mxu0
  %v872 = vpop.f32.mrb[0].mxu0
  %873 = vdwg.mxu0
  %v874 = vadd.f32 %v778, %v869
  %v875 = vpack.c.bf16 %v47, %v47
  %v876 = vpack.c.bf16 %v48, %v48
  %s877 = scalar_lea.vmem %s7, 768
  %v878 = vld [vmem:[%s877] sm:$0xff]
  %v879 = vld [vmem:[%s877 + $0x8] sm:$0xff]
  %v880 = vld [vmem:[%s877 + $0x10] sm:$0xff]
  %v881 = vld [vmem:[%s877 + $0x18] sm:$0xff]
  %v882 = vld [vmem:[%s877 + $0x20] sm:$0xff]
  %v883 = vld [vmem:[%s877 + $0x28] sm:$0xff]
  %v884 = vld [vmem:[%s877 + $0x30] sm:$0xff]
  %v885 = vld [vmem:[%s877 + $0x38] sm:$0xff]
  %v886 = vld [vmem:[%s877 + $0x40] sm:$0xff]
  %v887 = vld [vmem:[%s877 + $0x48] sm:$0xff]
  %v888 = vld [vmem:[%s877 + $0x50] sm:$0xff]
  %v889 = vld [vmem:[%s877 + $0x58] sm:$0xff]
  %v890 = vld [vmem:[%s877 + $0x60] sm:$0xff]
  %v891 = vld [vmem:[%s877 + $0x68] sm:$0xff]
  %v892 = vld [vmem:[%s877 + $0x70] sm:$0xff]
  %v893 = vld [vmem:[%s877 + $0x78] sm:$0xff]
  %v894 = vld [vmem:[%s877 + $0x80] sm:$0xff]
  %v895 = vld [vmem:[%s877 + $0x88] sm:$0xff]
  %v896 = vld [vmem:[%s877 + $0x90] sm:$0xff]
  %v897 = vld [vmem:[%s877 + $0x98] sm:$0xff]
  %v898 = vld [vmem:[%s877 + $0xa0] sm:$0xff]
  %v899 = vld [vmem:[%s877 + $0xa8] sm:$0xff]
  %v900 = vld [vmem:[%s877 + $0xb0] sm:$0xff]
  %v901 = vld [vmem:[%s877 + $0xb8] sm:$0xff]
  %v902 = vld [vmem:[%s877 + $0xc0] sm:$0xff]
  %v903 = vld [vmem:[%s877 + $0xc8] sm:$0xff]
  %v904 = vld [vmem:[%s877 + $0xd0] sm:$0xff]
  %v905 = vld [vmem:[%s877 + $0xd8] sm:$0xff]
  %v906 = vld [vmem:[%s877 + $0xe0] sm:$0xff]
  %v907 = vld [vmem:[%s877 + $0xe8] sm:$0xff]
  %v908 = vld [vmem:[%s877 + $0xf0] sm:$0xff]
  %v909 = vld [vmem:[%s877 + $0xf8] sm:$0xff]
  %v910 = vpack.c.bf16 %v879, %v878
  %v911 = vpack.c.bf16 %v881, %v880
  %v912 = vpack.c.bf16 %v883, %v882
  %v913 = vpack.c.bf16 %v885, %v884
  %v914 = vpack.c.bf16 %v887, %v886
  %v915 = vpack.c.bf16 %v889, %v888
  %v916 = vpack.c.bf16 %v891, %v890
  %v917 = vpack.c.bf16 %v893, %v892
  %v918 = vpack.c.bf16 %v895, %v894
  %v919 = vpack.c.bf16 %v897, %v896
  %v920 = vpack.c.bf16 %v899, %v898
  %v921 = vpack.c.bf16 %v901, %v900
  %v922 = vpack.c.bf16 %v903, %v902
  %v923 = vpack.c.bf16 %v905, %v904
  %v924 = vpack.c.bf16 %v907, %v906
  %v925 = vpack.c.bf16 %v909, %v908
  %926 = vmatprep.subr.bf16.mxu0 0
  %927 = vmatpush1.bf16.msra.mxu0 %v910
  %928 = vmatprep.subr.bf16.mxu0 0
  %929 = vmatpush1.bf16.msra.mxu0 %v911
  %930 = vmatprep.subr.bf16.mxu0 0
  %931 = vmatpush1.bf16.msra.mxu0 %v912
  %932 = vmatprep.subr.bf16.mxu0 0
  %933 = vmatpush1.bf16.msra.mxu0 %v913
  %934 = vmatprep.subr.bf16.mxu0 0
  %935 = vmatpush1.bf16.msra.mxu0 %v914
  %936 = vmatprep.subr.bf16.mxu0 0
  %937 = vmatpush1.bf16.msra.mxu0 %v915
  %938 = vmatprep.subr.bf16.mxu0 0
  %939 = vmatpush1.bf16.msra.mxu0 %v916
  %940 = vmatprep.subr.bf16.mxu0 0
  %941 = vmatpush1.bf16.msra.mxu0 %v917
  %942 = vmatprep.subr.bf16.mxu0 0
  %943 = vmatpush1.bf16.msra.mxu0 %v918
  %944 = vmatprep.subr.bf16.mxu0 0
  %945 = vmatpush1.bf16.msra.mxu0 %v919
  %946 = vmatprep.subr.bf16.mxu0 0
  %947 = vmatpush1.bf16.msra.mxu0 %v920
  %948 = vmatprep.subr.bf16.mxu0 0
  %949 = vmatpush1.bf16.msra.mxu0 %v921
  %950 = vmatprep.subr.bf16.mxu0 0
  %951 = vmatpush1.bf16.msra.mxu0 %v922
  %952 = vmatprep.subr.bf16.mxu0 0
  %953 = vmatpush1.bf16.msra.mxu0 %v923
  %954 = vmatprep.subr.bf16.mxu0 0
  %955 = vmatpush1.bf16.msra.mxu0 %v924
  %956 = vmatprep.subr.bf16.mxu0 0
  %957 = vmatpush1.bf16.msra.mxu0 %v925
  %958 = vmatprep.mubr.bf16.mxu0 %v876
  %959 = vmatmul.mubr.bf16.gmra.mrb[0].mxu0 %v875
  %v960 = vpop.f32.mrb[0].mxu0
  %v961 = vadd.f32 0.0, %v960
  %v962 = vpop.f32.mrb[0].mxu0
  %v963 = vpop.f32.mrb[0].mxu0
  %v964 = vpop.f32.mrb[0].mxu0
  %965 = vdwg.mxu0
  %v966 = vadd.f32 %v874, %v961
  %v967 = vpack.c.bf16 %v49, %v49
  %v968 = vpack.c.bf16 %v50, %v50
  %s969 = scalar_lea.vmem %s7, 1024
  %v970 = vld [vmem:[%s969] sm:$0xff]
  %v971 = vld [vmem:[%s969 + $0x8] sm:$0xff]
  %v972 = vld [vmem:[%s969 + $0x10] sm:$0xff]
  %v973 = vld [vmem:[%s969 + $0x18] sm:$0xff]
  %v974 = vld [vmem:[%s969 + $0x20] sm:$0xff]
  %v975 = vld [vmem:[%s969 + $0x28] sm:$0xff]
  %v976 = vld [vmem:[%s969 + $0x30] sm:$0xff]
  %v977 = vld [vmem:[%s969 + $0x38] sm:$0xff]
  %v978 = vld [vmem:[%s969 + $0x40] sm:$0xff]
  %v979 = vld [vmem:[%s969 + $0x48] sm:$0xff]
  %v980 = vld [vmem:[%s969 + $0x50] sm:$0xff]
  %v981 = vld [vmem:[%s969 + $0x58] sm:$0xff]
  %v982 = vld [vmem:[%s969 + $0x60] sm:$0xff]
  %v983 = vld [vmem:[%s969 + $0x68] sm:$0xff]
  %v984 = vld [vmem:[%s969 + $0x70] sm:$0xff]
  %v985 = vld [vmem:[%s969 + $0x78] sm:$0xff]
  %v986 = vld [vmem:[%s969 + $0x80] sm:$0xff]
  %v987 = vld [vmem:[%s969 + $0x88] sm:$0xff]
  %v988 = vld [vmem:[%s969 + $0x90] sm:$0xff]
  %v989 = vld [vmem:[%s969 + $0x98] sm:$0xff]
  %v990 = vld [vmem:[%s969 + $0xa0] sm:$0xff]
  %v991 = vld [vmem:[%s969 + $0xa8] sm:$0xff]
  %v992 = vld [vmem:[%s969 + $0xb0] sm:$0xff]
  %v993 = vld [vmem:[%s969 + $0xb8] sm:$0xff]
  %v994 = vld [vmem:[%s969 + $0xc0] sm:$0xff]
  %v995 = vld [vmem:[%s969 + $0xc8] sm:$0xff]
  %v996 = vld [vmem:[%s969 + $0xd0] sm:$0xff]
  %v997 = vld [vmem:[%s969 + $0xd8] sm:$0xff]
  %v998 = vld [vmem:[%s969 + $0xe0] sm:$0xff]
  %v999 = vld [vmem:[%s969 + $0xe8] sm:$0xff]
  %v1000 = vld [vmem:[%s969 + $0xf0] sm:$0xff]
  %v1001 = vld [vmem:[%s969 + $0xf8] sm:$0xff]
  %v1002 = vpack.c.bf16 %v971, %v970
  %v1003 = vpack.c.bf16 %v973, %v972
  %v1004 = vpack.c.bf16 %v975, %v974
  %v1005 = vpack.c.bf16 %v977, %v976
  %v1006 = vpack.c.bf16 %v979, %v978
  %v1007 = vpack.c.bf16 %v981, %v980
  %v1008 = vpack.c.bf16 %v983, %v982
  %v1009 = vpack.c.bf16 %v985, %v984
  %v1010 = vpack.c.bf16 %v987, %v986
  %v1011 = vpack.c.bf16 %v989, %v988
  %v1012 = vpack.c.bf16 %v991, %v990
  %v1013 = vpack.c.bf16 %v993, %v992
  %v1014 = vpack.c.bf16 %v995, %v994
  %v1015 = vpack.c.bf16 %v997, %v996
  %v1016 = vpack.c.bf16 %v999, %v998
  %v1017 = vpack.c.bf16 %v1001, %v1000
  %1018 = vmatprep.subr.bf16.mxu0 0
  %1019 = vmatpush1.bf16.msra.mxu0 %v1002
  %1020 = vmatprep.subr.bf16.mxu0 0
  %1021 = vmatpush1.bf16.msra.mxu0 %v1003
  %1022 = vmatprep.subr.bf16.mxu0 0
  %1023 = vmatpush1.bf16.msra.mxu0 %v1004
  %1024 = vmatprep.subr.bf16.mxu0 0
  %1025 = vmatpush1.bf16.msra.mxu0 %v1005
  %1026 = vmatprep.subr.bf16.mxu0 0
  %1027 = vmatpush1.bf16.msra.mxu0 %v1006
  %1028 = vmatprep.subr.bf16.mxu0 0
  %1029 = vmatpush1.bf16.msra.mxu0 %v1007
  %1030 = vmatprep.subr.bf16.mxu0 0
  %1031 = vmatpush1.bf16.msra.mxu0 %v1008
  %1032 = vmatprep.subr.bf16.mxu0 0
  %1033 = vmatpush1.bf16.msra.mxu0 %v1009
  %1034 = vmatprep.subr.bf16.mxu0 0
  %1035 = vmatpush1.bf16.msra.mxu0 %v1010
  %1036 = vmatprep.subr.bf16.mxu0 0
  %1037 = vmatpush1.bf16.msra.mxu0 %v1011
  %1038 = vmatprep.subr.bf16.mxu0 0
  %1039 = vmatpush1.bf16.msra.mxu0 %v1012
  %1040 = vmatprep.subr.bf16.mxu0 0
  %1041 = vmatpush1.bf16.msra.mxu0 %v1013
  %1042 = vmatprep.subr.bf16.mxu0 0
  %1043 = vmatpush1.bf16.msra.mxu0 %v1014
  %1044 = vmatprep.subr.bf16.mxu0 0
  %1045 = vmatpush1.bf16.msra.mxu0 %v1015
  %1046 = vmatprep.subr.bf16.mxu0 0
  %1047 = vmatpush1.bf16.msra.mxu0 %v1016
  %1048 = vmatprep.subr.bf16.mxu0 0
  %1049 = vmatpush1.bf16.msra.mxu0 %v1017
  %1050 = vmatprep.mubr.bf16.mxu0 %v968
  %1051 = vmatmul.mubr.bf16.gmra.mrb[0].mxu0 %v967
  %v1052 = vpop.f32.mrb[0].mxu0
  %v1053 = vadd.f32 0.0, %v1052
  %v1054 = vpop.f32.mrb[0].mxu0
  %v1055 = vpop.f32.mrb[0].mxu0
  %v1056 = vpop.f32.mrb[0].mxu0
  %1057 = vdwg.mxu0
  %v1058 = vadd.f32 %v966, %v1053
  %v1059 = vpack.c.bf16 %v51, %v51
  %v1060 = vpack.c.bf16 %v52, %v52
  %s1061 = scalar_lea.vmem %s7, 1280
  %v1062 = vld [vmem:[%s1061] sm:$0xff]
  %v1063 = vld [vmem:[%s1061 + $0x8] sm:$0xff]
  %v1064 = vld [vmem:[%s1061 + $0x10] sm:$0xff]
  %v1065 = vld [vmem:[%s1061 + $0x18] sm:$0xff]
  %v1066 = vld [vmem:[%s1061 + $0x20] sm:$0xff]
  %v1067 = vld [vmem:[%s1061 + $0x28] sm:$0xff]
  %v1068 = vld [vmem:[%s1061 + $0x30] sm:$0xff]
  %v1069 = vld [vmem:[%s1061 + $0x38] sm:$0xff]
  %v1070 = vld [vmem:[%s1061 + $0x40] sm:$0xff]
  %v1071 = vld [vmem:[%s1061 + $0x48] sm:$0xff]
  %v1072 = vld [vmem:[%s1061 + $0x50] sm:$0xff]
  %v1073 = vld [vmem:[%s1061 + $0x58] sm:$0xff]
  %v1074 = vld [vmem:[%s1061 + $0x60] sm:$0xff]
  %v1075 = vld [vmem:[%s1061 + $0x68] sm:$0xff]
  %v1076 = vld [vmem:[%s1061 + $0x70] sm:$0xff]
  %v1077 = vld [vmem:[%s1061 + $0x78] sm:$0xff]
  %v1078 = vld [vmem:[%s1061 + $0x80] sm:$0xff]
  %v1079 = vld [vmem:[%s1061 + $0x88] sm:$0xff]
  %v1080 = vld [vmem:[%s1061 + $0x90] sm:$0xff]
  %v1081 = vld [vmem:[%s1061 + $0x98] sm:$0xff]
  %v1082 = vld [vmem:[%s1061 + $0xa0] sm:$0xff]
  %v1083 = vld [vmem:[%s1061 + $0xa8] sm:$0xff]
  %v1084 = vld [vmem:[%s1061 + $0xb0] sm:$0xff]
  %v1085 = vld [vmem:[%s1061 + $0xb8] sm:$0xff]
  %v1086 = vld [vmem:[%s1061 + $0xc0] sm:$0xff]
  %v1087 = vld [vmem:[%s1061 + $0xc8] sm:$0xff]
  %v1088 = vld [vmem:[%s1061 + $0xd0] sm:$0xff]
  %v1089 = vld [vmem:[%s1061 + $0xd8] sm:$0xff]
  %v1090 = vld [vmem:[%s1061 + $0xe0] sm:$0xff]
  %v1091 = vld [vmem:[%s1061 + $0xe8] sm:$0xff]
  %v1092 = vld [vmem:[%s1061 + $0xf0] sm:$0xff]
  %v1093 = vld [vmem:[%s1061 + $0xf8] sm:$0xff]
  %v1094 = vpack.c.bf16 %v1063, %v1062
  %v1095 = vpack.c.bf16 %v1065, %v1064
  %v1096 = vpack.c.bf16 %v1067, %v1066
  %v1097 = vpack.c.bf16 %v1069, %v1068
  %v1098 = vpack.c.bf16 %v1071, %v1070
  %v1099 = vpack.c.bf16 %v1073, %v1072
  %v1100 = vpack.c.bf16 %v1075, %v1074
  %v1101 = vpack.c.bf16 %v1077, %v1076
  %v1102 = vpack.c.bf16 %v1079, %v1078
  %v1103 = vpack.c.bf16 %v1081, %v1080
  %v1104 = vpack.c.bf16 %v1083, %v1082
  %v1105 = vpack.c.bf16 %v1085, %v1084
  %v1106 = vpack.c.bf16 %v1087, %v1086
  %v1107 = vpack.c.bf16 %v1089, %v1088
  %v1108 = vpack.c.bf16 %v1091, %v1090
  %v1109 = vpack.c.bf16 %v1093, %v1092
  %1110 = vmatprep.subr.bf16.mxu0 0
  %1111 = vmatpush1.bf16.msra.mxu0 %v1094
  %1112 = vmatprep.subr.bf16.mxu0 0
  %1113 = vmatpush1.bf16.msra.mxu0 %v1095
  %1114 = vmatprep.subr.bf16.mxu0 0
  %1115 = vmatpush1.bf16.msra.mxu0 %v1096
  %1116 = vmatprep.subr.bf16.mxu0 0
  %1117 = vmatpush1.bf16.msra.mxu0 %v1097
  %1118 = vmatprep.subr.bf16.mxu0 0
  %1119 = vmatpush1.bf16.msra.mxu0 %v1098
  %1120 = vmatprep.subr.bf16.mxu0 0
  %1121 = vmatpush1.bf16.msra.mxu0 %v1099
  %1122 = vmatprep.subr.bf16.mxu0 0
  %1123 = vmatpush1.bf16.msra.mxu0 %v1100
  %1124 = vmatprep.subr.bf16.mxu0 0
  %1125 = vmatpush1.bf16.msra.mxu0 %v1101
  %1126 = vmatprep.subr.bf16.mxu0 0
  %1127 = vmatpush1.bf16.msra.mxu0 %v1102
  %1128 = vmatprep.subr.bf16.mxu0 0
  %1129 = vmatpush1.bf16.msra.mxu0 %v1103
  %1130 = vmatprep.subr.bf16.mxu0 0
  %1131 = vmatpush1.bf16.msra.mxu0 %v1104
  %1132 = vmatprep.subr.bf16.mxu0 0
  %1133 = vmatpush1.bf16.msra.mxu0 %v1105
  %1134 = vmatprep.subr.bf16.mxu0 0
  %1135 = vmatpush1.bf16.msra.mxu0 %v1106
  %1136 = vmatprep.subr.bf16.mxu0 0
  %1137 = vmatpush1.bf16.msra.mxu0 %v1107
  %1138 = vmatprep.subr.bf16.mxu0 0
  %1139 = vmatpush1.bf16.msra.mxu0 %v1108
  %1140 = vmatprep.subr.bf16.mxu0 0
  %1141 = vmatpush1.bf16.msra.mxu0 %v1109
  %1142 = vmatprep.mubr.bf16.mxu0 %v1060
  %1143 = vmatmul.mubr.bf16.gmra.mrb[0].mxu0 %v1059
  %v1144 = vpop.f32.mrb[0].mxu0
  %v1145 = vadd.f32 0.0, %v1144
  %v1146 = vpop.f32.mrb[0].mxu0
  %v1147 = vpop.f32.mrb[0].mxu0
  %v1148 = vpop.f32.mrb[0].mxu0
  %1149 = vdwg.mxu0
  %v1150 = vadd.f32 %v1058, %v1145
  %v1151 = vpack.c.bf16 %v53, %v53
  %v1152 = vpack.c.bf16 %v54, %v54
  %s1153 = scalar_lea.vmem %s7, 1536
  %v1154 = vld [vmem:[%s1153] sm:$0xff]
  %v1155 = vld [vmem:[%s1153 + $0x8] sm:$0xff]
  %v1156 = vld [vmem:[%s1153 + $0x10] sm:$0xff]
  %v1157 = vld [vmem:[%s1153 + $0x18] sm:$0xff]
  %v1158 = vld [vmem:[%s1153 + $0x20] sm:$0xff]
  %v1159 = vld [vmem:[%s1153 + $0x28] sm:$0xff]
  %v1160 = vld [vmem:[%s1153 + $0x30] sm:$0xff]
  %v1161 = vld [vmem:[%s1153 + $0x38] sm:$0xff]
  %v1162 = vld [vmem:[%s1153 + $0x40] sm:$0xff]
  %v1163 = vld [vmem:[%s1153 + $0x48] sm:$0xff]
  %v1164 = vld [vmem:[%s1153 + $0x50] sm:$0xff]
  %v1165 = vld [vmem:[%s1153 + $0x58] sm:$0xff]
  %v1166 = vld [vmem:[%s1153 + $0x60] sm:$0xff]
  %v1167 = vld [vmem:[%s1153 + $0x68] sm:$0xff]
  %v1168 = vld [vmem:[%s1153 + $0x70] sm:$0xff]
  %v1169 = vld [vmem:[%s1153 + $0x78] sm:$0xff]
  %v1170 = vld [vmem:[%s1153 + $0x80] sm:$0xff]
  %v1171 = vld [vmem:[%s1153 + $0x88] sm:$0xff]
  %v1172 = vld [vmem:[%s1153 + $0x90] sm:$0xff]
  %v1173 = vld [vmem:[%s1153 + $0x98] sm:$0xff]
  %v1174 = vld [vmem:[%s1153 + $0xa0] sm:$0xff]
  %v1175 = vld [vmem:[%s1153 + $0xa8] sm:$0xff]
  %v1176 = vld [vmem:[%s1153 + $0xb0] sm:$0xff]
  %v1177 = vld [vmem:[%s1153 + $0xb8] sm:$0xff]
  %v1178 = vld [vmem:[%s1153 + $0xc0] sm:$0xff]
  %v1179 = vld [vmem:[%s1153 + $0xc8] sm:$0xff]
  %v1180 = vld [vmem:[%s1153 + $0xd0] sm:$0xff]
  %v1181 = vld [vmem:[%s1153 + $0xd8] sm:$0xff]
  %v1182 = vld [vmem:[%s1153 + $0xe0] sm:$0xff]
  %v1183 = vld [vmem:[%s1153 + $0xe8] sm:$0xff]
  %v1184 = vld [vmem:[%s1153 + $0xf0] sm:$0xff]
  %v1185 = vld [vmem:[%s1153 + $0xf8] sm:$0xff]
  %v1186 = vpack.c.bf16 %v1155, %v1154
  %v1187 = vpack.c.bf16 %v1157, %v1156
  %v1188 = vpack.c.bf16 %v1159, %v1158
  %v1189 = vpack.c.bf16 %v1161, %v1160
  %v1190 = vpack.c.bf16 %v1163, %v1162
  %v1191 = vpack.c.bf16 %v1165, %v1164
  %v1192 = vpack.c.bf16 %v1167, %v1166
  %v1193 = vpack.c.bf16 %v1169, %v1168
  %v1194 = vpack.c.bf16 %v1171, %v1170
  %v1195 = vpack.c.bf16 %v1173, %v1172
  %v1196 = vpack.c.bf16 %v1175, %v1174
  %v1197 = vpack.c.bf16 %v1177, %v1176
  %v1198 = vpack.c.bf16 %v1179, %v1178
  %v1199 = vpack.c.bf16 %v1181, %v1180
  %v1200 = vpack.c.bf16 %v1183, %v1182
  %v1201 = vpack.c.bf16 %v1185, %v1184
  %1202 = vmatprep.subr.bf16.mxu0 0
  %1203 = vmatpush1.bf16.msra.mxu0 %v1186
  %1204 = vmatprep.subr.bf16.mxu0 0
  %1205 = vmatpush1.bf16.msra.mxu0 %v1187
  %1206 = vmatprep.subr.bf16.mxu0 0
  %1207 = vmatpush1.bf16.msra.mxu0 %v1188
  %1208 = vmatprep.subr.bf16.mxu0 0
  %1209 = vmatpush1.bf16.msra.mxu0 %v1189
  %1210 = vmatprep.subr.bf16.mxu0 0
  %1211 = vmatpush1.bf16.msra.mxu0 %v1190
  %1212 = vmatprep.subr.bf16.mxu0 0
  %1213 = vmatpush1.bf16.msra.mxu0 %v1191
  %1214 = vmatprep.subr.bf16.mxu0 0
  %1215 = vmatpush1.bf16.msra.mxu0 %v1192
  %1216 = vmatprep.subr.bf16.mxu0 0
  %1217 = vmatpush1.bf16.msra.mxu0 %v1193
  %1218 = vmatprep.subr.bf16.mxu0 0
  %1219 = vmatpush1.bf16.msra.mxu0 %v1194
  %1220 = vmatprep.subr.bf16.mxu0 0
  %1221 = vmatpush1.bf16.msra.mxu0 %v1195
  %1222 = vmatprep.subr.bf16.mxu0 0
  %1223 = vmatpush1.bf16.msra.mxu0 %v1196
  %1224 = vmatprep.subr.bf16.mxu0 0
  %1225 = vmatpush1.bf16.msra.mxu0 %v1197
  %1226 = vmatprep.subr.bf16.mxu0 0
  %1227 = vmatpush1.bf16.msra.mxu0 %v1198
  %1228 = vmatprep.subr.bf16.mxu0 0
  %1229 = vmatpush1.bf16.msra.mxu0 %v1199
  %1230 = vmatprep.subr.bf16.mxu0 0
  %1231 = vmatpush1.bf16.msra.mxu0 %v1200
  %1232 = vmatprep.subr.bf16.mxu0 0
  %1233 = vmatpush1.bf16.msra.mxu0 %v1201
  %1234 = vmatprep.mubr.bf16.mxu0 %v1152
  %1235 = vmatmul.mubr.bf16.gmra.mrb[0].mxu0 %v1151
  %v1236 = vpop.f32.mrb[0].mxu0
  %v1237 = vadd.f32 0.0, %v1236
  %v1238 = vpop.f32.mrb[0].mxu0
  %v1239 = vpop.f32.mrb[0].mxu0
  %v1240 = vpop.f32.mrb[0].mxu0
  %1241 = vdwg.mxu0
  %v1242 = vadd.f32 %v1150, %v1237
  %v1243 = vpack.c.bf16 %v55, %v55
  %v1244 = vpack.c.bf16 %v56, %v56
  %s1245 = scalar_lea.vmem %s7, 1792
  %v1246 = vld [vmem:[%s1245] sm:$0xff]
  %v1247 = vld [vmem:[%s1245 + $0x8] sm:$0xff]
  %v1248 = vld [vmem:[%s1245 + $0x10] sm:$0xff]
  %v1249 = vld [vmem:[%s1245 + $0x18] sm:$0xff]
  %v1250 = vld [vmem:[%s1245 + $0x20] sm:$0xff]
  %v1251 = vld [vmem:[%s1245 + $0x28] sm:$0xff]
  %v1252 = vld [vmem:[%s1245 + $0x30] sm:$0xff]
  %v1253 = vld [vmem:[%s1245 + $0x38] sm:$0xff]
  %v1254 = vld [vmem:[%s1245 + $0x40] sm:$0xff]
  %v1255 = vld [vmem:[%s1245 + $0x48] sm:$0xff]
  %v1256 = vld [vmem:[%s1245 + $0x50] sm:$0xff]
  %v1257 = vld [vmem:[%s1245 + $0x58] sm:$0xff]
  %v1258 = vld [vmem:[%s1245 + $0x60] sm:$0xff]
  %v1259 = vld [vmem:[%s1245 + $0x68] sm:$0xff]
  %v1260 = vld [vmem:[%s1245 + $0x70] sm:$0xff]
  %v1261 = vld [vmem:[%s1245 + $0x78] sm:$0xff]
  %v1262 = vld [vmem:[%s1245 + $0x80] sm:$0xff]
  %v1263 = vld [vmem:[%s1245 + $0x88] sm:$0xff]
  %v1264 = vld [vmem:[%s1245 + $0x90] sm:$0xff]
  %v1265 = vld [vmem:[%s1245 + $0x98] sm:$0xff]
  %v1266 = vld [vmem:[%s1245 + $0xa0] sm:$0xff]
  %v1267 = vld [vmem:[%s1245 + $0xa8] sm:$0xff]
  %v1268 = vld [vmem:[%s1245 + $0xb0] sm:$0xff]
  %v1269 = vld [vmem:[%s1245 + $0xb8] sm:$0xff]
  %v1270 = vld [vmem:[%s1245 + $0xc0] sm:$0xff]
  %v1271 = vld [vmem:[%s1245 + $0xc8] sm:$0xff]
  %v1272 = vld [vmem:[%s1245 + $0xd0] sm:$0xff]
  %v1273 = vld [vmem:[%s1245 + $0xd8] sm:$0xff]
  %v1274 = vld [vmem:[%s1245 + $0xe0] sm:$0xff]
  %v1275 = vld [vmem:[%s1245 + $0xe8] sm:$0xff]
  %v1276 = vld [vmem:[%s1245 + $0xf0] sm:$0xff]
  %v1277 = vld [vmem:[%s1245 + $0xf8] sm:$0xff]
  %v1278 = vpack.c.bf16 %v1247, %v1246
  %v1279 = vpack.c.bf16 %v1249, %v1248
  %v1280 = vpack.c.bf16 %v1251, %v1250
  %v1281 = vpack.c.bf16 %v1253, %v1252
  %v1282 = vpack.c.bf16 %v1255, %v1254
  %v1283 = vpack.c.bf16 %v1257, %v1256
  %v1284 = vpack.c.bf16 %v1259, %v1258
  %v1285 = vpack.c.bf16 %v1261, %v1260
  %v1286 = vpack.c.bf16 %v1263, %v1262
  %v1287 = vpack.c.bf16 %v1265, %v1264
  %v1288 = vpack.c.bf16 %v1267, %v1266
  %v1289 = vpack.c.bf16 %v1269, %v1268
  %v1290 = vpack.c.bf16 %v1271, %v1270
  %v1291 = vpack.c.bf16 %v1273, %v1272
  %v1292 = vpack.c.bf16 %v1275, %v1274
  %v1293 = vpack.c.bf16 %v1277, %v1276
  %1294 = vmatprep.subr.bf16.mxu0 0
  %1295 = vmatpush1.bf16.msra.mxu0 %v1278
  %1296 = vmatprep.subr.bf16.mxu0 0
  %1297 = vmatpush1.bf16.msra.mxu0 %v1279
  %1298 = vmatprep.subr.bf16.mxu0 0
  %1299 = vmatpush1.bf16.msra.mxu0 %v1280
  %1300 = vmatprep.subr.bf16.mxu0 0
  %1301 = vmatpush1.bf16.msra.mxu0 %v1281
  %1302 = vmatprep.subr.bf16.mxu0 0
  %1303 = vmatpush1.bf16.msra.mxu0 %v1282
  %1304 = vmatprep.subr.bf16.mxu0 0
  %1305 = vmatpush1.bf16.msra.mxu0 %v1283
  %1306 = vmatprep.subr.bf16.mxu0 0
  %1307 = vmatpush1.bf16.msra.mxu0 %v1284
  %1308 = vmatprep.subr.bf16.mxu0 0
  %1309 = vmatpush1.bf16.msra.mxu0 %v1285
  %1310 = vmatprep.subr.bf16.mxu0 0
  %1311 = vmatpush1.bf16.msra.mxu0 %v1286
  %1312 = vmatprep.subr.bf16.mxu0 0
  %1313 = vmatpush1.bf16.msra.mxu0 %v1287
  %1314 = vmatprep.subr.bf16.mxu0 0
  %1315 = vmatpush1.bf16.msra.mxu0 %v1288
  %1316 = vmatprep.subr.bf16.mxu0 0
  %1317 = vmatpush1.bf16.msra.mxu0 %v1289
  %1318 = vmatprep.subr.bf16.mxu0 0
  %1319 = vmatpush1.bf16.msra.mxu0 %v1290
  %1320 = vmatprep.subr.bf16.mxu0 0
  %1321 = vmatpush1.bf16.msra.mxu0 %v1291
  %1322 = vmatprep.subr.bf16.mxu0 0
  %1323 = vmatpush1.bf16.msra.mxu0 %v1292
  %1324 = vmatprep.subr.bf16.mxu0 0
  %1325 = vmatpush1.bf16.msra.mxu0 %v1293
  %1326 = vmatprep.mubr.bf16.mxu0 %v1244
  %1327 = vmatmul.mubr.bf16.gmra.mrb[0].mxu0 %v1243
  %v1328 = vpop.f32.mrb[0].mxu0
  %v1329 = vadd.f32 0.0, %v1328
  %v1330 = vpop.f32.mrb[0].mxu0
  %v1331 = vpop.f32.mrb[0].mxu0
  %v1332 = vpop.f32.mrb[0].mxu0
  %1333 = vdwg.mxu0
  %v1334 = vadd.f32 %v1242, %v1329
  %v1335 = vld [vmem:[%s8] sm:$0x1]
  %v1337 = vlaneseq
  %v1338 = vshrl.u32 %v1337, 7
  %v1339 = vsub.s32 0, %v1338
  %v1340 = vrot.slane %v1335, %v1339
  %v1342 = vadd.f32 %v1334, %v1340
  %v1343 = vmul.f32 %v1342, 0.5
  %v1344 = vmul.f32 %v1342, 0.70710677
  %v1345 = verf.f32.pop %v1344
  %v1346 = vadd.f32 %v1345, 1.0
  %v1347 = vmul.f32 %v1343, %v1346
  %v1348 = vpack.c.bf16 %v1347, %v1347
  %v1349 = vld [vmem:[%s9] sm:$0xff]
  %v1350 = vld [vmem:[%s9 + $0x8] sm:$0xff]
  %v1351 = vld [vmem:[%s9 + $0x10] sm:$0xff]
  %v1352 = vld [vmem:[%s9 + $0x18] sm:$0xff]
  %v1353 = vld [vmem:[%s9 + $0x20] sm:$0xff]
  %v1354 = vld [vmem:[%s9 + $0x28] sm:$0xff]
  %v1355 = vld [vmem:[%s9 + $0x30] sm:$0xff]
  %v1356 = vld [vmem:[%s9 + $0x38] sm:$0xff]
  %v1357 = vpack.c.bf16 %v1350, %v1349
  %v1358 = vpack.c.bf16 %v1352, %v1351
  %v1359 = vpack.c.bf16 %v1354, %v1353
  %v1360 = vpack.c.bf16 %v1356, %v1355
  %v1361 = vld [vmem:[%s10] sm:$0x1]
  %v1363 = vlaneseq
  %v1364 = vshrl.u32 %v1363, 7
  %v1365 = vsub.s32 0, %v1364
  %v1366 = vrot.slane %v1361, %v1365
  %vm1368 = vcmask 523264
  %v1370 = vsel %vm1368, %v1348, 0
  %1372 = vmatprep.subr.bf16.mxu0 0
  %1373 = vmatpush1.bf16.msra.mxu0 %v1357
  %1374 = vmatprep.subr.bf16.mxu0 0
  %1375 = vmatpush1.bf16.msra.mxu0 %v1358
  %1376 = vmatprep.subr.bf16.mxu0 0
  %1377 = vmatpush1.bf16.msra.mxu0 %v1359
  %1378 = vmatprep.subr.bf16.mxu0 0
  %1379 = vmatpush1.bf16.msra.mxu0 %v1360
  %1380 = vmatprep.subr.bf16.mxu0 0
  %1381 = vmatpush1.bf16.msra.mxu0 0
  %1382 = vmatprep.subr.bf16.mxu0 0
  %1383 = vmatpush1.bf16.msra.mxu0 0
  %1384 = vmatprep.subr.bf16.mxu0 0
  %1385 = vmatpush1.bf16.msra.mxu0 0
  %1386 = vmatprep.subr.bf16.mxu0 0
  %1387 = vmatpush1.bf16.msra.mxu0 0
  %1388 = vmatprep.subr.bf16.mxu0 0
  %1389 = vmatpush1.bf16.msra.mxu0 0
  %1390 = vmatprep.subr.bf16.mxu0 0
  %1391 = vmatpush1.bf16.msra.mxu0 0
  %1392 = vmatprep.subr.bf16.mxu0 0
  %1393 = vmatpush1.bf16.msra.mxu0 0
  %1394 = vmatprep.subr.bf16.mxu0 0
  %1395 = vmatpush1.bf16.msra.mxu0 0
  %1396 = vmatprep.subr.bf16.mxu0 0
  %1397 = vmatpush1.bf16.msra.mxu0 0
  %1398 = vmatprep.subr.bf16.mxu0 0
  %1399 = vmatpush1.bf16.msra.mxu0 0
  %1400 = vmatprep.subr.bf16.mxu0 0
  %1401 = vmatpush1.bf16.msra.mxu0 0
  %1402 = vmatprep.subr.bf16.mxu0 0
  %1403 = vmatpush1.bf16.msra.mxu0 0
  %1404 = vmatprep.mubr.bf16.mxu0 0
  %1405 = vmatmul.mubr.bf16.gmra.mrb[0].mxu0 %v1370
  %v1406 = vpop.f32.mrb[0].mxu0
  %v1407 = vadd.f32 %v1366, %v1406
  %v1408 = vpop.f32.mrb[0].mxu0
  %v1409 = vpop.f32.mrb[0].mxu0
  %v1410 = vpop.f32.mrb[0].mxu0
  %1411 = vdwg.mxu0
  %1412 = vst [vmem:[%s12] sm:$0xff] %v1407
  // Predicated region
  $region46: #{critic_classifier_forward.7} parent=0 // pred_check
    _
  $region47: #{critic_classifier_forward.7} parent=0 // pred_check_branch
    %1414 = sbr.rel (0) target = $region49
  $region48: #{critic_classifier_forward.7} parent=0 // pred_region
    _
  $region49: #{critic_classifier_forward.7} parent=0 // pred_fallthru
    _
  // Predicated region
  $region50: #{critic_classifier_forward.7} parent=0 // pred_check
    _
  $region51: #{critic_classifier_forward.7} parent=0 // pred_check_branch
    %1416 = sbr.rel (0) target = $region53
  $region52: #{critic_classifier_forward.7} parent=0 // pred_region
    _
  $region53: #{critic_classifier_forward.7} parent=0 // pred_fallthru
    _
  // Predicated region
  $region54: #{critic_classifier_forward.7} parent=0 // pred_check
    _
  $region55: #{critic_classifier_forward.7} parent=0 // pred_check_branch
    %1418 = sbr.rel (0) target = $region57
  $region56: #{critic_classifier_forward.7} parent=0 // pred_region
    _
  $region57: #{critic_classifier_forward.7} parent=0 // pred_fallthru
    _
  // Predicated region
  $region58: #{critic_classifier_forward.7} parent=0 // pred_check
    _
  $region59: #{critic_classifier_forward.7} parent=0 // pred_check_branch
    %1420 = sbr.rel (0) target = $region61
  $region60: #{critic_classifier_forward.7} parent=0 // pred_region
    _
  $region61: #{critic_classifier_forward.7} parent=0 // pred_fallthru
    _

// kernel: critic_classifier_forward.5
$region0: #{critic_classifier_forward.5}
  #allocation0 [shape = 'u32[]', space=smem, size = 0x4, offset = 0x4, fixed_abs, tag = 'smem constant byte address 0x4 - core index']
  #allocation1 [shape = 'u32[144,128]{1,0:T(1,128)}', space=vmem, size = 0x12000, scoped, tag = 'internal scratch']
  #allocation2 [shape = 'f32[8,8,512]{2,1,0:T(8,128)}', space=vmem, size = 0x20000, scoped, tag = 'scratch operand']
  #allocation3 [shape = 'bf16[128,512]{1,0:T(16,128)(2,1)}', space=vmem, size = 0x20000, scoped, tag = 'scratch operand']
  %s0 = inlined_call_operand.vmem [shape: f32[8,8,256], index: 0, kind: input, shape index: {}]
  %s1 = inlined_call_operand.hbm [shape: f32[2,256,512], index: 1, kind: input, shape index: {}]
  %s2 = inlined_call_operand.vmem [shape: f32[2,128,512], index: 2, kind: input, shape index: {}]
  %s3 = inlined_call_operand.vmem [shape: f32[2,1,512], index: 3, kind: input, shape index: {}]
  %s4 = inlined_call_operand.vmem [shape: f32[8,8,256], index: 4, kind: output, shape index: {}]
  %s5 = sld [smem:[#allocation0]]
  $region87: #{critic_classifier_forward.5} parent=0
    _
  %s7 = ssub.s32 1, %s5
  %s8 = scalar_select 0, %s7, %s5
  $region1: #{critic_classifier_forward.5} parent=0
    #allocation4 [shape = 'u8[1048576]{0}', space=vmem, size = 0x100000, scoped, tag = 'input window, operand 1']
    #allocation5 [shape = 's32[2]{0}', space=sflag, size = 0x8, scoped, tag = 'scoped memory for critic_classifier_forward.5']
    #allocation6 [shape = 'u8[65536]{0}', space=vmem, size = 0x10000, scoped, tag = 'output window, operand 0']
    %9 = vsyncpa [#allocation5], 0
    %s10 = scalar_lea.sflag [#allocation5], 1
    %11 = vsyncpa %s10, 0
    loop: start=0, step=1, limit=4
    $region2: #{critic_classifier_forward.5} parent=1 // loop_pre_header
      _
    $region3: #{critic_classifier_forward.5} parent=1 // loop_header
      %s13 = sphi 0, %s17
      %p14 = scmp.ge.s32.totalorder %s13, 4
      %s21 = sphi 0, %s21
      %s23 = sphi 0, %s21
      %s24 = sphi 0, %s23
      %s38 = sphi 0, %s24
      %s44 = sphi 0, %s46
      %s47 = sphi 0, %s44
      %s48 = sphi 0, %s47
      %s64 = sphi 0, %s48
      %s70 = sphi 0, %s72
      %s73 = sphi 0, %s70
      %s74 = sphi 0, %s73
      %s90 = sphi 0, %s74
      %s96 = sphi 0, %s98
      %s99 = sphi 0, %s96
      %s100 = sphi 0, %s99
      %s116 = sphi 0, %s100
      %s122 = sphi 0, %s124
      %s125 = sphi 0, %s122
      %s126 = sphi 0, %s125
      %s142 = sphi 0, %s126
    $region4: #{critic_classifier_forward.5} parent=1 // loop_header_branch
      %16 = sbr.rel (%p14) target = $region8
    $region5: #{critic_classifier_forward.5} parent=1 // loop_body
      %s18 = ssub.s32 %s13, 1
      %s19 = ssub.s32 %s13, 2
      %s20 = sadd.s32 %s13, 1
      %s22 = sadd.s32 %s21, 1
      %p25 = scmp.eq.s32.totalorder %s13, 1
      %p26 = scmp.ne.s32.totalorder %s21, %s23
      %p27 = scmp.eq.s32.totalorder %s13, 0
      %p28 = por %p26, %p27
      %p29 = scmp.ne.s32.totalorder %s21, %s23
      %p30 = scmp.eq.s32.totalorder %s18, 1
      %p31 = por %p29, %p30
      %p32 = scmp.ne.s32.totalorder %s23, %s24
      %p33 = scmp.eq.s32.totalorder %s18, 0
      %p34 = por %p32, %p33
      %p35 = scmp.ne.s32.totalorder %s23, %s24
      %p36 = scmp.eq.s32.totalorder %s19, 1
      %p37 = por %p35, %p36
      %p39 = scmp.ne.s32.totalorder %s24, %s38
      %p40 = scmp.eq.s32.totalorder %s19, 0
      %p41 = por %p39, %p40
      %s42 = ssub.s32 %s13, %s20
      %p43 = scmp.eq.s32.totalorder %s42, 0
      %s45 = sadd.s32 %s44, 1
      %s46 = scalar_select %p43, %s44, %s45
      %p49 = pneg %p43
      %p50 = scmp.eq.s32.totalorder %s13, 1
      %p51 = por %p49, %p50
      %p52 = scmp.ne.s32.totalorder %s44, %s47
      %p53 = scmp.eq.s32.totalorder %s13, 0
      %p54 = por %p52, %p53
      %p55 = scmp.ne.s32.totalorder %s44, %s47
      %p56 = scmp.eq.s32.totalorder %s18, 1
      %p57 = por %p55, %p56
      %p58 = scmp.ne.s32.totalorder %s47, %s48
      %p59 = scmp.eq.s32.totalorder %s18, 0
      %p60 = por %p58, %p59
      %p61 = scmp.ne.s32.totalorder %s47, %s48
      %p62 = scmp.eq.s32.totalorder %s19, 1
      %p63 = por %p61, %p62
      %p65 = scmp.ne.s32.totalorder %s48, %s64
      %p66 = scmp.eq.s32.totalorder %s19, 0
      %p67 = por %p65, %p66
      %s68 = ssub.s32 %s13, %s20
      %p69 = scmp.eq.s32.totalorder %s68, 0
      %s71 = sadd.s32 %s70, 1
      %s72 = scalar_select %p69, %s70, %s71
      %p75 = pneg %p69
      %p76 = scmp.eq.s32.totalorder %s13, 1
      %p77 = por %p75, %p76
      %p78 = scmp.ne.s32.totalorder %s70, %s73
      %p79 = scmp.eq.s32.totalorder %s13, 0
      %p80 = por %p78, %p79
      %p81 = scmp.ne.s32.totalorder %s70, %s73
      %p82 = scmp.eq.s32.totalorder %s18, 1
      %p83 = por %p81, %p82
      %p84 = scmp.ne.s32.totalorder %s73, %s74
      %p85 = scmp.eq.s32.totalorder %s18, 0
      %p86 = por %p84, %p85
      %p87 = scmp.ne.s32.totalorder %s73, %s74
      %p88 = scmp.eq.s32.totalorder %s19, 1
      %p89 = por %p87, %p88
      %p91 = scmp.ne.s32.totalorder %s74, %s90
      %p92 = scmp.eq.s32.totalorder %s19, 0
      %p93 = por %p91, %p92
      %s94 = ssub.s32 %s13, %s20
      %p95 = scmp.eq.s32.totalorder %s94, 0
      %s97 = sadd.s32 %s96, 1
      %s98 = scalar_select %p95, %s96, %s97
      %p101 = pneg %p95
      %p102 = scmp.eq.s32.totalorder %s13, 1
      %p103 = por %p101, %p102
      %p104 = scmp.ne.s32.totalorder %s96, %s99
      %p105 = scmp.eq.s32.totalorder %s13, 0
      %p106 = por %p104, %p105
      %p107 = scmp.ne.s32.totalorder %s96, %s99
      %p108 = scmp.eq.s32.totalorder %s18, 1
      %p109 = por %p107, %p108
      %p110 = scmp.ne.s32.totalorder %s99, %s100
      %p111 = scmp.eq.s32.totalorder %s18, 0
      %p112 = por %p110, %p111
      %p113 = scmp.ne.s32.totalorder %s99, %s100
      %p114 = scmp.eq.s32.totalorder %s19, 1
      %p115 = por %p113, %p114
      %p117 = scmp.ne.s32.totalorder %s100, %s116
      %p118 = scmp.eq.s32.totalorder %s19, 0
      %p119 = por %p117, %p118
      %s120 = ssub.s32 %s13, %s20
      %p121 = scmp.eq.s32.totalorder %s120, 0
      %s123 = sadd.s32 %s122, 1
      %s124 = scalar_select %p121, %s122, %s123
      %p127 = pneg %p121
      %p128 = scmp.eq.s32.totalorder %s13, 1
      %p129 = por %p127, %p128
      %p130 = scmp.ne.s32.totalorder %s122, %s125
      %p131 = scmp.eq.s32.totalorder %s13, 0
      %p132 = por %p130, %p131
      %p133 = scmp.ne.s32.totalorder %s122, %s125
      %p134 = scmp.eq.s32.totalorder %s18, 1
      %p135 = por %p133, %p134
      %p136 = scmp.ne.s32.totalorder %s125, %s126
      %p137 = scmp.eq.s32.totalorder %s18, 0
      %p138 = por %p136, %p137
      %p139 = scmp.ne.s32.totalorder %s125, %s126
      %p140 = scmp.eq.s32.totalorder %s19, 1
      %p141 = por %p139, %p140
      %p143 = scmp.ne.s32.totalorder %s126, %s142
      %p144 = scmp.eq.s32.totalorder %s19, 0
      %p145 = por %p143, %p144
      %p146 = scmp.le.s32.totalorder 1, %s13
      %p147 = scmp.lt.s32.totalorder %s13, 3
      %p148 = pnand %p146, %p147
      %p149 = pneg %p148
      // Predicated region
      $region9: #{critic_classifier_forward.5} parent=5 // pred_check
        _
      $region10: #{critic_classifier_forward.5} parent=5 // pred_check_branch
        %151 = sbr.rel (%p148) target = $region12
      $region11: #{critic_classifier_forward.5} parent=5 // pred_region
        %s152 = ssub.s32 %s13, 1
        // Predicated region
        $region13: #{critic_classifier_forward.5} parent=11 // pred_check
          %p153 = pneg %p34
        $region14: #{critic_classifier_forward.5} parent=11 // pred_check_branch
          %155 = sbr.rel (%p153) target = $region16
        $region15: #{critic_classifier_forward.5} parent=11 // pred_region
          _
        $region16: #{critic_classifier_forward.5} parent=11 // pred_fallthru
          _
      $region12: #{critic_classifier_forward.5} parent=5 // pred_fallthru
        _
      %p156 = scmp.lt.s32.totalorder %s13, 2
      // Predicated region
      $region17: #{critic_classifier_forward.5} parent=5 // pred_check
        %p157 = pneg %p156
      $region18: #{critic_classifier_forward.5} parent=5 // pred_check_branch
        %159 = sbr.rel (%p157) target = $region20
      $region19: #{critic_classifier_forward.5} parent=5 // pred_region
        // Predicated region
        $region21: #{critic_classifier_forward.5} parent=19 // pred_check
          %p160 = pneg %p54
        $region22: #{critic_classifier_forward.5} parent=19 // pred_check_branch
          %162 = sbr.rel (%p160) target = $region24
        $region23: #{critic_classifier_forward.5} parent=19 // pred_region
          %s163 = sand.u32 %s44, 1
          %s164 = scalar_lea.sflag [#allocation5], %s163
          %s165 = sand.u32 %s44, 1
          %s166 = smul.addr %s165, 1024
          %s167 = scalar_lea.vmem [#allocation4], %s166
          %s169 = ssub.s32 16384, 16384
          %170 = vsyncadd %s164, %s169
          %s171 = smul.addr %s13, 128
          %s172 = smul.addr %s171, 128
          %s173 = scalar_lea.hbm %s1, %s172
          %s174 = sshll.u32 %s167, 4
          %s175 = int_to_ptr.vmem [resolvable:$true] %s174
          %180 = dma.hbm_to_vmem [thread:$0]  %s173, 16384, %s175, %s164, 512, 512, 32
        $region24: #{critic_classifier_forward.5} parent=19 // pred_fallthru
          _
        // Predicated region
        $region25: #{critic_classifier_forward.5} parent=19 // pred_check
          %p181 = pneg %p80
        $region26: #{critic_classifier_forward.5} parent=19 // pred_check_branch
          %183 = sbr.rel (%p181) target = $region28
        $region27: #{critic_classifier_forward.5} parent=19 // pred_region
          %p184 = scmp.lt.s32.totalorder %s13, 1
          %s185 = scalar_select %p184, %s13, 1
          %s186 = smul.addr %s185, 64
          %s187 = smul.addr %s186, 8
          %s188 = scalar_lea.vmem %s2, %s187
        $region28: #{critic_classifier_forward.5} parent=19 // pred_fallthru
          _
        // Predicated region
        $region29: #{critic_classifier_forward.5} parent=19 // pred_check
          %p189 = pneg %p106
        $region30: #{critic_classifier_forward.5} parent=19 // pred_check_branch
          %191 = sbr.rel (%p189) target = $region32
        $region31: #{critic_classifier_forward.5} parent=19 // pred_region
          %p192 = scmp.lt.s32.totalorder %s13, 1
          %s193 = scalar_select %p192, %s13, 1
          %s194 = smul.addr %s193, 4
          %s195 = scalar_lea.vmem %s3, %s194
        $region32: #{critic_classifier_forward.5} parent=19 // pred_fallthru
          _
      $region20: #{critic_classifier_forward.5} parent=5 // pred_fallthru
        _
      %p196 = scmp.le.s32.totalorder 1, %s13
      %p197 = scmp.lt.s32.totalorder %s13, 3
      %p198 = pnand %p196, %p197
      %p199 = pneg %p198
      // Predicated region
      $region33: #{critic_classifier_forward.5} parent=5 // pred_check
        _
      $region34: #{critic_classifier_forward.5} parent=5 // pred_check_branch
        %201 = sbr.rel (%p198) target = $region36
      $region35: #{critic_classifier_forward.5} parent=5 // pred_region
        %s202 = ssub.s32 %s13, 1
        %s203 = sand.u32 %s47, 1
        %s204 = scalar_lea.sflag [#allocation5], %s203
        %s205 = sand.u32 %s47, 1
        %s206 = smul.addr %s205, 1024
        %s207 = scalar_lea.vmem [#allocation4], %s206
        // Predicated region
        $region37: #{critic_classifier_forward.5} parent=35 // pred_check
          %p208 = pneg %p60
        $region38: #{critic_classifier_forward.5} parent=35 // pred_check_branch
          %210 = sbr.rel (%p208) target = $region40
        $region39: #{critic_classifier_forward.5} parent=35 // pred_region
          %211 = dma.done %s204, 16384
        $region40: #{critic_classifier_forward.5} parent=35 // pred_fallthru
          _
        %p212 = pneg %p34
        %p213 = pneg %p31
        %s214 = sand.u32 %s47, 1
        %s215 = scalar_lea.sflag [#allocation5], %s214
        %s216 = sand.u32 %s47, 1
        %s217 = smul.addr %s216, 1024
        %s218 = scalar_lea.vmem [#allocation4], %s217
        %p219 = pneg %p60
        %p220 = pneg %p57
        %p221 = scmp.lt.s32.totalorder %s18, 1
        %s222 = scalar_select %p221, %s18, 1
        %s223 = smul.addr %s222, 64
        %s224 = smul.addr %s223, 8
        %s225 = scalar_lea.vmem %s2, %s224
        %p226 = pneg %p86
        %p227 = pneg %p83
        %p228 = scmp.lt.s32.totalorder %s18, 1
        %s229 = scalar_select %p228, %s18, 1
        %s230 = smul.addr %s229, 4
        %s231 = scalar_lea.vmem %s3, %s230
        %p232 = pneg %p112
        %p233 = pneg %p109
        %p234 = pneg %p138
        %p235 = pneg %p135
        %s236 = sand.u32 %s125, 1
        %s237 = sand.u32 %s125, 1
        %s238 = smul.addr %s237, 64
        %s239 = scalar_lea.vmem [#allocation6], %s238
        %p240 = scmp.lt.s32.totalorder %s18, 1
        %s241 = scalar_select %p240, %s18, 1
        %s242 = smul.addr %s241, 64
        %s243 = smul.addr %s242, 8
        %s244 = scalar_lea.vmem %s2, %s243
        %p245 = scmp.lt.s32.totalorder %s18, 1
        %s246 = scalar_select %p245, %s18, 1
        %s247 = smul.addr %s246, 4
        %s248 = scalar_lea.vmem %s3, %s247
        %v250 = vld [vmem:[%s0] sm:$0xff]
        %v251 = vld [vmem:[%s0 + $0x8] sm:$0xff]
        %v252 = vld [vmem:[%s0 + $0x10] sm:$0xff]
        %v253 = vld [vmem:[%s0 + $0x18] sm:$0xff]
        %v254 = vld [vmem:[%s0 + $0x20] sm:$0xff]
        %v255 = vld [vmem:[%s0 + $0x28] sm:$0xff]
        %v256 = vld [vmem:[%s0 + $0x30] sm:$0xff]
        %v257 = vld [vmem:[%s0 + $0x38] sm:$0xff]
        %v258 = vld [vmem:[%s0 + $0x40] sm:$0xff]
        %v259 = vld [vmem:[%s0 + $0x48] sm:$0xff]
        %v260 = vld [vmem:[%s0 + $0x50] sm:$0xff]
        %v261 = vld [vmem:[%s0 + $0x58] sm:$0xff]
        %v262 = vld [vmem:[%s0 + $0x60] sm:$0xff]
        %v263 = vld [vmem:[%s0 + $0x68] sm:$0xff]
        %v264 = vld [vmem:[%s0 + $0x70] sm:$0xff]
        %v265 = vld [vmem:[%s0 + $0x78] sm:$0xff]
        %v266 = vpack.c.bf16 %v252, %v250
        %v267 = vpack.c.bf16 %v253, %v251
        %v268 = vpack.c.bf16 %v256, %v254
        %v269 = vpack.c.bf16 %v257, %v255
        %v270 = vpack.c.bf16 %v260, %v258
        %v271 = vpack.c.bf16 %v261, %v259
        %v272 = vpack.c.bf16 %v264, %v262
        %v273 = vpack.c.bf16 %v265, %v263
        %v274 = vld [vmem:[%s207] sm:$0xff]
        %v275 = vld [vmem:[%s207 + $0x8] sm:$0xff]
        %v276 = vld [vmem:[%s207 + $0x10] sm:$0xff]
        %v277 = vld [vmem:[%s207 + $0x18] sm:$0xff]
        %v278 = vld [vmem:[%s207 + $0x20] sm:$0xff]
        %v279 = vld [vmem:[%s207 + $0x28] sm:$0xff]
        %v280 = vld [vmem:[%s207 + $0x30] sm:$0xff]
        %v281 = vld [vmem:[%s207 + $0x38] sm:$0xff]
        %v282 = vld [vmem:[%s207 + $0x40] sm:$0xff]
        %v283 = vld [vmem:[%s207 + $0x48] sm:$0xff]
        %v284 = vld [vmem:[%s207 + $0x50] sm:$0xff]
        %v285 = vld [vmem:[%s207 + $0x58] sm:$0xff]
        %v286 = vld [vmem:[%s207 + $0x60] sm:$0xff]
        %v287 = vld [vmem:[%s207 + $0x68] sm:$0xff]
        %v288 = vld [vmem:[%s207 + $0x70] sm:$0xff]
        %v289 = vld [vmem:[%s207 + $0x78] sm:$0xff]
        %v290 = vld [vmem:[%s207 + $0x80] sm:$0xff]
        %v291 = vld [vmem:[%s207 + $0x88] sm:$0xff]
        %v292 = vld [vmem:[%s207 + $0x90] sm:$0xff]
        %v293 = vld [vmem:[%s207 + $0x98] sm:$0xff]
        %v294 = vld [vmem:[%s207 + $0xa0] sm:$0xff]
        %v295 = vld [vmem:[%s207 + $0xa8] sm:$0xff]
        %v296 = vld [vmem:[%s207 + $0xb0] sm:$0xff]
        %v297 = vld [vmem:[%s207 + $0xb8] sm:$0xff]
        %v298 = vld [vmem:[%s207 + $0xc0] sm:$0xff]
        %v299 = vld [vmem:[%s207 + $0xc8] sm:$0xff]
        %v300 = vld [vmem:[%s207 + $0xd0] sm:$0xff]
        %v301 = vld [vmem:[%s207 + $0xd8] sm:$0xff]
        %v302 = vld [vmem:[%s207 + $0xe0] sm:$0xff]
        %v303 = vld [vmem:[%s207 + $0xe8] sm:$0xff]
        %v304 = vld [vmem:[%s207 + $0xf0] sm:$0xff]
        %v305 = vld [vmem:[%s207 + $0xf8] sm:$0xff]
        %v306 = vld [vmem:[%s207 + $0x100] sm:$0xff]
        %v307 = vld [vmem:[%s207 + $0x108] sm:$0xff]
        %v308 = vld [vmem:[%s207 + $0x110] sm:$0xff]
        %v309 = vld [vmem:[%s207 + $0x118] sm:$0xff]
        %v310 = vld [vmem:[%s207 + $0x120] sm:$0xff]
        %v311 = vld [vmem:[%s207 + $0x128] sm:$0xff]
        %v312 = vld [vmem:[%s207 + $0x130] sm:$0xff]
        %v313 = vld [vmem:[%s207 + $0x138] sm:$0xff]
        %v314 = vld [vmem:[%s207 + $0x140] sm:$0xff]
        %v315 = vld [vmem:[%s207 + $0x148] sm:$0xff]
        %v316 = vld [vmem:[%s207 + $0x150] sm:$0xff]
        %v317 = vld [vmem:[%s207 + $0x158] sm:$0xff]
        %v318 = vld [vmem:[%s207 + $0x160] sm:$0xff]
        %v319 = vld [vmem:[%s207 + $0x168] sm:$0xff]
        %v320 = vld [vmem:[%s207 + $0x170] sm:$0xff]
        %v321 = vld [vmem:[%s207 + $0x178] sm:$0xff]
        %v322 = vld [vmem:[%s207 + $0x180] sm:$0xff]
        %v323 = vld [vmem:[%s207 + $0x188] sm:$0xff]
        %v324 = vld [vmem:[%s207 + $0x190] sm:$0xff]
        %v325 = vld [vmem:[%s207 + $0x198] sm:$0xff]
        %v326 = vld [vmem:[%s207 + $0x1a0] sm:$0xff]
        %v327 = vld [vmem:[%s207 + $0x1a8] sm:$0xff]
        %v328 = vld [vmem:[%s207 + $0x1b0] sm:$0xff]
        %v329 = vld [vmem:[%s207 + $0x1b8] sm:$0xff]
        %v330 = vld [vmem:[%s207 + $0x1c0] sm:$0xff]
        %v331 = vld [vmem:[%s207 + $0x1c8] sm:$0xff]
        %v332 = vld [vmem:[%s207 + $0x1d0] sm:$0xff]
        %v333 = vld [vmem:[%s207 + $0x1d8] sm:$0xff]
        %v334 = vld [vmem:[%s207 + $0x1e0] sm:$0xff]
        %v335 = vld [vmem:[%s207 + $0x1e8] sm:$0xff]
        %v336 = vld [vmem:[%s207 + $0x1f0] sm:$0xff]
        %v337 = vld [vmem:[%s207 + $0x1f8] sm:$0xff]
        %v338 = vld [vmem:[%s207 + $0x200] sm:$0xff]
        %v339 = vld [vmem:[%s207 + $0x208] sm:$0xff]
        %v340 = vld [vmem:[%s207 + $0x210] sm:$0xff]
        %v341 = vld [vmem:[%s207 + $0x218] sm:$0xff]
        %v342 = vld [vmem:[%s207 + $0x220] sm:$0xff]
        %v343 = vld [vmem:[%s207 + $0x228] sm:$0xff]
        %v344 = vld [vmem:[%s207 + $0x230] sm:$0xff]
        %v345 = vld [vmem:[%s207 + $0x238] sm:$0xff]
        %v346 = vld [vmem:[%s207 + $0x240] sm:$0xff]
        %v347 = vld [vmem:[%s207 + $0x248] sm:$0xff]
        %v348 = vld [vmem:[%s207 + $0x250] sm:$0xff]
        %v349 = vld [vmem:[%s207 + $0x258] sm:$0xff]
        %v350 = vld [vmem:[%s207 + $0x260] sm:$0xff]
        %v351 = vld [vmem:[%s207 + $0x268] sm:$0xff]
        %v352 = vld [vmem:[%s207 + $0x270] sm:$0xff]
        %v353 = vld [vmem:[%s207 + $0x278] sm:$0xff]
        %v354 = vld [vmem:[%s207 + $0x280] sm:$0xff]
        %v355 = vld [vmem:[%s207 + $0x288] sm:$0xff]
        %v356 = vld [vmem:[%s207 + $0x290] sm:$0xff]
        %v357 = vld [vmem:[%s207 + $0x298] sm:$0xff]
        %v358 = vld [vmem:[%s207 + $0x2a0] sm:$0xff]
        %v359 = vld [vmem:[%s207 + $0x2a8] sm:$0xff]
        %v360 = vld [vmem:[%s207 + $0x2b0] sm:$0xff]
        %v361 = vld [vmem:[%s207 + $0x2b8] sm:$0xff]
        %v362 = vld [vmem:[%s207 + $0x2c0] sm:$0xff]
        %v363 = vld [vmem:[%s207 + $0x2c8] sm:$0xff]
        %v364 = vld [vmem:[%s207 + $0x2d0] sm:$0xff]
        %v365 = vld [vmem:[%s207 + $0x2d8] sm:$0xff]
        %v366 = vld [vmem:[%s207 + $0x2e0] sm:$0xff]
        %v367 = vld [vmem:[%s207 + $0x2e8] sm:$0xff]
        %v368 = vld [vmem:[%s207 + $0x2f0] sm:$0xff]
        %v369 = vld [vmem:[%s207 + $0x2f8] sm:$0xff]
        %v370 = vld [vmem:[%s207 + $0x300] sm:$0xff]
        %v371 = vld [vmem:[%s207 + $0x308] sm:$0xff]
        %v372 = vld [vmem:[%s207 + $0x310] sm:$0xff]
        %v373 = vld [vmem:[%s207 + $0x318] sm:$0xff]
        %v374 = vld [vmem:[%s207 + $0x320] sm:$0xff]
        %v375 = vld [vmem:[%s207 + $0x328] sm:$0xff]
        %v376 = vld [vmem:[%s207 + $0x330] sm:$0xff]
        %v377 = vld [vmem:[%s207 + $0x338] sm:$0xff]
        %v378 = vld [vmem:[%s207 + $0x340] sm:$0xff]
        %v379 = vld [vmem:[%s207 + $0x348] sm:$0xff]
        %v380 = vld [vmem:[%s207 + $0x350] sm:$0xff]
        %v381 = vld [vmem:[%s207 + $0x358] sm:$0xff]
        %v382 = vld [vmem:[%s207 + $0x360] sm:$0xff]
        %v383 = vld [vmem:[%s207 + $0x368] sm:$0xff]
        %v384 = vld [vmem:[%s207 + $0x370] sm:$0xff]
        %v385 = vld [vmem:[%s207 + $0x378] sm:$0xff]
        %v386 = vld [vmem:[%s207 + $0x380] sm:$0xff]
        %v387 = vld [vmem:[%s207 + $0x388] sm:$0xff]
        %v388 = vld [vmem:[%s207 + $0x390] sm:$0xff]
        %v389 = vld [vmem:[%s207 + $0x398] sm:$0xff]
        %v390 = vld [vmem:[%s207 + $0x3a0] sm:$0xff]
        %v391 = vld [vmem:[%s207 + $0x3a8] sm:$0xff]
        %v392 = vld [vmem:[%s207 + $0x3b0] sm:$0xff]
        %v393 = vld [vmem:[%s207 + $0x3b8] sm:$0xff]
        %v394 = vld [vmem:[%s207 + $0x3c0] sm:$0xff]
        %v395 = vld [vmem:[%s207 + $0x3c8] sm:$0xff]
        %v396 = vld [vmem:[%s207 + $0x3d0] sm:$0xff]
        %v397 = vld [vmem:[%s207 + $0x3d8] sm:$0xff]
        %v398 = vld [vmem:[%s207 + $0x3e0] sm:$0xff]
        %v399 = vld [vmem:[%s207 + $0x3e8] sm:$0xff]
        %v400 = vld [vmem:[%s207 + $0x3f0] sm:$0xff]
        %v401 = vld [vmem:[%s207 + $0x3f8] sm:$0xff]
        %v402 = vpack.c.bf16 %v278, %v274
        %v403 = vpack.c.bf16 %v279, %v275
        %v404 = vpack.c.bf16 %v280, %v276
        %v405 = vpack.c.bf16 %v281, %v277
        %v406 = vpack.c.bf16 %v286, %v282
        %v407 = vpack.c.bf16 %v287, %v283
        %v408 = vpack.c.bf16 %v288, %v284
        %v409 = vpack.c.bf16 %v289, %v285
        %v410 = vpack.c.bf16 %v294, %v290
        %v411 = vpack.c.bf16 %v295, %v291
        %v412 = vpack.c.bf16 %v296, %v292
        %v413 = vpack.c.bf16 %v297, %v293
        %v414 = vpack.c.bf16 %v302, %v298
        %v415 = vpack.c.bf16 %v303, %v299
        %v416 = vpack.c.bf16 %v304, %v300
        %v417 = vpack.c.bf16 %v305, %v301
        %v418 = vpack.c.bf16 %v310, %v306
        %v419 = vpack.c.bf16 %v311, %v307
        %v420 = vpack.c.bf16 %v312, %v308
        %v421 = vpack.c.bf16 %v313, %v309
        %v422 = vpack.c.bf16 %v318, %v314
        %v423 = vpack.c.bf16 %v319, %v315
        %v424 = vpack.c.bf16 %v320, %v316
        %v425 = vpack.c.bf16 %v321, %v317
        %v426 = vpack.c.bf16 %v326, %v322
        %v427 = vpack.c.bf16 %v327, %v323
        %v428 = vpack.c.bf16 %v328, %v324
        %v429 = vpack.c.bf16 %v329, %v325
        %v430 = vpack.c.bf16 %v334, %v330
        %v431 = vpack.c.bf16 %v335, %v331
        %v432 = vpack.c.bf16 %v336, %v332
        %v433 = vpack.c.bf16 %v337, %v333
        %v434 = vpack.c.bf16 %v342, %v338
        %v435 = vpack.c.bf16 %v343, %v339
        %v436 = vpack.c.bf16 %v344, %v340
        %v437 = vpack.c.bf16 %v345, %v341
        %v438 = vpack.c.bf16 %v350, %v346
        %v439 = vpack.c.bf16 %v351, %v347
        %v440 = vpack.c.bf16 %v352, %v348
        %v441 = vpack.c.bf16 %v353, %v349
        %v442 = vpack.c.bf16 %v358, %v354
        %v443 = vpack.c.bf16 %v359, %v355
        %v444 = vpack.c.bf16 %v360, %v356
        %v445 = vpack.c.bf16 %v361, %v357
        %v446 = vpack.c.bf16 %v366, %v362
        %v447 = vpack.c.bf16 %v367, %v363
        %v448 = vpack.c.bf16 %v368, %v364
        %v449 = vpack.c.bf16 %v369, %v365
        %v450 = vpack.c.bf16 %v374, %v370
        %v451 = vpack.c.bf16 %v375, %v371
        %v452 = vpack.c.bf16 %v376, %v372
        %v453 = vpack.c.bf16 %v377, %v373
        %v454 = vpack.c.bf16 %v382, %v378
        %v455 = vpack.c.bf16 %v383, %v379
        %v456 = vpack.c.bf16 %v384, %v380
        %v457 = vpack.c.bf16 %v385, %v381
        %v458 = vpack.c.bf16 %v390, %v386
        %v459 = vpack.c.bf16 %v391, %v387
        %v460 = vpack.c.bf16 %v392, %v388
        %v461 = vpack.c.bf16 %v393, %v389
        %v462 = vpack.c.bf16 %v398, %v394
        %v463 = vpack.c.bf16 %v399, %v395
        %v464 = vpack.c.bf16 %v400, %v396
        %v465 = vpack.c.bf16 %v401, %v397
        %v466 = vld [vmem:[%s248] sm:$0xf]
        %v468 = vlaneseq
        %v469 = vshrl.u32 %v468, 7
        %v470 = vsub.s32 0, %v469
        %v471 = vrot.slane %v466, %v470
        %v472 = vlaneseq
        %v473 = vshrl.u32 %v472, 7
        %v474 = vsub.s32 1, %v473
        %v475 = vrot.slane %v466, %v474
        %v476 = vlaneseq
        %v477 = vshrl.u32 %v476, 7
        %v478 = vsub.s32 2, %v477
        %v479 = vrot.slane %v466, %v478
        %v480 = vlaneseq
        %v481 = vshrl.u32 %v480, 7
        %v482 = vsub.s32 3, %v481
        %v483 = vrot.slane %v466, %v482
        %488 = vmatprep.subr.bf16.mxu0 %v403
        %489 = vmatpush1.bf16.msra.mxu0 %v402
        %490 = vmatprep.subr.bf16.mxu0 %v407
        %491 = vmatpush1.bf16.msra.mxu0 %v406
        %492 = vmatprep.subr.bf16.mxu0 %v411
        %493 = vmatpush1.bf16.msra.mxu0 %v410
        %494 = vmatprep.subr.bf16.mxu0 %v415
        %495 = vmatpush1.bf16.msra.mxu0 %v414
        %496 = vmatprep.subr.bf16.mxu0 %v419
        %497 = vmatpush1.bf16.msra.mxu0 %v418
        %498 = vmatprep.subr.bf16.mxu0 %v423
        %499 = vmatpush1.bf16.msra.mxu0 %v422
        %500 = vmatprep.subr.bf16.mxu0 %v427
        %501 = vmatpush1.bf16.msra.mxu0 %v426
        %502 = vmatprep.subr.bf16.mxu0 %v431
        %503 = vmatpush1.bf16.msra.mxu0 %v430
        %504 = vmatprep.subr.bf16.mxu0 %v435
        %505 = vmatpush1.bf16.msra.mxu0 %v434
        %506 = vmatprep.subr.bf16.mxu0 %v439
        %507 = vmatpush1.bf16.msra.mxu0 %v438
        %508 = vmatprep.subr.bf16.mxu0 %v443
        %509 = vmatpush1.bf16.msra.mxu0 %v442
        %510 = vmatprep.subr.bf16.mxu0 %v447
        %511 = vmatpush1.bf16.msra.mxu0 %v446
        %512 = vmatprep.subr.bf16.mxu0 %v451
        %513 = vmatpush1.bf16.msra.mxu0 %v450
        %514 = vmatprep.subr.bf16.mxu0 %v455
        %515 = vmatpush1.bf16.msra.mxu0 %v454
        %516 = vmatprep.subr.bf16.mxu0 %v459
        %517 = vmatpush1.bf16.msra.mxu0 %v458
        %518 = vmatprep.subr.bf16.mxu0 %v463
        %519 = vmatpush1.bf16.msra.mxu0 %v462
        %520 = vmatprep.mubr.bf16.mxu0 %v267
        %521 = vmatmul.mubr.bf16.gmra.mrb[0].mxu0 %v266
        %v522 = vpop.f32.mrb[0].mxu0
        %v523 = vadd.f32 %v471, %v522
        %v524 = vpop.f32.mrb[0].mxu0
        %v525 = vadd.f32 %v475, %v524
        %v526 = vpop.f32.mrb[0].mxu0
        %v527 = vadd.f32 %v471, %v526
        %v528 = vpop.f32.mrb[0].mxu0
        %v529 = vadd.f32 %v475, %v528
        %530 = vmatprep.mubr.bf16.mxu0 %v269
        %531 = vmatmul.mubr.bf16.gmra.mrb[0].mxu0 %v268
        %v532 = vpop.f32.mrb[0].mxu0
        %v533 = vadd.f32 %v471, %v532
        %v534 = vpop.f32.mrb[0].mxu0
        %v535 = vadd.f32 %v475, %v534
        %v536 = vpop.f32.mrb[0].mxu0
        %v537 = vadd.f32 %v471, %v536
        %v538 = vpop.f32.mrb[0].mxu0
        %v539 = vadd.f32 %v475, %v538
        %540 = vmatprep.mubr.bf16.mxu0 %v271
        %541 = vmatmul.mubr.bf16.gmra.mrb[0].mxu0 %v270
        %v542 = vpop.f32.mrb[0].mxu0
        %v543 = vadd.f32 %v471, %v542
        %v544 = vpop.f32.mrb[0].mxu0
        %v545 = vadd.f32 %v475, %v544
        %v546 = vpop.f32.mrb[0].mxu0
        %v547 = vadd.f32 %v471, %v546
        %v548 = vpop.f32.mrb[0].mxu0
        %v549 = vadd.f32 %v475, %v548
        %550 = vmatprep.mubr.bf16.mxu0 %v273
        %551 = vmatmul.mubr.bf16.gmra.mrb[0].mxu0 %v272
        %v552 = vpop.f32.mrb[0].mxu0
        %v553 = vadd.f32 %v471, %v552
        %v554 = vpop.f32.mrb[0].mxu0
        %v555 = vadd.f32 %v475, %v554
        %v556 = vpop.f32.mrb[0].mxu0
        %v557 = vadd.f32 %v471, %v556
        %v558 = vpop.f32.mrb[0].mxu0
        %v559 = vadd.f32 %v475, %v558
        %560 = vdwg.mxu0
        %561 = vmatprep.subr.bf16.mxu0 %v405
        %562 = vmatpush1.bf16.msra.mxu0 %v404
        %563 = vmatprep.subr.bf16.mxu0 %v409
        %564 = vmatpush1.bf16.msra.mxu0 %v408
        %565 = vmatprep.subr.bf16.mxu0 %v413
        %566 = vmatpush1.bf16.msra.mxu0 %v412
        %567 = vmatprep.subr.bf16.mxu0 %v417
        %568 = vmatpush1.bf16.msra.mxu0 %v416
        %569 = vmatprep.subr.bf16.mxu0 %v421
        %570 = vmatpush1.bf16.msra.mxu0 %v420
        %571 = vmatprep.subr.bf16.mxu0 %v425
        %572 = vmatpush1.bf16.msra.mxu0 %v424
        %573 = vmatprep.subr.bf16.mxu0 %v429
        %574 = vmatpush1.bf16.msra.mxu0 %v428
        %575 = vmatprep.subr.bf16.mxu0 %v433
        %576 = vmatpush1.bf16.msra.mxu0 %v432
        %577 = vmatprep.subr.bf16.mxu0 %v437
        %578 = vmatpush1.bf16.msra.mxu0 %v436
        %579 = vmatprep.subr.bf16.mxu0 %v441
        %580 = vmatpush1.bf16.msra.mxu0 %v440
        %581 = vmatprep.subr.bf16.mxu0 %v445
        %582 = vmatpush1.bf16.msra.mxu0 %v444
        %583 = vmatprep.subr.bf16.mxu0 %v449
        %584 = vmatpush1.bf16.msra.mxu0 %v448
        %585 = vmatprep.subr.bf16.mxu0 %v453
        %586 = vmatpush1.bf16.msra.mxu0 %v452
        %587 = vmatprep.subr.bf16.mxu0 %v457
        %588 = vmatpush1.bf16.msra.mxu0 %v456
        %589 = vmatprep.subr.bf16.mxu0 %v461
        %590 = vmatpush1.bf16.msra.mxu0 %v460
        %591 = vmatprep.subr.bf16.mxu0 %v465
        %592 = vmatpush1.bf16.msra.mxu0 %v464
        %593 = vmatprep.mubr.bf16.mxu0 %v267
        %594 = vmatmul.mubr.bf16.gmra.mrb[0].mxu0 %v266
        %v595 = vpop.f32.mrb[0].mxu0
        %v596 = vadd.f32 %v479, %v595
        %v597 = vpop.f32.mrb[0].mxu0
        %v598 = vadd.f32 %v483, %v597
        %v599 = vpop.f32.mrb[0].mxu0
        %v600 = vadd.f32 %v479, %v599
        %v601 = vpop.f32.mrb[0].mxu0
        %v602 = vadd.f32 %v483, %v601
        %603 = vmatprep.mubr.bf16.mxu0 %v269
        %604 = vmatmul.mubr.bf16.gmra.mrb[0].mxu0 %v268
        %v605 = vpop.f32.mrb[0].mxu0
        %v606 = vadd.f32 %v479, %v605
        %v607 = vpop.f32.mrb[0].mxu0
        %v608 = vadd.f32 %v483, %v607
        %v609 = vpop.f32.mrb[0].mxu0
        %v610 = vadd.f32 %v479, %v609
        %v611 = vpop.f32.mrb[0].mxu0
        %v612 = vadd.f32 %v483, %v611
        %613 = vmatprep.mubr.bf16.mxu0 %v271
        %614 = vmatmul.mubr.bf16.gmra.mrb[0].mxu0 %v270
        %v615 = vpop.f32.mrb[0].mxu0
        %v616 = vadd.f32 %v479, %v615
        %v617 = vpop.f32.mrb[0].mxu0
        %v618 = vadd.f32 %v483, %v617
        %v619 = vpop.f32.mrb[0].mxu0
        %v620 = vadd.f32 %v479, %v619
        %v621 = vpop.f32.mrb[0].mxu0
        %v622 = vadd.f32 %v483, %v621
        %623 = vmatprep.mubr.bf16.mxu0 %v273
        %624 = vmatmul.mubr.bf16.gmra.mrb[0].mxu0 %v272
        %v625 = vpop.f32.mrb[0].mxu0
        %v626 = vadd.f32 %v479, %v625
        %v627 = vpop.f32.mrb[0].mxu0
        %v628 = vadd.f32 %v483, %v627
        %v629 = vpop.f32.mrb[0].mxu0
        %v630 = vadd.f32 %v479, %v629
        %v631 = vpop.f32.mrb[0].mxu0
        %v632 = vadd.f32 %v483, %v631
        %633 = vdwg.mxu0
        %634 = vst [vmem:[#allocation2] sm:$0xff] %v523
        %635 = vst [vmem:[#allocation2 + $0x8] sm:$0xff] %v525
        %636 = vst [vmem:[#allocation2 + $0x10] sm:$0xff] %v596
        %637 = vst [vmem:[#allocation2 + $0x18] sm:$0xff] %v598
        %638 = vst [vmem:[#allocation2 + $0x20] sm:$0xff] %v527
        %639 = vst [vmem:[#allocation2 + $0x28] sm:$0xff] %v529
        %640 = vst [vmem:[#allocation2 + $0x30] sm:$0xff] %v600
        %641 = vst [vmem:[#allocation2 + $0x38] sm:$0xff] %v602
        %642 = vst [vmem:[#allocation2 + $0x40] sm:$0xff] %v533
        %643 = vst [vmem:[#allocation2 + $0x48] sm:$0xff] %v535
        %644 = vst [vmem:[#allocation2 + $0x50] sm:$0xff] %v606
        %645 = vst [vmem:[#allocation2 + $0x58] sm:$0xff] %v608
        %646 = vst [vmem:[#allocation2 + $0x60] sm:$0xff] %v537
        %647 = vst [vmem:[#allocation2 + $0x68] sm:$0xff] %v539
        %648 = vst [vmem:[#allocation2 + $0x70] sm:$0xff] %v610
        %649 = vst [vmem:[#allocation2 + $0x78] sm:$0xff] %v612
        %650 = vst [vmem:[#allocation2 + $0x80] sm:$0xff] %v543
        %651 = vst [vmem:[#allocation2 + $0x88] sm:$0xff] %v545
        %652 = vst [vmem:[#allocation2 + $0x90] sm:$0xff] %v616
        %653 = vst [vmem:[#allocation2 + $0x98] sm:$0xff] %v618
        %654 = vst [vmem:[#allocation2 + $0xa0] sm:$0xff] %v547
        %655 = vst [vmem:[#allocation2 + $0xa8] sm:$0xff] %v549
        %656 = vst [vmem:[#allocation2 + $0xb0] sm:$0xff] %v620
        %657 = vst [vmem:[#allocation2 + $0xb8] sm:$0xff] %v622
        %658 = vst [vmem:[#allocation2 + $0xc0] sm:$0xff] %v553
        %659 = vst [vmem:[#allocation2 + $0xc8] sm:$0xff] %v555
        %660 = vst [vmem:[#allocation2 + $0xd0] sm:$0xff] %v626
        %661 = vst [vmem:[#allocation2 + $0xd8] sm:$0xff] %v628
        %662 = vst [vmem:[#allocation2 + $0xe0] sm:$0xff] %v557
        %663 = vst [vmem:[#allocation2 + $0xe8] sm:$0xff] %v559
        %664 = vst [vmem:[#allocation2 + $0xf0] sm:$0xff] %v630
        %665 = vst [vmem:[#allocation2 + $0xf8] sm:$0xff] %v632
        %v666 = vld [vmem:[%s244] sm:$0xff]
        %v667 = vld [vmem:[%s244 + $0x8] sm:$0xff]
        %v668 = vld [vmem:[%s244 + $0x10] sm:$0xff]
        %v669 = vld [vmem:[%s244 + $0x18] sm:$0xff]
        %v670 = vld [vmem:[%s244 + $0x20] sm:$0xff]
        %v671 = vld [vmem:[%s244 + $0x28] sm:$0xff]
        %v672 = vld [vmem:[%s244 + $0x30] sm:$0xff]
        %v673 = vld [vmem:[%s244 + $0x38] sm:$0xff]
        %v674 = vld [vmem:[%s244 + $0x40] sm:$0xff]
        %v675 = vld [vmem:[%s244 + $0x48] sm:$0xff]
        %v676 = vld [vmem:[%s244 + $0x50] sm:$0xff]
        %v677 = vld [vmem:[%s244 + $0x58] sm:$0xff]
        %v678 = vld [vmem:[%s244 + $0x60] sm:$0xff]
        %v679 = vld [vmem:[%s244 + $0x68] sm:$0xff]
        %v680 = vld [vmem:[%s244 + $0x70] sm:$0xff]
        %v681 = vld [vmem:[%s244 + $0x78] sm:$0xff]
        %v682 = vld [vmem:[%s244 + $0x80] sm:$0xff]
        %v683 = vld [vmem:[%s244 + $0x88] sm:$0xff]
        %v684 = vld [vmem:[%s244 + $0x90] sm:$0xff]
        %v685 = vld [vmem:[%s244 + $0x98] sm:$0xff]
        %v686 = vld [vmem:[%s244 + $0xa0] sm:$0xff]
        %v687 = vld [vmem:[%s244 + $0xa8] sm:$0xff]
        %v688 = vld [vmem:[%s244 + $0xb0] sm:$0xff]
        %v689 = vld [vmem:[%s244 + $0xb8] sm:$0xff]
        %v690 = vld [vmem:[%s244 + $0xc0] sm:$0xff]
        %v691 = vld [vmem:[%s244 + $0xc8] sm:$0xff]
        %v692 = vld [vmem:[%s244 + $0xd0] sm:$0xff]
        %v693 = vld [vmem:[%s244 + $0xd8] sm:$0xff]
        %v694 = vld [vmem:[%s244 + $0xe0] sm:$0xff]
        %v695 = vld [vmem:[%s244 + $0xe8] sm:$0xff]
        %v696 = vld [vmem:[%s244 + $0xf0] sm:$0xff]
        %v697 = vld [vmem:[%s244 + $0xf8] sm:$0xff]
        %v698 = vld [vmem:[%s244 + $0x100] sm:$0xff]
        %v699 = vld [vmem:[%s244 + $0x108] sm:$0xff]
        %v700 = vld [vmem:[%s244 + $0x110] sm:$0xff]
        %v701 = vld [vmem:[%s244 + $0x118] sm:$0xff]
        %v702 = vld [vmem:[%s244 + $0x120] sm:$0xff]
        %v703 = vld [vmem:[%s244 + $0x128] sm:$0xff]
        %v704 = vld [vmem:[%s244 + $0x130] sm:$0xff]
        %v705 = vld [vmem:[%s244 + $0x138] sm:$0xff]
        %v706 = vld [vmem:[%s244 + $0x140] sm:$0xff]
        %v707 = vld [vmem:[%s244 + $0x148] sm:$0xff]
        %v708 = vld [vmem:[%s244 + $0x150] sm:$0xff]
        %v709 = vld [vmem:[%s244 + $0x158] sm:$0xff]
        %v710 = vld [vmem:[%s244 + $0x160] sm:$0xff]
        %v711 = vld [vmem:[%s244 + $0x168] sm:$0xff]
        %v712 = vld [vmem:[%s244 + $0x170] sm:$0xff]
        %v713 = vld [vmem:[%s244 + $0x178] sm:$0xff]
        %v714 = vld [vmem:[%s244 + $0x180] sm:$0xff]
        %v715 = vld [vmem:[%s244 + $0x188] sm:$0xff]
        %v716 = vld [vmem:[%s244 + $0x190] sm:$0xff]
        %v717 = vld [vmem:[%s244 + $0x198] sm:$0xff]
        %v718 = vld [vmem:[%s244 + $0x1a0] sm:$0xff]
        %v719 = vld [vmem:[%s244 + $0x1a8] sm:$0xff]
        %v720 = vld [vmem:[%s244 + $0x1b0] sm:$0xff]
        %v721 = vld [vmem:[%s244 + $0x1b8] sm:$0xff]
        %v722 = vld [vmem:[%s244 + $0x1c0] sm:$0xff]
        %v723 = vld [vmem:[%s244 + $0x1c8] sm:$0xff]
        %v724 = vld [vmem:[%s244 + $0x1d0] sm:$0xff]
        %v725 = vld [vmem:[%s244 + $0x1d8] sm:$0xff]
        %v726 = vld [vmem:[%s244 + $0x1e0] sm:$0xff]
        %v727 = vld [vmem:[%s244 + $0x1e8] sm:$0xff]
        %v728 = vld [vmem:[%s244 + $0x1f0] sm:$0xff]
        %v729 = vld [vmem:[%s244 + $0x1f8] sm:$0xff]
        %v730 = vpack.c.bf16 %v670, %v666
        %v731 = vpack.c.bf16 %v671, %v667
        %v732 = vpack.c.bf16 %v672, %v668
        %v733 = vpack.c.bf16 %v673, %v669
        %v734 = vpack.c.bf16 %v678, %v674
        %v735 = vpack.c.bf16 %v679, %v675
        %v736 = vpack.c.bf16 %v680, %v676
        %v737 = vpack.c.bf16 %v681, %v677
        %v738 = vpack.c.bf16 %v686, %v682
        %v739 = vpack.c.bf16 %v687, %v683
        %v740 = vpack.c.bf16 %v688, %v684
        %v741 = vpack.c.bf16 %v689, %v685
        %v742 = vpack.c.bf16 %v694, %v690
        %v743 = vpack.c.bf16 %v695, %v691
        %v744 = vpack.c.bf16 %v696, %v692
        %v745 = vpack.c.bf16 %v697, %v693
        %v746 = vpack.c.bf16 %v702, %v698
        %v747 = vpack.c.bf16 %v703, %v699
        %v748 = vpack.c.bf16 %v704, %v700
        %v749 = vpack.c.bf16 %v705, %v701
        %v750 = vpack.c.bf16 %v710, %v706
        %v751 = vpack.c.bf16 %v711, %v707
        %v752 = vpack.c.bf16 %v712, %v708
        %v753 = vpack.c.bf16 %v713, %v709
        %v754 = vpack.c.bf16 %v718, %v714
        %v755 = vpack.c.bf16 %v719, %v715
        %v756 = vpack.c.bf16 %v720, %v716
        %v757 = vpack.c.bf16 %v721, %v717
        %v758 = vpack.c.bf16 %v726, %v722
        %v759 = vpack.c.bf16 %v727, %v723
        %v760 = vpack.c.bf16 %v728, %v724
        %v761 = vpack.c.bf16 %v729, %v725
        %762 = vst [vmem:[#allocation3] sm:$0xff] %v730
        %763 = vst [vmem:[#allocation3 + $0x8] sm:$0xff] %v731
        %764 = vst [vmem:[#allocation3 + $0x10] sm:$0xff] %v732
        %765 = vst [vmem:[#allocation3 + $0x18] sm:$0xff] %v733
        %766 = vst [vmem:[#allocation3 + $0x20] sm:$0xff] %v734
        %767 = vst [vmem:[#allocation3 + $0x28] sm:$0xff] %v735
        %768 = vst [vmem:[#allocation3 + $0x30] sm:$0xff] %v736
        %769 = vst [vmem:[#allocation3 + $0x38] sm:$0xff] %v737
        %770 = vst [vmem:[#allocation3 + $0x40] sm:$0xff] %v738
        %771 = vst [vmem:[#allocation3 + $0x48] sm:$0xff] %v739
        %772 = vst [vmem:[#allocation3 + $0x50] sm:$0xff] %v740
        %773 = vst [vmem:[#allocation3 + $0x58] sm:$0xff] %v741
        %774 = vst [vmem:[#allocation3 + $0x60] sm:$0xff] %v742
        %775 = vst [vmem:[#allocation3 + $0x68] sm:$0xff] %v743
        %776 = vst [vmem:[#allocation3 + $0x70] sm:$0xff] %v744
        %777 = vst [vmem:[#allocation3 + $0x78] sm:$0xff] %v745
        %778 = vst [vmem:[#allocation3 + $0x80] sm:$0xff] %v746
        %779 = vst [vmem:[#allocation3 + $0x88] sm:$0xff] %v747
        %780 = vst [vmem:[#allocation3 + $0x90] sm:$0xff] %v748
        %781 = vst [vmem:[#allocation3 + $0x98] sm:$0xff] %v749
        %782 = vst [vmem:[#allocation3 + $0xa0] sm:$0xff] %v750
        %783 = vst [vmem:[#allocation3 + $0xa8] sm:$0xff] %v751
        %784 = vst [vmem:[#allocation3 + $0xb0] sm:$0xff] %v752
        %785 = vst [vmem:[#allocation3 + $0xb8] sm:$0xff] %v753
        %786 = vst [vmem:[#allocation3 + $0xc0] sm:$0xff] %v754
        %787 = vst [vmem:[#allocation3 + $0xc8] sm:$0xff] %v755
        %788 = vst [vmem:[#allocation3 + $0xd0] sm:$0xff] %v756
        %789 = vst [vmem:[#allocation3 + $0xd8] sm:$0xff] %v757
        %790 = vst [vmem:[#allocation3 + $0xe0] sm:$0xff] %v758
        %791 = vst [vmem:[#allocation3 + $0xe8] sm:$0xff] %v759
        %792 = vst [vmem:[#allocation3 + $0xf0] sm:$0xff] %v760
        %793 = vst [vmem:[#allocation3 + $0xf8] sm:$0xff] %v761
        %p794 = scmp.eq.s32.totalorder %s18, 0
        %s795 = scalar_select %p794, 0, 7
        %s796 = smul.u32 %s795, 4
        %s797 = smul.addr %s796, 8
        %s798 = scalar_lea.vmem [#allocation2], %s797
        %v799 = vld [vmem:[%s798] sm:$0xff]
        %v800 = vld [vmem:[%s798 + $0x8] sm:$0xff]
        %v801 = vld [vmem:[%s798 + $0x10] sm:$0xff]
        %v802 = vld [vmem:[%s798 + $0x18] sm:$0xff]
        %v803 = vld [vmem:[#allocation3] sm:$0xff]
        %v804 = vld [vmem:[#allocation3 + $0x8] sm:$0xff]
        %v805 = vld [vmem:[#allocation3 + $0x10] sm:$0xff]
        %v806 = vld [vmem:[#allocation3 + $0x18] sm:$0xff]
        %v807 = vld [vmem:[#allocation3 + $0x20] sm:$0xff]
        %v808 = vld [vmem:[#allocation3 + $0x28] sm:$0xff]
        %v809 = vld [vmem:[#allocation3 + $0x30] sm:$0xff]
        %v810 = vld [vmem:[#allocation3 + $0x38] sm:$0xff]
        %v811 = vld [vmem:[#allocation3 + $0x40] sm:$0xff]
        %v812 = vld [vmem:[#allocation3 + $0x48] sm:$0xff]
        %v813 = vld [vmem:[#allocation3 + $0x50] sm:$0xff]
        %v814 = vld [vmem:[#allocation3 + $0x58] sm:$0xff]
        %v815 = vld [vmem:[#allocation3 + $0x60] sm:$0xff]
        %v816 = vld [vmem:[#allocation3 + $0x68] sm:$0xff]
        %v817 = vld [vmem:[#allocation3 + $0x70] sm:$0xff]
        %v818 = vld [vmem:[#allocation3 + $0x78] sm:$0xff]
        %v819 = vld [vmem:[#allocation3 + $0x80] sm:$0xff]
        %v820 = vld [vmem:[#allocation3 + $0x88] sm:$0xff]
        %v821 = vld [vmem:[#allocation3 + $0x90] sm:$0xff]
        %v822 = vld [vmem:[#allocation3 + $0x98] sm:$0xff]
        %v823 = vld [vmem:[#allocation3 + $0xa0] sm:$0xff]
        %v824 = vld [vmem:[#allocation3 + $0xa8] sm:$0xff]
        %v825 = vld [vmem:[#allocation3 + $0xb0] sm:$0xff]
        %v826 = vld [vmem:[#allocation3 + $0xb8] sm:$0xff]
        %v827 = vld [vmem:[#allocation3 + $0xc0] sm:$0xff]
        %v828 = vld [vmem:[#allocation3 + $0xc8] sm:$0xff]
        %v829 = vld [vmem:[#allocation3 + $0xd0] sm:$0xff]
        %v830 = vld [vmem:[#allocation3 + $0xd8] sm:$0xff]
        %v831 = vld [vmem:[#allocation3 + $0xe0] sm:$0xff]
        %v832 = vld [vmem:[#allocation3 + $0xe8] sm:$0xff]
        %v833 = vld [vmem:[#allocation3 + $0xf0] sm:$0xff]
        %v834 = vld [vmem:[#allocation3 + $0xf8] sm:$0xff]
        %835 = vmatprep.subr.bf16.mxu0 %v804
        %836 = vmatpush1.bf16.msra.mxu0 %v803
        %837 = vmatprep.subr.bf16.mxu0 %v808
        %838 = vmatpush1.bf16.msra.mxu0 %v807
        %839 = vmatprep.subr.bf16.mxu0 %v812
        %840 = vmatpush1.bf16.msra.mxu0 %v811
        %841 = vmatprep.subr.bf16.mxu0 %v816
        %842 = vmatpush1.bf16.msra.mxu0 %v815
        %843 = vmatprep.subr.bf16.mxu0 %v820
        %844 = vmatpush1.bf16.msra.mxu0 %v819
        %845 = vmatprep.subr.bf16.mxu0 %v824
        %846 = vmatpush1.bf16.msra.mxu0 %v823
        %847 = vmatprep.subr.bf16.mxu0 %v828
        %848 = vmatpush1.bf16.msra.mxu0 %v827
        %849 = vmatprep.subr.bf16.mxu0 %v832
        %850 = vmatpush1.bf16.msra.mxu0 %v831
        %851 = vmatprep.subr.bf16.mxu0 0
        %852 = vmatpush1.bf16.msra.mxu0 0
        %853 = vmatprep.subr.bf16.mxu0 0
        %854 = vmatpush1.bf16.msra.mxu0 0
        %855 = vmatprep.subr.bf16.mxu0 0
        %856 = vmatpush1.bf16.msra.mxu0 0
        %857 = vmatprep.subr.bf16.mxu0 0
        %858 = vmatpush1.bf16.msra.mxu0 0
        %859 = vmatprep.subr.bf16.mxu0 0
        %860 = vmatpush1.bf16.msra.mxu0 0
        %861 = vmatprep.subr.bf16.mxu0 0
        %862 = vmatpush1.bf16.msra.mxu0 0
        %863 = vmatprep.subr.bf16.mxu0 0
        %864 = vmatpush1.bf16.msra.mxu0 0
        %865 = vmatprep.subr.bf16.mxu0 0
        %866 = vmatpush1.bf16.msra.mxu0 0
        %867 = vmatprep.mubr.bf16.mxu0 0
        %868 = vmatmul.mubr.bf16.gmra.mrb[0].mxu0 0
        %v869 = vpop.f32.mrb[0].mxu0
        %v870 = vadd.f32 0.0, %v869
        %v871 = vpop.f32.mrb[0].mxu0
        %v872 = vadd.f32 0.0, %v871
        %v873 = vpop.f32.mrb[0].mxu0
        %v874 = vpop.f32.mrb[0].mxu0
        %875 = vdwg.mxu0
        %876 = vmatprep.subr.bf16.mxu0 %v806
        %877 = vmatpush1.bf16.msra.mxu0 %v805
        %878 = vmatprep.subr.bf16.mxu0 %v810
        %879 = vmatpush1.bf16.msra.mxu0 %v809
        %880 = vmatprep.subr.bf16.mxu0 %v814
        %881 = vmatpush1.bf16.msra.mxu0 %v813
        %882 = vmatprep.subr.bf16.mxu0 %v818
        %883 = vmatpush1.bf16.msra.mxu0 %v817
        %884 = vmatprep.subr.bf16.mxu0 %v822
        %885 = vmatpush1.bf16.msra.mxu0 %v821
        %886 = vmatprep.subr.bf16.mxu0 %v826
        %887 = vmatpush1.bf16.msra.mxu0 %v825
        %888 = vmatprep.subr.bf16.mxu0 %v830
        %889 = vmatpush1.bf16.msra.mxu0 %v829
        %890 = vmatprep.subr.bf16.mxu0 %v834
        %891 = vmatpush1.bf16.msra.mxu0 %v833
        %892 = vmatprep.subr.bf16.mxu0 0
        %893 = vmatpush1.bf16.msra.mxu0 0
        %894 = vmatprep.subr.bf16.mxu0 0
        %895 = vmatpush1.bf16.msra.mxu0 0
        %896 = vmatprep.subr.bf16.mxu0 0
        %897 = vmatpush1.bf16.msra.mxu0 0
        %898 = vmatprep.subr.bf16.mxu0 0
        %899 = vmatpush1.bf16.msra.mxu0 0
        %900 = vmatprep.subr.bf16.mxu0 0
        %901 = vmatpush1.bf16.msra.mxu0 0
        %902 = vmatprep.subr.bf16.mxu0 0
        %903 = vmatpush1.bf16.msra.mxu0 0
        %904 = vmatprep.subr.bf16.mxu0 0
        %905 = vmatpush1.bf16.msra.mxu0 0
        %906 = vmatprep.subr.bf16.mxu0 0
        %907 = vmatpush1.bf16.msra.mxu0 0
        %908 = vmatprep.mubr.bf16.mxu0 0
        %909 = vmatmul.mubr.bf16.gmra.mrb[0].mxu0 0
        %v910 = vpop.f32.mrb[0].mxu0
        %v911 = vadd.f32 0.0, %v910
        %v912 = vpop.f32.mrb[0].mxu0
        %v913 = vadd.f32 0.0, %v912
        %v914 = vpop.f32.mrb[0].mxu0
        %v915 = vpop.f32.mrb[0].mxu0
        %916 = vdwg.mxu0
        %v917 = vadd.f32 %v799, %v870
        %v918 = vadd.f32 %v800, %v872
        %v919 = vadd.f32 %v801, %v911
        %v920 = vadd.f32 %v802, %v913
        %v921 = vxor.u32 %v917, 2147483648
        %v922 = vmul.f32 %v921, 1.442695
        %v923 = vpow.pop %v922
        %v924 = vadd.f32 %v923, 1.0
        %v925 = vrcp.pop %v924
        %v926 = vmul.f32 1.0, %v925
        %v927 = vxor.u32 %v918, 2147483648
        %v928 = vmul.f32 %v927, 1.442695
        %v929 = vpow.pop %v928
        %v930 = vadd.f32 %v929, 1.0
        %v931 = vrcp.pop %v930
        %v932 = vmul.f32 1.0, %v931
        %v933 = vtanh.pop %v919
        %v934 = vxor.u32 %v920, 2147483648
        %v935 = vmul.f32 %v934, 1.442695
        %v936 = vpow.pop %v935
        %v937 = vadd.f32 %v936, 1.0
        %v938 = vrcp.pop %v937
        %v939 = vmul.f32 1.0, %v938
        %v940 = vmul.f32 %v932, 0.0
        %v941 = vmul.f32 %v926, %v933
        %v942 = vadd.f32 %v940, %v941
        %v943 = vtanh.pop %v942
        %v944 = vmul.f32 %v939, %v943
        %s945 = smul.u32 %s795, 8
        %s946 = scalar_lea.vmem %s239, %s945 [#allocation6]
        %947 = vst [vmem:[%s946] sm:$0xff] %v944
        %s948 = scalar_select %p794, 1, 6
        %s949 = smul.u32 %s948, 4
        %s950 = smul.addr %s949, 8
        %s951 = scalar_lea.vmem [#allocation2], %s950
        %v952 = vld [vmem:[%s951] sm:$0xff]
        %v953 = vld [vmem:[%s951 + $0x8] sm:$0xff]
        %v954 = vld [vmem:[%s951 + $0x10] sm:$0xff]
        %v955 = vld [vmem:[%s951 + $0x18] sm:$0xff]
        %v956 = vpack.c.bf16 %v944, %v944
        %v957 = vld [vmem:[#allocation3] sm:$0xff]
        %v958 = vld [vmem:[#allocation3 + $0x8] sm:$0xff]
        %v959 = vld [vmem:[#allocation3 + $0x10] sm:$0xff]
        %v960 = vld [vmem:[#allocation3 + $0x18] sm:$0xff]
        %v961 = vld [vmem:[#allocation3 + $0x20] sm:$0xff]
        %v962 = vld [vmem:[#allocation3 + $0x28] sm:$0xff]
        %v963 = vld [vmem:[#allocation3 + $0x30] sm:$0xff]
        %v964 = vld [vmem:[#allocation3 + $0x38] sm:$0xff]
        %v965 = vld [vmem:[#allocation3 + $0x40] sm:$0xff]
        %v966 = vld [vmem:[#allocation3 + $0x48] sm:$0xff]
        %v967 = vld [vmem:[#allocation3 + $0x50] sm:$0xff]
        %v968 = vld [vmem:[#allocation3 + $0x58] sm:$0xff]
        %v969 = vld [vmem:[#allocation3 + $0x60] sm:$0xff]
        %v970 = vld [vmem:[#allocation3 + $0x68] sm:$0xff]
        %v971 = vld [vmem:[#allocation3 + $0x70] sm:$0xff]
        %v972 = vld [vmem:[#allocation3 + $0x78] sm:$0xff]
        %v973 = vld [vmem:[#allocation3 + $0x80] sm:$0xff]
        %v974 = vld [vmem:[#allocation3 + $0x88] sm:$0xff]
        %v975 = vld [vmem:[#allocation3 + $0x90] sm:$0xff]
        %v976 = vld [vmem:[#allocation3 + $0x98] sm:$0xff]
        %v977 = vld [vmem:[#allocation3 + $0xa0] sm:$0xff]
        %v978 = vld [vmem:[#allocation3 + $0xa8] sm:$0xff]
        %v979 = vld [vmem:[#allocation3 + $0xb0] sm:$0xff]
        %v980 = vld [vmem:[#allocation3 + $0xb8] sm:$0xff]
        %v981 = vld [vmem:[#allocation3 + $0xc0] sm:$0xff]
        %v982 = vld [vmem:[#allocation3 + $0xc8] sm:$0xff]
        %v983 = vld [vmem:[#allocation3 + $0xd0] sm:$0xff]
        %v984 = vld [vmem:[#allocation3 + $0xd8] sm:$0xff]
        %v985 = vld [vmem:[#allocation3 + $0xe0] sm:$0xff]
        %v986 = vld [vmem:[#allocation3 + $0xe8] sm:$0xff]
        %v987 = vld [vmem:[#allocation3 + $0xf0] sm:$0xff]
        %v988 = vld [vmem:[#allocation3 + $0xf8] sm:$0xff]
        %989 = vmatprep.subr.bf16.mxu0 %v958
        %990 = vmatpush1.bf16.msra.mxu0 %v957
        %991 = vmatprep.subr.bf16.mxu0 %v962
        %992 = vmatpush1.bf16.msra.mxu0 %v961
        %993 = vmatprep.subr.bf16.mxu0 %v966
        %994 = vmatpush1.bf16.msra.mxu0 %v965
        %995 = vmatprep.subr.bf16.mxu0 %v970
        %996 = vmatpush1.bf16.msra.mxu0 %v969
        %997 = vmatprep.subr.bf16.mxu0 %v974
        %998 = vmatpush1.bf16.msra.mxu0 %v973
        %999 = vmatprep.subr.bf16.mxu0 %v978
        %1000 = vmatpush1.bf16.msra.mxu0 %v977
        %1001 = vmatprep.subr.bf16.mxu0 %v982
        %1002 = vmatpush1.bf16.msra.mxu0 %v981
        %1003 = vmatprep.subr.bf16.mxu0 %v986
        %1004 = vmatpush1.bf16.msra.mxu0 %v985
        %1005 = vmatprep.subr.bf16.mxu0 0
        %1006 = vmatpush1.bf16.msra.mxu0 0
        %1007 = vmatprep.subr.bf16.mxu0 0
        %1008 = vmatpush1.bf16.msra.mxu0 0
        %1009 = vmatprep.subr.bf16.mxu0 0
        %1010 = vmatpush1.bf16.msra.mxu0 0
        %1011 = vmatprep.subr.bf16.mxu0 0
        %1012 = vmatpush1.bf16.msra.mxu0 0
        %1013 = vmatprep.subr.bf16.mxu0 0
        %1014 = vmatpush1.bf16.msra.mxu0 0
        %1015 = vmatprep.subr.bf16.mxu0 0
        %1016 = vmatpush1.bf16.msra.mxu0 0
        %1017 = vmatprep.subr.bf16.mxu0 0
        %1018 = vmatpush1.bf16.msra.mxu0 0
        %1019 = vmatprep.subr.bf16.mxu0 0
        %1020 = vmatpush1.bf16.msra.mxu0 0
        %1021 = vmatprep.mubr.bf16.mxu0 0
        %1022 = vmatmul.mubr.bf16.gmra.mrb[0].mxu0 %v956
        %v1023 = vpop.f32.mrb[0].mxu0
        %v1024 = vadd.f32 0.0, %v1023
        %v1025 = vpop.f32.mrb[0].mxu0
        %v1026 = vadd.f32 0.0, %v1025
        %v1027 = vpop.f32.mrb[0].mxu0
        %v1028 = vpop.f32.mrb[0].mxu0
        %1029 = vdwg.mxu0
        %1030 = vmatprep.subr.bf16.mxu0 %v960
        %1031 = vmatpush1.bf16.msra.mxu0 %v959
        %1032 = vmatprep.subr.bf16.mxu0 %v964
        %1033 = vmatpush1.bf16.msra.mxu0 %v963
        %1034 = vmatprep.subr.bf16.mxu0 %v968
        %1035 = vmatpush1.bf16.msra.mxu0 %v967
        %1036 = vmatprep.subr.bf16.mxu0 %v972
        %1037 = vmatpush1.bf16.msra.mxu0 %v971
        %1038 = vmatprep.subr.bf16.mxu0 %v976
        %1039 = vmatpush1.bf16.msra.mxu0 %v975
        %1040 = vmatprep.subr.bf16.mxu0 %v980
        %1041 = vmatpush1.bf16.msra.mxu0 %v979
        %1042 = vmatprep.subr.bf16.mxu0 %v984
        %1043 = vmatpush1.bf16.msra.mxu0 %v983
        %1044 = vmatprep.subr.bf16.mxu0 %v988
        %1045 = vmatpush1.bf16.msra.mxu0 %v987
        %1046 = vmatprep.subr.bf16.mxu0 0
        %1047 = vmatpush1.bf16.msra.mxu0 0
        %1048 = vmatprep.subr.bf16.mxu0 0
        %1049 = vmatpush1.bf16.msra.mxu0 0
        %1050 = vmatprep.subr.bf16.mxu0 0
        %1051 = vmatpush1.bf16.msra.mxu0 0
        %1052 = vmatprep.subr.bf16.mxu0 0
        %1053 = vmatpush1.bf16.msra.mxu0 0
        %1054 = vmatprep.subr.bf16.mxu0 0
        %1055 = vmatpush1.bf16.msra.mxu0 0
        %1056 = vmatprep.subr.bf16.mxu0 0
        %1057 = vmatpush1.bf16.msra.mxu0 0
        %1058 = vmatprep.subr.bf16.mxu0 0
        %1059 = vmatpush1.bf16.msra.mxu0 0
        %1060 = vmatprep.subr.bf16.mxu0 0
        %1061 = vmatpush1.bf16.msra.mxu0 0
        %1062 = vmatprep.mubr.bf16.mxu0 0
        %1063 = vmatmul.mubr.bf16.gmra.mrb[0].mxu0 %v956
        %v1064 = vpop.f32.mrb[0].mxu0
        %v1065 = vadd.f32 0.0, %v1064
        %v1066 = vpop.f32.mrb[0].mxu0
        %v1067 = vadd.f32 0.0, %v1066
        %v1068 = vpop.f32.mrb[0].mxu0
        %v1069 = vpop.f32.mrb[0].mxu0
        %1070 = vdwg.mxu0
        %v1071 = vadd.f32 %v952, %v1024
        %v1072 = vadd.f32 %v953, %v1026
        %v1073 = vadd.f32 %v954, %v1065
        %v1074 = vadd.f32 %v955, %v1067
        %v1075 = vxor.u32 %v1071, 2147483648
        %v1076 = vmul.f32 %v1075, 1.442695
        %v1077 = vpow.pop %v1076
        %v1078 = vadd.f32 %v1077, 1.0
        %v1079 = vrcp.pop %v1078
        %v1080 = vmul.f32 1.0, %v1079
        %v1081 = vxor.u32 %v1072, 2147483648
        %v1082 = vmul.f32 %v1081, 1.442695
        %v1083 = vpow.pop %v1082
        %v1084 = vadd.f32 %v1083, 1.0
        %v1085 = vrcp.pop %v1084
        %v1086 = vmul.f32 1.0, %v1085
        %v1087 = vtanh.pop %v1073
        %v1088 = vxor.u32 %v1074, 2147483648
        %v1089 = vmul.f32 %v1088, 1.442695
        %v1090 = vpow.pop %v1089
        %v1091 = vadd.f32 %v1090, 1.0
        %v1092 = vrcp.pop %v1091
        %v1093 = vmul.f32 1.0, %v1092
        %v1094 = vmul.f32 %v1086, %v942
        %v1095 = vmul.f32 %v1080, %v1087
        %v1096 = vadd.f32 %v1094, %v1095
        %v1097 = vtanh.pop %v1096
        %v1098 = vmul.f32 %v1093, %v1097
        %s1099 = smul.u32 %s948, 8
        %s1100 = scalar_lea.vmem %s239, %s1099 [#allocation6]
        %1101 = vst [vmem:[%s1100] sm:$0xff] %v1098
        %s1102 = scalar_select %p794, 2, 5
        %s1103 = smul.u32 %s1102, 4
        %s1104 = smul.addr %s1103, 8
        %s1105 = scalar_lea.vmem [#allocation2], %s1104
        %v1106 = vld [vmem:[%s1105] sm:$0xff]
        %v1107 = vld [vmem:[%s1105 + $0x8] sm:$0xff]
        %v1108 = vld [vmem:[%s1105 + $0x10] sm:$0xff]
        %v1109 = vld [vmem:[%s1105 + $0x18] sm:$0xff]
        %v1110 = vpack.c.bf16 %v1098, %v1098
        %v1111 = vld [vmem:[#allocation3] sm:$0xff]
        %v1112 = vld [vmem:[#allocation3 + $0x8] sm:$0xff]
        %v1113 = vld [vmem:[#allocation3 + $0x10] sm:$0xff]
        %v1114 = vld [vmem:[#allocation3 + $0x18] sm:$0xff]
        %v1115 = vld [vmem:[#allocation3 + $0x20] sm:$0xff]
        %v1116 = vld [vmem:[#allocation3 + $0x28] sm:$0xff]
        %v1117 = vld [vmem:[#allocation3 + $0x30] sm:$0xff]
        %v1118 = vld [vmem:[#allocation3 + $0x38] sm:$0xff]
        %v1119 = vld [vmem:[#allocation3 + $0x40] sm:$0xff]
        %v1120 = vld [vmem:[#allocation3 + $0x48] sm:$0xff]
        %v1121 = vld [vmem:[#allocation3 + $0x50] sm:$0xff]
        %v1122 = vld [vmem:[#allocation3 + $0x58] sm:$0xff]
        %v1123 = vld [vmem:[#allocation3 + $0x60] sm:$0xff]
        %v1124 = vld [vmem:[#allocation3 + $0x68] sm:$0xff]
        %v1125 = vld [vmem:[#allocation3 + $0x70] sm:$0xff]
        %v1126 = vld [vmem:[#allocation3 + $0x78] sm:$0xff]
        %v1127 = vld [vmem:[#allocation3 + $0x80] sm:$0xff]
        %v1128 = vld [vmem:[#allocation3 + $0x88] sm:$0xff]
        %v1129 = vld [vmem:[#allocation3 + $0x90] sm:$0xff]
        %v1130 = vld [vmem:[#allocation3 + $0x98] sm:$0xff]
        %v1131 = vld [vmem:[#allocation3 + $0xa0] sm:$0xff]
        %v1132 = vld [vmem:[#allocation3 + $0xa8] sm:$0xff]
        %v1133 = vld [vmem:[#allocation3 + $0xb0] sm:$0xff]
        %v1134 = vld [vmem:[#allocation3 + $0xb8] sm:$0xff]
        %v1135 = vld [vmem:[#allocation3 + $0xc0] sm:$0xff]
        %v1136 = vld [vmem:[#allocation3 + $0xc8] sm:$0xff]
        %v1137 = vld [vmem:[#allocation3 + $0xd0] sm:$0xff]
        %v1138 = vld [vmem:[#allocation3 + $0xd8] sm:$0xff]
        %v1139 = vld [vmem:[#allocation3 + $0xe0] sm:$0xff]
        %v1140 = vld [vmem:[#allocation3 + $0xe8] sm:$0xff]
        %v1141 = vld [vmem:[#allocation3 + $0xf0] sm:$0xff]
        %v1142 = vld [vmem:[#allocation3 + $0xf8] sm:$0xff]
        %1143 = vmatprep.subr.bf16.mxu0 %v1112
        %1144 = vmatpush1.bf16.msra.mxu0 %v1111
        %1145 = vmatprep.subr.bf16.mxu0 %v1116
        %1146 = vmatpush1.bf16.msra.mxu0 %v1115
        %1147 = vmatprep.subr.bf16.mxu0 %v1120
        %1148 = vmatpush1.bf16.msra.mxu0 %v1119
        %1149 = vmatprep.subr.bf16.mxu0 %v1124
        %1150 = vmatpush1.bf16.msra.mxu0 %v1123
        %1151 = vmatprep.subr.bf16.mxu0 %v1128
        %1152 = vmatpush1.bf16.msra.mxu0 %v1127
        %1153 = vmatprep.subr.bf16.mxu0 %v1132
        %1154 = vmatpush1.bf16.msra.mxu0 %v1131
        %1155 = vmatprep.subr.bf16.mxu0 %v1136
        %1156 = vmatpush1.bf16.msra.mxu0 %v1135
        %1157 = vmatprep.subr.bf16.mxu0 %v1140
        %1158 = vmatpush1.bf16.msra.mxu0 %v1139
        %1159 = vmatprep.subr.bf16.mxu0 0
        %1160 = vmatpush1.bf16.msra.mxu0 0
        %1161 = vmatprep.subr.bf16.mxu0 0
        %1162 = vmatpush1.bf16.msra.mxu0 0
        %1163 = vmatprep.subr.bf16.mxu0 0
        %1164 = vmatpush1.bf16.msra.mxu0 0
        %1165 = vmatprep.subr.bf16.mxu0 0
        %1166 = vmatpush1.bf16.msra.mxu0 0
        %1167 = vmatprep.subr.bf16.mxu0 0
        %1168 = vmatpush1.bf16.msra.mxu0 0
        %1169 = vmatprep.subr.bf16.mxu0 0
        %1170 = vmatpush1.bf16.msra.mxu0 0
        %1171 = vmatprep.subr.bf16.mxu0 0
        %1172 = vmatpush1.bf16.msra.mxu0 0
        %1173 = vmatprep.subr.bf16.mxu0 0
        %1174 = vmatpush1.bf16.msra.mxu0 0
        %1175 = vmatprep.mubr.bf16.mxu0 0
        %1176 = vmatmul.mubr.bf16.gmra.mrb[0].mxu0 %v1110
        %v1177 = vpop.f32.mrb[0].mxu0
        %v1178 = vadd.f32 0.0, %v1177
        %v1179 = vpop.f32.mrb[0].mxu0
        %v1180 = vadd.f32 0.0, %v1179
        %v1181 = vpop.f32.mrb[0].mxu0
        %v1182 = vpop.f32.mrb[0].mxu0
        %1183 = vdwg.mxu0
        %1184 = vmatprep.subr.bf16.mxu0 %v1114
        %1185 = vmatpush1.bf16.msra.mxu0 %v1113
        %1186 = vmatprep.subr.bf16.mxu0 %v1118
        %1187 = vmatpush1.bf16.msra.mxu0 %v1117
        %1188 = vmatprep.subr.bf16.mxu0 %v1122
        %1189 = vmatpush1.bf16.msra.mxu0 %v1121
        %1190 = vmatprep.subr.bf16.mxu0 %v1126
        %1191 = vmatpush1.bf16.msra.mxu0 %v1125
        %1192 = vmatprep.subr.bf16.mxu0 %v1130
        %1193 = vmatpush1.bf16.msra.mxu0 %v1129
        %1194 = vmatprep.subr.bf16.mxu0 %v1134
        %1195 = vmatpush1.bf16.msra.mxu0 %v1133
        %1196 = vmatprep.subr.bf16.mxu0 %v1138
        %1197 = vmatpush1.bf16.msra.mxu0 %v1137
        %1198 = vmatprep.subr.bf16.mxu0 %v1142
        %1199 = vmatpush1.bf16.msra.mxu0 %v1141
        %1200 = vmatprep.subr.bf16.mxu0 0
        %1201 = vmatpush1.bf16.msra.mxu0 0
        %1202 = vmatprep.subr.bf16.mxu0 0
        %1203 = vmatpush1.bf16.msra.mxu0 0
        %1204 = vmatprep.subr.bf16.mxu0 0
        %1205 = vmatpush1.bf16.msra.mxu0 0
        %1206 = vmatprep.subr.bf16.mxu0 0
        %1207 = vmatpush1.bf16.msra.mxu0 0
        %1208 = vmatprep.subr.bf16.mxu0 0
        %1209 = vmatpush1.bf16.msra.mxu0 0
        %1210 = vmatprep.subr.bf16.mxu0 0
        %1211 = vmatpush1.bf16.msra.mxu0 0
        %1212 = vmatprep.subr.bf16.mxu0 0
        %1213 = vmatpush1.bf16.msra.mxu0 0
        %1214 = vmatprep.subr.bf16.mxu0 0
        %1215 = vmatpush1.bf16.msra.mxu0 0
        %1216 = vmatprep.mubr.bf16.mxu0 0
        %1217 = vmatmul.mubr.bf16.gmra.mrb[0].mxu0 %v1110
        %v1218 = vpop.f32.mrb[0].mxu0
        %v1219 = vadd.f32 0.0, %v1218
        %v1220 = vpop.f32.mrb[0].mxu0
        %v1221 = vadd.f32 0.0, %v1220
        %v1222 = vpop.f32.mrb[0].mxu0
        %v1223 = vpop.f32.mrb[0].mxu0
        %1224 = vdwg.mxu0
        %v1225 = vadd.f32 %v1106, %v1178
        %v1226 = vadd.f32 %v1107, %v1180
        %v1227 = vadd.f32 %v1108, %v1219
        %v1228 = vadd.f32 %v1109, %v1221
        %v1229 = vxor.u32 %v1225, 2147483648
        %v1230 = vmul.f32 %v1229, 1.442695
        %v1231 = vpow.pop %v1230
        %v1232 = vadd.f32 %v1231, 1.0
        %v1233 = vrcp.pop %v1232
        %v1234 = vmul.f32 1.0, %v1233
        %v1235 = vxor.u32 %v1226, 2147483648
        %v1236 = vmul.f32 %v1235, 1.442695
        %v1237 = vpow.pop %v1236
        %v1238 = vadd.f32 %v1237, 1.0
        %v1239 = vrcp.pop %v1238
        %v1240 = vmul.f32 1.0, %v1239
        %v1241 = vtanh.pop %v1227
        %v1242 = vxor.u32 %v1228, 2147483648
        %v1243 = vmul.f32 %v1242, 1.442695
        %v1244 = vpow.pop %v1243
        %v1245 = vadd.f32 %v1244, 1.0
        %v1246 = vrcp.pop %v1245
        %v1247 = vmul.f32 1.0, %v1246
        %v1248 = vmul.f32 %v1240, %v1096
        %v1249 = vmul.f32 %v1234, %v1241
        %v1250 = vadd.f32 %v1248, %v1249
        %v1251 = vtanh.pop %v1250
        %v1252 = vmul.f32 %v1247, %v1251
        %s1253 = smul.u32 %s1102, 8
        %s1254 = scalar_lea.vmem %s239, %s1253 [#allocation6]
        %1255 = vst [vmem:[%s1254] sm:$0xff] %v1252
        %s1256 = scalar_select %p794, 3, 4
        %s1257 = smul.u32 %s1256, 4
        %s1258 = smul.addr %s1257, 8
        %s1259 = scalar_lea.vmem [#allocation2], %s1258
        %v1260 = vld [vmem:[%s1259] sm:$0xff]
        %v1261 = vld [vmem:[%s1259 + $0x8] sm:$0xff]
        %v1262 = vld [vmem:[%s1259 + $0x10] sm:$0xff]
        %v1263 = vld [vmem:[%s1259 + $0x18] sm:$0xff]
        %v1264 = vpack.c.bf16 %v1252, %v1252
        %v1265 = vld [vmem:[#allocation3] sm:$0xff]
        %v1266 = vld [vmem:[#allocation3 + $0x8] sm:$0xff]
        %v1267 = vld [vmem:[#allocation3 + $0x10] sm:$0xff]
        %v1268 = vld [vmem:[#allocation3 + $0x18] sm:$0xff]
        %v1269 = vld [vmem:[#allocation3 + $0x20] sm:$0xff]
        %v1270 = vld [vmem:[#allocation3 + $0x28] sm:$0xff]
        %v1271 = vld [vmem:[#allocation3 + $0x30] sm:$0xff]
        %v1272 = vld [vmem:[#allocation3 + $0x38] sm:$0xff]
        %v1273 = vld [vmem:[#allocation3 + $0x40] sm:$0xff]
        %v1274 = vld [vmem:[#allocation3 + $0x48] sm:$0xff]
        %v1275 = vld [vmem:[#allocation3 + $0x50] sm:$0xff]
        %v1276 = vld [vmem:[#allocation3 + $0x58] sm:$0xff]
        %v1277 = vld [vmem:[#allocation3 + $0x60] sm:$0xff]
        %v1278 = vld [vmem:[#allocation3 + $0x68] sm:$0xff]
        %v1279 = vld [vmem:[#allocation3 + $0x70] sm:$0xff]
        %v1280 = vld [vmem:[#allocation3 + $0x78] sm:$0xff]
        %v1281 = vld [vmem:[#allocation3 + $0x80] sm:$0xff]
        %v1282 = vld [vmem:[#allocation3 + $0x88] sm:$0xff]
        %v1283 = vld [vmem:[#allocation3 + $0x90] sm:$0xff]
        %v1284 = vld [vmem:[#allocation3 + $0x98] sm:$0xff]
        %v1285 = vld [vmem:[#allocation3 + $0xa0] sm:$0xff]
        %v1286 = vld [vmem:[#allocation3 + $0xa8] sm:$0xff]
        %v1287 = vld [vmem:[#allocation3 + $0xb0] sm:$0xff]
        %v1288 = vld [vmem:[#allocation3 + $0xb8] sm:$0xff]
        %v1289 = vld [vmem:[#allocation3 + $0xc0] sm:$0xff]
        %v1290 = vld [vmem:[#allocation3 + $0xc8] sm:$0xff]
        %v1291 = vld [vmem:[#allocation3 + $0xd0] sm:$0xff]
        %v1292 = vld [vmem:[#allocation3 + $0xd8] sm:$0xff]
        %v1293 = vld [vmem:[#allocation3 + $0xe0] sm:$0xff]
        %v1294 = vld [vmem:[#allocation3 + $0xe8] sm:$0xff]
        %v1295 = vld [vmem:[#allocation3 + $0xf0] sm:$0xff]
        %v1296 = vld [vmem:[#allocation3 + $0xf8] sm:$0xff]
        %1297 = vmatprep.subr.bf16.mxu0 %v1266
        %1298 = vmatpush1.bf16.msra.mxu0 %v1265
        %1299 = vmatprep.subr.bf16.mxu0 %v1270
        %1300 = vmatpush1.bf16.msra.mxu0 %v1269
        %1301 = vmatprep.subr.bf16.mxu0 %v1274
        %1302 = vmatpush1.bf16.msra.mxu0 %v1273
        %1303 = vmatprep.subr.bf16.mxu0 %v1278
        %1304 = vmatpush1.bf16.msra.mxu0 %v1277
        %1305 = vmatprep.subr.bf16.mxu0 %v1282
        %1306 = vmatpush1.bf16.msra.mxu0 %v1281
        %1307 = vmatprep.subr.bf16.mxu0 %v1286
        %1308 = vmatpush1.bf16.msra.mxu0 %v1285
        %1309 = vmatprep.subr.bf16.mxu0 %v1290
        %1310 = vmatpush1.bf16.msra.mxu0 %v1289
        %1311 = vmatprep.subr.bf16.mxu0 %v1294
        %1312 = vmatpush1.bf16.msra.mxu0 %v1293
        %1313 = vmatprep.subr.bf16.mxu0 0
        %1314 = vmatpush1.bf16.msra.mxu0 0
        %1315 = vmatprep.subr.bf16.mxu0 0
        %1316 = vmatpush1.bf16.msra.mxu0 0
        %1317 = vmatprep.subr.bf16.mxu0 0
        %1318 = vmatpush1.bf16.msra.mxu0 0
        %1319 = vmatprep.subr.bf16.mxu0 0
        %1320 = vmatpush1.bf16.msra.mxu0 0
        %1321 = vmatprep.subr.bf16.mxu0 0
        %1322 = vmatpush1.bf16.msra.mxu0 0
        %1323 = vmatprep.subr.bf16.mxu0 0
        %1324 = vmatpush1.bf16.msra.mxu0 0
        %1325 = vmatprep.subr.bf16.mxu0 0
        %1326 = vmatpush1.bf16.msra.mxu0 0
        %1327 = vmatprep.subr.bf16.mxu0 0
        %1328 = vmatpush1.bf16.msra.mxu0 0
        %1329 = vmatprep.mubr.bf16.mxu0 0
        %1330 = vmatmul.mubr.bf16.gmra.mrb[0].mxu0 %v1264
        %v1331 = vpop.f32.mrb[0].mxu0
        %v1332 = vadd.f32 0.0, %v1331
        %v1333 = vpop.f32.mrb[0].mxu0
        %v1334 = vadd.f32 0.0, %v1333
        %v1335 = vpop.f32.mrb[0].mxu0
        %v1336 = vpop.f32.mrb[0].mxu0
        %1337 = vdwg.mxu0
        %1338 = vmatprep.subr.bf16.mxu0 %v1268
        %1339 = vmatpush1.bf16.msra.mxu0 %v1267
        %1340 = vmatprep.subr.bf16.mxu0 %v1272
        %1341 = vmatpush1.bf16.msra.mxu0 %v1271
        %1342 = vmatprep.subr.bf16.mxu0 %v1276
        %1343 = vmatpush1.bf16.msra.mxu0 %v1275
        %1344 = vmatprep.subr.bf16.mxu0 %v1280
        %1345 = vmatpush1.bf16.msra.mxu0 %v1279
        %1346 = vmatprep.subr.bf16.mxu0 %v1284
        %1347 = vmatpush1.bf16.msra.mxu0 %v1283
        %1348 = vmatprep.subr.bf16.mxu0 %v1288
        %1349 = vmatpush1.bf16.msra.mxu0 %v1287
        %1350 = vmatprep.subr.bf16.mxu0 %v1292
        %1351 = vmatpush1.bf16.msra.mxu0 %v1291
        %1352 = vmatprep.subr.bf16.mxu0 %v1296
        %1353 = vmatpush1.bf16.msra.mxu0 %v1295
        %1354 = vmatprep.subr.bf16.mxu0 0
        %1355 = vmatpush1.bf16.msra.mxu0 0
        %1356 = vmatprep.subr.bf16.mxu0 0
        %1357 = vmatpush1.bf16.msra.mxu0 0
        %1358 = vmatprep.subr.bf16.mxu0 0
        %1359 = vmatpush1.bf16.msra.mxu0 0
        %1360 = vmatprep.subr.bf16.mxu0 0
        %1361 = vmatpush1.bf16.msra.mxu0 0
        %1362 = vmatprep.subr.bf16.mxu0 0
        %1363 = vmatpush1.bf16.msra.mxu0 0
        %1364 = vmatprep.subr.bf16.mxu0 0
        %1365 = vmatpush1.bf16.msra.mxu0 0
        %1366 = vmatprep.subr.bf16.mxu0 0
        %1367 = vmatpush1.bf16.msra.mxu0 0
        %1368 = vmatprep.subr.bf16.mxu0 0
        %1369 = vmatpush1.bf16.msra.mxu0 0
        %1370 = vmatprep.mubr.bf16.mxu0 0
        %1371 = vmatmul.mubr.bf16.gmra.mrb[0].mxu0 %v1264
        %v1372 = vpop.f32.mrb[0].mxu0
        %v1373 = vadd.f32 0.0, %v1372
        %v1374 = vpop.f32.mrb[0].mxu0
        %v1375 = vadd.f32 0.0, %v1374
        %v1376 = vpop.f32.mrb[0].mxu0
        %v1377 = vpop.f32.mrb[0].mxu0
        %1378 = vdwg.mxu0
        %v1379 = vadd.f32 %v1260, %v1332
        %v1380 = vadd.f32 %v1261, %v1334
        %v1381 = vadd.f32 %v1262, %v1373
        %v1382 = vadd.f32 %v1263, %v1375
        %v1383 = vxor.u32 %v1379, 2147483648
        %v1384 = vmul.f32 %v1383, 1.442695
        %v1385 = vpow.pop %v1384
        %v1386 = vadd.f32 %v1385, 1.0
        %v1387 = vrcp.pop %v1386
        %v1388 = vmul.f32 1.0, %v1387
        %v1389 = vxor.u32 %v1380, 2147483648
        %v1390 = vmul.f32 %v1389, 1.442695
        %v1391 = vpow.pop %v1390
        %v1392 = vadd.f32 %v1391, 1.0
        %v1393 = vrcp.pop %v1392
        %v1394 = vmul.f32 1.0, %v1393
        %v1395 = vtanh.pop %v1381
        %v1396 = vxor.u32 %v1382, 2147483648
        %v1397 = vmul.f32 %v1396, 1.442695
        %v1398 = vpow.pop %v1397
        %v1399 = vadd.f32 %v1398, 1.0
        %v1400 = vrcp.pop %v1399
        %v1401 = vmul.f32 1.0, %v1400
        %v1402 = vmul.f32 %v1394, %v1250
        %v1403 = vmul.f32 %v1388, %v1395
        %v1404 = vadd.f32 %v1402, %v1403
        %v1405 = vtanh.pop %v1404
        %v1406 = vmul.f32 %v1401, %v1405
        %s1407 = smul.u32 %s1256, 8
        %s1408 = scalar_lea.vmem %s239, %s1407 [#allocation6]
        %1409 = vst [vmem:[%s1408] sm:$0xff] %v1406
        %s1410 = scalar_select %p794, 4, 3
        %s1411 = smul.u32 %s1410, 4
        %s1412 = smul.addr %s1411, 8
        %s1413 = scalar_lea.vmem [#allocation2], %s1412
        %v1414 = vld [vmem:[%s1413] sm:$0xff]
        %v1415 = vld [vmem:[%s1413 + $0x8] sm:$0xff]
        %v1416 = vld [vmem:[%s1413 + $0x10] sm:$0xff]
        %v1417 = vld [vmem:[%s1413 + $0x18] sm:$0xff]
        %v1418 = vpack.c.bf16 %v1406, %v1406
        %v1419 = vld [vmem:[#allocation3] sm:$0xff]
        %v1420 = vld [vmem:[#allocation3 + $0x8] sm:$0xff]
        %v1421 = vld [vmem:[#allocation3 + $0x10] sm:$0xff]
        %v1422 = vld [vmem:[#allocation3 + $0x18] sm:$0xff]
        %v1423 = vld [vmem:[#allocation3 + $0x20] sm:$0xff]
        %v1424 = vld [vmem:[#allocation3 + $0x28] sm:$0xff]
        %v1425 = vld [vmem:[#allocation3 + $0x30] sm:$0xff]
        %v1426 = vld [vmem:[#allocation3 + $0x38] sm:$0xff]
        %v1427 = vld [vmem:[#allocation3 + $0x40] sm:$0xff]
        %v1428 = vld [vmem:[#allocation3 + $0x48] sm:$0xff]
        %v1429 = vld [vmem:[#allocation3 + $0x50] sm:$0xff]
        %v1430 = vld [vmem:[#allocation3 + $0x58] sm:$0xff]
        %v1431 = vld [vmem:[#allocation3 + $0x60] sm:$0xff]
        %v1432 = vld [vmem:[#allocation3 + $0x68] sm:$0xff]
        %v1433 = vld [vmem:[#allocation3 + $0x70] sm:$0xff]
        %v1434 = vld [vmem:[#allocation3 + $0x78] sm:$0xff]
        %v1435 = vld [vmem:[#allocation3 + $0x80] sm:$0xff]
        %v1436 = vld [vmem:[#allocation3 + $0x88] sm:$0xff]
        %v1437 = vld [vmem:[#allocation3 + $0x90] sm:$0xff]
        %v1438 = vld [vmem:[#allocation3 + $0x98] sm:$0xff]
        %v1439 = vld [vmem:[#allocation3 + $0xa0] sm:$0xff]
        %v1440 = vld [vmem:[#allocation3 + $0xa8] sm:$0xff]
        %v1441 = vld [vmem:[#allocation3 + $0xb0] sm:$0xff]
        %v1442 = vld [vmem:[#allocation3 + $0xb8] sm:$0xff]
        %v1443 = vld [vmem:[#allocation3 + $0xc0] sm:$0xff]
        %v1444 = vld [vmem:[#allocation3 + $0xc8] sm:$0xff]
        %v1445 = vld [vmem:[#allocation3 + $0xd0] sm:$0xff]
        %v1446 = vld [vmem:[#allocation3 + $0xd8] sm:$0xff]
        %v1447 = vld [vmem:[#allocation3 + $0xe0] sm:$0xff]
        %v1448 = vld [vmem:[#allocation3 + $0xe8] sm:$0xff]
        %v1449 = vld [vmem:[#allocation3 + $0xf0] sm:$0xff]
        %v1450 = vld [vmem:[#allocation3 + $0xf8] sm:$0xff]
        %1451 = vmatprep.subr.bf16.mxu0 %v1420
        %1452 = vmatpush1.bf16.msra.mxu0 %v1419
        %1453 = vmatprep.subr.bf16.mxu0 %v1424
        %1454 = vmatpush1.bf16.msra.mxu0 %v1423
        %1455 = vmatprep.subr.bf16.mxu0 %v1428
        %1456 = vmatpush1.bf16.msra.mxu0 %v1427
        %1457 = vmatprep.subr.bf16.mxu0 %v1432
        %1458 = vmatpush1.bf16.msra.mxu0 %v1431
        %1459 = vmatprep.subr.bf16.mxu0 %v1436
        %1460 = vmatpush1.bf16.msra.mxu0 %v1435
        %1461 = vmatprep.subr.bf16.mxu0 %v1440
        %1462 = vmatpush1.bf16.msra.mxu0 %v1439
        %1463 = vmatprep.subr.bf16.mxu0 %v1444
        %1464 = vmatpush1.bf16.msra.mxu0 %v1443
        %1465 = vmatprep.subr.bf16.mxu0 %v1448
        %1466 = vmatpush1.bf16.msra.mxu0 %v1447
        %1467 = vmatprep.subr.bf16.mxu0 0
        %1468 = vmatpush1.bf16.msra.mxu0 0
        %1469 = vmatprep.subr.bf16.mxu0 0
        %1470 = vmatpush1.bf16.msra.mxu0 0
        %1471 = vmatprep.subr.bf16.mxu0 0
        %1472 = vmatpush1.bf16.msra.mxu0 0
        %1473 = vmatprep.subr.bf16.mxu0 0
        %1474 = vmatpush1.bf16.msra.mxu0 0
        %1475 = vmatprep.subr.bf16.mxu0 0
        %1476 = vmatpush1.bf16.msra.mxu0 0
        %1477 = vmatprep.subr.bf16.mxu0 0
        %1478 = vmatpush1.bf16.msra.mxu0 0
        %1479 = vmatprep.subr.bf16.mxu0 0
        %1480 = vmatpush1.bf16.msra.mxu0 0
        %1481 = vmatprep.subr.bf16.mxu0 0
        %1482 = vmatpush1.bf16.msra.mxu0 0
        %1483 = vmatprep.mubr.bf16.mxu0 0
        %1484 = vmatmul.mubr.bf16.gmra.mrb[0].mxu0 %v1418
        %v1485 = vpop.f32.mrb[0].mxu0
        %v1486 = vadd.f32 0.0, %v1485
        %v1487 = vpop.f32.mrb[0].mxu0
        %v1488 = vadd.f32 0.0, %v1487
        %v1489 = vpop.f32.mrb[0].mxu0
        %v1490 = vpop.f32.mrb[0].mxu0
        %1491 = vdwg.mxu0
        %1492 = vmatprep.subr.bf16.mxu0 %v1422
        %1493 = vmatpush1.bf16.msra.mxu0 %v1421
        %1494 = vmatprep.subr.bf16.mxu0 %v1426
        %1495 = vmatpush1.bf16.msra.mxu0 %v1425
        %1496 = vmatprep.subr.bf16.mxu0 %v1430
        %1497 = vmatpush1.bf16.msra.mxu0 %v1429
        %1498 = vmatprep.subr.bf16.mxu0 %v1434
        %1499 = vmatpush1.bf16.msra.mxu0 %v1433
        %1500 = vmatprep.subr.bf16.mxu0 %v1438
        %1501 = vmatpush1.bf16.msra.mxu0 %v1437
        %1502 = vmatprep.subr.bf16.mxu0 %v1442
        %1503 = vmatpush1.bf16.msra.mxu0 %v1441
        %1504 = vmatprep.subr.bf16.mxu0 %v1446
        %1505 = vmatpush1.bf16.msra.mxu0 %v1445
        %1506 = vmatprep.subr.bf16.mxu0 %v1450
        %1507 = vmatpush1.bf16.msra.mxu0 %v1449
        %1508 = vmatprep.subr.bf16.mxu0 0
        %1509 = vmatpush1.bf16.msra.mxu0 0
        %1510 = vmatprep.subr.bf16.mxu0 0
        %1511 = vmatpush1.bf16.msra.mxu0 0
        %1512 = vmatprep.subr.bf16.mxu0 0
        %1513 = vmatpush1.bf16.msra.mxu0 0
        %1514 = vmatprep.subr.bf16.mxu0 0
        %1515 = vmatpush1.bf16.msra.mxu0 0
        %1516 = vmatprep.subr.bf16.mxu0 0
        %1517 = vmatpush1.bf16.msra.mxu0 0
        %1518 = vmatprep.subr.bf16.mxu0 0
        %1519 = vmatpush1.bf16.msra.mxu0 0
        %1520 = vmatprep.subr.bf16.mxu0 0
        %1521 = vmatpush1.bf16.msra.mxu0 0
        %1522 = vmatprep.subr.bf16.mxu0 0
        %1523 = vmatpush1.bf16.msra.mxu0 0
        %1524 = vmatprep.mubr.bf16.mxu0 0
        %1525 = vmatmul.mubr.bf16.gmra.mrb[0].mxu0 %v1418
        %v1526 = vpop.f32.mrb[0].mxu0
        %v1527 = vadd.f32 0.0, %v1526
        %v1528 = vpop.f32.mrb[0].mxu0
        %v1529 = vadd.f32 0.0, %v1528
        %v1530 = vpop.f32.mrb[0].mxu0
        %v1531 = vpop.f32.mrb[0].mxu0
        %1532 = vdwg.mxu0
        %v1533 = vadd.f32 %v1414, %v1486
        %v1534 = vadd.f32 %v1415, %v1488
        %v1535 = vadd.f32 %v1416, %v1527
        %v1536 = vadd.f32 %v1417, %v1529
        %v1537 = vxor.u32 %v1533, 2147483648
        %v1538 = vmul.f32 %v1537, 1.442695
        %v1539 = vpow.pop %v1538
        %v1540 = vadd.f32 %v1539, 1.0
        %v1541 = vrcp.pop %v1540
        %v1542 = vmul.f32 1.0, %v1541
        %v1543 = vxor.u32 %v1534, 2147483648
        %v1544 = vmul.f32 %v1543, 1.442695
        %v1545 = vpow.pop %v1544
        %v1546 = vadd.f32 %v1545, 1.0
        %v1547 = vrcp.pop %v1546
        %v1548 = vmul.f32 1.0, %v1547
        %v1549 = vtanh.pop %v1535
        %v1550 = vxor.u32 %v1536, 2147483648
        %v1551 = vmul.f32 %v1550, 1.442695
        %v1552 = vpow.pop %v1551
        %v1553 = vadd.f32 %v1552, 1.0
        %v1554 = vrcp.pop %v1553
        %v1555 = vmul.f32 1.0, %v1554
        %v1556 = vmul.f32 %v1548, %v1404
        %v1557 = vmul.f32 %v1542, %v1549
        %v1558 = vadd.f32 %v1556, %v1557
        %v1559 = vtanh.pop %v1558
        %v1560 = vmul.f32 %v1555, %v1559
        %s1561 = smul.u32 %s1410, 8
        %s1562 = scalar_lea.vmem %s239, %s1561 [#allocation6]
        %1563 = vst [vmem:[%s1562] sm:$0xff] %v1560
        %s1564 = scalar_select %p794, 5, 2
        %s1565 = smul.u32 %s1564, 4
        %s1566 = smul.addr %s1565, 8
        %s1567 = scalar_lea.vmem [#allocation2], %s1566
        %v1568 = vld [vmem:[%s1567] sm:$0xff]
        %v1569 = vld [vmem:[%s1567 + $0x8] sm:$0xff]
        %v1570 = vld [vmem:[%s1567 + $0x10] sm:$0xff]
        %v1571 = vld [vmem:[%s1567 + $0x18] sm:$0xff]
        %v1572 = vpack.c.bf16 %v1560, %v1560
        %v1573 = vld [vmem:[#allocation3] sm:$0xff]
        %v1574 = vld [vmem:[#allocation3 + $0x8] sm:$0xff]
        %v1575 = vld [vmem:[#allocation3 + $0x10] sm:$0xff]
        %v1576 = vld [vmem:[#allocation3 + $0x18] sm:$0xff]
        %v1577 = vld [vmem:[#allocation3 + $0x20] sm:$0xff]
        %v1578 = vld [vmem:[#allocation3 + $0x28] sm:$0xff]
        %v1579 = vld [vmem:[#allocation3 + $0x30] sm:$0xff]
        %v1580 = vld [vmem:[#allocation3 + $0x38] sm:$0xff]
        %v1581 = vld [vmem:[#allocation3 + $0x40] sm:$0xff]
        %v1582 = vld [vmem:[#allocation3 + $0x48] sm:$0xff]
        %v1583 = vld [vmem:[#allocation3 + $0x50] sm:$0xff]
        %v1584 = vld [vmem:[#allocation3 + $0x58] sm:$0xff]
        %v1585 = vld [vmem:[#allocation3 + $0x60] sm:$0xff]
        %v1586 = vld [vmem:[#allocation3 + $0x68] sm:$0xff]
        %v1587 = vld [vmem:[#allocation3 + $0x70] sm:$0xff]
        %v1588 = vld [vmem:[#allocation3 + $0x78] sm:$0xff]
        %v1589 = vld [vmem:[#allocation3 + $0x80] sm:$0xff]
        %v1590 = vld [vmem:[#allocation3 + $0x88] sm:$0xff]
        %v1591 = vld [vmem:[#allocation3 + $0x90] sm:$0xff]
        %v1592 = vld [vmem:[#allocation3 + $0x98] sm:$0xff]
        %v1593 = vld [vmem:[#allocation3 + $0xa0] sm:$0xff]
        %v1594 = vld [vmem:[#allocation3 + $0xa8] sm:$0xff]
        %v1595 = vld [vmem:[#allocation3 + $0xb0] sm:$0xff]
        %v1596 = vld [vmem:[#allocation3 + $0xb8] sm:$0xff]
        %v1597 = vld [vmem:[#allocation3 + $0xc0] sm:$0xff]
        %v1598 = vld [vmem:[#allocation3 + $0xc8] sm:$0xff]
        %v1599 = vld [vmem:[#allocation3 + $0xd0] sm:$0xff]
        %v1600 = vld [vmem:[#allocation3 + $0xd8] sm:$0xff]
        %v1601 = vld [vmem:[#allocation3 + $0xe0] sm:$0xff]
        %v1602 = vld [vmem:[#allocation3 + $0xe8] sm:$0xff]
        %v1603 = vld [vmem:[#allocation3 + $0xf0] sm:$0xff]
        %v1604 = vld [vmem:[#allocation3 + $0xf8] sm:$0xff]
        %1605 = vmatprep.subr.bf16.mxu0 %v1574
        %1606 = vmatpush1.bf16.msra.mxu0 %v1573
        %1607 = vmatprep.subr.bf16.mxu0 %v1578
        %1608 = vmatpush1.bf16.msra.mxu0 %v1577
        %1609 = vmatprep.subr.bf16.mxu0 %v1582
        %1610 = vmatpush1.bf16.msra.mxu0 %v1581
        %1611 = vmatprep.subr.bf16.mxu0 %v1586
        %1612 = vmatpush1.bf16.msra.mxu0 %v1585
        %1613 = vmatprep.subr.bf16.mxu0 %v1590
        %1614 = vmatpush1.bf16.msra.mxu0 %v1589
        %1615 = vmatprep.subr.bf16.mxu0 %v1594
        %1616 = vmatpush1.bf16.msra.mxu0 %v1593
        %1617 = vmatprep.subr.bf16.mxu0 %v1598
        %1618 = vmatpush1.bf16.msra.mxu0 %v1597
        %1619 = vmatprep.subr.bf16.mxu0 %v1602
        %1620 = vmatpush1.bf16.msra.mxu0 %v1601
        %1621 = vmatprep.subr.bf16.mxu0 0
        %1622 = vmatpush1.bf16.msra.mxu0 0
        %1623 = vmatprep.subr.bf16.mxu0 0
        %1624 = vmatpush1.bf16.msra.mxu0 0
        %1625 = vmatprep.subr.bf16.mxu0 0
        %1626 = vmatpush1.bf16.msra.mxu0 0
        %1627 = vmatprep.subr.bf16.mxu0 0
        %1628 = vmatpush1.bf16.msra.mxu0 0
        %1629 = vmatprep.subr.bf16.mxu0 0
        %1630 = vmatpush1.bf16.msra.mxu0 0
        %1631 = vmatprep.subr.bf16.mxu0 0
        %1632 = vmatpush1.bf16.msra.mxu0 0
        %1633 = vmatprep.subr.bf16.mxu0 0
        %1634 = vmatpush1.bf16.msra.mxu0 0
        %1635 = vmatprep.subr.bf16.mxu0 0
        %1636 = vmatpush1.bf16.msra.mxu0 0
        %1637 = vmatprep.mubr.bf16.mxu0 0
        %1638 = vmatmul.mubr.bf16.gmra.mrb[0].mxu0 %v1572
        %v1639 = vpop.f32.mrb[0].mxu0
        %v1640 = vadd.f32 0.0, %v1639
        %v1641 = vpop.f32.mrb[0].mxu0
        %v1642 = vadd.f32 0.0, %v1641
        %v1643 = vpop.f32.mrb[0].mxu0
        %v1644 = vpop.f32.mrb[0].mxu0
        %1645 = vdwg.mxu0
        %1646 = vmatprep.subr.bf16.mxu0 %v1576
        %1647 = vmatpush1.bf16.msra.mxu0 %v1575
        %1648 = vmatprep.subr.bf16.mxu0 %v1580
        %1649 = vmatpush1.bf16.msra.mxu0 %v1579
        %1650 = vmatprep.subr.bf16.mxu0 %v1584
        %1651 = vmatpush1.bf16.msra.mxu0 %v1583
        %1652 = vmatprep.subr.bf16.mxu0 %v1588
        %1653 = vmatpush1.bf16.msra.mxu0 %v1587
        %1654 = vmatprep.subr.bf16.mxu0 %v1592
        %1655 = vmatpush1.bf16.msra.mxu0 %v1591
        %1656 = vmatprep.subr.bf16.mxu0 %v1596
        %1657 = vmatpush1.bf16.msra.mxu0 %v1595
        %1658 = vmatprep.subr.bf16.mxu0 %v1600
        %1659 = vmatpush1.bf16.msra.mxu0 %v1599
        %1660 = vmatprep.subr.bf16.mxu0 %v1604
        %1661 = vmatpush1.bf16.msra.mxu0 %v1603
        %1662 = vmatprep.subr.bf16.mxu0 0
        %1663 = vmatpush1.bf16.msra.mxu0 0
        %1664 = vmatprep.subr.bf16.mxu0 0
        %1665 = vmatpush1.bf16.msra.mxu0 0
        %1666 = vmatprep.subr.bf16.mxu0 0
        %1667 = vmatpush1.bf16.msra.mxu0 0
        %1668 = vmatprep.subr.bf16.mxu0 0
        %1669 = vmatpush1.bf16.msra.mxu0 0
        %1670 = vmatprep.subr.bf16.mxu0 0
        %1671 = vmatpush1.bf16.msra.mxu0 0
        %1672 = vmatprep.subr.bf16.mxu0 0
        %1673 = vmatpush1.bf16.msra.mxu0 0
        %1674 = vmatprep.subr.bf16.mxu0 0
        %1675 = vmatpush1.bf16.msra.mxu0 0
        %1676 = vmatprep.subr.bf16.mxu0 0
        %1677 = vmatpush1.bf16.msra.mxu0 0
        %1678 = vmatprep.mubr.bf16.mxu0 0
        %1679 = vmatmul.mubr.bf16.gmra.mrb[0].mxu0 %v1572
        %v1680 = vpop.f32.mrb[0].mxu0
        %v1681 = vadd.f32 0.0, %v1680
        %v1682 = vpop.f32.mrb[0].mxu0
        %v1683 = vadd.f32 0.0, %v1682
        %v1684 = vpop.f32.mrb[0].mxu0
        %v1685 = vpop.f32.mrb[0].mxu0
        %1686 = vdwg.mxu0
        %v1687 = vadd.f32 %v1568, %v1640
        %v1688 = vadd.f32 %v1569, %v1642
        %v1689 = vadd.f32 %v1570, %v1681
        %v1690 = vadd.f32 %v1571, %v1683
        %v1691 = vxor.u32 %v1687, 2147483648
        %v1692 = vmul.f32 %v1691, 1.442695
        %v1693 = vpow.pop %v1692
        %v1694 = vadd.f32 %v1693, 1.0
        %v1695 = vrcp.pop %v1694
        %v1696 = vmul.f32 1.0, %v1695
        %v1697 = vxor.u32 %v1688, 2147483648
        %v1698 = vmul.f32 %v1697, 1.442695
        %v1699 = vpow.pop %v1698
        %v1700 = vadd.f32 %v1699, 1.0
        %v1701 = vrcp.pop %v1700
        %v1702 = vmul.f32 1.0, %v1701
        %v1703 = vtanh.pop %v1689
        %v1704 = vxor.u32 %v1690, 2147483648
        %v1705 = vmul.f32 %v1704, 1.442695
        %v1706 = vpow.pop %v1705
        %v1707 = vadd.f32 %v1706, 1.0
        %v1708 = vrcp.pop %v1707
        %v1709 = vmul.f32 1.0, %v1708
        %v1710 = vmul.f32 %v1702, %v1558
        %v1711 = vmul.f32 %v1696, %v1703
        %v1712 = vadd.f32 %v1710, %v1711
        %v1713 = vtanh.pop %v1712
        %v1714 = vmul.f32 %v1709, %v1713
        %s1715 = smul.u32 %s1564, 8
        %s1716 = scalar_lea.vmem %s239, %s1715 [#allocation6]
        %1717 = vst [vmem:[%s1716] sm:$0xff] %v1714
        %s1718 = scalar_select %p794, 6, 1
        %s1719 = smul.u32 %s1718, 4
        %s1720 = smul.addr %s1719, 8
        %s1721 = scalar_lea.vmem [#allocation2], %s1720
        %v1722 = vld [vmem:[%s1721] sm:$0xff]
        %v1723 = vld [vmem:[%s1721 + $0x8] sm:$0xff]
        %v1724 = vld [vmem:[%s1721 + $0x10] sm:$0xff]
        %v1725 = vld [vmem:[%s1721 + $0x18] sm:$0xff]
        %v1726 = vpack.c.bf16 %v1714, %v1714
        %v1727 = vld [vmem:[#allocation3] sm:$0xff]
        %v1728 = vld [vmem:[#allocation3 + $0x8] sm:$0xff]
        %v1729 = vld [vmem:[#allocation3 + $0x10] sm:$0xff]
        %v1730 = vld [vmem:[#allocation3 + $0x18] sm:$0xff]
        %v1731 = vld [vmem:[#allocation3 + $0x20] sm:$0xff]
        %v1732 = vld [vmem:[#allocation3 + $0x28] sm:$0xff]
        %v1733 = vld [vmem:[#allocation3 + $0x30] sm:$0xff]
        %v1734 = vld [vmem:[#allocation3 + $0x38] sm:$0xff]
        %v1735 = vld [vmem:[#allocation3 + $0x40] sm:$0xff]
        %v1736 = vld [vmem:[#allocation3 + $0x48] sm:$0xff]
        %v1737 = vld [vmem:[#allocation3 + $0x50] sm:$0xff]
        %v1738 = vld [vmem:[#allocation3 + $0x58] sm:$0xff]
        %v1739 = vld [vmem:[#allocation3 + $0x60] sm:$0xff]
        %v1740 = vld [vmem:[#allocation3 + $0x68] sm:$0xff]
        %v1741 = vld [vmem:[#allocation3 + $0x70] sm:$0xff]
        %v1742 = vld [vmem:[#allocation3 + $0x78] sm:$0xff]
        %v1743 = vld [vmem:[#allocation3 + $0x80] sm:$0xff]
        %v1744 = vld [vmem:[#allocation3 + $0x88] sm:$0xff]
        %v1745 = vld [vmem:[#allocation3 + $0x90] sm:$0xff]
        %v1746 = vld [vmem:[#allocation3 + $0x98] sm:$0xff]
        %v1747 = vld [vmem:[#allocation3 + $0xa0] sm:$0xff]
        %v1748 = vld [vmem:[#allocation3 + $0xa8] sm:$0xff]
        %v1749 = vld [vmem:[#allocation3 + $0xb0] sm:$0xff]
        %v1750 = vld [vmem:[#allocation3 + $0xb8] sm:$0xff]
        %v1751 = vld [vmem:[#allocation3 + $0xc0] sm:$0xff]
        %v1752 = vld [vmem:[#allocation3 + $0xc8] sm:$0xff]
        %v1753 = vld [vmem:[#allocation3 + $0xd0] sm:$0xff]
        %v1754 = vld [vmem:[#allocation3 + $0xd8] sm:$0xff]
        %v1755 = vld [vmem:[#allocation3 + $0xe0] sm:$0xff]
        %v1756 = vld [vmem:[#allocation3 + $0xe8] sm:$0xff]
        %v1757 = vld [vmem:[#allocation3 + $0xf0] sm:$0xff]
        %v1758 = vld [vmem:[#allocation3 + $0xf8] sm:$0xff]
        %1759 = vmatprep.subr.bf16.mxu0 %v1728
        %1760 = vmatpush1.bf16.msra.mxu0 %v1727
        %1761 = vmatprep.subr.bf16.mxu0 %v1732
        %1762 = vmatpush1.bf16.msra.mxu0 %v1731
        %1763 = vmatprep.subr.bf16.mxu0 %v1736
        %1764 = vmatpush1.bf16.msra.mxu0 %v1735
        %1765 = vmatprep.subr.bf16.mxu0 %v1740
        %1766 = vmatpush1.bf16.msra.mxu0 %v1739
        %1767 = vmatprep.subr.bf16.mxu0 %v1744
        %1768 = vmatpush1.bf16.msra.mxu0 %v1743
        %1769 = vmatprep.subr.bf16.mxu0 %v1748
        %1770 = vmatpush1.bf16.msra.mxu0 %v1747
        %1771 = vmatprep.subr.bf16.mxu0 %v1752
        %1772 = vmatpush1.bf16.msra.mxu0 %v1751
        %1773 = vmatprep.subr.bf16.mxu0 %v1756
        %1774 = vmatpush1.bf16.msra.mxu0 %v1755
        %1775 = vmatprep.subr.bf16.mxu0 0
        %1776 = vmatpush1.bf16.msra.mxu0 0
        %1777 = vmatprep.subr.bf16.mxu0 0
        %1778 = vmatpush1.bf16.msra.mxu0 0
        %1779 = vmatprep.subr.bf16.mxu0 0
        %1780 = vmatpush1.bf16.msra.mxu0 0
        %1781 = vmatprep.subr.bf16.mxu0 0
        %1782 = vmatpush1.bf16.msra.mxu0 0
        %1783 = vmatprep.subr.bf16.mxu0 0
        %1784 = vmatpush1.bf16.msra.mxu0 0
        %1785 = vmatprep.subr.bf16.mxu0 0
        %1786 = vmatpush1.bf16.msra.mxu0 0
        %1787 = vmatprep.subr.bf16.mxu0 0
        %1788 = vmatpush1.bf16.msra.mxu0 0
        %1789 = vmatprep.subr.bf16.mxu0 0
        %1790 = vmatpush1.bf16.msra.mxu0 0
        %1791 = vmatprep.mubr.bf16.mxu0 0
        %1792 = vmatmul.mubr.bf16.gmra.mrb[0].mxu0 %v1726
        %v1793 = vpop.f32.mrb[0].mxu0
        %v1794 = vadd.f32 0.0, %v1793
        %v1795 = vpop.f32.mrb[0].mxu0
        %v1796 = vadd.f32 0.0, %v1795
        %v1797 = vpop.f32.mrb[0].mxu0
        %v1798 = vpop.f32.mrb[0].mxu0
        %1799 = vdwg.mxu0
        %1800 = vmatprep.subr.bf16.mxu0 %v1730
        %1801 = vmatpush1.bf16.msra.mxu0 %v1729
        %1802 = vmatprep.subr.bf16.mxu0 %v1734
        %1803 = vmatpush1.bf16.msra.mxu0 %v1733
        %1804 = vmatprep.subr.bf16.mxu0 %v1738
        %1805 = vmatpush1.bf16.msra.mxu0 %v1737
        %1806 = vmatprep.subr.bf16.mxu0 %v1742
        %1807 = vmatpush1.bf16.msra.mxu0 %v1741
        %1808 = vmatprep.subr.bf16.mxu0 %v1746
        %1809 = vmatpush1.bf16.msra.mxu0 %v1745
        %1810 = vmatprep.subr.bf16.mxu0 %v1750
        %1811 = vmatpush1.bf16.msra.mxu0 %v1749
        %1812 = vmatprep.subr.bf16.mxu0 %v1754
        %1813 = vmatpush1.bf16.msra.mxu0 %v1753
        %1814 = vmatprep.subr.bf16.mxu0 %v1758
        %1815 = vmatpush1.bf16.msra.mxu0 %v1757
        %1816 = vmatprep.subr.bf16.mxu0 0
        %1817 = vmatpush1.bf16.msra.mxu0 0
        %1818 = vmatprep.subr.bf16.mxu0 0
        %1819 = vmatpush1.bf16.msra.mxu0 0
        %1820 = vmatprep.subr.bf16.mxu0 0
        %1821 = vmatpush1.bf16.msra.mxu0 0
        %1822 = vmatprep.subr.bf16.mxu0 0
        %1823 = vmatpush1.bf16.msra.mxu0 0
        %1824 = vmatprep.subr.bf16.mxu0 0
        %1825 = vmatpush1.bf16.msra.mxu0 0
        %1826 = vmatprep.subr.bf16.mxu0 0
        %1827 = vmatpush1.bf16.msra.mxu0 0
        %1828 = vmatprep.subr.bf16.mxu0 0
        %1829 = vmatpush1.bf16.msra.mxu0 0
        %1830 = vmatprep.subr.bf16.mxu0 0
        %1831 = vmatpush1.bf16.msra.mxu0 0
        %1832 = vmatprep.mubr.bf16.mxu0 0
        %1833 = vmatmul.mubr.bf16.gmra.mrb[0].mxu0 %v1726
        %v1834 = vpop.f32.mrb[0].mxu0
        %v1835 = vadd.f32 0.0, %v1834
        %v1836 = vpop.f32.mrb[0].mxu0
        %v1837 = vadd.f32 0.0, %v1836
        %v1838 = vpop.f32.mrb[0].mxu0
        %v1839 = vpop.f32.mrb[0].mxu0
        %1840 = vdwg.mxu0
        %v1841 = vadd.f32 %v1722, %v1794
        %v1842 = vadd.f32 %v1723, %v1796
        %v1843 = vadd.f32 %v1724, %v1835
        %v1844 = vadd.f32 %v1725, %v1837
        %v1845 = vxor.u32 %v1841, 2147483648
        %v1846 = vmul.f32 %v1845, 1.442695
        %v1847 = vpow.pop %v1846
        %v1848 = vadd.f32 %v1847, 1.0
        %v1849 = vrcp.pop %v1848
        %v1850 = vmul.f32 1.0, %v1849
        %v1851 = vxor.u32 %v1842, 2147483648
        %v1852 = vmul.f32 %v1851, 1.442695
        %v1853 = vpow.pop %v1852
        %v1854 = vadd.f32 %v1853, 1.0
        %v1855 = vrcp.pop %v1854
        %v1856 = vmul.f32 1.0, %v1855
        %v1857 = vtanh.pop %v1843
        %v1858 = vxor.u32 %v1844, 2147483648
        %v1859 = vmul.f32 %v1858, 1.442695
        %v1860 = vpow.pop %v1859
        %v1861 = vadd.f32 %v1860, 1.0
        %v1862 = vrcp.pop %v1861
        %v1863 = vmul.f32 1.0, %v1862
        %v1864 = vmul.f32 %v1856, %v1712
        %v1865 = vmul.f32 %v1850, %v1857
        %v1866 = vadd.f32 %v1864, %v1865
        %v1867 = vtanh.pop %v1866
        %v1868 = vmul.f32 %v1863, %v1867
        %s1869 = smul.u32 %s1718, 8
        %s1870 = scalar_lea.vmem %s239, %s1869 [#allocation6]
        %1871 = vst [vmem:[%s1870] sm:$0xff] %v1868
        %s1872 = scalar_select %p794, 7, 0
        %s1873 = smul.u32 %s1872, 4
        %s1874 = smul.addr %s1873, 8
        %s1875 = scalar_lea.vmem [#allocation2], %s1874
        %v1876 = vld [vmem:[%s1875] sm:$0xff]
        %v1877 = vld [vmem:[%s1875 + $0x8] sm:$0xff]
        %v1878 = vld [vmem:[%s1875 + $0x10] sm:$0xff]
        %v1879 = vld [vmem:[%s1875 + $0x18] sm:$0xff]
        %v1880 = vpack.c.bf16 %v1868, %v1868
        %v1881 = vld [vmem:[#allocation3] sm:$0xff]
        %v1882 = vld [vmem:[#allocation3 + $0x8] sm:$0xff]
        %v1883 = vld [vmem:[#allocation3 + $0x10] sm:$0xff]
        %v1884 = vld [vmem:[#allocation3 + $0x18] sm:$0xff]
        %v1885 = vld [vmem:[#allocation3 + $0x20] sm:$0xff]
        %v1886 = vld [vmem:[#allocation3 + $0x28] sm:$0xff]
        %v1887 = vld [vmem:[#allocation3 + $0x30] sm:$0xff]
        %v1888 = vld [vmem:[#allocation3 + $0x38] sm:$0xff]
        %v1889 = vld [vmem:[#allocation3 + $0x40] sm:$0xff]
        %v1890 = vld [vmem:[#allocation3 + $0x48] sm:$0xff]
        %v1891 = vld [vmem:[#allocation3 + $0x50] sm:$0xff]
        %v1892 = vld [vmem:[#allocation3 + $0x58] sm:$0xff]
        %v1893 = vld [vmem:[#allocation3 + $0x60] sm:$0xff]
        %v1894 = vld [vmem:[#allocation3 + $0x68] sm:$0xff]
        %v1895 = vld [vmem:[#allocation3 + $0x70] sm:$0xff]
        %v1896 = vld [vmem:[#allocation3 + $0x78] sm:$0xff]
        %v1897 = vld [vmem:[#allocation3 + $0x80] sm:$0xff]
        %v1898 = vld [vmem:[#allocation3 + $0x88] sm:$0xff]
        %v1899 = vld [vmem:[#allocation3 + $0x90] sm:$0xff]
        %v1900 = vld [vmem:[#allocation3 + $0x98] sm:$0xff]
        %v1901 = vld [vmem:[#allocation3 + $0xa0] sm:$0xff]
        %v1902 = vld [vmem:[#allocation3 + $0xa8] sm:$0xff]
        %v1903 = vld [vmem:[#allocation3 + $0xb0] sm:$0xff]
        %v1904 = vld [vmem:[#allocation3 + $0xb8] sm:$0xff]
        %v1905 = vld [vmem:[#allocation3 + $0xc0] sm:$0xff]
        %v1906 = vld [vmem:[#allocation3 + $0xc8] sm:$0xff]
        %v1907 = vld [vmem:[#allocation3 + $0xd0] sm:$0xff]
        %v1908 = vld [vmem:[#allocation3 + $0xd8] sm:$0xff]
        %v1909 = vld [vmem:[#allocation3 + $0xe0] sm:$0xff]
        %v1910 = vld [vmem:[#allocation3 + $0xe8] sm:$0xff]
        %v1911 = vld [vmem:[#allocation3 + $0xf0] sm:$0xff]
        %v1912 = vld [vmem:[#allocation3 + $0xf8] sm:$0xff]
        %1913 = vmatprep.subr.bf16.mxu0 %v1882
        %1914 = vmatpush1.bf16.msra.mxu0 %v1881
        %1915 = vmatprep.subr.bf16.mxu0 %v1886
        %1916 = vmatpush1.bf16.msra.mxu0 %v1885
        %1917 = vmatprep.subr.bf16.mxu0 %v1890
        %1918 = vmatpush1.bf16.msra.mxu0 %v1889
        %1919 = vmatprep.subr.bf16.mxu0 %v1894
        %1920 = vmatpush1.bf16.msra.mxu0 %v1893
        %1921 = vmatprep.subr.bf16.mxu0 %v1898
        %1922 = vmatpush1.bf16.msra.mxu0 %v1897
        %1923 = vmatprep.subr.bf16.mxu0 %v1902
        %1924 = vmatpush1.bf16.msra.mxu0 %v1901
        %1925 = vmatprep.subr.bf16.mxu0 %v1906
        %1926 = vmatpush1.bf16.msra.mxu0 %v1905
        %1927 = vmatprep.subr.bf16.mxu0 %v1910
        %1928 = vmatpush1.bf16.msra.mxu0 %v1909
        %1929 = vmatprep.subr.bf16.mxu0 0
        %1930 = vmatpush1.bf16.msra.mxu0 0
        %1931 = vmatprep.subr.bf16.mxu0 0
        %1932 = vmatpush1.bf16.msra.mxu0 0
        %1933 = vmatprep.subr.bf16.mxu0 0
        %1934 = vmatpush1.bf16.msra.mxu0 0
        %1935 = vmatprep.subr.bf16.mxu0 0
        %1936 = vmatpush1.bf16.msra.mxu0 0
        %1937 = vmatprep.subr.bf16.mxu0 0
        %1938 = vmatpush1.bf16.msra.mxu0 0
        %1939 = vmatprep.subr.bf16.mxu0 0
        %1940 = vmatpush1.bf16.msra.mxu0 0
        %1941 = vmatprep.subr.bf16.mxu0 0
        %1942 = vmatpush1.bf16.msra.mxu0 0
        %1943 = vmatprep.subr.bf16.mxu0 0
        %1944 = vmatpush1.bf16.msra.mxu0 0
        %1945 = vmatprep.mubr.bf16.mxu0 0
        %1946 = vmatmul.mubr.bf16.gmra.mrb[0].mxu0 %v1880
        %v1947 = vpop.f32.mrb[0].mxu0
        %v1948 = vadd.f32 0.0, %v1947
        %v1949 = vpop.f32.mrb[0].mxu0
        %v1950 = vadd.f32 0.0, %v1949
        %v1951 = vpop.f32.mrb[0].mxu0
        %v1952 = vpop.f32.mrb[0].mxu0
        %1953 = vdwg.mxu0
        %1954 = vmatprep.subr.bf16.mxu0 %v1884
        %1955 = vmatpush1.bf16.msra.mxu0 %v1883
        %1956 = vmatprep.subr.bf16.mxu0 %v1888
        %1957 = vmatpush1.bf16.msra.mxu0 %v1887
        %1958 = vmatprep.subr.bf16.mxu0 %v1892
        %1959 = vmatpush1.bf16.msra.mxu0 %v1891
        %1960 = vmatprep.subr.bf16.mxu0 %v1896
        %1961 = vmatpush1.bf16.msra.mxu0 %v1895
        %1962 = vmatprep.subr.bf16.mxu0 %v1900
        %1963 = vmatpush1.bf16.msra.mxu0 %v1899
        %1964 = vmatprep.subr.bf16.mxu0 %v1904
        %1965 = vmatpush1.bf16.msra.mxu0 %v1903
        %1966 = vmatprep.subr.bf16.mxu0 %v1908
        %1967 = vmatpush1.bf16.msra.mxu0 %v1907
        %1968 = vmatprep.subr.bf16.mxu0 %v1912
        %1969 = vmatpush1.bf16.msra.mxu0 %v1911
        %1970 = vmatprep.subr.bf16.mxu0 0
        %1971 = vmatpush1.bf16.msra.mxu0 0
        %1972 = vmatprep.subr.bf16.mxu0 0
        %1973 = vmatpush1.bf16.msra.mxu0 0
        %1974 = vmatprep.subr.bf16.mxu0 0
        %1975 = vmatpush1.bf16.msra.mxu0 0
        %1976 = vmatprep.subr.bf16.mxu0 0
        %1977 = vmatpush1.bf16.msra.mxu0 0
        %1978 = vmatprep.subr.bf16.mxu0 0
        %1979 = vmatpush1.bf16.msra.mxu0 0
        %1980 = vmatprep.subr.bf16.mxu0 0
        %1981 = vmatpush1.bf16.msra.mxu0 0
        %1982 = vmatprep.subr.bf16.mxu0 0
        %1983 = vmatpush1.bf16.msra.mxu0 0
        %1984 = vmatprep.subr.bf16.mxu0 0
        %1985 = vmatpush1.bf16.msra.mxu0 0
        %1986 = vmatprep.mubr.bf16.mxu0 0
        %1987 = vmatmul.mubr.bf16.gmra.mrb[0].mxu0 %v1880
        %v1988 = vpop.f32.mrb[0].mxu0
        %v1989 = vadd.f32 0.0, %v1988
        %v1990 = vpop.f32.mrb[0].mxu0
        %v1991 = vadd.f32 0.0, %v1990
        %v1992 = vpop.f32.mrb[0].mxu0
        %v1993 = vpop.f32.mrb[0].mxu0
        %1994 = vdwg.mxu0
        %v1995 = vadd.f32 %v1876, %v1948
        %v1996 = vadd.f32 %v1877, %v1950
        %v1997 = vadd.f32 %v1878, %v1989
        %v1998 = vadd.f32 %v1879, %v1991
        %v1999 = vxor.u32 %v1995, 2147483648
        %v2000 = vmul.f32 %v1999, 1.442695
        %v2001 = vpow.pop %v2000
        %v2002 = vadd.f32 %v2001, 1.0
        %v2003 = vrcp.pop %v2002
        %v2004 = vmul.f32 1.0, %v2003
        %v2005 = vxor.u32 %v1996, 2147483648
        %v2006 = vmul.f32 %v2005, 1.442695
        %v2007 = vpow.pop %v2006
        %v2008 = vadd.f32 %v2007, 1.0
        %v2009 = vrcp.pop %v2008
        %v2010 = vmul.f32 1.0, %v2009
        %v2011 = vtanh.pop %v1997
        %v2012 = vxor.u32 %v1998, 2147483648
        %v2013 = vmul.f32 %v2012, 1.442695
        %v2014 = vpow.pop %v2013
        %v2015 = vadd.f32 %v2014, 1.0
        %v2016 = vrcp.pop %v2015
        %v2017 = vmul.f32 1.0, %v2016
        %v2018 = vmul.f32 %v2010, %v1866
        %v2019 = vmul.f32 %v2004, %v2011
        %v2020 = vadd.f32 %v2018, %v2019
        %v2021 = vtanh.pop %v2020
        %v2022 = vmul.f32 %v2017, %v2021
        %s2023 = smul.u32 %s1872, 8
        %s2024 = scalar_lea.vmem %s239, %s2023 [#allocation6]
        %2025 = vst [vmem:[%s2024] sm:$0xff] %v2022
        %s2026 = sand.u32 %s125, 1
        %s2027 = sand.u32 %s125, 1
        %s2028 = smul.addr %s2027, 64
        %s2029 = scalar_lea.vmem [#allocation6], %s2028
        // Predicated region
        $region41: #{critic_classifier_forward.5} parent=35 // pred_check
          %p2030 = pneg %p135
        $region42: #{critic_classifier_forward.5} parent=35 // pred_check_branch
          %2032 = sbr.rel (%p2030) target = $region44
        $region43: #{critic_classifier_forward.5} parent=35 // pred_region
          %s2033 = smul.addr %s18, 8
          %s2034 = scalar_lea.vmem %s4, %s2033
          // Predicated region
          $region45: #{critic_classifier_forward.5} parent=43 // pred_check
            _
          $region46: #{critic_classifier_forward.5} parent=43 // pred_check_branch
            %2036 = sbr.rel (0) target = $region48
          $region47: #{critic_classifier_forward.5} parent=43 // pred_region
            // Predicated region
            $region49: #{critic_classifier_forward.5} parent=47 // pred_check
              _
            $region50: #{critic_classifier_forward.5} parent=47 // pred_check_branch
              %2038 = sbr.rel (0) target = $region52
            $region51: #{critic_classifier_forward.5} parent=47 // pred_region
              // Predicated region
              $region64: #{critic_classifier_forward.5} parent=51 // pred_check
                _
              $region65: #{critic_classifier_forward.5} parent=51 // pred_check_branch
                %2067 = sbr.rel (0) target = $region67
              $region66: #{critic_classifier_forward.5} parent=51 // pred_region
                loop: start=0, step=1, limit=1
                $region68: #{critic_classifier_forward.5} parent=66 // loop_pre_header
                  _
                $region69: #{critic_classifier_forward.5} parent=66 // loop_header
                  %s2069 = sphi 0, %s2073
                  %p2070 = scmp.ge.s32.totalorder %s2069, 1
                  %s2074 = sphi %s2029, %s2029
                  %s2075 = sphi %s2034, %s2034
                $region70: #{critic_classifier_forward.5} parent=66 // loop_header_branch
                  %2072 = sbr.rel (%p2070) target = $region74
                $region71: #{critic_classifier_forward.5} parent=66 // loop_body
                  %v2076 = vld [vmem:[%s2074] sm:$0xff]
                  %2077 = vst [vmem:[%s2075] sm:$0xff] %v2076
                  %v2078 = vld [vmem:[%s2074 + $0x8] sm:$0xff]
                  %2079 = vst [vmem:[%s2075 + $0x10] sm:$0xff] %v2078
                  %v2080 = vld [vmem:[%s2074 + $0x10] sm:$0xff]
                  %2081 = vst [vmem:[%s2075 + $0x20] sm:$0xff] %v2080
                  %v2082 = vld [vmem:[%s2074 + $0x18] sm:$0xff]
                  %2083 = vst [vmem:[%s2075 + $0x30] sm:$0xff] %v2082
                  %v2084 = vld [vmem:[%s2074 + $0x20] sm:$0xff]
                  %2085 = vst [vmem:[%s2075 + $0x40] sm:$0xff] %v2084
                  %v2086 = vld [vmem:[%s2074 + $0x28] sm:$0xff]
                  %2087 = vst [vmem:[%s2075 + $0x50] sm:$0xff] %v2086
                  %v2088 = vld [vmem:[%s2074 + $0x30] sm:$0xff]
                  %2089 = vst [vmem:[%s2075 + $0x60] sm:$0xff] %v2088
                  %v2090 = vld [vmem:[%s2074 + $0x38] sm:$0xff]
                  %2091 = vst [vmem:[%s2075 + $0x70] sm:$0xff] %v2090
                $region72: #{critic_classifier_forward.5} parent=66 // loop_footer
                  %s2073 = sadd.s32 1, %s2069
                $region73: #{critic_classifier_forward.5} parent=66 // loop_footer_branch
                  %2068 = sbr.rel target = $region69
                $region74: #{critic_classifier_forward.5} parent=66 // loop_exit
                  _
              $region67: #{critic_classifier_forward.5} parent=51 // pred_fallthru
                _
              // Predicated region
              $region75: #{critic_classifier_forward.5} parent=51 // pred_check
                _
              $region76: #{critic_classifier_forward.5} parent=51 // pred_check_branch
                %2093 = sbr.rel target = $region78
              $region77: #{critic_classifier_forward.5} parent=51 // pred_region
                _
              $region78: #{critic_classifier_forward.5} parent=51 // pred_fallthru
                _
            $region52: #{critic_classifier_forward.5} parent=47 // pred_fallthru
              _
            // Predicated region
            $region53: #{critic_classifier_forward.5} parent=47 // pred_check
              _
            $region54: #{critic_classifier_forward.5} parent=47 // pred_check_branch
              %2040 = sbr.rel target = $region56
            $region55: #{critic_classifier_forward.5} parent=47 // pred_region
              loop: start=0, step=1, limit=1
              $region57: #{critic_classifier_forward.5} parent=55 // loop_pre_header
                _
              $region58: #{critic_classifier_forward.5} parent=55 // loop_header
                %s2043 = sphi 0, %s2047
                %p2044 = scmp.ge.s32.totalorder %s2043, 1
                %s2048 = sphi %s2029, %s2029
                %s2049 = sphi %s2034, %s2034
              $region59: #{critic_classifier_forward.5} parent=55 // loop_header_branch
                %2046 = sbr.rel (%p2044) target = $region63
              $region60: #{critic_classifier_forward.5} parent=55 // loop_body
                %v2050 = vld [vmem:[%s2048] sm:$0xff]
                %2051 = vst [vmem:[%s2049] sm:$0xff] %v2050
                %v2052 = vld [vmem:[%s2048 + $0x8] sm:$0xff]
                %2053 = vst [vmem:[%s2049 + $0x10] sm:$0xff] %v2052
                %v2054 = vld [vmem:[%s2048 + $0x10] sm:$0xff]
                %2055 = vst [vmem:[%s2049 + $0x20] sm:$0xff] %v2054
                %v2056 = vld [vmem:[%s2048 + $0x18] sm:$0xff]
                %2057 = vst [vmem:[%s2049 + $0x30] sm:$0xff] %v2056
                %v2058 = vld [vmem:[%s2048 + $0x20] sm:$0xff]
                %2059 = vst [vmem:[%s2049 + $0x40] sm:$0xff] %v2058
                %v2060 = vld [vmem:[%s2048 + $0x28] sm:$0xff]
                %2061 = vst [vmem:[%s2049 + $0x50] sm:$0xff] %v2060
                %v2062 = vld [vmem:[%s2048 + $0x30] sm:$0xff]
                %2063 = vst [vmem:[%s2049 + $0x60] sm:$0xff] %v2062
                %v2064 = vld [vmem:[%s2048 + $0x38] sm:$0xff]
                %2065 = vst [vmem:[%s2049 + $0x70] sm:$0xff] %v2064
              $region61: #{critic_classifier_forward.5} parent=55 // loop_footer
                %s2047 = sadd.s32 1, %s2043
              $region62: #{critic_classifier_forward.5} parent=55 // loop_footer_branch
                %2042 = sbr.rel target = $region58
              $region63: #{critic_classifier_forward.5} parent=55 // loop_exit
                _
            $region56: #{critic_classifier_forward.5} parent=47 // pred_fallthru
              _
          $region48: #{critic_classifier_forward.5} parent=43 // pred_fallthru
            _
          %2094 = vnop
        $region44: #{critic_classifier_forward.5} parent=35 // pred_fallthru
          _
      $region36: #{critic_classifier_forward.5} parent=5 // pred_fallthru
        _
      %p2095 = scmp.le.s32.totalorder 2, %s13
      // Predicated region
      $region79: #{critic_classifier_forward.5} parent=5 // pred_check
        %p2096 = pneg %p2095
      $region80: #{critic_classifier_forward.5} parent=5 // pred_check_branch
        %2098 = sbr.rel (%p2096) target = $region82
      $region81: #{critic_classifier_forward.5} parent=5 // pred_region
        %s2099 = ssub.s32 %s13, 2
        // Predicated region
        $region83: #{critic_classifier_forward.5} parent=81 // pred_check
          %p2100 = pneg %p141
        $region84: #{critic_classifier_forward.5} parent=81 // pred_check_branch
          %2102 = sbr.rel (%p2100) target = $region86
        $region85: #{critic_classifier_forward.5} parent=81 // pred_region
          %s2103 = sand.u32 %s126, 1
          %s2104 = sand.u32 %s126, 1
          %s2105 = smul.addr %s2104, 64
          %s2106 = scalar_lea.vmem [#allocation6], %s2105
        $region86: #{critic_classifier_forward.5} parent=81 // pred_fallthru
          _
      $region82: #{critic_classifier_forward.5} parent=5 // pred_fallthru
        _
    $region6: #{critic_classifier_forward.5} parent=1 // loop_footer
      %s17 = sadd.s32 1, %s13
    $region7: #{critic_classifier_forward.5} parent=1 // loop_footer_branch
      %12 = sbr.rel target = $region3
    $region8: #{critic_classifier_forward.5} parent=1 // loop_exit
      _
    %2107 = vsyncpa [#allocation5], 1
    %s2108 = scalar_lea.sflag [#allocation5], 1
    %2109 = vsyncpa %s2108, 1

</llo_original>
